<compile_context>
chip_gen: v5e
topology: v5e:2x2
jax: 0.10.0
libtpu: 0.0.40
codegen_flags: <defaults>
</compile_context>

<pallas_src>
import functools

import jax
import jax.numpy as jnp
from jax.experimental import pallas as pl
from jax.experimental.pallas import tpu as pltpu

CP = 128                       # lane-dense OUTPUT channel width between layers
_BN_EPS = 1e-5
_TM_MAX = 1024                 # max rows per M tile (A tile <= TM*KKC*2B ~2.3 MiB)
_COMPUTE_DTYPE = jnp.bfloat16
_DOWN_STRIDES = (2, 1)         # every RestNetDownBlock in the reference uses [2, 1]


def _round_up(x, m):
    return (x + m - 1) // m * m


def _cin_p(c):
    """Contraction channel count: true channels rounded to 16 (bf16 sublanes),
    NOT padded to 128 lanes."""
    return _round_up(c, 16)


# ------------------------------ Pallas kernel ------------------------------- #

def _fused_conv_kernel(a_ref, w_ref, ss_ref, *rest, relu_flags, has_res):
    """One M-tile of: split_g( relu_g( (A @ W) * scale + shift [+ residual] ) )."""
    if has_res:
        res_ref, outs = rest[0], rest[1:]
    else:
        res_ref, outs = None, rest

    acc = jnp.dot(a_ref[...], w_ref[...], preferred_element_type=jnp.float32)
    y = acc * ss_ref[0:1, :] + ss_ref[1:2, :]          # folded bias + BatchNorm
    if has_res:
        y = y + res_ref[...].astype(jnp.float32)

    off = 0
    for o_ref, do_relu in zip(outs, relu_flags):
        c = o_ref.shape[-1]
        yg = y[:, off:off + c]                          # lane-aligned static slice
        if do_relu:
            yg = jnp.maximum(yg, 0.0)
        o_ref[...] = yg.astype(o_ref.dtype)
        off += c


def fused_conv(x, w, ss, *, stride, padding, relu_flags, residual=None):
    """Fused conv2d + folded BN(+bias) [+ residual] + per-group ReLU.

    x        : [N, H, W, Cin]  bf16 NHWC (Cin may exceed or fall short of the
               weight's cin_p; it is sliced / zero-padded to cin_p here)
    w        : [KH, KW, cin_p, Ctot] bf16, Ctot = len(relu_flags) * CP
    ss       : [2, Ctot] f32 -- row0 = scale, row1 = shift
    residual : optional [N, Ho, Wo, CP] bf16 added before ReLU (single group)
    returns  : list of len(relu_flags) arrays [N, Ho, Wo, CP] bf16
    """
    N, H, W_, Cin = x.shape
    KH, KW, cin_p, Ctot = w.shape
    n_out = len(relu_flags)
    assert Ctot == n_out * CP

    # Contract only over the true (16-rounded) input channels: drop the 128-lane
    # padding carried by the activation, or pad up (conv1: 3 -> 16).
    if Cin > cin_p:
        x = x[..., :cin_p]
    elif Cin < cin_p:
        x = jnp.pad(x, ((0, 0), (0, 0), (0, 0), (0, cin_p - Cin)))

    Ho = (H + 2 * padding - KH) // stride + 1
    Wo = (W_ + 2 * padding - KW) // stride + 1
    M = N * Ho * Wo
    KKC = KH * KW * cin_p

    # im2col (XLA glue, bf16): [M, KKC]; (kh, kw) outer, channel inner, matching
    # w.reshape(KKC, Ctot) row ordering.
    xp = jnp.pad(x, ((0, 0), (padding, padding), (padding, padding), (0, 0)))
    cols = []
    for kh in range(KH):
        for kw in range(KW):
            cols.append(xp[:, kh:kh + stride * (Ho - 1) + 1:stride,
                           kw:kw + stride * (Wo - 1) + 1:stride, :])
    A = jnp.concatenate(cols, axis=-1).reshape(M, KKC)

    # TM: 16-aligned (bf16 packed sublanes); sized so the grid has >=2 parallel
    # M tiles whenever M > 16, giving v7x's second TensorCore work.
    TM = min(_TM_MAX, _round_up((M + 1) // 2, 16))
    Mp = _round_up(M, TM)
    if Mp != M:
        A = jnp.pad(A, ((0, Mp - M), (0, 0)))
    Wm = w.reshape(KKC, Ctot)

    has_res = residual is not None
    inputs = [A, Wm, ss]
    in_specs = [
        pl.BlockSpec((TM, KKC), lambda i: (i, 0)),
        pl.BlockSpec((KKC, Ctot), lambda i: (0, 0)),   # weights stay resident
        pl.BlockSpec((2, Ctot), lambda i: (0, 0)),     # merged scale/shift
    ]
    if has_res:
        assert n_out == 1
        R = residual.reshape(M, CP)
        if Mp != M:
            R = jnp.pad(R, ((0, Mp - M), (0, 0)))
        inputs.append(R)
        in_specs.append(pl.BlockSpec((TM, CP), lambda i: (i, 0)))

    kernel = functools.partial(_fused_conv_kernel,
                               relu_flags=tuple(relu_flags), has_res=has_res)
    outs = pl.pallas_call(
        kernel,
        out_shape=tuple(jax.ShapeDtypeStruct((Mp, CP), _COMPUTE_DTYPE)
                        for _ in range(n_out)),
        grid=(Mp // TM,),
        in_specs=in_specs,
        out_specs=tuple(pl.BlockSpec((TM, CP), lambda i: (i, 0))
                        for _ in range(n_out)),
        compiler_params=pltpu.CompilerParams(
            dimension_semantics=("parallel",),
            # worst-case pipelined footprint (TM=1024, KKC=1152, 6 out groups,
            # double-buffered) is ~10 MiB; 24 MiB leaves headroom and stays far
            # under v7x's 64 MiB physical VMEM (v5e/v6e have 128 MiB).
            vmem_limit_bytes=24 * 1024 * 1024),
    )(*inputs)

    return [o[:M].reshape(N, Ho, Wo, CP) for o in outs]


# ---------------------------- parameter creation ----------------------------- #

def _conv_bn_arrays(key, kh, kw, cin, cout, with_bn=True):
    ks = jax.random.split(key, 6)
    fan_in = kh * kw * cin
    w = jax.random.normal(ks[0], (kh, kw, cin, cout), jnp.float32) / jnp.sqrt(
        float(fan_in))
    b = 0.1 * jax.random.normal(ks[1], (cout,), jnp.float32)
    if with_bn:
        gamma = 1.0 + 0.1 * jax.random.normal(ks[2], (cout,), jnp.float32)
        beta = 0.1 * jax.random.normal(ks[3], (cout,), jnp.float32)
        mean = 0.1 * jax.random.normal(ks[4], (cout,), jnp.float32)
        var = 1.0 + 0.1 * jnp.abs(jax.random.normal(ks[5], (cout,), jnp.float32))
        scale = gamma / jnp.sqrt(var + _BN_EPS)
        shift = beta + (b - mean) * scale
    else:
        scale = jnp.ones((cout,), jnp.float32)
        shift = b
    return w, scale, shift


def _pack_single(w, scale, shift, cin_p):
    """Pack a conv to (cin_p) contraction channels and CP output lanes; padded
    out-channels get scale=shift=0 so they stay exactly 0 downstream."""
    kh, kw, cin, cout = w.shape
    wp = jnp.zeros((kh, kw, cin_p, CP), jnp.float32).at[:, :, :cin, :cout].set(w)
    ss = jnp.zeros((2, CP), jnp.float32)
    ss = ss.at[0, :cout].set(scale).at[1, :cout].set(shift)
    return wp.astype(_COMPUTE_DTYPE), ss


def _pack_heads(specs, cin_p):
    """Fuse N down-block heads sharing the same input: for each head, its 3x3
    conv1 (group 2i) and its 1x1 'extra' shortcut embedded as the centre tap
    (group 2i+1).  Centre-tap embedding is exact only for kernel=3, padding=1,
    the shared stride, and a zero-padded border (all true for this module)."""
    n = len(specs)
    wp = jnp.zeros((3, 3, cin_p, 2 * n * CP), jnp.float32)
    ss = jnp.zeros((2, 2 * n * CP), jnp.float32)
    for i, (w3, s3, h3, w1, s1, h1) in enumerate(specs):
        assert w3.shape[:2] == (3, 3) and w1.shape[:2] == (1, 1)
        cin, cout = w3.shape[2], w3.shape[3]
        o0, o1 = 2 * i * CP, (2 * i + 1) * CP
        wp = wp.at[:, :, :cin, o0:o0 + cout].set(w3)
        wp = wp.at[1, 1, :cin, o1:o1 + cout].set(w1[0, 0])
        ss = ss.at[0, o0:o0 + cout].set(s3).at[1, o0:o0 + cout].set(h3)
        ss = ss.at[0, o1:o1 + cout].set(s1).at[1, o1:o1 + cout].set(h1)
    return wp.astype(_COMPUTE_DTYPE), ss


def _make_basic(key, cin, cout):
    k1, k2 = jax.random.split(key)
    w1, s1, h1 = _conv_bn_arrays(k1, 3, 3, cin, cout)
    w2, s2, h2 = _conv_bn_arrays(k2, 3, 3, cout, cout)
    c1w, c1ss = _pack_single(w1, s1, h1, _cin_p(cin))
    c2w, c2ss = _pack_single(w2, s2, h2, _cin_p(cout))
    return {"c1_w": c1w, "c1_ss": c1ss, "c2_w": c2w, "c2_ss": c2ss}


def _make_down(key, cin, cout):
    k1, k2, k3 = jax.random.split(key, 3)
    w1, s1, h1 = _conv_bn_arrays(k1, 3, 3, cin, cout)
    w2, s2, h2 = _conv_bn_arrays(k2, 3, 3, cout, cout)
    we, se, he = _conv_bn_arrays(k3, 1, 1, cin, cout)
    hw, hss = _pack_heads([(w1, s1, h1, we, se, he)], _cin_p(cin))
    c2w, c2ss = _pack_single(w2, s2, h2, _cin_p(cout))
    return {"head_w": hw, "head_ss": hss, "c2_w": c2w, "c2_ss": c2ss}


def init_restnet18_params(key):
    """Pytree of ARRAYS ONLY (jit-safe); block kind is encoded by the dict keys,
    down-block strides are the static _DOWN_STRIDES of the reference module."""
    keys = iter(jax.random.split(key, 16))
    params = {}
    # conv1: 3 -> 32, k=7, s=2, p=3, bias only (bn1 / maxpool of the reference
    # module are declared but never used in forward()); no post-conv ReLU.
    w, s, h = _conv_bn_arrays(next(keys), 7, 7, 3, 32, with_bn=False)
    cw, css = _pack_single(w, s, h, _cin_p(3))        # Cin padded 3 -> 16
    params["conv1"] = {"w": cw, "ss": css}
    params["layer1"] = [_make_basic(next(keys), 32, 32),
                        _make_basic(next(keys), 32, 32)]

    # Heads of layer2[0] / layer3[0] / layer4[0] (all consume the layer1
    # output) fused into one (3,3,32,6*CP) weight; conv2 tails stay per-block.
    head_specs, tails = [], []
    for cout in (64, 96, 64):
        k1, k2, k3 = jax.random.split(next(keys), 3)
        w1, s1, h1 = _conv_bn_arrays(k1, 3, 3, 32, cout)
        we, se, he = _conv_bn_arrays(k3, 1, 1, 32, cout)
        head_specs.append((w1, s1, h1, we, se, he))
        w2, s2, h2 = _conv_bn_arrays(k2, 3, 3, cout, cout)
        c2w, c2ss = _pack_single(w2, s2, h2, _cin_p(cout))
        tails.append({"c2_w": c2w, "c2_ss": c2ss})
    params["heads_w"], params["heads_ss"] = _pack_heads(head_specs, _cin_p(32))

    params["layer2"] = [tails[0], _make_basic(next(keys), 64, 64)]
    params["layer3"] = [tails[1], _make_down(next(keys), 96, 96),
                        _make_basic(next(keys), 96, 96)]
    params["layer4"] = [tails[2], _make_down(next(keys), 64, 128),
                        _make_down(next(keys), 128, 128),
                        _make_basic(next(keys), 128, 128)]
    return params


# ------------------------------- forward pass -------------------------------- #

def _basic_block(x, p):
    out = fused_conv(x, p["c1_w"], p["c1_ss"], stride=1, padding=1,
                     relu_flags=(True,))[0]
    return fused_conv(out, p["c2_w"], p["c2_ss"], stride=1, padding=1,
                      relu_flags=(True,), residual=x)[0]


def _down_tail(c1_out, extra, p):
    """conv2 + bn2 + residual(extra) + ReLU of a RestNetDownBlock."""
    return fused_conv(c1_out, p["c2_w"], p["c2_ss"], stride=_DOWN_STRIDES[1],
                      padding=1, relu_flags=(True,), residual=extra)[0]


def _down_block(x, p):
    # Fused head: relu(bn1(conv1(x))) and bn(extra_1x1(x)) from one kernel.
    c1_out, extra = fused_conv(x, p["head_w"], p["head_ss"],
                               stride=_DOWN_STRIDES[0], padding=1,
                               relu_flags=(True, False))
    return _down_tail(c1_out, extra, p)


def _apply_layer(x, layer_params):
    for p in layer_params:
        x = _down_block(x, p) if "head_w" in p else _basic_block(x, p)
    return x


def restnet18_forward(x_nchw, params):
    """Matches RestNet18.forward: returns ((fea_D1, fea_D2, fea_D3), fea_D3)."""
    x = jnp.transpose(x_nchw, (0, 2, 3, 1)).astype(_COMPUTE_DTYPE)  # NCHW->NHWC
    out = fused_conv(x, params["conv1"]["w"], params["conv1"]["ss"],
                     stride=2, padding=3, relu_flags=(False,))[0]
    for p in params["layer1"]:
        out = _basic_block(out, p)

    # Reference wiring: layer2 / layer3 / layer4 all consume the layer1 output.
    # Their three stride-2 down-block heads run as ONE 6-group pallas_call.
    heads = fused_conv(out, params["heads_w"], params["heads_ss"],
                       stride=_DOWN_STRIDES[0], padding=1,
                       relu_flags=(True, False, True, False, True, False))

    fea_d3 = _down_tail(heads[0], heads[1], params["layer2"][0])
    fea_d3 = _apply_layer(fea_d3, params["layer2"][1:])

    fea_d2 = _down_tail(heads[2], heads[3], params["layer3"][0])
    fea_d2 = _apply_layer(fea_d2, params["layer3"][1:])

    fea_d1 = _down_tail(heads[4], heads[5], params["layer4"][0])
    fea_d1 = _apply_layer(fea_d1, params["layer4"][1:])

    def finish(t, true_c):  # drop channel padding, NHWC -> NCHW, back to f32
        return jnp.transpose(t[..., :true_c], (0, 3, 1, 2)).astype(jnp.float32)

    return (finish(fea_d1, 128), finish(fea_d2, 96), finish(fea_d3, 64)), \
        finish(fea_d3, 64)


# ----------------------------------- main ------------------------------------ #

if __name__ == "__main__":
    key = jax.random.PRNGKey(0)
    pkey, xkey = jax.random.split(key)
    params = init_restnet18_params(pkey)

    # small NCHW input; conv1 requires 3 input channels
    x = jax.random.normal(xkey, (2, 3, 16, 16), jnp.float32)

    (fea_d1, fea_d2, fea_d3), out = jax.jit(restnet18_forward)(x, params)
    jax.block_until_ready((fea_d1, fea_d2, fea_d3, out))

    # expected shapes for 16x16 input: D3 [2,64,4,4], D2 [2,96,2,2], D1 [2,128,1,1]
    assert fea_d3.shape == (2, 64, 4, 4), fea_d3.shape
    assert fea_d2.shape == (2, 96, 2, 2), fea_d2.shape
    assert fea_d1.shape == (2, 128, 1, 1), fea_d1.shape
    assert out.shape == fea_d3.shape
    assert all(bool(jnp.isfinite(t).all()) for t in (fea_d1, fea_d2, fea_d3))

    print("KERNEL_OK")
</pallas_src>

<mosaic_0001>
module attributes {stable_mosaic.version = 11 : i64} {
  func.func @_fused_conv_kernel(%arg0: i32, %arg1: memref<64x784xbf16, #tpu.memory_space<vmem>>, %arg2: memref<784x128xbf16, #tpu.memory_space<vmem>>, %arg3: memref<2x128xf32, #tpu.memory_space<vmem>>, %arg4: memref<64x128xbf16, #tpu.memory_space<vmem>>) attributes {dimension_semantics = [#tpu.dimension_semantics<parallel>], iteration_bounds = array<i64: 2>, scalar_prefetch = 0 : i64, scratch_operands = 0 : i64, tpu.core_type = #tpu.core_type<tc>, window_params = [{transform_indices = @transform_0, window_bounds = array<i64: 64, 784>}, {pipeline_mode = #tpu.pipeline_mode<synchronous>, transform_indices = @transform_1, window_bounds = array<i64: 784, 128>}, {pipeline_mode = #tpu.pipeline_mode<synchronous>, transform_indices = @transform_2, window_bounds = array<i64: 2, 128>}, {transform_indices = @transform_3, window_bounds = array<i64: 64, 128>}]} {
    %c0 = arith.constant 0 : index
    %c0_0 = arith.constant 0 : index
    %0 = vector.load %arg1[%c0, %c0_0] : memref<64x784xbf16, #tpu.memory_space<vmem>>, vector<64x784xbf16>
    %c0_1 = arith.constant 0 : index
    %c0_2 = arith.constant 0 : index
    %1 = vector.load %arg2[%c0_1, %c0_2] : memref<784x128xbf16, #tpu.memory_space<vmem>>, vector<784x128xbf16>
    %cst = arith.constant dense<0.000000e+00> : vector<64x128xf32>
    %2 = tpu.matmul %0, %1, %cst {dimension_numbers = #tpu.dot_dimension_numbers<[1], [0], [0], [1], [0, 0, 1, 1], [], []>} : vector<64x784xbf16>, vector<784x128xbf16>, vector<64x128xf32> -> vector<64x128xf32>
    %c0_3 = arith.constant 0 : index
    %c0_4 = arith.constant 0 : index
    %3 = vector.load %arg3[%c0_3, %c0_4] : memref<2x128xf32, #tpu.memory_space<vmem>>, vector<1x128xf32>
    %4 = vector.broadcast %3 : vector<1x128xf32> to vector<64x128xf32>
    %5 = arith.mulf %2, %4 : vector<64x128xf32>
    %c1 = arith.constant 1 : index
    %c0_5 = arith.constant 0 : index
    %6 = vector.load %arg3[%c1, %c0_5] : memref<2x128xf32, #tpu.memory_space<vmem>>, vector<1x128xf32>
    %7 = vector.broadcast %6 : vector<1x128xf32> to vector<64x128xf32>
    %8 = arith.addf %5, %7 : vector<64x128xf32>
    %9 = arith.truncf %8 : vector<64x128xf32> to vector<64x128xbf16>
    %c0_6 = arith.constant 0 : index
    %c0_7 = arith.constant 0 : index
    %10 = vector.load %arg4[%c0_6, %c0_7] : memref<64x128xbf16, #tpu.memory_space<vmem>>, vector<64x128xbf16>
    tpu.vector_store %arg4[%c0_6, %c0_7], %9 {strides = array<i32>} : memref<64x128xbf16, #tpu.memory_space<vmem>>, vector<64x128xbf16>,
    return
  }
  func.func @transform_0(%arg0: i32) -> (i32, i32) {
    %c0_i32 = arith.constant 0 : i32
    %c0_i32_0 = arith.constant 0 : i32
    return %arg0, %c0_i32 : i32, i32
  }
  func.func @transform_1(%arg0: i32) -> (i32, i32) {
    %c0_i32 = arith.constant 0 : i32
    %c0_i32_0 = arith.constant 0 : i32
    %c0_i32_1 = arith.constant 0 : i32
    return %c0_i32, %c0_i32_0 : i32, i32
  }
  func.func @transform_2(%arg0: i32) -> (i32, i32) {
    %c0_i32 = arith.constant 0 : i32
    %c0_i32_0 = arith.constant 0 : i32
    %c0_i32_1 = arith.constant 0 : i32
    return %c0_i32, %c0_i32_0 : i32, i32
  }
  func.func @transform_3(%arg0: i32) -> (i32, i32) {
    %c0_i32 = arith.constant 0 : i32
    %c0_i32_0 = arith.constant 0 : i32
    return %arg0, %c0_i32 : i32, i32
  }
}

module attributes {stable_mosaic.version = 11 : i64} {
  func.func @_fused_conv_kernel(%arg0: i32, %arg1: memref<64x288xbf16, #tpu.memory_space<vmem>>, %arg2: memref<288x128xbf16, #tpu.memory_space<vmem>>, %arg3: memref<2x128xf32, #tpu.memory_space<vmem>>, %arg4: memref<64x128xbf16, #tpu.memory_space<vmem>>) attributes {dimension_semantics = [#tpu.dimension_semantics<parallel>], iteration_bounds = array<i64: 2>, scalar_prefetch = 0 : i64, scratch_operands = 0 : i64, tpu.core_type = #tpu.core_type<tc>, window_params = [{transform_indices = @transform_0, window_bounds = array<i64: 64, 288>}, {pipeline_mode = #tpu.pipeline_mode<synchronous>, transform_indices = @transform_1, window_bounds = array<i64: 288, 128>}, {pipeline_mode = #tpu.pipeline_mode<synchronous>, transform_indices = @transform_2, window_bounds = array<i64: 2, 128>}, {transform_indices = @transform_3, window_bounds = array<i64: 64, 128>}]} {
    %c0 = arith.constant 0 : index
    %c0_0 = arith.constant 0 : index
    %0 = vector.load %arg1[%c0, %c0_0] : memref<64x288xbf16, #tpu.memory_space<vmem>>, vector<64x288xbf16>
    %c0_1 = arith.constant 0 : index
    %c0_2 = arith.constant 0 : index
    %1 = vector.load %arg2[%c0_1, %c0_2] : memref<288x128xbf16, #tpu.memory_space<vmem>>, vector<288x128xbf16>
    %cst = arith.constant dense<0.000000e+00> : vector<64x128xf32>
    %2 = tpu.matmul %0, %1, %cst {dimension_numbers = #tpu.dot_dimension_numbers<[1], [0], [0], [1], [0, 0, 1, 1], [], []>} : vector<64x288xbf16>, vector<288x128xbf16>, vector<64x128xf32> -> vector<64x128xf32>
    %c0_3 = arith.constant 0 : index
    %c0_4 = arith.constant 0 : index
    %3 = vector.load %arg3[%c0_3, %c0_4] : memref<2x128xf32, #tpu.memory_space<vmem>>, vector<1x128xf32>
    %4 = vector.broadcast %3 : vector<1x128xf32> to vector<64x128xf32>
    %5 = arith.mulf %2, %4 : vector<64x128xf32>
    %c1 = arith.constant 1 : index
    %c0_5 = arith.constant 0 : index
    %6 = vector.load %arg3[%c1, %c0_5] : memref<2x128xf32, #tpu.memory_space<vmem>>, vector<1x128xf32>
    %7 = vector.broadcast %6 : vector<1x128xf32> to vector<64x128xf32>
    %8 = arith.addf %5, %7 : vector<64x128xf32>
    %cst_6 = arith.constant 0.000000e+00 : f32
    %9 = vector.broadcast %cst_6 : f32 to vector<64x128xf32>
    %10 = arith.maximumf %8, %9 : vector<64x128xf32>
    %11 = arith.truncf %10 : vector<64x128xf32> to vector<64x128xbf16>
    %c0_7 = arith.constant 0 : index
    %c0_8 = arith.constant 0 : index
    %12 = vector.load %arg4[%c0_7, %c0_8] : memref<64x128xbf16, #tpu.memory_space<vmem>>, vector<64x128xbf16>
    tpu.vector_store %arg4[%c0_7, %c0_8], %11 {strides = array<i32>} : memref<64x128xbf16, #tpu.memory_space<vmem>>, vector<64x128xbf16>,
    return
  }
  func.func @transform_0(%arg0: i32) -> (i32, i32) {
    %c0_i32 = arith.constant 0 : i32
    %c0_i32_0 = arith.constant 0 : i32
    return %arg0, %c0_i32 : i32, i32
  }
  func.func @transform_1(%arg0: i32) -> (i32, i32) {
    %c0_i32 = arith.constant 0 : i32
    %c0_i32_0 = arith.constant 0 : i32
    %c0_i32_1 = arith.constant 0 : i32
    return %c0_i32, %c0_i32_0 : i32, i32
  }
  func.func @transform_2(%arg0: i32) -> (i32, i32) {
    %c0_i32 = arith.constant 0 : i32
    %c0_i32_0 = arith.constant 0 : i32
    %c0_i32_1 = arith.constant 0 : i32
    return %c0_i32, %c0_i32_0 : i32, i32
  }
  func.func @transform_3(%arg0: i32) -> (i32, i32) {
    %c0_i32 = arith.constant 0 : i32
    %c0_i32_0 = arith.constant 0 : i32
    return %arg0, %c0_i32 : i32, i32
  }
}

module attributes {stable_mosaic.version = 11 : i64} {
  func.func @_fused_conv_kernel(%arg0: i32, %arg1: memref<64x288xbf16, #tpu.memory_space<vmem>>, %arg2: memref<288x128xbf16, #tpu.memory_space<vmem>>, %arg3: memref<2x128xf32, #tpu.memory_space<vmem>>, %arg4: memref<64x128xbf16, #tpu.memory_space<vmem>>, %arg5: memref<64x128xbf16, #tpu.memory_space<vmem>>) attributes {dimension_semantics = [#tpu.dimension_semantics<parallel>], iteration_bounds = array<i64: 2>, scalar_prefetch = 0 : i64, scratch_operands = 0 : i64, tpu.core_type = #tpu.core_type<tc>, window_params = [{transform_indices = @transform_0, window_bounds = array<i64: 64, 288>}, {pipeline_mode = #tpu.pipeline_mode<synchronous>, transform_indices = @transform_1, window_bounds = array<i64: 288, 128>}, {pipeline_mode = #tpu.pipeline_mode<synchronous>, transform_indices = @transform_2, window_bounds = array<i64: 2, 128>}, {transform_indices = @transform_3, window_bounds = array<i64: 64, 128>}, {transform_indices = @transform_4, window_bounds = array<i64: 64, 128>}]} {
    %c0 = arith.constant 0 : index
    %c0_0 = arith.constant 0 : index
    %0 = vector.load %arg1[%c0, %c0_0] : memref<64x288xbf16, #tpu.memory_space<vmem>>, vector<64x288xbf16>
    %c0_1 = arith.constant 0 : index
    %c0_2 = arith.constant 0 : index
    %1 = vector.load %arg2[%c0_1, %c0_2] : memref<288x128xbf16, #tpu.memory_space<vmem>>, vector<288x128xbf16>
    %cst = arith.constant dense<0.000000e+00> : vector<64x128xf32>
    %2 = tpu.matmul %0, %1, %cst {dimension_numbers = #tpu.dot_dimension_numbers<[1], [0], [0], [1], [0, 0, 1, 1], [], []>} : vector<64x288xbf16>, vector<288x128xbf16>, vector<64x128xf32> -> vector<64x128xf32>
    %c0_3 = arith.constant 0 : index
    %c0_4 = arith.constant 0 : index
    %3 = vector.load %arg3[%c0_3, %c0_4] : memref<2x128xf32, #tpu.memory_space<vmem>>, vector<1x128xf32>
    %4 = vector.broadcast %3 : vector<1x128xf32> to vector<64x128xf32>
    %5 = arith.mulf %2, %4 : vector<64x128xf32>
    %c1 = arith.constant 1 : index
    %c0_5 = arith.constant 0 : index
    %6 = vector.load %arg3[%c1, %c0_5] : memref<2x128xf32, #tpu.memory_space<vmem>>, vector<1x128xf32>
    %7 = vector.broadcast %6 : vector<1x128xf32> to vector<64x128xf32>
    %8 = arith.addf %5, %7 : vector<64x128xf32>
    %c0_6 = arith.constant 0 : index
    %c0_7 = arith.constant 0 : index
    %9 = vector.load %arg4[%c0_6, %c0_7] : memref<64x128xbf16, #tpu.memory_space<vmem>>, vector<64x128xbf16>
    %10 = arith.extf %9 : vector<64x128xbf16> to vector<64x128xf32>
    %11 = arith.addf %8, %10 : vector<64x128xf32>
    %cst_8 = arith.constant 0.000000e+00 : f32
    %12 = vector.broadcast %cst_8 : f32 to vector<64x128xf32>
    %13 = arith.maximumf %11, %12 : vector<64x128xf32>
    %14 = arith.truncf %13 : vector<64x128xf32> to vector<64x128xbf16>
    %c0_9 = arith.constant 0 : index
    %c0_10 = arith.constant 0 : index
    %15 = vector.load %arg5[%c0_9, %c0_10] : memref<64x128xbf16, #tpu.memory_space<vmem>>, vector<64x128xbf16>
    tpu.vector_store %arg5[%c0_9, %c0_10], %14 {strides = array<i32>} : memref<64x128xbf16, #tpu.memory_space<vmem>>, vector<64x128xbf16>,
    return
  }
  func.func @transform_0(%arg0: i32) -> (i32, i32) {
    %c0_i32 = arith.constant 0 : i32
    %c0_i32_0 = arith.constant 0 : i32
    return %arg0, %c0_i32 : i32, i32
  }
  func.func @transform_1(%arg0: i32) -> (i32, i32) {
    %c0_i32 = arith.constant 0 : i32
    %c0_i32_0 = arith.constant 0 : i32
    %c0_i32_1 = arith.constant 0 : i32
    return %c0_i32, %c0_i32_0 : i32, i32
  }
  func.func @transform_2(%arg0: i32) -> (i32, i32) {
    %c0_i32 = arith.constant 0 : i32
    %c0_i32_0 = arith.constant 0 : i32
    %c0_i32_1 = arith.constant 0 : i32
    return %c0_i32, %c0_i32_0 : i32, i32
  }
  func.func @transform_3(%arg0: i32) -> (i32, i32) {
    %c0_i32 = arith.constant 0 : i32
    %c0_i32_0 = arith.constant 0 : i32
    return %arg0, %c0_i32 : i32, i32
  }
  func.func @transform_4(%arg0: i32) -> (i32, i32) {
    %c0_i32 = arith.constant 0 : i32
    %c0_i32_0 = arith.constant 0 : i32
    return %arg0, %c0_i32 : i32, i32
  }
}

module attributes {stable_mosaic.version = 11 : i64} {
  func.func @_fused_conv_kernel(%arg0: i32, %arg1: memref<16x288xbf16, #tpu.memory_space<vmem>>, %arg2: memref<288x768xbf16, #tpu.memory_space<vmem>>, %arg3: memref<2x768xf32, #tpu.memory_space<vmem>>, %arg4: memref<16x128xbf16, #tpu.memory_space<vmem>>, %arg5: memref<16x128xbf16, #tpu.memory_space<vmem>>, %arg6: memref<16x128xbf16, #tpu.memory_space<vmem>>, %arg7: memref<16x128xbf16, #tpu.memory_space<vmem>>, %arg8: memref<16x128xbf16, #tpu.memory_space<vmem>>, %arg9: memref<16x128xbf16, #tpu.memory_space<vmem>>) attributes {dimension_semantics = [#tpu.dimension_semantics<parallel>], iteration_bounds = array<i64: 2>, scalar_prefetch = 0 : i64, scratch_operands = 0 : i64, tpu.core_type = #tpu.core_type<tc>, window_params = [{transform_indices = @transform_0, window_bounds = array<i64: 16, 288>}, {pipeline_mode = #tpu.pipeline_mode<synchronous>, transform_indices = @transform_1, window_bounds = array<i64: 288, 768>}, {pipeline_mode = #tpu.pipeline_mode<synchronous>, transform_indices = @transform_2, window_bounds = array<i64: 2, 768>}, {transform_indices = @transform_3, window_bounds = array<i64: 16, 128>}, {transform_indices = @transform_4, window_bounds = array<i64: 16, 128>}, {transform_indices = @transform_5, window_bounds = array<i64: 16, 128>}, {transform_indices = @transform_6, window_bounds = array<i64: 16, 128>}, {transform_indices = @transform_7, window_bounds = array<i64: 16, 128>}, {transform_indices = @transform_8, window_bounds = array<i64: 16, 128>}]} {
    %c0 = arith.constant 0 : index
    %c0_0 = arith.constant 0 : index
    %0 = vector.load %arg1[%c0, %c0_0] : memref<16x288xbf16, #tpu.memory_space<vmem>>, vector<16x288xbf16>
    %c0_1 = arith.constant 0 : index
    %c0_2 = arith.constant 0 : index
    %1 = vector.load %arg2[%c0_1, %c0_2] : memref<288x768xbf16, #tpu.memory_space<vmem>>, vector<288x768xbf16>
    %cst = arith.constant dense<0.000000e+00> : vector<16x768xf32>
    %2 = tpu.matmul %0, %1, %cst {dimension_numbers = #tpu.dot_dimension_numbers<[1], [0], [0], [1], [0, 0, 1, 1], [], []>} : vector<16x288xbf16>, vector<288x768xbf16>, vector<16x768xf32> -> vector<16x768xf32>
    %c0_3 = arith.constant 0 : index
    %c0_4 = arith.constant 0 : index
    %3 = vector.load %arg3[%c0_3, %c0_4] : memref<2x768xf32, #tpu.memory_space<vmem>>, vector<1x768xf32>
    %4 = vector.broadcast %3 : vector<1x768xf32> to vector<16x768xf32>
    %5 = arith.mulf %2, %4 : vector<16x768xf32>
    %c1 = arith.constant 1 : index
    %c0_5 = arith.constant 0 : index
    %6 = vector.load %arg3[%c1, %c0_5] : memref<2x768xf32, #tpu.memory_space<vmem>>, vector<1x768xf32>
    %7 = vector.broadcast %6 : vector<1x768xf32> to vector<16x768xf32>
    %8 = arith.addf %5, %7 : vector<16x768xf32>
    %9 = vector.extract_strided_slice %8 {offsets = [0, 0], sizes = [16, 128], strides = [1, 1]} : vector<16x768xf32> to vector<16x128xf32>
    %cst_6 = arith.constant 0.000000e+00 : f32
    %10 = vector.broadcast %cst_6 : f32 to vector<16x128xf32>
    %11 = arith.maximumf %9, %10 : vector<16x128xf32>
    %12 = arith.truncf %11 : vector<16x128xf32> to vector<16x128xbf16>
    %c0_7 = arith.constant 0 : index
    %c0_8 = arith.constant 0 : index
    %13 = vector.load %arg4[%c0_7, %c0_8] : memref<16x128xbf16, #tpu.memory_space<vmem>>, vector<16x128xbf16>
    tpu.vector_store %arg4[%c0_7, %c0_8], %12 {strides = array<i32>} : memref<16x128xbf16, #tpu.memory_space<vmem>>, vector<16x128xbf16>,
    %14 = vector.extract_strided_slice %8 {offsets = [0, 128], sizes = [16, 128], strides = [1, 1]} : vector<16x768xf32> to vector<16x128xf32>
    %15 = arith.truncf %14 : vector<16x128xf32> to vector<16x128xbf16>
    %c0_9 = arith.constant 0 : index
    %c0_10 = arith.constant 0 : index
    %16 = vector.load %arg5[%c0_9, %c0_10] : memref<16x128xbf16, #tpu.memory_space<vmem>>, vector<16x128xbf16>
    tpu.vector_store %arg5[%c0_9, %c0_10], %15 {strides = array<i32>} : memref<16x128xbf16, #tpu.memory_space<vmem>>, vector<16x128xbf16>,
    %17 = vector.extract_strided_slice %8 {offsets = [0, 256], sizes = [16, 128], strides = [1, 1]} : vector<16x768xf32> to vector<16x128xf32>
    %cst_11 = arith.constant 0.000000e+00 : f32
    %18 = vector.broadcast %cst_11 : f32 to vector<16x128xf32>
    %19 = arith.maximumf %17, %18 : vector<16x128xf32>
    %20 = arith.truncf %19 : vector<16x128xf32> to vector<16x128xbf16>
    %c0_12 = arith.constant 0 : index
    %c0_13 = arith.constant 0 : index
    %21 = vector.load %arg6[%c0_12, %c0_13] : memref<16x128xbf16, #tpu.memory_space<vmem>>, vector<16x128xbf16>
    tpu.vector_store %arg6[%c0_12, %c0_13], %20 {strides = array<i32>} : memref<16x128xbf16, #tpu.memory_space<vmem>>, vector<16x128xbf16>,
    %22 = vector.extract_strided_slice %8 {offsets = [0, 384], sizes = [16, 128], strides = [1, 1]} : vector<16x768xf32> to vector<16x128xf32>
    %23 = arith.truncf %22 : vector<16x128xf32> to vector<16x128xbf16>
    %c0_14 = arith.constant 0 : index
    %c0_15 = arith.constant 0 : index
    %24 = vector.load %arg7[%c0_14, %c0_15] : memref<16x128xbf16, #tpu.memory_space<vmem>>, vector<16x128xbf16>
    tpu.vector_store %arg7[%c0_14, %c0_15], %23 {strides = array<i32>} : memref<16x128xbf16, #tpu.memory_space<vmem>>, vector<16x128xbf16>,
    %25 = vector.extract_strided_slice %8 {offsets = [0, 512], sizes = [16, 128], strides = [1, 1]} : vector<16x768xf32> to vector<16x128xf32>
    %cst_16 = arith.constant 0.000000e+00 : f32
    %26 = vector.broadcast %cst_16 : f32 to vector<16x128xf32>
    %27 = arith.maximumf %25, %26 : vector<16x128xf32>
    %28 = arith.truncf %27 : vector<16x128xf32> to vector<16x128xbf16>
    %c0_17 = arith.constant 0 : index
    %c0_18 = arith.constant 0 : index
    %29 = vector.load %arg8[%c0_17, %c0_18] : memref<16x128xbf16, #tpu.memory_space<vmem>>, vector<16x128xbf16>
    tpu.vector_store %arg8[%c0_17, %c0_18], %28 {strides = array<i32>} : memref<16x128xbf16, #tpu.memory_space<vmem>>, vector<16x128xbf16>,
    %30 = vector.extract_strided_slice %8 {offsets = [0, 640], sizes = [16, 128], strides = [1, 1]} : vector<16x768xf32> to vector<16x128xf32>
    %31 = arith.truncf %30 : vector<16x128xf32> to vector<16x128xbf16>
    %c0_19 = arith.constant 0 : index
    %c0_20 = arith.constant 0 : index
    %32 = vector.load %arg9[%c0_19, %c0_20] : memref<16x128xbf16, #tpu.memory_space<vmem>>, vector<16x128xbf16>
    tpu.vector_store %arg9[%c0_19, %c0_20], %31 {strides = array<i32>} : memref<16x128xbf16, #tpu.memory_space<vmem>>, vector<16x128xbf16>,
    return
  }
  func.func @transform_0(%arg0: i32) -> (i32, i32) {
    %c0_i32 = arith.constant 0 : i32
    %c0_i32_0 = arith.constant 0 : i32
    return %arg0, %c0_i32 : i32, i32
  }
  func.func @transform_1(%arg0: i32) -> (i32, i32) {
    %c0_i32 = arith.constant 0 : i32
    %c0_i32_0 = arith.constant 0 : i32
    %c0_i32_1 = arith.constant 0 : i32
    return %c0_i32, %c0_i32_0 : i32, i32
  }
  func.func @transform_2(%arg0: i32) -> (i32, i32) {
    %c0_i32 = arith.constant 0 : i32
    %c0_i32_0 = arith.constant 0 : i32
    %c0_i32_1 = arith.constant 0 : i32
    return %c0_i32, %c0_i32_0 : i32, i32
  }
  func.func @transform_3(%arg0: i32) -> (i32, i32) {
    %c0_i32 = arith.constant 0 : i32
    %c0_i32_0 = arith.constant 0 : i32
    return %arg0, %c0_i32 : i32, i32
  }
  func.func @transform_4(%arg0: i32) -> (i32, i32) {
    %c0_i32 = arith.constant 0 : i32
    %c0_i32_0 = arith.constant 0 : i32
    return %arg0, %c0_i32 : i32, i32
  }
  func.func @transform_5(%arg0: i32) -> (i32, i32) {
    %c0_i32 = arith.constant 0 : i32
    %c0_i32_0 = arith.constant 0 : i32
    return %arg0, %c0_i32 : i32, i32
  }
  func.func @transform_6(%arg0: i32) -> (i32, i32) {
    %c0_i32 = arith.constant 0 : i32
    %c0_i32_0 = arith.constant 0 : i32
    return %arg0, %c0_i32 : i32, i32
  }
  func.func @transform_7(%arg0: i32) -> (i32, i32) {
    %c0_i32 = arith.constant 0 : i32
    %c0_i32_0 = arith.constant 0 : i32
    return %arg0, %c0_i32 : i32, i32
  }
  func.func @transform_8(%arg0: i32) -> (i32, i32) {
    %c0_i32 = arith.constant 0 : i32
    %c0_i32_0 = arith.constant 0 : i32
    return %arg0, %c0_i32 : i32, i32
  }
}

module attributes {stable_mosaic.version = 11 : i64} {
  func.func @_fused_conv_kernel(%arg0: i32, %arg1: memref<16x576xbf16, #tpu.memory_space<vmem>>, %arg2: memref<576x128xbf16, #tpu.memory_space<vmem>>, %arg3: memref<2x128xf32, #tpu.memory_space<vmem>>, %arg4: memref<16x128xbf16, #tpu.memory_space<vmem>>, %arg5: memref<16x128xbf16, #tpu.memory_space<vmem>>) attributes {dimension_semantics = [#tpu.dimension_semantics<parallel>], iteration_bounds = array<i64: 2>, scalar_prefetch = 0 : i64, scratch_operands = 0 : i64, tpu.core_type = #tpu.core_type<tc>, window_params = [{transform_indices = @transform_0, window_bounds = array<i64: 16, 576>}, {pipeline_mode = #tpu.pipeline_mode<synchronous>, transform_indices = @transform_1, window_bounds = array<i64: 576, 128>}, {pipeline_mode = #tpu.pipeline_mode<synchronous>, transform_indices = @transform_2, window_bounds = array<i64: 2, 128>}, {transform_indices = @transform_3, window_bounds = array<i64: 16, 128>}, {transform_indices = @transform_4, window_bounds = array<i64: 16, 128>}]} {
    %c0 = arith.constant 0 : index
    %c0_0 = arith.constant 0 : index
    %0 = vector.load %arg1[%c0, %c0_0] : memref<16x576xbf16, #tpu.memory_space<vmem>>, vector<16x576xbf16>
    %c0_1 = arith.constant 0 : index
    %c0_2 = arith.constant 0 : index
    %1 = vector.load %arg2[%c0_1, %c0_2] : memref<576x128xbf16, #tpu.memory_space<vmem>>, vector<576x128xbf16>
    %cst = arith.constant dense<0.000000e+00> : vector<16x128xf32>
    %2 = tpu.matmul %0, %1, %cst {dimension_numbers = #tpu.dot_dimension_numbers<[1], [0], [0], [1], [0, 0, 1, 1], [], []>} : vector<16x576xbf16>, vector<576x128xbf16>, vector<16x128xf32> -> vector<16x128xf32>
    %c0_3 = arith.constant 0 : index
    %c0_4 = arith.constant 0 : index
    %3 = vector.load %arg3[%c0_3, %c0_4] : memref<2x128xf32, #tpu.memory_space<vmem>>, vector<1x128xf32>
    %4 = vector.broadcast %3 : vector<1x128xf32> to vector<16x128xf32>
    %5 = arith.mulf %2, %4 : vector<16x128xf32>
    %c1 = arith.constant 1 : index
    %c0_5 = arith.constant 0 : index
    %6 = vector.load %arg3[%c1, %c0_5] : memref<2x128xf32, #tpu.memory_space<vmem>>, vector<1x128xf32>
    %7 = vector.broadcast %6 : vector<1x128xf32> to vector<16x128xf32>
    %8 = arith.addf %5, %7 : vector<16x128xf32>
    %c0_6 = arith.constant 0 : index
    %c0_7 = arith.constant 0 : index
    %9 = vector.load %arg4[%c0_6, %c0_7] : memref<16x128xbf16, #tpu.memory_space<vmem>>, vector<16x128xbf16>
    %10 = arith.extf %9 : vector<16x128xbf16> to vector<16x128xf32>
    %11 = arith.addf %8, %10 : vector<16x128xf32>
    %cst_8 = arith.constant 0.000000e+00 : f32
    %12 = vector.broadcast %cst_8 : f32 to vector<16x128xf32>
    %13 = arith.maximumf %11, %12 : vector<16x128xf32>
    %14 = arith.truncf %13 : vector<16x128xf32> to vector<16x128xbf16>
    %c0_9 = arith.constant 0 : index
    %c0_10 = arith.constant 0 : index
    %15 = vector.load %arg5[%c0_9, %c0_10] : memref<16x128xbf16, #tpu.memory_space<vmem>>, vector<16x128xbf16>
    tpu.vector_store %arg5[%c0_9, %c0_10], %14 {strides = array<i32>} : memref<16x128xbf16, #tpu.memory_space<vmem>>, vector<16x128xbf16>,
    return
  }
  func.func @transform_0(%arg0: i32) -> (i32, i32) {
    %c0_i32 = arith.constant 0 : i32
    %c0_i32_0 = arith.constant 0 : i32
    return %arg0, %c0_i32 : i32, i32
  }
  func.func @transform_1(%arg0: i32) -> (i32, i32) {
    %c0_i32 = arith.constant 0 : i32
    %c0_i32_0 = arith.constant 0 : i32
    %c0_i32_1 = arith.constant 0 : i32
    return %c0_i32, %c0_i32_0 : i32, i32
  }
  func.func @transform_2(%arg0: i32) -> (i32, i32) {
    %c0_i32 = arith.constant 0 : i32
    %c0_i32_0 = arith.constant 0 : i32
    %c0_i32_1 = arith.constant 0 : i32
    return %c0_i32, %c0_i32_0 : i32, i32
  }
  func.func @transform_3(%arg0: i32) -> (i32, i32) {
    %c0_i32 = arith.constant 0 : i32
    %c0_i32_0 = arith.constant 0 : i32
    return %arg0, %c0_i32 : i32, i32
  }
  func.func @transform_4(%arg0: i32) -> (i32, i32) {
    %c0_i32 = arith.constant 0 : i32
    %c0_i32_0 = arith.constant 0 : i32
    return %arg0, %c0_i32 : i32, i32
  }
}

module attributes {stable_mosaic.version = 11 : i64} {
  func.func @_fused_conv_kernel(%arg0: i32, %arg1: memref<16x576xbf16, #tpu.memory_space<vmem>>, %arg2: memref<576x128xbf16, #tpu.memory_space<vmem>>, %arg3: memref<2x128xf32, #tpu.memory_space<vmem>>, %arg4: memref<16x128xbf16, #tpu.memory_space<vmem>>) attributes {dimension_semantics = [#tpu.dimension_semantics<parallel>], iteration_bounds = array<i64: 2>, scalar_prefetch = 0 : i64, scratch_operands = 0 : i64, tpu.core_type = #tpu.core_type<tc>, window_params = [{transform_indices = @transform_0, window_bounds = array<i64: 16, 576>}, {pipeline_mode = #tpu.pipeline_mode<synchronous>, transform_indices = @transform_1, window_bounds = array<i64: 576, 128>}, {pipeline_mode = #tpu.pipeline_mode<synchronous>, transform_indices = @transform_2, window_bounds = array<i64: 2, 128>}, {transform_indices = @transform_3, window_bounds = array<i64: 16, 128>}]} {
    %c0 = arith.constant 0 : index
    %c0_0 = arith.constant 0 : index
    %0 = vector.load %arg1[%c0, %c0_0] : memref<16x576xbf16, #tpu.memory_space<vmem>>, vector<16x576xbf16>
    %c0_1 = arith.constant 0 : index
    %c0_2 = arith.constant 0 : index
    %1 = vector.load %arg2[%c0_1, %c0_2] : memref<576x128xbf16, #tpu.memory_space<vmem>>, vector<576x128xbf16>
    %cst = arith.constant dense<0.000000e+00> : vector<16x128xf32>
    %2 = tpu.matmul %0, %1, %cst {dimension_numbers = #tpu.dot_dimension_numbers<[1], [0], [0], [1], [0, 0, 1, 1], [], []>} : vector<16x576xbf16>, vector<576x128xbf16>, vector<16x128xf32> -> vector<16x128xf32>
    %c0_3 = arith.constant 0 : index
    %c0_4 = arith.constant 0 : index
    %3 = vector.load %arg3[%c0_3, %c0_4] : memref<2x128xf32, #tpu.memory_space<vmem>>, vector<1x128xf32>
    %4 = vector.broadcast %3 : vector<1x128xf32> to vector<16x128xf32>
    %5 = arith.mulf %2, %4 : vector<16x128xf32>
    %c1 = arith.constant 1 : index
    %c0_5 = arith.constant 0 : index
    %6 = vector.load %arg3[%c1, %c0_5] : memref<2x128xf32, #tpu.memory_space<vmem>>, vector<1x128xf32>
    %7 = vector.broadcast %6 : vector<1x128xf32> to vector<16x128xf32>
    %8 = arith.addf %5, %7 : vector<16x128xf32>
    %cst_6 = arith.constant 0.000000e+00 : f32
    %9 = vector.broadcast %cst_6 : f32 to vector<16x128xf32>
    %10 = arith.maximumf %8, %9 : vector<16x128xf32>
    %11 = arith.truncf %10 : vector<16x128xf32> to vector<16x128xbf16>
    %c0_7 = arith.constant 0 : index
    %c0_8 = arith.constant 0 : index
    %12 = vector.load %arg4[%c0_7, %c0_8] : memref<16x128xbf16, #tpu.memory_space<vmem>>, vector<16x128xbf16>
    tpu.vector_store %arg4[%c0_7, %c0_8], %11 {strides = array<i32>} : memref<16x128xbf16, #tpu.memory_space<vmem>>, vector<16x128xbf16>,
    return
  }
  func.func @transform_0(%arg0: i32) -> (i32, i32) {
    %c0_i32 = arith.constant 0 : i32
    %c0_i32_0 = arith.constant 0 : i32
    return %arg0, %c0_i32 : i32, i32
  }
  func.func @transform_1(%arg0: i32) -> (i32, i32) {
    %c0_i32 = arith.constant 0 : i32
    %c0_i32_0 = arith.constant 0 : i32
    %c0_i32_1 = arith.constant 0 : i32
    return %c0_i32, %c0_i32_0 : i32, i32
  }
  func.func @transform_2(%arg0: i32) -> (i32, i32) {
    %c0_i32 = arith.constant 0 : i32
    %c0_i32_0 = arith.constant 0 : i32
    %c0_i32_1 = arith.constant 0 : i32
    return %c0_i32, %c0_i32_0 : i32, i32
  }
  func.func @transform_3(%arg0: i32) -> (i32, i32) {
    %c0_i32 = arith.constant 0 : i32
    %c0_i32_0 = arith.constant 0 : i32
    return %arg0, %c0_i32 : i32, i32
  }
}

module attributes {stable_mosaic.version = 11 : i64} {
  func.func @_fused_conv_kernel(%arg0: i32, %arg1: memref<16x864xbf16, #tpu.memory_space<vmem>>, %arg2: memref<864x128xbf16, #tpu.memory_space<vmem>>, %arg3: memref<2x128xf32, #tpu.memory_space<vmem>>, %arg4: memref<16x128xbf16, #tpu.memory_space<vmem>>, %arg5: memref<16x128xbf16, #tpu.memory_space<vmem>>) attributes {dimension_semantics = [#tpu.dimension_semantics<parallel>], iteration_bounds = array<i64: 2>, scalar_prefetch = 0 : i64, scratch_operands = 0 : i64, tpu.core_type = #tpu.core_type<tc>, window_params = [{transform_indices = @transform_0, window_bounds = array<i64: 16, 864>}, {pipeline_mode = #tpu.pipeline_mode<synchronous>, transform_indices = @transform_1, window_bounds = array<i64: 864, 128>}, {pipeline_mode = #tpu.pipeline_mode<synchronous>, transform_indices = @transform_2, window_bounds = array<i64: 2, 128>}, {transform_indices = @transform_3, window_bounds = array<i64: 16, 128>}, {transform_indices = @transform_4, window_bounds = array<i64: 16, 128>}]} {
    %c0 = arith.constant 0 : index
    %c0_0 = arith.constant 0 : index
    %0 = vector.load %arg1[%c0, %c0_0] : memref<16x864xbf16, #tpu.memory_space<vmem>>, vector<16x864xbf16>
    %c0_1 = arith.constant 0 : index
    %c0_2 = arith.constant 0 : index
    %1 = vector.load %arg2[%c0_1, %c0_2] : memref<864x128xbf16, #tpu.memory_space<vmem>>, vector<864x128xbf16>
    %cst = arith.constant dense<0.000000e+00> : vector<16x128xf32>
    %2 = tpu.matmul %0, %1, %cst {dimension_numbers = #tpu.dot_dimension_numbers<[1], [0], [0], [1], [0, 0, 1, 1], [], []>} : vector<16x864xbf16>, vector<864x128xbf16>, vector<16x128xf32> -> vector<16x128xf32>
    %c0_3 = arith.constant 0 : index
    %c0_4 = arith.constant 0 : index
    %3 = vector.load %arg3[%c0_3, %c0_4] : memref<2x128xf32, #tpu.memory_space<vmem>>, vector<1x128xf32>
    %4 = vector.broadcast %3 : vector<1x128xf32> to vector<16x128xf32>
    %5 = arith.mulf %2, %4 : vector<16x128xf32>
    %c1 = arith.constant 1 : index
    %c0_5 = arith.constant 0 : index
    %6 = vector.load %arg3[%c1, %c0_5] : memref<2x128xf32, #tpu.memory_space<vmem>>, vector<1x128xf32>
    %7 = vector.broadcast %6 : vector<1x128xf32> to vector<16x128xf32>
    %8 = arith.addf %5, %7 : vector<16x128xf32>
    %c0_6 = arith.constant 0 : index
    %c0_7 = arith.constant 0 : index
    %9 = vector.load %arg4[%c0_6, %c0_7] : memref<16x128xbf16, #tpu.memory_space<vmem>>, vector<16x128xbf16>
    %10 = arith.extf %9 : vector<16x128xbf16> to vector<16x128xf32>
    %11 = arith.addf %8, %10 : vector<16x128xf32>
    %cst_8 = arith.constant 0.000000e+00 : f32
    %12 = vector.broadcast %cst_8 : f32 to vector<16x128xf32>
    %13 = arith.maximumf %11, %12 : vector<16x128xf32>
    %14 = arith.truncf %13 : vector<16x128xf32> to vector<16x128xbf16>
    %c0_9 = arith.constant 0 : index
    %c0_10 = arith.constant 0 : index
    %15 = vector.load %arg5[%c0_9, %c0_10] : memref<16x128xbf16, #tpu.memory_space<vmem>>, vector<16x128xbf16>
    tpu.vector_store %arg5[%c0_9, %c0_10], %14 {strides = array<i32>} : memref<16x128xbf16, #tpu.memory_space<vmem>>, vector<16x128xbf16>,
    return
  }
  func.func @transform_0(%arg0: i32) -> (i32, i32) {
    %c0_i32 = arith.constant 0 : i32
    %c0_i32_0 = arith.constant 0 : i32
    return %arg0, %c0_i32 : i32, i32
  }
  func.func @transform_1(%arg0: i32) -> (i32, i32) {
    %c0_i32 = arith.constant 0 : i32
    %c0_i32_0 = arith.constant 0 : i32
    %c0_i32_1 = arith.constant 0 : i32
    return %c0_i32, %c0_i32_0 : i32, i32
  }
  func.func @transform_2(%arg0: i32) -> (i32, i32) {
    %c0_i32 = arith.constant 0 : i32
    %c0_i32_0 = arith.constant 0 : i32
    %c0_i32_1 = arith.constant 0 : i32
    return %c0_i32, %c0_i32_0 : i32, i32
  }
  func.func @transform_3(%arg0: i32) -> (i32, i32) {
    %c0_i32 = arith.constant 0 : i32
    %c0_i32_0 = arith.constant 0 : i32
    return %arg0, %c0_i32 : i32, i32
  }
  func.func @transform_4(%arg0: i32) -> (i32, i32) {
    %c0_i32 = arith.constant 0 : i32
    %c0_i32_0 = arith.constant 0 : i32
    return %arg0, %c0_i32 : i32, i32
  }
}

module attributes {stable_mosaic.version = 11 : i64} {
  func.func @_fused_conv_kernel(%arg0: i32, %arg1: memref<16x864xbf16, #tpu.memory_space<vmem>>, %arg2: memref<864x256xbf16, #tpu.memory_space<vmem>>, %arg3: memref<2x256xf32, #tpu.memory_space<vmem>>, %arg4: memref<16x128xbf16, #tpu.memory_space<vmem>>, %arg5: memref<16x128xbf16, #tpu.memory_space<vmem>>) attributes {dimension_semantics = [#tpu.dimension_semantics<parallel>], iteration_bounds = array<i64: 1>, scalar_prefetch = 0 : i64, scratch_operands = 0 : i64, tpu.core_type = #tpu.core_type<tc>, window_params = [{transform_indices = @transform_0, window_bounds = array<i64: 16, 864>}, {pipeline_mode = #tpu.pipeline_mode<synchronous>, transform_indices = @transform_1, window_bounds = array<i64: 864, 256>}, {pipeline_mode = #tpu.pipeline_mode<synchronous>, transform_indices = @transform_2, window_bounds = array<i64: 2, 256>}, {transform_indices = @transform_3, window_bounds = array<i64: 16, 128>}, {transform_indices = @transform_4, window_bounds = array<i64: 16, 128>}]} {
    %c0 = arith.constant 0 : index
    %c0_0 = arith.constant 0 : index
    %0 = vector.load %arg1[%c0, %c0_0] : memref<16x864xbf16, #tpu.memory_space<vmem>>, vector<16x864xbf16>
    %c0_1 = arith.constant 0 : index
    %c0_2 = arith.constant 0 : index
    %1 = vector.load %arg2[%c0_1, %c0_2] : memref<864x256xbf16, #tpu.memory_space<vmem>>, vector<864x256xbf16>
    %cst = arith.constant dense<0.000000e+00> : vector<16x256xf32>
    %2 = tpu.matmul %0, %1, %cst {dimension_numbers = #tpu.dot_dimension_numbers<[1], [0], [0], [1], [0, 0, 1, 1], [], []>} : vector<16x864xbf16>, vector<864x256xbf16>, vector<16x256xf32> -> vector<16x256xf32>
    %c0_3 = arith.constant 0 : index
    %c0_4 = arith.constant 0 : index
    %3 = vector.load %arg3[%c0_3, %c0_4] : memref<2x256xf32, #tpu.memory_space<vmem>>, vector<1x256xf32>
    %4 = vector.broadcast %3 : vector<1x256xf32> to vector<16x256xf32>
    %5 = arith.mulf %2, %4 : vector<16x256xf32>
    %c1 = arith.constant 1 : index
    %c0_5 = arith.constant 0 : index
    %6 = vector.load %arg3[%c1, %c0_5] : memref<2x256xf32, #tpu.memory_space<vmem>>, vector<1x256xf32>
    %7 = vector.broadcast %6 : vector<1x256xf32> to vector<16x256xf32>
    %8 = arith.addf %5, %7 : vector<16x256xf32>
    %9 = vector.extract_strided_slice %8 {offsets = [0, 0], sizes = [16, 128], strides = [1, 1]} : vector<16x256xf32> to vector<16x128xf32>
    %cst_6 = arith.constant 0.000000e+00 : f32
    %10 = vector.broadcast %cst_6 : f32 to vector<16x128xf32>
    %11 = arith.maximumf %9, %10 : vector<16x128xf32>
    %12 = arith.truncf %11 : vector<16x128xf32> to vector<16x128xbf16>
    %c0_7 = arith.constant 0 : index
    %c0_8 = arith.constant 0 : index
    %13 = vector.load %arg4[%c0_7, %c0_8] : memref<16x128xbf16, #tpu.memory_space<vmem>>, vector<16x128xbf16>
    tpu.vector_store %arg4[%c0_7, %c0_8], %12 {strides = array<i32>} : memref<16x128xbf16, #tpu.memory_space<vmem>>, vector<16x128xbf16>,
    %14 = vector.extract_strided_slice %8 {offsets = [0, 128], sizes = [16, 128], strides = [1, 1]} : vector<16x256xf32> to vector<16x128xf32>
    %15 = arith.truncf %14 : vector<16x128xf32> to vector<16x128xbf16>
    %c0_9 = arith.constant 0 : index
    %c0_10 = arith.constant 0 : index
    %16 = vector.load %arg5[%c0_9, %c0_10] : memref<16x128xbf16, #tpu.memory_space<vmem>>, vector<16x128xbf16>
    tpu.vector_store %arg5[%c0_9, %c0_10], %15 {strides = array<i32>} : memref<16x128xbf16, #tpu.memory_space<vmem>>, vector<16x128xbf16>,
    return
  }
  func.func @transform_0(%arg0: i32) -> (i32, i32) {
    %c0_i32 = arith.constant 0 : i32
    %c0_i32_0 = arith.constant 0 : i32
    return %arg0, %c0_i32 : i32, i32
  }
  func.func @transform_1(%arg0: i32) -> (i32, i32) {
    %c0_i32 = arith.constant 0 : i32
    %c0_i32_0 = arith.constant 0 : i32
    %c0_i32_1 = arith.constant 0 : i32
    return %c0_i32, %c0_i32_0 : i32, i32
  }
  func.func @transform_2(%arg0: i32) -> (i32, i32) {
    %c0_i32 = arith.constant 0 : i32
    %c0_i32_0 = arith.constant 0 : i32
    %c0_i32_1 = arith.constant 0 : i32
    return %c0_i32, %c0_i32_0 : i32, i32
  }
  func.func @transform_3(%arg0: i32) -> (i32, i32) {
    %c0_i32 = arith.constant 0 : i32
    %c0_i32_0 = arith.constant 0 : i32
    return %arg0, %c0_i32 : i32, i32
  }
  func.func @transform_4(%arg0: i32) -> (i32, i32) {
    %c0_i32 = arith.constant 0 : i32
    %c0_i32_0 = arith.constant 0 : i32
    return %arg0, %c0_i32 : i32, i32
  }
}

module attributes {stable_mosaic.version = 11 : i64} {
  func.func @_fused_conv_kernel(%arg0: i32, %arg1: memref<16x864xbf16, #tpu.memory_space<vmem>>, %arg2: memref<864x128xbf16, #tpu.memory_space<vmem>>, %arg3: memref<2x128xf32, #tpu.memory_space<vmem>>, %arg4: memref<16x128xbf16, #tpu.memory_space<vmem>>) attributes {dimension_semantics = [#tpu.dimension_semantics<parallel>], iteration_bounds = array<i64: 1>, scalar_prefetch = 0 : i64, scratch_operands = 0 : i64, tpu.core_type = #tpu.core_type<tc>, window_params = [{transform_indices = @transform_0, window_bounds = array<i64: 16, 864>}, {pipeline_mode = #tpu.pipeline_mode<synchronous>, transform_indices = @transform_1, window_bounds = array<i64: 864, 128>}, {pipeline_mode = #tpu.pipeline_mode<synchronous>, transform_indices = @transform_2, window_bounds = array<i64: 2, 128>}, {transform_indices = @transform_3, window_bounds = array<i64: 16, 128>}]} {
    %c0 = arith.constant 0 : index
    %c0_0 = arith.constant 0 : index
    %0 = vector.load %arg1[%c0, %c0_0] : memref<16x864xbf16, #tpu.memory_space<vmem>>, vector<16x864xbf16>
    %c0_1 = arith.constant 0 : index
    %c0_2 = arith.constant 0 : index
    %1 = vector.load %arg2[%c0_1, %c0_2] : memref<864x128xbf16, #tpu.memory_space<vmem>>, vector<864x128xbf16>
    %cst = arith.constant dense<0.000000e+00> : vector<16x128xf32>
    %2 = tpu.matmul %0, %1, %cst {dimension_numbers = #tpu.dot_dimension_numbers<[1], [0], [0], [1], [0, 0, 1, 1], [], []>} : vector<16x864xbf16>, vector<864x128xbf16>, vector<16x128xf32> -> vector<16x128xf32>
    %c0_3 = arith.constant 0 : index
    %c0_4 = arith.constant 0 : index
    %3 = vector.load %arg3[%c0_3, %c0_4] : memref<2x128xf32, #tpu.memory_space<vmem>>, vector<1x128xf32>
    %4 = vector.broadcast %3 : vector<1x128xf32> to vector<16x128xf32>
    %5 = arith.mulf %2, %4 : vector<16x128xf32>
    %c1 = arith.constant 1 : index
    %c0_5 = arith.constant 0 : index
    %6 = vector.load %arg3[%c1, %c0_5] : memref<2x128xf32, #tpu.memory_space<vmem>>, vector<1x128xf32>
    %7 = vector.broadcast %6 : vector<1x128xf32> to vector<16x128xf32>
    %8 = arith.addf %5, %7 : vector<16x128xf32>
    %cst_6 = arith.constant 0.000000e+00 : f32
    %9 = vector.broadcast %cst_6 : f32 to vector<16x128xf32>
    %10 = arith.maximumf %8, %9 : vector<16x128xf32>
    %11 = arith.truncf %10 : vector<16x128xf32> to vector<16x128xbf16>
    %c0_7 = arith.constant 0 : index
    %c0_8 = arith.constant 0 : index
    %12 = vector.load %arg4[%c0_7, %c0_8] : memref<16x128xbf16, #tpu.memory_space<vmem>>, vector<16x128xbf16>
    tpu.vector_store %arg4[%c0_7, %c0_8], %11 {strides = array<i32>} : memref<16x128xbf16, #tpu.memory_space<vmem>>, vector<16x128xbf16>,
    return
  }
  func.func @transform_0(%arg0: i32) -> (i32, i32) {
    %c0_i32 = arith.constant 0 : i32
    %c0_i32_0 = arith.constant 0 : i32
    return %arg0, %c0_i32 : i32, i32
  }
  func.func @transform_1(%arg0: i32) -> (i32, i32) {
    %c0_i32 = arith.constant 0 : i32
    %c0_i32_0 = arith.constant 0 : i32
    %c0_i32_1 = arith.constant 0 : i32
    return %c0_i32, %c0_i32_0 : i32, i32
  }
  func.func @transform_2(%arg0: i32) -> (i32, i32) {
    %c0_i32 = arith.constant 0 : i32
    %c0_i32_0 = arith.constant 0 : i32
    %c0_i32_1 = arith.constant 0 : i32
    return %c0_i32, %c0_i32_0 : i32, i32
  }
  func.func @transform_3(%arg0: i32) -> (i32, i32) {
    %c0_i32 = arith.constant 0 : i32
    %c0_i32_0 = arith.constant 0 : i32
    return %arg0, %c0_i32 : i32, i32
  }
}

module attributes {stable_mosaic.version = 11 : i64} {
  func.func @_fused_conv_kernel(%arg0: i32, %arg1: memref<16x864xbf16, #tpu.memory_space<vmem>>, %arg2: memref<864x128xbf16, #tpu.memory_space<vmem>>, %arg3: memref<2x128xf32, #tpu.memory_space<vmem>>, %arg4: memref<16x128xbf16, #tpu.memory_space<vmem>>, %arg5: memref<16x128xbf16, #tpu.memory_space<vmem>>) attributes {dimension_semantics = [#tpu.dimension_semantics<parallel>], iteration_bounds = array<i64: 1>, scalar_prefetch = 0 : i64, scratch_operands = 0 : i64, tpu.core_type = #tpu.core_type<tc>, window_params = [{transform_indices = @transform_0, window_bounds = array<i64: 16, 864>}, {pipeline_mode = #tpu.pipeline_mode<synchronous>, transform_indices = @transform_1, window_bounds = array<i64: 864, 128>}, {pipeline_mode = #tpu.pipeline_mode<synchronous>, transform_indices = @transform_2, window_bounds = array<i64: 2, 128>}, {transform_indices = @transform_3, window_bounds = array<i64: 16, 128>}, {transform_indices = @transform_4, window_bounds = array<i64: 16, 128>}]} {
    %c0 = arith.constant 0 : index
    %c0_0 = arith.constant 0 : index
    %0 = vector.load %arg1[%c0, %c0_0] : memref<16x864xbf16, #tpu.memory_space<vmem>>, vector<16x864xbf16>
    %c0_1 = arith.constant 0 : index
    %c0_2 = arith.constant 0 : index
    %1 = vector.load %arg2[%c0_1, %c0_2] : memref<864x128xbf16, #tpu.memory_space<vmem>>, vector<864x128xbf16>
    %cst = arith.constant dense<0.000000e+00> : vector<16x128xf32>
    %2 = tpu.matmul %0, %1, %cst {dimension_numbers = #tpu.dot_dimension_numbers<[1], [0], [0], [1], [0, 0, 1, 1], [], []>} : vector<16x864xbf16>, vector<864x128xbf16>, vector<16x128xf32> -> vector<16x128xf32>
    %c0_3 = arith.constant 0 : index
    %c0_4 = arith.constant 0 : index
    %3 = vector.load %arg3[%c0_3, %c0_4] : memref<2x128xf32, #tpu.memory_space<vmem>>, vector<1x128xf32>
    %4 = vector.broadcast %3 : vector<1x128xf32> to vector<16x128xf32>
    %5 = arith.mulf %2, %4 : vector<16x128xf32>
    %c1 = arith.constant 1 : index
    %c0_5 = arith.constant 0 : index
    %6 = vector.load %arg3[%c1, %c0_5] : memref<2x128xf32, #tpu.memory_space<vmem>>, vector<1x128xf32>
    %7 = vector.broadcast %6 : vector<1x128xf32> to vector<16x128xf32>
    %8 = arith.addf %5, %7 : vector<16x128xf32>
    %c0_6 = arith.constant 0 : index
    %c0_7 = arith.constant 0 : index
    %9 = vector.load %arg4[%c0_6, %c0_7] : memref<16x128xbf16, #tpu.memory_space<vmem>>, vector<16x128xbf16>
    %10 = arith.extf %9 : vector<16x128xbf16> to vector<16x128xf32>
    %11 = arith.addf %8, %10 : vector<16x128xf32>
    %cst_8 = arith.constant 0.000000e+00 : f32
    %12 = vector.broadcast %cst_8 : f32 to vector<16x128xf32>
    %13 = arith.maximumf %11, %12 : vector<16x128xf32>
    %14 = arith.truncf %13 : vector<16x128xf32> to vector<16x128xbf16>
    %c0_9 = arith.constant 0 : index
    %c0_10 = arith.constant 0 : index
    %15 = vector.load %arg5[%c0_9, %c0_10] : memref<16x128xbf16, #tpu.memory_space<vmem>>, vector<16x128xbf16>
    tpu.vector_store %arg5[%c0_9, %c0_10], %14 {strides = array<i32>} : memref<16x128xbf16, #tpu.memory_space<vmem>>, vector<16x128xbf16>,
    return
  }
  func.func @transform_0(%arg0: i32) -> (i32, i32) {
    %c0_i32 = arith.constant 0 : i32
    %c0_i32_0 = arith.constant 0 : i32
    return %arg0, %c0_i32 : i32, i32
  }
  func.func @transform_1(%arg0: i32) -> (i32, i32) {
    %c0_i32 = arith.constant 0 : i32
    %c0_i32_0 = arith.constant 0 : i32
    %c0_i32_1 = arith.constant 0 : i32
    return %c0_i32, %c0_i32_0 : i32, i32
  }
  func.func @transform_2(%arg0: i32) -> (i32, i32) {
    %c0_i32 = arith.constant 0 : i32
    %c0_i32_0 = arith.constant 0 : i32
    %c0_i32_1 = arith.constant 0 : i32
    return %c0_i32, %c0_i32_0 : i32, i32
  }
  func.func @transform_3(%arg0: i32) -> (i32, i32) {
    %c0_i32 = arith.constant 0 : i32
    %c0_i32_0 = arith.constant 0 : i32
    return %arg0, %c0_i32 : i32, i32
  }
  func.func @transform_4(%arg0: i32) -> (i32, i32) {
    %c0_i32 = arith.constant 0 : i32
    %c0_i32_0 = arith.constant 0 : i32
    return %arg0, %c0_i32 : i32, i32
  }
}

module attributes {stable_mosaic.version = 11 : i64} {
  func.func @_fused_conv_kernel(%arg0: i32, %arg1: memref<16x576xbf16, #tpu.memory_space<vmem>>, %arg2: memref<576x256xbf16, #tpu.memory_space<vmem>>, %arg3: memref<2x256xf32, #tpu.memory_space<vmem>>, %arg4: memref<16x128xbf16, #tpu.memory_space<vmem>>, %arg5: memref<16x128xbf16, #tpu.memory_space<vmem>>) attributes {dimension_semantics = [#tpu.dimension_semantics<parallel>], iteration_bounds = array<i64: 1>, scalar_prefetch = 0 : i64, scratch_operands = 0 : i64, tpu.core_type = #tpu.core_type<tc>, window_params = [{transform_indices = @transform_0, window_bounds = array<i64: 16, 576>}, {pipeline_mode = #tpu.pipeline_mode<synchronous>, transform_indices = @transform_1, window_bounds = array<i64: 576, 256>}, {pipeline_mode = #tpu.pipeline_mode<synchronous>, transform_indices = @transform_2, window_bounds = array<i64: 2, 256>}, {transform_indices = @transform_3, window_bounds = array<i64: 16, 128>}, {transform_indices = @transform_4, window_bounds = array<i64: 16, 128>}]} {
    %c0 = arith.constant 0 : index
    %c0_0 = arith.constant 0 : index
    %0 = vector.load %arg1[%c0, %c0_0] : memref<16x576xbf16, #tpu.memory_space<vmem>>, vector<16x576xbf16>
    %c0_1 = arith.constant 0 : index
    %c0_2 = arith.constant 0 : index
    %1 = vector.load %arg2[%c0_1, %c0_2] : memref<576x256xbf16, #tpu.memory_space<vmem>>, vector<576x256xbf16>
    %cst = arith.constant dense<0.000000e+00> : vector<16x256xf32>
    %2 = tpu.matmul %0, %1, %cst {dimension_numbers = #tpu.dot_dimension_numbers<[1], [0], [0], [1], [0, 0, 1, 1], [], []>} : vector<16x576xbf16>, vector<576x256xbf16>, vector<16x256xf32> -> vector<16x256xf32>
    %c0_3 = arith.constant 0 : index
    %c0_4 = arith.constant 0 : index
    %3 = vector.load %arg3[%c0_3, %c0_4] : memref<2x256xf32, #tpu.memory_space<vmem>>, vector<1x256xf32>
    %4 = vector.broadcast %3 : vector<1x256xf32> to vector<16x256xf32>
    %5 = arith.mulf %2, %4 : vector<16x256xf32>
    %c1 = arith.constant 1 : index
    %c0_5 = arith.constant 0 : index
    %6 = vector.load %arg3[%c1, %c0_5] : memref<2x256xf32, #tpu.memory_space<vmem>>, vector<1x256xf32>
    %7 = vector.broadcast %6 : vector<1x256xf32> to vector<16x256xf32>
    %8 = arith.addf %5, %7 : vector<16x256xf32>
    %9 = vector.extract_strided_slice %8 {offsets = [0, 0], sizes = [16, 128], strides = [1, 1]} : vector<16x256xf32> to vector<16x128xf32>
    %cst_6 = arith.constant 0.000000e+00 : f32
    %10 = vector.broadcast %cst_6 : f32 to vector<16x128xf32>
    %11 = arith.maximumf %9, %10 : vector<16x128xf32>
    %12 = arith.truncf %11 : vector<16x128xf32> to vector<16x128xbf16>
    %c0_7 = arith.constant 0 : index
    %c0_8 = arith.constant 0 : index
    %13 = vector.load %arg4[%c0_7, %c0_8] : memref<16x128xbf16, #tpu.memory_space<vmem>>, vector<16x128xbf16>
    tpu.vector_store %arg4[%c0_7, %c0_8], %12 {strides = array<i32>} : memref<16x128xbf16, #tpu.memory_space<vmem>>, vector<16x128xbf16>,
    %14 = vector.extract_strided_slice %8 {offsets = [0, 128], sizes = [16, 128], strides = [1, 1]} : vector<16x256xf32> to vector<16x128xf32>
    %15 = arith.truncf %14 : vector<16x128xf32> to vector<16x128xbf16>
    %c0_9 = arith.constant 0 : index
    %c0_10 = arith.constant 0 : index
    %16 = vector.load %arg5[%c0_9, %c0_10] : memref<16x128xbf16, #tpu.memory_space<vmem>>, vector<16x128xbf16>
    tpu.vector_store %arg5[%c0_9, %c0_10], %15 {strides = array<i32>} : memref<16x128xbf16, #tpu.memory_space<vmem>>, vector<16x128xbf16>,
    return
  }
  func.func @transform_0(%arg0: i32) -> (i32, i32) {
    %c0_i32 = arith.constant 0 : i32
    %c0_i32_0 = arith.constant 0 : i32
    return %arg0, %c0_i32 : i32, i32
  }
  func.func @transform_1(%arg0: i32) -> (i32, i32) {
    %c0_i32 = arith.constant 0 : i32
    %c0_i32_0 = arith.constant 0 : i32
    %c0_i32_1 = arith.constant 0 : i32
    return %c0_i32, %c0_i32_0 : i32, i32
  }
  func.func @transform_2(%arg0: i32) -> (i32, i32) {
    %c0_i32 = arith.constant 0 : i32
    %c0_i32_0 = arith.constant 0 : i32
    %c0_i32_1 = arith.constant 0 : i32
    return %c0_i32, %c0_i32_0 : i32, i32
  }
  func.func @transform_3(%arg0: i32) -> (i32, i32) {
    %c0_i32 = arith.constant 0 : i32
    %c0_i32_0 = arith.constant 0 : i32
    return %arg0, %c0_i32 : i32, i32
  }
  func.func @transform_4(%arg0: i32) -> (i32, i32) {
    %c0_i32 = arith.constant 0 : i32
    %c0_i32_0 = arith.constant 0 : i32
    return %arg0, %c0_i32 : i32, i32
  }
}

module attributes {stable_mosaic.version = 11 : i64} {
  func.func @_fused_conv_kernel(%arg0: i32, %arg1: memref<16x1152xbf16, #tpu.memory_space<vmem>>, %arg2: memref<1152x128xbf16, #tpu.memory_space<vmem>>, %arg3: memref<2x128xf32, #tpu.memory_space<vmem>>, %arg4: memref<16x128xbf16, #tpu.memory_space<vmem>>, %arg5: memref<16x128xbf16, #tpu.memory_space<vmem>>) attributes {dimension_semantics = [#tpu.dimension_semantics<parallel>], iteration_bounds = array<i64: 1>, scalar_prefetch = 0 : i64, scratch_operands = 0 : i64, tpu.core_type = #tpu.core_type<tc>, window_params = [{transform_indices = @transform_0, window_bounds = array<i64: 16, 1152>}, {pipeline_mode = #tpu.pipeline_mode<synchronous>, transform_indices = @transform_1, window_bounds = array<i64: 1152, 128>}, {pipeline_mode = #tpu.pipeline_mode<synchronous>, transform_indices = @transform_2, window_bounds = array<i64: 2, 128>}, {transform_indices = @transform_3, window_bounds = array<i64: 16, 128>}, {transform_indices = @transform_4, window_bounds = array<i64: 16, 128>}]} {
    %c0 = arith.constant 0 : index
    %c0_0 = arith.constant 0 : index
    %0 = vector.load %arg1[%c0, %c0_0] : memref<16x1152xbf16, #tpu.memory_space<vmem>>, vector<16x1152xbf16>
    %c0_1 = arith.constant 0 : index
    %c0_2 = arith.constant 0 : index
    %1 = vector.load %arg2[%c0_1, %c0_2] : memref<1152x128xbf16, #tpu.memory_space<vmem>>, vector<1152x128xbf16>
    %cst = arith.constant dense<0.000000e+00> : vector<16x128xf32>
    %2 = tpu.matmul %0, %1, %cst {dimension_numbers = #tpu.dot_dimension_numbers<[1], [0], [0], [1], [0, 0, 1, 1], [], []>} : vector<16x1152xbf16>, vector<1152x128xbf16>, vector<16x128xf32> -> vector<16x128xf32>
    %c0_3 = arith.constant 0 : index
    %c0_4 = arith.constant 0 : index
    %3 = vector.load %arg3[%c0_3, %c0_4] : memref<2x128xf32, #tpu.memory_space<vmem>>, vector<1x128xf32>
    %4 = vector.broadcast %3 : vector<1x128xf32> to vector<16x128xf32>
    %5 = arith.mulf %2, %4 : vector<16x128xf32>
    %c1 = arith.constant 1 : index
    %c0_5 = arith.constant 0 : index
    %6 = vector.load %arg3[%c1, %c0_5] : memref<2x128xf32, #tpu.memory_space<vmem>>, vector<1x128xf32>
    %7 = vector.broadcast %6 : vector<1x128xf32> to vector<16x128xf32>
    %8 = arith.addf %5, %7 : vector<16x128xf32>
    %c0_6 = arith.constant 0 : index
    %c0_7 = arith.constant 0 : index
    %9 = vector.load %arg4[%c0_6, %c0_7] : memref<16x128xbf16, #tpu.memory_space<vmem>>, vector<16x128xbf16>
    %10 = arith.extf %9 : vector<16x128xbf16> to vector<16x128xf32>
    %11 = arith.addf %8, %10 : vector<16x128xf32>
    %cst_8 = arith.constant 0.000000e+00 : f32
    %12 = vector.broadcast %cst_8 : f32 to vector<16x128xf32>
    %13 = arith.maximumf %11, %12 : vector<16x128xf32>
    %14 = arith.truncf %13 : vector<16x128xf32> to vector<16x128xbf16>
    %c0_9 = arith.constant 0 : index
    %c0_10 = arith.constant 0 : index
    %15 = vector.load %arg5[%c0_9, %c0_10] : memref<16x128xbf16, #tpu.memory_space<vmem>>, vector<16x128xbf16>
    tpu.vector_store %arg5[%c0_9, %c0_10], %14 {strides = array<i32>} : memref<16x128xbf16, #tpu.memory_space<vmem>>, vector<16x128xbf16>,
    return
  }
  func.func @transform_0(%arg0: i32) -> (i32, i32) {
    %c0_i32 = arith.constant 0 : i32
    %c0_i32_0 = arith.constant 0 : i32
    return %arg0, %c0_i32 : i32, i32
  }
  func.func @transform_1(%arg0: i32) -> (i32, i32) {
    %c0_i32 = arith.constant 0 : i32
    %c0_i32_0 = arith.constant 0 : i32
    %c0_i32_1 = arith.constant 0 : i32
    return %c0_i32, %c0_i32_0 : i32, i32
  }
  func.func @transform_2(%arg0: i32) -> (i32, i32) {
    %c0_i32 = arith.constant 0 : i32
    %c0_i32_0 = arith.constant 0 : i32
    %c0_i32_1 = arith.constant 0 : i32
    return %c0_i32, %c0_i32_0 : i32, i32
  }
  func.func @transform_3(%arg0: i32) -> (i32, i32) {
    %c0_i32 = arith.constant 0 : i32
    %c0_i32_0 = arith.constant 0 : i32
    return %arg0, %c0_i32 : i32, i32
  }
  func.func @transform_4(%arg0: i32) -> (i32, i32) {
    %c0_i32 = arith.constant 0 : i32
    %c0_i32_0 = arith.constant 0 : i32
    return %arg0, %c0_i32 : i32, i32
  }
}

module attributes {stable_mosaic.version = 11 : i64} {
  func.func @_fused_conv_kernel(%arg0: i32, %arg1: memref<16x1152xbf16, #tpu.memory_space<vmem>>, %arg2: memref<1152x256xbf16, #tpu.memory_space<vmem>>, %arg3: memref<2x256xf32, #tpu.memory_space<vmem>>, %arg4: memref<16x128xbf16, #tpu.memory_space<vmem>>, %arg5: memref<16x128xbf16, #tpu.memory_space<vmem>>) attributes {dimension_semantics = [#tpu.dimension_semantics<parallel>], iteration_bounds = array<i64: 1>, scalar_prefetch = 0 : i64, scratch_operands = 0 : i64, tpu.core_type = #tpu.core_type<tc>, window_params = [{transform_indices = @transform_0, window_bounds = array<i64: 16, 1152>}, {pipeline_mode = #tpu.pipeline_mode<synchronous>, transform_indices = @transform_1, window_bounds = array<i64: 1152, 256>}, {pipeline_mode = #tpu.pipeline_mode<synchronous>, transform_indices = @transform_2, window_bounds = array<i64: 2, 256>}, {transform_indices = @transform_3, window_bounds = array<i64: 16, 128>}, {transform_indices = @transform_4, window_bounds = array<i64: 16, 128>}]} {
    %c0 = arith.constant 0 : index
    %c0_0 = arith.constant 0 : index
    %0 = vector.load %arg1[%c0, %c0_0] : memref<16x1152xbf16, #tpu.memory_space<vmem>>, vector<16x1152xbf16>
    %c0_1 = arith.constant 0 : index
    %c0_2 = arith.constant 0 : index
    %1 = vector.load %arg2[%c0_1, %c0_2] : memref<1152x256xbf16, #tpu.memory_space<vmem>>, vector<1152x256xbf16>
    %cst = arith.constant dense<0.000000e+00> : vector<16x256xf32>
    %2 = tpu.matmul %0, %1, %cst {dimension_numbers = #tpu.dot_dimension_numbers<[1], [0], [0], [1], [0, 0, 1, 1], [], []>} : vector<16x1152xbf16>, vector<1152x256xbf16>, vector<16x256xf32> -> vector<16x256xf32>
    %c0_3 = arith.constant 0 : index
    %c0_4 = arith.constant 0 : index
    %3 = vector.load %arg3[%c0_3, %c0_4] : memref<2x256xf32, #tpu.memory_space<vmem>>, vector<1x256xf32>
    %4 = vector.broadcast %3 : vector<1x256xf32> to vector<16x256xf32>
    %5 = arith.mulf %2, %4 : vector<16x256xf32>
    %c1 = arith.constant 1 : index
    %c0_5 = arith.constant 0 : index
    %6 = vector.load %arg3[%c1, %c0_5] : memref<2x256xf32, #tpu.memory_space<vmem>>, vector<1x256xf32>
    %7 = vector.broadcast %6 : vector<1x256xf32> to vector<16x256xf32>
    %8 = arith.addf %5, %7 : vector<16x256xf32>
    %9 = vector.extract_strided_slice %8 {offsets = [0, 0], sizes = [16, 128], strides = [1, 1]} : vector<16x256xf32> to vector<16x128xf32>
    %cst_6 = arith.constant 0.000000e+00 : f32
    %10 = vector.broadcast %cst_6 : f32 to vector<16x128xf32>
    %11 = arith.maximumf %9, %10 : vector<16x128xf32>
    %12 = arith.truncf %11 : vector<16x128xf32> to vector<16x128xbf16>
    %c0_7 = arith.constant 0 : index
    %c0_8 = arith.constant 0 : index
    %13 = vector.load %arg4[%c0_7, %c0_8] : memref<16x128xbf16, #tpu.memory_space<vmem>>, vector<16x128xbf16>
    tpu.vector_store %arg4[%c0_7, %c0_8], %12 {strides = array<i32>} : memref<16x128xbf16, #tpu.memory_space<vmem>>, vector<16x128xbf16>,
    %14 = vector.extract_strided_slice %8 {offsets = [0, 128], sizes = [16, 128], strides = [1, 1]} : vector<16x256xf32> to vector<16x128xf32>
    %15 = arith.truncf %14 : vector<16x128xf32> to vector<16x128xbf16>
    %c0_9 = arith.constant 0 : index
    %c0_10 = arith.constant 0 : index
    %16 = vector.load %arg5[%c0_9, %c0_10] : memref<16x128xbf16, #tpu.memory_space<vmem>>, vector<16x128xbf16>
    tpu.vector_store %arg5[%c0_9, %c0_10], %15 {strides = array<i32>} : memref<16x128xbf16, #tpu.memory_space<vmem>>, vector<16x128xbf16>,
    return
  }
  func.func @transform_0(%arg0: i32) -> (i32, i32) {
    %c0_i32 = arith.constant 0 : i32
    %c0_i32_0 = arith.constant 0 : i32
    return %arg0, %c0_i32 : i32, i32
  }
  func.func @transform_1(%arg0: i32) -> (i32, i32) {
    %c0_i32 = arith.constant 0 : i32
    %c0_i32_0 = arith.constant 0 : i32
    %c0_i32_1 = arith.constant 0 : i32
    return %c0_i32, %c0_i32_0 : i32, i32
  }
  func.func @transform_2(%arg0: i32) -> (i32, i32) {
    %c0_i32 = arith.constant 0 : i32
    %c0_i32_0 = arith.constant 0 : i32
    %c0_i32_1 = arith.constant 0 : i32
    return %c0_i32, %c0_i32_0 : i32, i32
  }
  func.func @transform_3(%arg0: i32) -> (i32, i32) {
    %c0_i32 = arith.constant 0 : i32
    %c0_i32_0 = arith.constant 0 : i32
    return %arg0, %c0_i32 : i32, i32
  }
  func.func @transform_4(%arg0: i32) -> (i32, i32) {
    %c0_i32 = arith.constant 0 : i32
    %c0_i32_0 = arith.constant 0 : i32
    return %arg0, %c0_i32 : i32, i32
  }
}

module attributes {stable_mosaic.version = 11 : i64} {
  func.func @_fused_conv_kernel(%arg0: i32, %arg1: memref<16x1152xbf16, #tpu.memory_space<vmem>>, %arg2: memref<1152x128xbf16, #tpu.memory_space<vmem>>, %arg3: memref<2x128xf32, #tpu.memory_space<vmem>>, %arg4: memref<16x128xbf16, #tpu.memory_space<vmem>>) attributes {dimension_semantics = [#tpu.dimension_semantics<parallel>], iteration_bounds = array<i64: 1>, scalar_prefetch = 0 : i64, scratch_operands = 0 : i64, tpu.core_type = #tpu.core_type<tc>, window_params = [{transform_indices = @transform_0, window_bounds = array<i64: 16, 1152>}, {pipeline_mode = #tpu.pipeline_mode<synchronous>, transform_indices = @transform_1, window_bounds = array<i64: 1152, 128>}, {pipeline_mode = #tpu.pipeline_mode<synchronous>, transform_indices = @transform_2, window_bounds = array<i64: 2, 128>}, {transform_indices = @transform_3, window_bounds = array<i64: 16, 128>}]} {
    %c0 = arith.constant 0 : index
    %c0_0 = arith.constant 0 : index
    %0 = vector.load %arg1[%c0, %c0_0] : memref<16x1152xbf16, #tpu.memory_space<vmem>>, vector<16x1152xbf16>
    %c0_1 = arith.constant 0 : index
    %c0_2 = arith.constant 0 : index
    %1 = vector.load %arg2[%c0_1, %c0_2] : memref<1152x128xbf16, #tpu.memory_space<vmem>>, vector<1152x128xbf16>
    %cst = arith.constant dense<0.000000e+00> : vector<16x128xf32>
    %2 = tpu.matmul %0, %1, %cst {dimension_numbers = #tpu.dot_dimension_numbers<[1], [0], [0], [1], [0, 0, 1, 1], [], []>} : vector<16x1152xbf16>, vector<1152x128xbf16>, vector<16x128xf32> -> vector<16x128xf32>
    %c0_3 = arith.constant 0 : index
    %c0_4 = arith.constant 0 : index
    %3 = vector.load %arg3[%c0_3, %c0_4] : memref<2x128xf32, #tpu.memory_space<vmem>>, vector<1x128xf32>
    %4 = vector.broadcast %3 : vector<1x128xf32> to vector<16x128xf32>
    %5 = arith.mulf %2, %4 : vector<16x128xf32>
    %c1 = arith.constant 1 : index
    %c0_5 = arith.constant 0 : index
    %6 = vector.load %arg3[%c1, %c0_5] : memref<2x128xf32, #tpu.memory_space<vmem>>, vector<1x128xf32>
    %7 = vector.broadcast %6 : vector<1x128xf32> to vector<16x128xf32>
    %8 = arith.addf %5, %7 : vector<16x128xf32>
    %cst_6 = arith.constant 0.000000e+00 : f32
    %9 = vector.broadcast %cst_6 : f32 to vector<16x128xf32>
    %10 = arith.maximumf %8, %9 : vector<16x128xf32>
    %11 = arith.truncf %10 : vector<16x128xf32> to vector<16x128xbf16>
    %c0_7 = arith.constant 0 : index
    %c0_8 = arith.constant 0 : index
    %12 = vector.load %arg4[%c0_7, %c0_8] : memref<16x128xbf16, #tpu.memory_space<vmem>>, vector<16x128xbf16>
    tpu.vector_store %arg4[%c0_7, %c0_8], %11 {strides = array<i32>} : memref<16x128xbf16, #tpu.memory_space<vmem>>, vector<16x128xbf16>,
    return
  }
  func.func @transform_0(%arg0: i32) -> (i32, i32) {
    %c0_i32 = arith.constant 0 : i32
    %c0_i32_0 = arith.constant 0 : i32
    return %arg0, %c0_i32 : i32, i32
  }
  func.func @transform_1(%arg0: i32) -> (i32, i32) {
    %c0_i32 = arith.constant 0 : i32
    %c0_i32_0 = arith.constant 0 : i32
    %c0_i32_1 = arith.constant 0 : i32
    return %c0_i32, %c0_i32_0 : i32, i32
  }
  func.func @transform_2(%arg0: i32) -> (i32, i32) {
    %c0_i32 = arith.constant 0 : i32
    %c0_i32_0 = arith.constant 0 : i32
    %c0_i32_1 = arith.constant 0 : i32
    return %c0_i32, %c0_i32_0 : i32, i32
  }
  func.func @transform_3(%arg0: i32) -> (i32, i32) {
    %c0_i32 = arith.constant 0 : i32
    %c0_i32_0 = arith.constant 0 : i32
    return %arg0, %c0_i32 : i32, i32
  }
}

</mosaic_0001>

<llo_original>
// kernel: restnet18_forward.22
$region0: #{restnet18_forward.22}
  #allocation0 [shape = 'u32[]', space=smem, size = 0x4, offset = 0x4, fixed_abs, tag = 'smem constant byte address 0x4 - core index']
  #allocation1 [shape = 'u32[72,128]{1,0:T(1,128)}', space=vmem, size = 0x9000, scoped, tag = 'internal scratch']
  %s0 = inlined_call_operand.vmem [shape: bf16[128,288], index: 0, kind: input, shape index: {}]
  %s1 = inlined_call_operand.vmem [shape: bf16[288,128], index: 1, kind: input, shape index: {}]
  %s2 = inlined_call_operand.vmem [shape: f32[2,128], index: 2, kind: input, shape index: {}]
  %s3 = inlined_call_operand.vmem [shape: bf16[128,128], index: 3, kind: output, shape index: {}]
  %s4 = sld [smem:[#allocation0]]
  $region45: #{restnet18_forward.22} parent=0
    _
  %s6 = ssub.s32 1, %s4
  %s7 = scalar_select 0, %s6, %s4
  loop: start=0, step=1, limit=4
  $region2: #{restnet18_forward.22} parent=0 // loop_pre_header
    _
  $region3: #{restnet18_forward.22} parent=0 // loop_header
    %s9 = sphi 0, %s13
    %p10 = scmp.ge.s32.totalorder %s9, 4
    %s19 = sphi 0, %s21
    %s22 = sphi 0, %s19
    %s23 = sphi 0, %s22
    %s39 = sphi 0, %s23
    %s43 = sphi 0, %s43
    %s45 = sphi 0, %s43
    %s46 = sphi 0, %s45
    %s60 = sphi 0, %s46
    %s64 = sphi 0, %s64
    %s66 = sphi 0, %s64
    %s67 = sphi 0, %s66
    %s81 = sphi 0, %s67
    %s87 = sphi 0, %s89
    %s90 = sphi 0, %s87
    %s91 = sphi 0, %s90
    %s107 = sphi 0, %s91
  $region4: #{restnet18_forward.22} parent=0 // loop_header_branch
    %12 = sbr.rel (%p10) target = $region8
  $region5: #{restnet18_forward.22} parent=0 // loop_body
    %s14 = ssub.s32 %s9, 1
    %s15 = ssub.s32 %s9, 2
    %s16 = sadd.s32 %s9, 1
    %s17 = ssub.s32 %s9, %s16
    %p18 = scmp.eq.s32.totalorder %s17, 0
    %s20 = sadd.s32 %s19, 1
    %s21 = scalar_select %p18, %s19, %s20
    %p24 = pneg %p18
    %p25 = scmp.eq.s32.totalorder %s9, 1
    %p26 = por %p24, %p25
    %p27 = scmp.ne.s32.totalorder %s19, %s22
    %p28 = scmp.eq.s32.totalorder %s9, 0
    %p29 = por %p27, %p28
    %p30 = scmp.ne.s32.totalorder %s19, %s22
    %p31 = scmp.eq.s32.totalorder %s14, 1
    %p32 = por %p30, %p31
    %p33 = scmp.ne.s32.totalorder %s22, %s23
    %p34 = scmp.eq.s32.totalorder %s14, 0
    %p35 = por %p33, %p34
    %p36 = scmp.ne.s32.totalorder %s22, %s23
    %p37 = scmp.eq.s32.totalorder %s15, 1
    %p38 = por %p36, %p37
    %p40 = scmp.ne.s32.totalorder %s23, %s39
    %p41 = scmp.eq.s32.totalorder %s15, 0
    %p42 = por %p40, %p41
    %s44 = sadd.s32 %s43, 1
    %p47 = scmp.eq.s32.totalorder %s9, 1
    %p48 = scmp.ne.s32.totalorder %s43, %s45
    %p49 = scmp.eq.s32.totalorder %s9, 0
    %p50 = por %p48, %p49
    %p51 = scmp.ne.s32.totalorder %s43, %s45
    %p52 = scmp.eq.s32.totalorder %s14, 1
    %p53 = por %p51, %p52
    %p54 = scmp.ne.s32.totalorder %s45, %s46
    %p55 = scmp.eq.s32.totalorder %s14, 0
    %p56 = por %p54, %p55
    %p57 = scmp.ne.s32.totalorder %s45, %s46
    %p58 = scmp.eq.s32.totalorder %s15, 1
    %p59 = por %p57, %p58
    %p61 = scmp.ne.s32.totalorder %s46, %s60
    %p62 = scmp.eq.s32.totalorder %s15, 0
    %p63 = por %p61, %p62
    %s65 = sadd.s32 %s64, 1
    %p68 = scmp.eq.s32.totalorder %s9, 1
    %p69 = scmp.ne.s32.totalorder %s64, %s66
    %p70 = scmp.eq.s32.totalorder %s9, 0
    %p71 = por %p69, %p70
    %p72 = scmp.ne.s32.totalorder %s64, %s66
    %p73 = scmp.eq.s32.totalorder %s14, 1
    %p74 = por %p72, %p73
    %p75 = scmp.ne.s32.totalorder %s66, %s67
    %p76 = scmp.eq.s32.totalorder %s14, 0
    %p77 = por %p75, %p76
    %p78 = scmp.ne.s32.totalorder %s66, %s67
    %p79 = scmp.eq.s32.totalorder %s15, 1
    %p80 = por %p78, %p79
    %p82 = scmp.ne.s32.totalorder %s67, %s81
    %p83 = scmp.eq.s32.totalorder %s15, 0
    %p84 = por %p82, %p83
    %s85 = ssub.s32 %s9, %s16
    %p86 = scmp.eq.s32.totalorder %s85, 0
    %s88 = sadd.s32 %s87, 1
    %s89 = scalar_select %p86, %s87, %s88
    %p92 = pneg %p86
    %p93 = scmp.eq.s32.totalorder %s9, 1
    %p94 = por %p92, %p93
    %p95 = scmp.ne.s32.totalorder %s87, %s90
    %p96 = scmp.eq.s32.totalorder %s9, 0
    %p97 = por %p95, %p96
    %p98 = scmp.ne.s32.totalorder %s87, %s90
    %p99 = scmp.eq.s32.totalorder %s14, 1
    %p100 = por %p98, %p99
    %p101 = scmp.ne.s32.totalorder %s90, %s91
    %p102 = scmp.eq.s32.totalorder %s14, 0
    %p103 = por %p101, %p102
    %p104 = scmp.ne.s32.totalorder %s90, %s91
    %p105 = scmp.eq.s32.totalorder %s15, 1
    %p106 = por %p104, %p105
    %p108 = scmp.ne.s32.totalorder %s91, %s107
    %p109 = scmp.eq.s32.totalorder %s15, 0
    %p110 = por %p108, %p109
    %p111 = scmp.le.s32.totalorder 1, %s9
    %p112 = scmp.lt.s32.totalorder %s9, 3
    %p113 = pnand %p111, %p112
    %p114 = pneg %p113
    // Predicated region
    $region9: #{restnet18_forward.22} parent=5 // pred_check
      _
    $region10: #{restnet18_forward.22} parent=5 // pred_check_branch
      %116 = sbr.rel (%p113) target = $region12
    $region11: #{restnet18_forward.22} parent=5 // pred_region
      %s117 = ssub.s32 %s9, 1
      // Predicated region
      $region13: #{restnet18_forward.22} parent=11 // pred_check
        %p118 = pneg %p56
      $region14: #{restnet18_forward.22} parent=11 // pred_check_branch
        %120 = sbr.rel (%p118) target = $region16
      $region15: #{restnet18_forward.22} parent=11 // pred_region
        _
      $region16: #{restnet18_forward.22} parent=11 // pred_fallthru
        _
      // Predicated region
      $region17: #{restnet18_forward.22} parent=11 // pred_check
        %p121 = pneg %p77
      $region18: #{restnet18_forward.22} parent=11 // pred_check_branch
        %123 = sbr.rel (%p121) target = $region20
      $region19: #{restnet18_forward.22} parent=11 // pred_region
        _
      $region20: #{restnet18_forward.22} parent=11 // pred_fallthru
        _
    $region12: #{restnet18_forward.22} parent=5 // pred_fallthru
      _
    %p124 = scmp.lt.s32.totalorder %s9, 2
    // Predicated region
    $region21: #{restnet18_forward.22} parent=5 // pred_check
      %p125 = pneg %p124
    $region22: #{restnet18_forward.22} parent=5 // pred_check_branch
      %127 = sbr.rel (%p125) target = $region24
    $region23: #{restnet18_forward.22} parent=5 // pred_region
      // Predicated region
      $region25: #{restnet18_forward.22} parent=23 // pred_check
        %p128 = pneg %p29
      $region26: #{restnet18_forward.22} parent=23 // pred_check_branch
        %130 = sbr.rel (%p128) target = $region28
      $region27: #{restnet18_forward.22} parent=23 // pred_region
        %s131 = smul.u32 8, %s9
        %p132 = scmp.lt.s32.totalorder %s131, 15
        %s133 = scalar_select %p132, %s131, 15
        %s134 = smul.addr %s133, 3
        %s135 = smul.addr %s134, 4
        %s136 = scalar_lea.vmem %s0, %s135
        %s137 = smul.u32 8, %s9
      $region28: #{restnet18_forward.22} parent=23 // pred_fallthru
        _
    $region24: #{restnet18_forward.22} parent=5 // pred_fallthru
      _
    %p138 = scmp.le.s32.totalorder 1, %s9
    %p139 = scmp.lt.s32.totalorder %s9, 3
    %p140 = pnand %p138, %p139
    %p141 = pneg %p140
    // Predicated region
    $region29: #{restnet18_forward.22} parent=5 // pred_check
      _
    $region30: #{restnet18_forward.22} parent=5 // pred_check_branch
      %143 = sbr.rel (%p140) target = $region32
    $region31: #{restnet18_forward.22} parent=5 // pred_region
      %s144 = ssub.s32 %s9, 1
      %s145 = smul.u32 8, %s14
      %p146 = scmp.lt.s32.totalorder %s145, 15
      %s147 = scalar_select %p146, %s145, 15
      %s148 = smul.addr %s147, 3
      %s149 = smul.addr %s148, 4
      %s150 = scalar_lea.vmem %s0, %s149
      %p151 = pneg %p35
      %p152 = pneg %p32
      %p153 = pneg %p56
      %p154 = pneg %p53
      %p155 = pneg %p77
      %p156 = pneg %p74
      %p157 = pneg %p103
      %p158 = pneg %p100
      %s159 = smul.u32 8, %s14
      %p160 = scmp.lt.s32.totalorder %s159, 15
      %s161 = scalar_select %p160, %s159, 15
      %s162 = smul.addr %s161, 4
      %s163 = scalar_lea.vmem %s3, %s162
      %s164 = smul.u32 8, %s14
      %p165 = scmp.lt.s32.totalorder %s164, 15
      %s166 = scalar_select %p165, %s164, 15
      %s167 = smul.addr %s166, 3
      %s168 = smul.addr %s167, 4
      %s169 = scalar_lea.vmem %s0, %s168
      %s170 = smul.u32 8, %s14
      %s171 = smul.u32 8, %s14
      %p172 = scmp.lt.s32.totalorder %s171, 15
      %s173 = scalar_select %p172, %s171, 15
      %s174 = smul.addr %s173, 4
      %s175 = scalar_lea.vmem %s3, %s174
      %s176 = smul.u32 8, %s14
      %v178 = vld [vmem:[%s169] sm:$0xff]
      %v179 = vld [vmem:[%s169 + $0x8] sm:$0xf]
      %v180 = vld [vmem:[%s169 + $0xc] sm:$0xff]
      %v181 = vld [vmem:[%s169 + $0x14] sm:$0xf]
      %v182 = vld [vmem:[%s169 + $0x18] sm:$0xff]
      %v183 = vld [vmem:[%s169 + $0x20] sm:$0xf]
      %v184 = vld [vmem:[%s169 + $0x24] sm:$0xff]
      %v185 = vld [vmem:[%s169 + $0x2c] sm:$0xf]
      %v186 = vld [vmem:[%s169 + $0x30] sm:$0xff]
      %v187 = vld [vmem:[%s169 + $0x38] sm:$0xf]
      %v188 = vld [vmem:[%s169 + $0x3c] sm:$0xff]
      %v189 = vld [vmem:[%s169 + $0x44] sm:$0xf]
      %v190 = vld [vmem:[%s169 + $0x48] sm:$0xff]
      %v191 = vld [vmem:[%s169 + $0x50] sm:$0xf]
      %v192 = vld [vmem:[%s169 + $0x54] sm:$0xff]
      %v193 = vld [vmem:[%s169 + $0x5c] sm:$0xf]
      %v194 = vld [vmem:[%s1] sm:$0xf]
      %v195 = vld [vmem:[%s1 + $0x4] sm:$0xf]
      %v196 = vld [vmem:[%s1 + $0x8] sm:$0xf]
      %v197 = vld [vmem:[%s1 + $0xc] sm:$0xf]
      %v198 = vld [vmem:[%s1 + $0x10] sm:$0xf]
      %v199 = vld [vmem:[%s1 + $0x14] sm:$0xf]
      %v200 = vld [vmem:[%s1 + $0x18] sm:$0xf]
      %v201 = vld [vmem:[%s1 + $0x1c] sm:$0xf]
      %v202 = vld [vmem:[%s1 + $0x20] sm:$0xf]
      %v203 = vld [vmem:[%s1 + $0x24] sm:$0xf]
      %v204 = vld [vmem:[%s1 + $0x28] sm:$0xf]
      %v205 = vld [vmem:[%s1 + $0x2c] sm:$0xf]
      %v206 = vld [vmem:[%s1 + $0x30] sm:$0xf]
      %v207 = vld [vmem:[%s1 + $0x34] sm:$0xf]
      %v208 = vld [vmem:[%s1 + $0x38] sm:$0xf]
      %v209 = vld [vmem:[%s1 + $0x3c] sm:$0xf]
      %v210 = vld [vmem:[%s1 + $0x40] sm:$0xf]
      %v211 = vld [vmem:[%s1 + $0x44] sm:$0xf]
      %v212 = vld [vmem:[%s1 + $0x48] sm:$0xf]
      %v213 = vld [vmem:[%s1 + $0x4c] sm:$0xf]
      %v214 = vld [vmem:[%s1 + $0x50] sm:$0xf]
      %v215 = vld [vmem:[%s1 + $0x54] sm:$0xf]
      %v216 = vld [vmem:[%s1 + $0x58] sm:$0xf]
      %v217 = vld [vmem:[%s1 + $0x5c] sm:$0xf]
      %v218 = vld [vmem:[%s1 + $0x60] sm:$0xf]
      %v219 = vld [vmem:[%s1 + $0x64] sm:$0xf]
      %v220 = vld [vmem:[%s1 + $0x68] sm:$0xf]
      %v221 = vld [vmem:[%s1 + $0x6c] sm:$0xf]
      %v222 = vld [vmem:[%s1 + $0x70] sm:$0xf]
      %v223 = vld [vmem:[%s1 + $0x74] sm:$0xf]
      %v224 = vld [vmem:[%s1 + $0x78] sm:$0xf]
      %v225 = vld [vmem:[%s1 + $0x7c] sm:$0xf]
      %v226 = vld [vmem:[%s1 + $0x80] sm:$0xf]
      %v227 = vld [vmem:[%s1 + $0x84] sm:$0xf]
      %v228 = vld [vmem:[%s1 + $0x88] sm:$0xf]
      %v229 = vld [vmem:[%s1 + $0x8c] sm:$0xf]
      %v246 = vunpack.c.l.b16 %v178
      %v247 = vunpack.c.h.b16 %v178
      %v248 = vunpack.c.l.b16 %v179
      %v249 = vunpack.c.l.b16 %v180
      %v250 = vunpack.c.h.b16 %v180
      %v251 = vunpack.c.l.b16 %v181
      %v252 = vunpack.c.l.b16 %v182
      %v253 = vunpack.c.h.b16 %v182
      %v254 = vunpack.c.l.b16 %v183
      %v255 = vunpack.c.l.b16 %v184
      %v256 = vunpack.c.h.b16 %v184
      %v257 = vunpack.c.l.b16 %v185
      %v258 = vunpack.c.l.b16 %v186
      %v259 = vunpack.c.h.b16 %v186
      %v260 = vunpack.c.l.b16 %v187
      %v261 = vunpack.c.l.b16 %v188
      %v262 = vunpack.c.h.b16 %v188
      %v263 = vunpack.c.l.b16 %v189
      %v264 = vunpack.c.l.b16 %v190
      %v265 = vunpack.c.h.b16 %v190
      %v266 = vunpack.c.l.b16 %v191
      %v267 = vunpack.c.l.b16 %v192
      %v268 = vunpack.c.h.b16 %v192
      %v269 = vunpack.c.l.b16 %v193
      %v270 = vpack.c.b16 %v249, %v246
      %v271 = vpack.c.b16 %v250, %v247
      %v272 = vpack.c.b16 %v251, %v248
      %v273 = vpack.c.b16 %v255, %v252
      %v274 = vpack.c.b16 %v256, %v253
      %v275 = vpack.c.b16 %v257, %v254
      %v276 = vpack.c.b16 %v261, %v258
      %v277 = vpack.c.b16 %v262, %v259
      %v278 = vpack.c.b16 %v263, %v260
      %v279 = vpack.c.b16 %v267, %v264
      %v280 = vpack.c.b16 %v268, %v265
      %v281 = vpack.c.b16 %v269, %v266
      %v326 = vunpack.c.l.b16 %v194
      %v327 = vunpack.c.l.b16 %v195
      %v328 = vunpack.c.l.b16 %v196
      %v329 = vunpack.c.l.b16 %v197
      %v330 = vunpack.c.l.b16 %v198
      %v331 = vunpack.c.l.b16 %v199
      %v332 = vunpack.c.l.b16 %v200
      %v333 = vunpack.c.l.b16 %v201
      %v334 = vunpack.c.l.b16 %v202
      %v335 = vunpack.c.l.b16 %v203
      %v336 = vunpack.c.l.b16 %v204
      %v337 = vunpack.c.l.b16 %v205
      %v338 = vunpack.c.l.b16 %v206
      %v339 = vunpack.c.l.b16 %v207
      %v340 = vunpack.c.l.b16 %v208
      %v341 = vunpack.c.l.b16 %v209
      %v342 = vunpack.c.l.b16 %v210
      %v343 = vunpack.c.l.b16 %v211
      %v344 = vunpack.c.l.b16 %v212
      %v345 = vunpack.c.l.b16 %v213
      %v346 = vunpack.c.l.b16 %v214
      %v347 = vunpack.c.l.b16 %v215
      %v348 = vunpack.c.l.b16 %v216
      %v349 = vunpack.c.l.b16 %v217
      %v350 = vunpack.c.l.b16 %v218
      %v351 = vunpack.c.l.b16 %v219
      %v352 = vunpack.c.l.b16 %v220
      %v353 = vunpack.c.l.b16 %v221
      %v354 = vunpack.c.l.b16 %v222
      %v355 = vunpack.c.l.b16 %v223
      %v356 = vunpack.c.l.b16 %v224
      %v357 = vunpack.c.l.b16 %v225
      %v358 = vunpack.c.l.b16 %v226
      %v359 = vunpack.c.l.b16 %v227
      %v360 = vunpack.c.l.b16 %v228
      %v361 = vunpack.c.l.b16 %v229
      %v362 = vpack.c.b16 %v327, %v326
      %v363 = vpack.c.b16 %v329, %v328
      %v364 = vpack.c.b16 %v331, %v330
      %v365 = vpack.c.b16 %v333, %v332
      %v366 = vpack.c.b16 %v335, %v334
      %v367 = vpack.c.b16 %v337, %v336
      %v368 = vpack.c.b16 %v339, %v338
      %v369 = vpack.c.b16 %v341, %v340
      %v370 = vpack.c.b16 %v343, %v342
      %v371 = vpack.c.b16 %v345, %v344
      %v372 = vpack.c.b16 %v347, %v346
      %v373 = vpack.c.b16 %v349, %v348
      %v374 = vpack.c.b16 %v351, %v350
      %v375 = vpack.c.b16 %v353, %v352
      %v376 = vpack.c.b16 %v355, %v354
      %v377 = vpack.c.b16 %v357, %v356
      %v378 = vpack.c.b16 %v359, %v358
      %v379 = vpack.c.b16 %v361, %v360
      %vm398 = vcmask 261120
      %v400 = vsel %vm398, %v272, 0
      %v403 = vsel %vm398, %v275, 0
      %v406 = vsel %vm398, %v278, 0
      %v409 = vsel %vm398, %v281, 0
      %411 = vmatpush.bf16.msra.mxu0 %v369
      %412 = vmatpush.bf16.msra.mxu0 %v368
      %413 = vmatpush.bf16.msra.mxu0 %v367
      %414 = vmatpush.bf16.msra.mxu0 %v366
      %415 = vmatpush.bf16.msra.mxu0 %v365
      %416 = vmatpush.bf16.msra.mxu0 %v364
      %417 = vmatpush.bf16.msra.mxu0 %v363
      %418 = vmatpush.bf16.msra.mxu0 %v362
      %419 = vmatmul.bf16.gmra.mxu0 %v270
      %v420 = vpop.f32.mrf.mxu0
      %v421 = vadd.f32 0.0, %v420
      %v422 = vpop.f32.mrf.mxu0
      %v423 = vadd.f32 0.0, %v422
      %424 = vmatmul.bf16.gmra.mxu0 %v273
      %v425 = vpop.f32.mrf.mxu0
      %v426 = vadd.f32 0.0, %v425
      %v427 = vpop.f32.mrf.mxu0
      %v428 = vadd.f32 0.0, %v427
      %429 = vmatmul.bf16.gmra.mxu0 %v276
      %v430 = vpop.f32.mrf.mxu0
      %v431 = vadd.f32 0.0, %v430
      %v432 = vpop.f32.mrf.mxu0
      %v433 = vadd.f32 0.0, %v432
      %434 = vmatmul.bf16.gmra.mxu0 %v279
      %v435 = vpop.f32.mrf.mxu0
      %v436 = vadd.f32 0.0, %v435
      %v437 = vpop.f32.mrf.mxu0
      %v438 = vadd.f32 0.0, %v437
      %439 = vdwg.mxu0
      %440 = vmatpush.bf16.msra.mxu0 %v377
      %441 = vmatpush.bf16.msra.mxu0 %v376
      %442 = vmatpush.bf16.msra.mxu0 %v375
      %443 = vmatpush.bf16.msra.mxu0 %v374
      %444 = vmatpush.bf16.msra.mxu0 %v373
      %445 = vmatpush.bf16.msra.mxu0 %v372
      %446 = vmatpush.bf16.msra.mxu0 %v371
      %447 = vmatpush.bf16.msra.mxu0 %v370
      %448 = vmatmul.bf16.gmra.mxu0 %v271
      %v449 = vpop.f32.mrf.mxu0
      %v450 = vadd.f32 %v421, %v449
      %v451 = vpop.f32.mrf.mxu0
      %v452 = vadd.f32 %v423, %v451
      %453 = vmatmul.bf16.gmra.mxu0 %v274
      %v454 = vpop.f32.mrf.mxu0
      %v455 = vadd.f32 %v426, %v454
      %v456 = vpop.f32.mrf.mxu0
      %v457 = vadd.f32 %v428, %v456
      %458 = vmatmul.bf16.gmra.mxu0 %v277
      %v459 = vpop.f32.mrf.mxu0
      %v460 = vadd.f32 %v431, %v459
      %v461 = vpop.f32.mrf.mxu0
      %v462 = vadd.f32 %v433, %v461
      %463 = vmatmul.bf16.gmra.mxu0 %v280
      %v464 = vpop.f32.mrf.mxu0
      %v465 = vadd.f32 %v436, %v464
      %v466 = vpop.f32.mrf.mxu0
      %v467 = vadd.f32 %v438, %v466
      %468 = vdwg.mxu0
      %469 = vmatpush.bf16.msra.mxu0 0
      %470 = vmatpush.bf16.msra.mxu0 0
      %471 = vmatpush.bf16.msra.mxu0 0
      %472 = vmatpush.bf16.msra.mxu0 0
      %473 = vmatpush.bf16.msra.mxu0 0
      %474 = vmatpush.bf16.msra.mxu0 0
      %475 = vmatpush.bf16.msra.mxu0 %v379
      %476 = vmatpush.bf16.msra.mxu0 %v378
      %477 = vmatmul.bf16.gmra.mxu0 %v400
      %v478 = vpop.f32.mrf.mxu0
      %v479 = vadd.f32 %v450, %v478
      %v480 = vpop.f32.mrf.mxu0
      %v481 = vadd.f32 %v452, %v480
      %482 = vmatmul.bf16.gmra.mxu0 %v403
      %v483 = vpop.f32.mrf.mxu0
      %v484 = vadd.f32 %v455, %v483
      %v485 = vpop.f32.mrf.mxu0
      %v486 = vadd.f32 %v457, %v485
      %487 = vmatmul.bf16.gmra.mxu0 %v406
      %v488 = vpop.f32.mrf.mxu0
      %v489 = vadd.f32 %v460, %v488
      %v490 = vpop.f32.mrf.mxu0
      %v491 = vadd.f32 %v462, %v490
      %492 = vmatmul.bf16.gmra.mxu0 %v409
      %v493 = vpop.f32.mrf.mxu0
      %v494 = vadd.f32 %v465, %v493
      %v495 = vpop.f32.mrf.mxu0
      %v496 = vadd.f32 %v467, %v495
      %497 = vdwg.mxu0
      %v498 = vld [vmem:[%s2] sm:$0x1]
      %v499 = vperm.slane %v498, 0
      %v500 = vmul.f32 %v479, %v499
      %v501 = vmul.f32 %v481, %v499
      %v502 = vmul.f32 %v484, %v499
      %v503 = vmul.f32 %v486, %v499
      %v504 = vmul.f32 %v489, %v499
      %v505 = vmul.f32 %v491, %v499
      %v506 = vmul.f32 %v494, %v499
      %v507 = vmul.f32 %v496, %v499
      %v508 = vld [vmem:[%s2 + $0x1] sm:$0x1]
      %v509 = vperm.slane %v508, 0
      %v510 = vadd.f32 %v500, %v509
      %v511 = vadd.f32 %v501, %v509
      %v512 = vadd.f32 %v502, %v509
      %v513 = vadd.f32 %v503, %v509
      %v514 = vadd.f32 %v504, %v509
      %v515 = vadd.f32 %v505, %v509
      %v516 = vadd.f32 %v506, %v509
      %v517 = vadd.f32 %v507, %v509
      %v518 = vmax.f32 %v510, 0.0
      %v519 = vmax.f32 %v511, 0.0
      %v520 = vmax.f32 %v512, 0.0
      %v521 = vmax.f32 %v513, 0.0
      %v522 = vmax.f32 %v514, 0.0
      %v523 = vmax.f32 %v515, 0.0
      %v524 = vmax.f32 %v516, 0.0
      %v525 = vmax.f32 %v517, 0.0
      %v526 = vpack.c.bf16 %v518, %v518
      %v527 = vpack.c.bf16 %v519, %v519
      %v528 = vpack.c.bf16 %v520, %v520
      %v529 = vpack.c.bf16 %v521, %v521
      %v530 = vpack.c.bf16 %v522, %v522
      %v531 = vpack.c.bf16 %v523, %v523
      %v532 = vpack.c.bf16 %v524, %v524
      %v533 = vpack.c.bf16 %v525, %v525
      %534 = vst [vmem:[%s175] sm:$0xf] %v526
      %535 = vst [vmem:[%s175 + $0x4] sm:$0xf] %v527
      %536 = vst [vmem:[%s175 + $0x8] sm:$0xf] %v528
      %537 = vst [vmem:[%s175 + $0xc] sm:$0xf] %v529
      %538 = vst [vmem:[%s175 + $0x10] sm:$0xf] %v530
      %539 = vst [vmem:[%s175 + $0x14] sm:$0xf] %v531
      %540 = vst [vmem:[%s175 + $0x18] sm:$0xf] %v532
      %541 = vst [vmem:[%s175 + $0x1c] sm:$0xf] %v533
      %s542 = smul.u32 8, %s14
      %p543 = scmp.lt.s32.totalorder %s542, 15
      %s544 = scalar_select %p543, %s542, 15
      %s545 = smul.addr %s544, 4
      %s546 = scalar_lea.vmem %s3, %s545
      // Predicated region
      $region33: #{restnet18_forward.22} parent=31 // pred_check
        %p547 = pneg %p100
      $region34: #{restnet18_forward.22} parent=31 // pred_check_branch
        %549 = sbr.rel (%p547) target = $region36
      $region35: #{restnet18_forward.22} parent=31 // pred_region
        %s550 = smul.u32 8, %s14
      $region36: #{restnet18_forward.22} parent=31 // pred_fallthru
        _
    $region32: #{restnet18_forward.22} parent=5 // pred_fallthru
      _
    %p551 = scmp.le.s32.totalorder 2, %s9
    // Predicated region
    $region37: #{restnet18_forward.22} parent=5 // pred_check
      %p552 = pneg %p551
    $region38: #{restnet18_forward.22} parent=5 // pred_check_branch
      %554 = sbr.rel (%p552) target = $region40
    $region39: #{restnet18_forward.22} parent=5 // pred_region
      %s555 = ssub.s32 %s9, 2
      // Predicated region
      $region41: #{restnet18_forward.22} parent=39 // pred_check
        %p556 = pneg %p106
      $region42: #{restnet18_forward.22} parent=39 // pred_check_branch
        %558 = sbr.rel (%p556) target = $region44
      $region43: #{restnet18_forward.22} parent=39 // pred_region
        %s559 = smul.u32 8, %s15
        %p560 = scmp.lt.s32.totalorder %s559, 15
        %s561 = scalar_select %p560, %s559, 15
        %s562 = smul.addr %s561, 4
        %s563 = scalar_lea.vmem %s3, %s562
      $region44: #{restnet18_forward.22} parent=39 // pred_fallthru
        _
    $region40: #{restnet18_forward.22} parent=5 // pred_fallthru
      _
  $region6: #{restnet18_forward.22} parent=0 // loop_footer
    %s13 = sadd.s32 1, %s9
  $region7: #{restnet18_forward.22} parent=0 // loop_footer_branch
    %8 = sbr.rel target = $region3
  $region8: #{restnet18_forward.22} parent=0 // loop_exit
    _

// kernel: restnet18_forward.21
$region0: #{restnet18_forward.21}
  #allocation0 [shape = 'u32[]', space=smem, size = 0x4, offset = 0x4, fixed_abs, tag = 'smem constant byte address 0x4 - core index']
  #allocation1 [shape = 'u32[72,128]{1,0:T(1,128)}', space=vmem, size = 0x9000, scoped, tag = 'internal scratch']
  %s0 = inlined_call_operand.vmem [shape: bf16[128,784], index: 0, kind: input, shape index: {}]
  %s1 = inlined_call_operand.vmem [shape: bf16[784,128], index: 1, kind: input, shape index: {}]
  %s2 = inlined_call_operand.vmem [shape: f32[2,128], index: 2, kind: input, shape index: {}]
  %s3 = inlined_call_operand.vmem [shape: bf16[128,128], index: 3, kind: output, shape index: {}]
  %s4 = sld [smem:[#allocation0]]
  $region45: #{restnet18_forward.21} parent=0
    _
  %s6 = ssub.s32 1, %s4
  %s7 = scalar_select 0, %s6, %s4
  loop: start=0, step=1, limit=4
  $region2: #{restnet18_forward.21} parent=0 // loop_pre_header
    _
  $region3: #{restnet18_forward.21} parent=0 // loop_header
    %s9 = sphi 0, %s13
    %p10 = scmp.ge.s32.totalorder %s9, 4
    %s19 = sphi 0, %s21
    %s22 = sphi 0, %s19
    %s23 = sphi 0, %s22
    %s39 = sphi 0, %s23
    %s43 = sphi 0, %s43
    %s45 = sphi 0, %s43
    %s46 = sphi 0, %s45
    %s60 = sphi 0, %s46
    %s64 = sphi 0, %s64
    %s66 = sphi 0, %s64
    %s67 = sphi 0, %s66
    %s81 = sphi 0, %s67
    %s87 = sphi 0, %s89
    %s90 = sphi 0, %s87
    %s91 = sphi 0, %s90
    %s107 = sphi 0, %s91
  $region4: #{restnet18_forward.21} parent=0 // loop_header_branch
    %12 = sbr.rel (%p10) target = $region8
  $region5: #{restnet18_forward.21} parent=0 // loop_body
    %s14 = ssub.s32 %s9, 1
    %s15 = ssub.s32 %s9, 2
    %s16 = sadd.s32 %s9, 1
    %s17 = ssub.s32 %s9, %s16
    %p18 = scmp.eq.s32.totalorder %s17, 0
    %s20 = sadd.s32 %s19, 1
    %s21 = scalar_select %p18, %s19, %s20
    %p24 = pneg %p18
    %p25 = scmp.eq.s32.totalorder %s9, 1
    %p26 = por %p24, %p25
    %p27 = scmp.ne.s32.totalorder %s19, %s22
    %p28 = scmp.eq.s32.totalorder %s9, 0
    %p29 = por %p27, %p28
    %p30 = scmp.ne.s32.totalorder %s19, %s22
    %p31 = scmp.eq.s32.totalorder %s14, 1
    %p32 = por %p30, %p31
    %p33 = scmp.ne.s32.totalorder %s22, %s23
    %p34 = scmp.eq.s32.totalorder %s14, 0
    %p35 = por %p33, %p34
    %p36 = scmp.ne.s32.totalorder %s22, %s23
    %p37 = scmp.eq.s32.totalorder %s15, 1
    %p38 = por %p36, %p37
    %p40 = scmp.ne.s32.totalorder %s23, %s39
    %p41 = scmp.eq.s32.totalorder %s15, 0
    %p42 = por %p40, %p41
    %s44 = sadd.s32 %s43, 1
    %p47 = scmp.eq.s32.totalorder %s9, 1
    %p48 = scmp.ne.s32.totalorder %s43, %s45
    %p49 = scmp.eq.s32.totalorder %s9, 0
    %p50 = por %p48, %p49
    %p51 = scmp.ne.s32.totalorder %s43, %s45
    %p52 = scmp.eq.s32.totalorder %s14, 1
    %p53 = por %p51, %p52
    %p54 = scmp.ne.s32.totalorder %s45, %s46
    %p55 = scmp.eq.s32.totalorder %s14, 0
    %p56 = por %p54, %p55
    %p57 = scmp.ne.s32.totalorder %s45, %s46
    %p58 = scmp.eq.s32.totalorder %s15, 1
    %p59 = por %p57, %p58
    %p61 = scmp.ne.s32.totalorder %s46, %s60
    %p62 = scmp.eq.s32.totalorder %s15, 0
    %p63 = por %p61, %p62
    %s65 = sadd.s32 %s64, 1
    %p68 = scmp.eq.s32.totalorder %s9, 1
    %p69 = scmp.ne.s32.totalorder %s64, %s66
    %p70 = scmp.eq.s32.totalorder %s9, 0
    %p71 = por %p69, %p70
    %p72 = scmp.ne.s32.totalorder %s64, %s66
    %p73 = scmp.eq.s32.totalorder %s14, 1
    %p74 = por %p72, %p73
    %p75 = scmp.ne.s32.totalorder %s66, %s67
    %p76 = scmp.eq.s32.totalorder %s14, 0
    %p77 = por %p75, %p76
    %p78 = scmp.ne.s32.totalorder %s66, %s67
    %p79 = scmp.eq.s32.totalorder %s15, 1
    %p80 = por %p78, %p79
    %p82 = scmp.ne.s32.totalorder %s67, %s81
    %p83 = scmp.eq.s32.totalorder %s15, 0
    %p84 = por %p82, %p83
    %s85 = ssub.s32 %s9, %s16
    %p86 = scmp.eq.s32.totalorder %s85, 0
    %s88 = sadd.s32 %s87, 1
    %s89 = scalar_select %p86, %s87, %s88
    %p92 = pneg %p86
    %p93 = scmp.eq.s32.totalorder %s9, 1
    %p94 = por %p92, %p93
    %p95 = scmp.ne.s32.totalorder %s87, %s90
    %p96 = scmp.eq.s32.totalorder %s9, 0
    %p97 = por %p95, %p96
    %p98 = scmp.ne.s32.totalorder %s87, %s90
    %p99 = scmp.eq.s32.totalorder %s14, 1
    %p100 = por %p98, %p99
    %p101 = scmp.ne.s32.totalorder %s90, %s91
    %p102 = scmp.eq.s32.totalorder %s14, 0
    %p103 = por %p101, %p102
    %p104 = scmp.ne.s32.totalorder %s90, %s91
    %p105 = scmp.eq.s32.totalorder %s15, 1
    %p106 = por %p104, %p105
    %p108 = scmp.ne.s32.totalorder %s91, %s107
    %p109 = scmp.eq.s32.totalorder %s15, 0
    %p110 = por %p108, %p109
    %p111 = scmp.le.s32.totalorder 1, %s9
    %p112 = scmp.lt.s32.totalorder %s9, 3
    %p113 = pnand %p111, %p112
    %p114 = pneg %p113
    // Predicated region
    $region9: #{restnet18_forward.21} parent=5 // pred_check
      _
    $region10: #{restnet18_forward.21} parent=5 // pred_check_branch
      %116 = sbr.rel (%p113) target = $region12
    $region11: #{restnet18_forward.21} parent=5 // pred_region
      %s117 = ssub.s32 %s9, 1
      // Predicated region
      $region13: #{restnet18_forward.21} parent=11 // pred_check
        %p118 = pneg %p56
      $region14: #{restnet18_forward.21} parent=11 // pred_check_branch
        %120 = sbr.rel (%p118) target = $region16
      $region15: #{restnet18_forward.21} parent=11 // pred_region
        _
      $region16: #{restnet18_forward.21} parent=11 // pred_fallthru
        _
      // Predicated region
      $region17: #{restnet18_forward.21} parent=11 // pred_check
        %p121 = pneg %p77
      $region18: #{restnet18_forward.21} parent=11 // pred_check_branch
        %123 = sbr.rel (%p121) target = $region20
      $region19: #{restnet18_forward.21} parent=11 // pred_region
        _
      $region20: #{restnet18_forward.21} parent=11 // pred_fallthru
        _
    $region12: #{restnet18_forward.21} parent=5 // pred_fallthru
      _
    %p124 = scmp.lt.s32.totalorder %s9, 2
    // Predicated region
    $region21: #{restnet18_forward.21} parent=5 // pred_check
      %p125 = pneg %p124
    $region22: #{restnet18_forward.21} parent=5 // pred_check_branch
      %127 = sbr.rel (%p125) target = $region24
    $region23: #{restnet18_forward.21} parent=5 // pred_region
      // Predicated region
      $region25: #{restnet18_forward.21} parent=23 // pred_check
        %p128 = pneg %p29
      $region26: #{restnet18_forward.21} parent=23 // pred_check_branch
        %130 = sbr.rel (%p128) target = $region28
      $region27: #{restnet18_forward.21} parent=23 // pred_region
        %s131 = smul.u32 8, %s9
        %p132 = scmp.lt.s32.totalorder %s131, 15
        %s133 = scalar_select %p132, %s131, 15
        %s134 = smul.addr %s133, 7
        %s135 = smul.addr %s134, 4
        %s136 = scalar_lea.vmem %s0, %s135
        %s137 = smul.u32 8, %s9
      $region28: #{restnet18_forward.21} parent=23 // pred_fallthru
        _
    $region24: #{restnet18_forward.21} parent=5 // pred_fallthru
      _
    %p138 = scmp.le.s32.totalorder 1, %s9
    %p139 = scmp.lt.s32.totalorder %s9, 3
    %p140 = pnand %p138, %p139
    %p141 = pneg %p140
    // Predicated region
    $region29: #{restnet18_forward.21} parent=5 // pred_check
      _
    $region30: #{restnet18_forward.21} parent=5 // pred_check_branch
      %143 = sbr.rel (%p140) target = $region32
    $region31: #{restnet18_forward.21} parent=5 // pred_region
      %s144 = ssub.s32 %s9, 1
      %s145 = smul.u32 8, %s14
      %p146 = scmp.lt.s32.totalorder %s145, 15
      %s147 = scalar_select %p146, %s145, 15
      %s148 = smul.addr %s147, 7
      %s149 = smul.addr %s148, 4
      %s150 = scalar_lea.vmem %s0, %s149
      %p151 = pneg %p35
      %p152 = pneg %p32
      %p153 = pneg %p56
      %p154 = pneg %p53
      %p155 = pneg %p77
      %p156 = pneg %p74
      %p157 = pneg %p103
      %p158 = pneg %p100
      %s159 = smul.u32 8, %s14
      %p160 = scmp.lt.s32.totalorder %s159, 15
      %s161 = scalar_select %p160, %s159, 15
      %s162 = smul.addr %s161, 4
      %s163 = scalar_lea.vmem %s3, %s162
      %s164 = smul.u32 8, %s14
      %p165 = scmp.lt.s32.totalorder %s164, 15
      %s166 = scalar_select %p165, %s164, 15
      %s167 = smul.addr %s166, 7
      %s168 = smul.addr %s167, 4
      %s169 = scalar_lea.vmem %s0, %s168
      %s170 = smul.u32 8, %s14
      %s171 = smul.u32 8, %s14
      %p172 = scmp.lt.s32.totalorder %s171, 15
      %s173 = scalar_select %p172, %s171, 15
      %s174 = smul.addr %s173, 4
      %s175 = scalar_lea.vmem %s3, %s174
      %s176 = smul.u32 8, %s14
      %v178 = vld [vmem:[%s169] sm:$0xff]
      %v179 = vld [vmem:[%s169 + $0x8] sm:$0xff]
      %v180 = vld [vmem:[%s169 + $0x10] sm:$0xff]
      %v181 = vld [vmem:[%s169 + $0x18] sm:$0xf]
      %v182 = vld [vmem:[%s169 + $0x1c] sm:$0xff]
      %v183 = vld [vmem:[%s169 + $0x24] sm:$0xff]
      %v184 = vld [vmem:[%s169 + $0x2c] sm:$0xff]
      %v185 = vld [vmem:[%s169 + $0x34] sm:$0xf]
      %v186 = vld [vmem:[%s169 + $0x38] sm:$0xff]
      %v187 = vld [vmem:[%s169 + $0x40] sm:$0xff]
      %v188 = vld [vmem:[%s169 + $0x48] sm:$0xff]
      %v189 = vld [vmem:[%s169 + $0x50] sm:$0xf]
      %v190 = vld [vmem:[%s169 + $0x54] sm:$0xff]
      %v191 = vld [vmem:[%s169 + $0x5c] sm:$0xff]
      %v192 = vld [vmem:[%s169 + $0x64] sm:$0xff]
      %v193 = vld [vmem:[%s169 + $0x6c] sm:$0xf]
      %v194 = vld [vmem:[%s169 + $0x70] sm:$0xff]
      %v195 = vld [vmem:[%s169 + $0x78] sm:$0xff]
      %v196 = vld [vmem:[%s169 + $0x80] sm:$0xff]
      %v197 = vld [vmem:[%s169 + $0x88] sm:$0xf]
      %v198 = vld [vmem:[%s169 + $0x8c] sm:$0xff]
      %v199 = vld [vmem:[%s169 + $0x94] sm:$0xff]
      %v200 = vld [vmem:[%s169 + $0x9c] sm:$0xff]
      %v201 = vld [vmem:[%s169 + $0xa4] sm:$0xf]
      %v202 = vld [vmem:[%s169 + $0xa8] sm:$0xff]
      %v203 = vld [vmem:[%s169 + $0xb0] sm:$0xff]
      %v204 = vld [vmem:[%s169 + $0xb8] sm:$0xff]
      %v205 = vld [vmem:[%s169 + $0xc0] sm:$0xf]
      %v206 = vld [vmem:[%s169 + $0xc4] sm:$0xff]
      %v207 = vld [vmem:[%s169 + $0xcc] sm:$0xff]
      %v208 = vld [vmem:[%s169 + $0xd4] sm:$0xff]
      %v209 = vld [vmem:[%s169 + $0xdc] sm:$0xf]
      %v210 = vld [vmem:[%s1] sm:$0xf]
      %v211 = vld [vmem:[%s1 + $0x4] sm:$0xf]
      %v212 = vld [vmem:[%s1 + $0x8] sm:$0xf]
      %v213 = vld [vmem:[%s1 + $0xc] sm:$0xf]
      %v214 = vld [vmem:[%s1 + $0x10] sm:$0xf]
      %v215 = vld [vmem:[%s1 + $0x14] sm:$0xf]
      %v216 = vld [vmem:[%s1 + $0x18] sm:$0xf]
      %v217 = vld [vmem:[%s1 + $0x1c] sm:$0xf]
      %v218 = vld [vmem:[%s1 + $0x20] sm:$0xf]
      %v219 = vld [vmem:[%s1 + $0x24] sm:$0xf]
      %v220 = vld [vmem:[%s1 + $0x28] sm:$0xf]
      %v221 = vld [vmem:[%s1 + $0x2c] sm:$0xf]
      %v222 = vld [vmem:[%s1 + $0x30] sm:$0xf]
      %v223 = vld [vmem:[%s1 + $0x34] sm:$0xf]
      %v224 = vld [vmem:[%s1 + $0x38] sm:$0xf]
      %v225 = vld [vmem:[%s1 + $0x3c] sm:$0xf]
      %v226 = vld [vmem:[%s1 + $0x40] sm:$0xf]
      %v227 = vld [vmem:[%s1 + $0x44] sm:$0xf]
      %v228 = vld [vmem:[%s1 + $0x48] sm:$0xf]
      %v229 = vld [vmem:[%s1 + $0x4c] sm:$0xf]
      %v230 = vld [vmem:[%s1 + $0x50] sm:$0xf]
      %v231 = vld [vmem:[%s1 + $0x54] sm:$0xf]
      %v232 = vld [vmem:[%s1 + $0x58] sm:$0xf]
      %v233 = vld [vmem:[%s1 + $0x5c] sm:$0xf]
      %v234 = vld [vmem:[%s1 + $0x60] sm:$0xf]
      %v235 = vld [vmem:[%s1 + $0x64] sm:$0xf]
      %v236 = vld [vmem:[%s1 + $0x68] sm:$0xf]
      %v237 = vld [vmem:[%s1 + $0x6c] sm:$0xf]
      %v238 = vld [vmem:[%s1 + $0x70] sm:$0xf]
      %v239 = vld [vmem:[%s1 + $0x74] sm:$0xf]
      %v240 = vld [vmem:[%s1 + $0x78] sm:$0xf]
      %v241 = vld [vmem:[%s1 + $0x7c] sm:$0xf]
      %v242 = vld [vmem:[%s1 + $0x80] sm:$0xf]
      %v243 = vld [vmem:[%s1 + $0x84] sm:$0xf]
      %v244 = vld [vmem:[%s1 + $0x88] sm:$0xf]
      %v245 = vld [vmem:[%s1 + $0x8c] sm:$0xf]
      %v246 = vld [vmem:[%s1 + $0x90] sm:$0xf]
      %v247 = vld [vmem:[%s1 + $0x94] sm:$0xf]
      %v248 = vld [vmem:[%s1 + $0x98] sm:$0xf]
      %v249 = vld [vmem:[%s1 + $0x9c] sm:$0xf]
      %v250 = vld [vmem:[%s1 + $0xa0] sm:$0xf]
      %v251 = vld [vmem:[%s1 + $0xa4] sm:$0xf]
      %v252 = vld [vmem:[%s1 + $0xa8] sm:$0xf]
      %v253 = vld [vmem:[%s1 + $0xac] sm:$0xf]
      %v254 = vld [vmem:[%s1 + $0xb0] sm:$0xf]
      %v255 = vld [vmem:[%s1 + $0xb4] sm:$0xf]
      %v256 = vld [vmem:[%s1 + $0xb8] sm:$0xf]
      %v257 = vld [vmem:[%s1 + $0xbc] sm:$0xf]
      %v258 = vld [vmem:[%s1 + $0xc0] sm:$0xf]
      %v259 = vld [vmem:[%s1 + $0xc4] sm:$0xf]
      %v260 = vld [vmem:[%s1 + $0xc8] sm:$0xf]
      %v261 = vld [vmem:[%s1 + $0xcc] sm:$0xf]
      %v262 = vld [vmem:[%s1 + $0xd0] sm:$0xf]
      %v263 = vld [vmem:[%s1 + $0xd4] sm:$0xf]
      %v264 = vld [vmem:[%s1 + $0xd8] sm:$0xf]
      %v265 = vld [vmem:[%s1 + $0xdc] sm:$0xf]
      %v266 = vld [vmem:[%s1 + $0xe0] sm:$0xf]
      %v267 = vld [vmem:[%s1 + $0xe4] sm:$0xf]
      %v268 = vld [vmem:[%s1 + $0xe8] sm:$0xf]
      %v269 = vld [vmem:[%s1 + $0xec] sm:$0xf]
      %v270 = vld [vmem:[%s1 + $0xf0] sm:$0xf]
      %v271 = vld [vmem:[%s1 + $0xf4] sm:$0xf]
      %v272 = vld [vmem:[%s1 + $0xf8] sm:$0xf]
      %v273 = vld [vmem:[%s1 + $0xfc] sm:$0xf]
      %v274 = vld [vmem:[%s1 + $0x100] sm:$0xf]
      %v275 = vld [vmem:[%s1 + $0x104] sm:$0xf]
      %v276 = vld [vmem:[%s1 + $0x108] sm:$0xf]
      %v277 = vld [vmem:[%s1 + $0x10c] sm:$0xf]
      %v278 = vld [vmem:[%s1 + $0x110] sm:$0xf]
      %v279 = vld [vmem:[%s1 + $0x114] sm:$0xf]
      %v280 = vld [vmem:[%s1 + $0x118] sm:$0xf]
      %v281 = vld [vmem:[%s1 + $0x11c] sm:$0xf]
      %v282 = vld [vmem:[%s1 + $0x120] sm:$0xf]
      %v283 = vld [vmem:[%s1 + $0x124] sm:$0xf]
      %v284 = vld [vmem:[%s1 + $0x128] sm:$0xf]
      %v285 = vld [vmem:[%s1 + $0x12c] sm:$0xf]
      %v286 = vld [vmem:[%s1 + $0x130] sm:$0xf]
      %v287 = vld [vmem:[%s1 + $0x134] sm:$0xf]
      %v288 = vld [vmem:[%s1 + $0x138] sm:$0xf]
      %v289 = vld [vmem:[%s1 + $0x13c] sm:$0xf]
      %v290 = vld [vmem:[%s1 + $0x140] sm:$0xf]
      %v291 = vld [vmem:[%s1 + $0x144] sm:$0xf]
      %v292 = vld [vmem:[%s1 + $0x148] sm:$0xf]
      %v293 = vld [vmem:[%s1 + $0x14c] sm:$0xf]
      %v294 = vld [vmem:[%s1 + $0x150] sm:$0xf]
      %v295 = vld [vmem:[%s1 + $0x154] sm:$0xf]
      %v296 = vld [vmem:[%s1 + $0x158] sm:$0xf]
      %v297 = vld [vmem:[%s1 + $0x15c] sm:$0xf]
      %v298 = vld [vmem:[%s1 + $0x160] sm:$0xf]
      %v299 = vld [vmem:[%s1 + $0x164] sm:$0xf]
      %v300 = vld [vmem:[%s1 + $0x168] sm:$0xf]
      %v301 = vld [vmem:[%s1 + $0x16c] sm:$0xf]
      %v302 = vld [vmem:[%s1 + $0x170] sm:$0xf]
      %v303 = vld [vmem:[%s1 + $0x174] sm:$0xf]
      %v304 = vld [vmem:[%s1 + $0x178] sm:$0xf]
      %v305 = vld [vmem:[%s1 + $0x17c] sm:$0xf]
      %v306 = vld [vmem:[%s1 + $0x180] sm:$0xf]
      %v307 = vld [vmem:[%s1 + $0x184] sm:$0xf]
      %v340 = vunpack.c.l.b16 %v178
      %v341 = vunpack.c.h.b16 %v178
      %v342 = vunpack.c.l.b16 %v179
      %v343 = vunpack.c.h.b16 %v179
      %v344 = vunpack.c.l.b16 %v180
      %v345 = vunpack.c.h.b16 %v180
      %v346 = vunpack.c.l.b16 %v181
      %v347 = vunpack.c.l.b16 %v182
      %v348 = vunpack.c.h.b16 %v182
      %v349 = vunpack.c.l.b16 %v183
      %v350 = vunpack.c.h.b16 %v183
      %v351 = vunpack.c.l.b16 %v184
      %v352 = vunpack.c.h.b16 %v184
      %v353 = vunpack.c.l.b16 %v185
      %v354 = vunpack.c.l.b16 %v186
      %v355 = vunpack.c.h.b16 %v186
      %v356 = vunpack.c.l.b16 %v187
      %v357 = vunpack.c.h.b16 %v187
      %v358 = vunpack.c.l.b16 %v188
      %v359 = vunpack.c.h.b16 %v188
      %v360 = vunpack.c.l.b16 %v189
      %v361 = vunpack.c.l.b16 %v190
      %v362 = vunpack.c.h.b16 %v190
      %v363 = vunpack.c.l.b16 %v191
      %v364 = vunpack.c.h.b16 %v191
      %v365 = vunpack.c.l.b16 %v192
      %v366 = vunpack.c.h.b16 %v192
      %v367 = vunpack.c.l.b16 %v193
      %v368 = vunpack.c.l.b16 %v194
      %v369 = vunpack.c.h.b16 %v194
      %v370 = vunpack.c.l.b16 %v195
      %v371 = vunpack.c.h.b16 %v195
      %v372 = vunpack.c.l.b16 %v196
      %v373 = vunpack.c.h.b16 %v196
      %v374 = vunpack.c.l.b16 %v197
      %v375 = vunpack.c.l.b16 %v198
      %v376 = vunpack.c.h.b16 %v198
      %v377 = vunpack.c.l.b16 %v199
      %v378 = vunpack.c.h.b16 %v199
      %v379 = vunpack.c.l.b16 %v200
      %v380 = vunpack.c.h.b16 %v200
      %v381 = vunpack.c.l.b16 %v201
      %v382 = vunpack.c.l.b16 %v202
      %v383 = vunpack.c.h.b16 %v202
      %v384 = vunpack.c.l.b16 %v203
      %v385 = vunpack.c.h.b16 %v203
      %v386 = vunpack.c.l.b16 %v204
      %v387 = vunpack.c.h.b16 %v204
      %v388 = vunpack.c.l.b16 %v205
      %v389 = vunpack.c.l.b16 %v206
      %v390 = vunpack.c.h.b16 %v206
      %v391 = vunpack.c.l.b16 %v207
      %v392 = vunpack.c.h.b16 %v207
      %v393 = vunpack.c.l.b16 %v208
      %v394 = vunpack.c.h.b16 %v208
      %v395 = vunpack.c.l.b16 %v209
      %v396 = vpack.c.b16 %v347, %v340
      %v397 = vpack.c.b16 %v348, %v341
      %v398 = vpack.c.b16 %v349, %v342
      %v399 = vpack.c.b16 %v350, %v343
      %v400 = vpack.c.b16 %v351, %v344
      %v401 = vpack.c.b16 %v352, %v345
      %v402 = vpack.c.b16 %v353, %v346
      %v403 = vpack.c.b16 %v361, %v354
      %v404 = vpack.c.b16 %v362, %v355
      %v405 = vpack.c.b16 %v363, %v356
      %v406 = vpack.c.b16 %v364, %v357
      %v407 = vpack.c.b16 %v365, %v358
      %v408 = vpack.c.b16 %v366, %v359
      %v409 = vpack.c.b16 %v367, %v360
      %v410 = vpack.c.b16 %v375, %v368
      %v411 = vpack.c.b16 %v376, %v369
      %v412 = vpack.c.b16 %v377, %v370
      %v413 = vpack.c.b16 %v378, %v371
      %v414 = vpack.c.b16 %v379, %v372
      %v415 = vpack.c.b16 %v380, %v373
      %v416 = vpack.c.b16 %v381, %v374
      %v417 = vpack.c.b16 %v389, %v382
      %v418 = vpack.c.b16 %v390, %v383
      %v419 = vpack.c.b16 %v391, %v384
      %v420 = vpack.c.b16 %v392, %v385
      %v421 = vpack.c.b16 %v393, %v386
      %v422 = vpack.c.b16 %v394, %v387
      %v423 = vpack.c.b16 %v395, %v388
      %v546 = vunpack.c.l.b16 %v210
      %v547 = vunpack.c.l.b16 %v211
      %v548 = vunpack.c.l.b16 %v212
      %v549 = vunpack.c.l.b16 %v213
      %v550 = vunpack.c.l.b16 %v214
      %v551 = vunpack.c.l.b16 %v215
      %v552 = vunpack.c.l.b16 %v216
      %v553 = vunpack.c.l.b16 %v217
      %v554 = vunpack.c.l.b16 %v218
      %v555 = vunpack.c.l.b16 %v219
      %v556 = vunpack.c.l.b16 %v220
      %v557 = vunpack.c.l.b16 %v221
      %v558 = vunpack.c.l.b16 %v222
      %v559 = vunpack.c.l.b16 %v223
      %v560 = vunpack.c.l.b16 %v224
      %v561 = vunpack.c.l.b16 %v225
      %v562 = vunpack.c.l.b16 %v226
      %v563 = vunpack.c.l.b16 %v227
      %v564 = vunpack.c.l.b16 %v228
      %v565 = vunpack.c.l.b16 %v229
      %v566 = vunpack.c.l.b16 %v230
      %v567 = vunpack.c.l.b16 %v231
      %v568 = vunpack.c.l.b16 %v232
      %v569 = vunpack.c.l.b16 %v233
      %v570 = vunpack.c.l.b16 %v234
      %v571 = vunpack.c.l.b16 %v235
      %v572 = vunpack.c.l.b16 %v236
      %v573 = vunpack.c.l.b16 %v237
      %v574 = vunpack.c.l.b16 %v238
      %v575 = vunpack.c.l.b16 %v239
      %v576 = vunpack.c.l.b16 %v240
      %v577 = vunpack.c.l.b16 %v241
      %v578 = vunpack.c.l.b16 %v242
      %v579 = vunpack.c.l.b16 %v243
      %v580 = vunpack.c.l.b16 %v244
      %v581 = vunpack.c.l.b16 %v245
      %v582 = vunpack.c.l.b16 %v246
      %v583 = vunpack.c.l.b16 %v247
      %v584 = vunpack.c.l.b16 %v248
      %v585 = vunpack.c.l.b16 %v249
      %v586 = vunpack.c.l.b16 %v250
      %v587 = vunpack.c.l.b16 %v251
      %v588 = vunpack.c.l.b16 %v252
      %v589 = vunpack.c.l.b16 %v253
      %v590 = vunpack.c.l.b16 %v254
      %v591 = vunpack.c.l.b16 %v255
      %v592 = vunpack.c.l.b16 %v256
      %v593 = vunpack.c.l.b16 %v257
      %v594 = vunpack.c.l.b16 %v258
      %v595 = vunpack.c.l.b16 %v259
      %v596 = vunpack.c.l.b16 %v260
      %v597 = vunpack.c.l.b16 %v261
      %v598 = vunpack.c.l.b16 %v262
      %v599 = vunpack.c.l.b16 %v263
      %v600 = vunpack.c.l.b16 %v264
      %v601 = vunpack.c.l.b16 %v265
      %v602 = vunpack.c.l.b16 %v266
      %v603 = vunpack.c.l.b16 %v267
      %v604 = vunpack.c.l.b16 %v268
      %v605 = vunpack.c.l.b16 %v269
      %v606 = vunpack.c.l.b16 %v270
      %v607 = vunpack.c.l.b16 %v271
      %v608 = vunpack.c.l.b16 %v272
      %v609 = vunpack.c.l.b16 %v273
      %v610 = vunpack.c.l.b16 %v274
      %v611 = vunpack.c.l.b16 %v275
      %v612 = vunpack.c.l.b16 %v276
      %v613 = vunpack.c.l.b16 %v277
      %v614 = vunpack.c.l.b16 %v278
      %v615 = vunpack.c.l.b16 %v279
      %v616 = vunpack.c.l.b16 %v280
      %v617 = vunpack.c.l.b16 %v281
      %v618 = vunpack.c.l.b16 %v282
      %v619 = vunpack.c.l.b16 %v283
      %v620 = vunpack.c.l.b16 %v284
      %v621 = vunpack.c.l.b16 %v285
      %v622 = vunpack.c.l.b16 %v286
      %v623 = vunpack.c.l.b16 %v287
      %v624 = vunpack.c.l.b16 %v288
      %v625 = vunpack.c.l.b16 %v289
      %v626 = vunpack.c.l.b16 %v290
      %v627 = vunpack.c.l.b16 %v291
      %v628 = vunpack.c.l.b16 %v292
      %v629 = vunpack.c.l.b16 %v293
      %v630 = vunpack.c.l.b16 %v294
      %v631 = vunpack.c.l.b16 %v295
      %v632 = vunpack.c.l.b16 %v296
      %v633 = vunpack.c.l.b16 %v297
      %v634 = vunpack.c.l.b16 %v298
      %v635 = vunpack.c.l.b16 %v299
      %v636 = vunpack.c.l.b16 %v300
      %v637 = vunpack.c.l.b16 %v301
      %v638 = vunpack.c.l.b16 %v302
      %v639 = vunpack.c.l.b16 %v303
      %v640 = vunpack.c.l.b16 %v304
      %v641 = vunpack.c.l.b16 %v305
      %v642 = vunpack.c.l.b16 %v306
      %v643 = vunpack.c.l.b16 %v307
      %v644 = vpack.c.b16 %v547, %v546
      %v645 = vpack.c.b16 %v549, %v548
      %v646 = vpack.c.b16 %v551, %v550
      %v647 = vpack.c.b16 %v553, %v552
      %v648 = vpack.c.b16 %v555, %v554
      %v649 = vpack.c.b16 %v557, %v556
      %v650 = vpack.c.b16 %v559, %v558
      %v651 = vpack.c.b16 %v561, %v560
      %v652 = vpack.c.b16 %v563, %v562
      %v653 = vpack.c.b16 %v565, %v564
      %v654 = vpack.c.b16 %v567, %v566
      %v655 = vpack.c.b16 %v569, %v568
      %v656 = vpack.c.b16 %v571, %v570
      %v657 = vpack.c.b16 %v573, %v572
      %v658 = vpack.c.b16 %v575, %v574
      %v659 = vpack.c.b16 %v577, %v576
      %v660 = vpack.c.b16 %v579, %v578
      %v661 = vpack.c.b16 %v581, %v580
      %v662 = vpack.c.b16 %v583, %v582
      %v663 = vpack.c.b16 %v585, %v584
      %v664 = vpack.c.b16 %v587, %v586
      %v665 = vpack.c.b16 %v589, %v588
      %v666 = vpack.c.b16 %v591, %v590
      %v667 = vpack.c.b16 %v593, %v592
      %v668 = vpack.c.b16 %v595, %v594
      %v669 = vpack.c.b16 %v597, %v596
      %v670 = vpack.c.b16 %v599, %v598
      %v671 = vpack.c.b16 %v601, %v600
      %v672 = vpack.c.b16 %v603, %v602
      %v673 = vpack.c.b16 %v605, %v604
      %v674 = vpack.c.b16 %v607, %v606
      %v675 = vpack.c.b16 %v609, %v608
      %v676 = vpack.c.b16 %v611, %v610
      %v677 = vpack.c.b16 %v613, %v612
      %v678 = vpack.c.b16 %v615, %v614
      %v679 = vpack.c.b16 %v617, %v616
      %v680 = vpack.c.b16 %v619, %v618
      %v681 = vpack.c.b16 %v621, %v620
      %v682 = vpack.c.b16 %v623, %v622
      %v683 = vpack.c.b16 %v625, %v624
      %v684 = vpack.c.b16 %v627, %v626
      %v685 = vpack.c.b16 %v629, %v628
      %v686 = vpack.c.b16 %v631, %v630
      %v687 = vpack.c.b16 %v633, %v632
      %v688 = vpack.c.b16 %v635, %v634
      %v689 = vpack.c.b16 %v637, %v636
      %v690 = vpack.c.b16 %v639, %v638
      %v691 = vpack.c.b16 %v641, %v640
      %v692 = vpack.c.b16 %v643, %v642
      %vm742 = vcmask 130048
      %v744 = vsel %vm742, %v402, 0
      %v747 = vsel %vm742, %v409, 0
      %v750 = vsel %vm742, %v416, 0
      %v753 = vsel %vm742, %v423, 0
      %755 = vmatpush.bf16.msra.mxu0 %v651
      %756 = vmatpush.bf16.msra.mxu0 %v650
      %757 = vmatpush.bf16.msra.mxu0 %v649
      %758 = vmatpush.bf16.msra.mxu0 %v648
      %759 = vmatpush.bf16.msra.mxu0 %v647
      %760 = vmatpush.bf16.msra.mxu0 %v646
      %761 = vmatpush.bf16.msra.mxu0 %v645
      %762 = vmatpush.bf16.msra.mxu0 %v644
      %763 = vmatmul.bf16.gmra.mxu0 %v396
      %v764 = vpop.f32.mrf.mxu0
      %v765 = vadd.f32 0.0, %v764
      %v766 = vpop.f32.mrf.mxu0
      %v767 = vadd.f32 0.0, %v766
      %768 = vmatmul.bf16.gmra.mxu0 %v403
      %v769 = vpop.f32.mrf.mxu0
      %v770 = vadd.f32 0.0, %v769
      %v771 = vpop.f32.mrf.mxu0
      %v772 = vadd.f32 0.0, %v771
      %773 = vmatmul.bf16.gmra.mxu0 %v410
      %v774 = vpop.f32.mrf.mxu0
      %v775 = vadd.f32 0.0, %v774
      %v776 = vpop.f32.mrf.mxu0
      %v777 = vadd.f32 0.0, %v776
      %778 = vmatmul.bf16.gmra.mxu0 %v417
      %v779 = vpop.f32.mrf.mxu0
      %v780 = vadd.f32 0.0, %v779
      %v781 = vpop.f32.mrf.mxu0
      %v782 = vadd.f32 0.0, %v781
      %783 = vdwg.mxu0
      %784 = vmatpush.bf16.msra.mxu0 %v659
      %785 = vmatpush.bf16.msra.mxu0 %v658
      %786 = vmatpush.bf16.msra.mxu0 %v657
      %787 = vmatpush.bf16.msra.mxu0 %v656
      %788 = vmatpush.bf16.msra.mxu0 %v655
      %789 = vmatpush.bf16.msra.mxu0 %v654
      %790 = vmatpush.bf16.msra.mxu0 %v653
      %791 = vmatpush.bf16.msra.mxu0 %v652
      %792 = vmatmul.bf16.gmra.mxu0 %v397
      %v793 = vpop.f32.mrf.mxu0
      %v794 = vadd.f32 %v765, %v793
      %v795 = vpop.f32.mrf.mxu0
      %v796 = vadd.f32 %v767, %v795
      %797 = vmatmul.bf16.gmra.mxu0 %v404
      %v798 = vpop.f32.mrf.mxu0
      %v799 = vadd.f32 %v770, %v798
      %v800 = vpop.f32.mrf.mxu0
      %v801 = vadd.f32 %v772, %v800
      %802 = vmatmul.bf16.gmra.mxu0 %v411
      %v803 = vpop.f32.mrf.mxu0
      %v804 = vadd.f32 %v775, %v803
      %v805 = vpop.f32.mrf.mxu0
      %v806 = vadd.f32 %v777, %v805
      %807 = vmatmul.bf16.gmra.mxu0 %v418
      %v808 = vpop.f32.mrf.mxu0
      %v809 = vadd.f32 %v780, %v808
      %v810 = vpop.f32.mrf.mxu0
      %v811 = vadd.f32 %v782, %v810
      %812 = vdwg.mxu0
      %813 = vmatpush.bf16.msra.mxu0 %v667
      %814 = vmatpush.bf16.msra.mxu0 %v666
      %815 = vmatpush.bf16.msra.mxu0 %v665
      %816 = vmatpush.bf16.msra.mxu0 %v664
      %817 = vmatpush.bf16.msra.mxu0 %v663
      %818 = vmatpush.bf16.msra.mxu0 %v662
      %819 = vmatpush.bf16.msra.mxu0 %v661
      %820 = vmatpush.bf16.msra.mxu0 %v660
      %821 = vmatmul.bf16.gmra.mxu0 %v398
      %v822 = vpop.f32.mrf.mxu0
      %v823 = vadd.f32 %v794, %v822
      %v824 = vpop.f32.mrf.mxu0
      %v825 = vadd.f32 %v796, %v824
      %826 = vmatmul.bf16.gmra.mxu0 %v405
      %v827 = vpop.f32.mrf.mxu0
      %v828 = vadd.f32 %v799, %v827
      %v829 = vpop.f32.mrf.mxu0
      %v830 = vadd.f32 %v801, %v829
      %831 = vmatmul.bf16.gmra.mxu0 %v412
      %v832 = vpop.f32.mrf.mxu0
      %v833 = vadd.f32 %v804, %v832
      %v834 = vpop.f32.mrf.mxu0
      %v835 = vadd.f32 %v806, %v834
      %836 = vmatmul.bf16.gmra.mxu0 %v419
      %v837 = vpop.f32.mrf.mxu0
      %v838 = vadd.f32 %v809, %v837
      %v839 = vpop.f32.mrf.mxu0
      %v840 = vadd.f32 %v811, %v839
      %841 = vdwg.mxu0
      %842 = vmatpush.bf16.msra.mxu0 %v675
      %843 = vmatpush.bf16.msra.mxu0 %v674
      %844 = vmatpush.bf16.msra.mxu0 %v673
      %845 = vmatpush.bf16.msra.mxu0 %v672
      %846 = vmatpush.bf16.msra.mxu0 %v671
      %847 = vmatpush.bf16.msra.mxu0 %v670
      %848 = vmatpush.bf16.msra.mxu0 %v669
      %849 = vmatpush.bf16.msra.mxu0 %v668
      %850 = vmatmul.bf16.gmra.mxu0 %v399
      %v851 = vpop.f32.mrf.mxu0
      %v852 = vadd.f32 %v823, %v851
      %v853 = vpop.f32.mrf.mxu0
      %v854 = vadd.f32 %v825, %v853
      %855 = vmatmul.bf16.gmra.mxu0 %v406
      %v856 = vpop.f32.mrf.mxu0
      %v857 = vadd.f32 %v828, %v856
      %v858 = vpop.f32.mrf.mxu0
      %v859 = vadd.f32 %v830, %v858
      %860 = vmatmul.bf16.gmra.mxu0 %v413
      %v861 = vpop.f32.mrf.mxu0
      %v862 = vadd.f32 %v833, %v861
      %v863 = vpop.f32.mrf.mxu0
      %v864 = vadd.f32 %v835, %v863
      %865 = vmatmul.bf16.gmra.mxu0 %v420
      %v866 = vpop.f32.mrf.mxu0
      %v867 = vadd.f32 %v838, %v866
      %v868 = vpop.f32.mrf.mxu0
      %v869 = vadd.f32 %v840, %v868
      %870 = vdwg.mxu0
      %871 = vmatpush.bf16.msra.mxu0 %v683
      %872 = vmatpush.bf16.msra.mxu0 %v682
      %873 = vmatpush.bf16.msra.mxu0 %v681
      %874 = vmatpush.bf16.msra.mxu0 %v680
      %875 = vmatpush.bf16.msra.mxu0 %v679
      %876 = vmatpush.bf16.msra.mxu0 %v678
      %877 = vmatpush.bf16.msra.mxu0 %v677
      %878 = vmatpush.bf16.msra.mxu0 %v676
      %879 = vmatmul.bf16.gmra.mxu0 %v400
      %v880 = vpop.f32.mrf.mxu0
      %v881 = vadd.f32 %v852, %v880
      %v882 = vpop.f32.mrf.mxu0
      %v883 = vadd.f32 %v854, %v882
      %884 = vmatmul.bf16.gmra.mxu0 %v407
      %v885 = vpop.f32.mrf.mxu0
      %v886 = vadd.f32 %v857, %v885
      %v887 = vpop.f32.mrf.mxu0
      %v888 = vadd.f32 %v859, %v887
      %889 = vmatmul.bf16.gmra.mxu0 %v414
      %v890 = vpop.f32.mrf.mxu0
      %v891 = vadd.f32 %v862, %v890
      %v892 = vpop.f32.mrf.mxu0
      %v893 = vadd.f32 %v864, %v892
      %894 = vmatmul.bf16.gmra.mxu0 %v421
      %v895 = vpop.f32.mrf.mxu0
      %v896 = vadd.f32 %v867, %v895
      %v897 = vpop.f32.mrf.mxu0
      %v898 = vadd.f32 %v869, %v897
      %899 = vdwg.mxu0
      %900 = vmatpush.bf16.msra.mxu0 %v691
      %901 = vmatpush.bf16.msra.mxu0 %v690
      %902 = vmatpush.bf16.msra.mxu0 %v689
      %903 = vmatpush.bf16.msra.mxu0 %v688
      %904 = vmatpush.bf16.msra.mxu0 %v687
      %905 = vmatpush.bf16.msra.mxu0 %v686
      %906 = vmatpush.bf16.msra.mxu0 %v685
      %907 = vmatpush.bf16.msra.mxu0 %v684
      %908 = vmatmul.bf16.gmra.mxu0 %v401
      %v909 = vpop.f32.mrf.mxu0
      %v910 = vadd.f32 %v881, %v909
      %v911 = vpop.f32.mrf.mxu0
      %v912 = vadd.f32 %v883, %v911
      %913 = vmatmul.bf16.gmra.mxu0 %v408
      %v914 = vpop.f32.mrf.mxu0
      %v915 = vadd.f32 %v886, %v914
      %v916 = vpop.f32.mrf.mxu0
      %v917 = vadd.f32 %v888, %v916
      %918 = vmatmul.bf16.gmra.mxu0 %v415
      %v919 = vpop.f32.mrf.mxu0
      %v920 = vadd.f32 %v891, %v919
      %v921 = vpop.f32.mrf.mxu0
      %v922 = vadd.f32 %v893, %v921
      %923 = vmatmul.bf16.gmra.mxu0 %v422
      %v924 = vpop.f32.mrf.mxu0
      %v925 = vadd.f32 %v896, %v924
      %v926 = vpop.f32.mrf.mxu0
      %v927 = vadd.f32 %v898, %v926
      %928 = vdwg.mxu0
      %929 = vmatpush.bf16.msra.mxu0 0
      %930 = vmatpush.bf16.msra.mxu0 0
      %931 = vmatpush.bf16.msra.mxu0 0
      %932 = vmatpush.bf16.msra.mxu0 0
      %933 = vmatpush.bf16.msra.mxu0 0
      %934 = vmatpush.bf16.msra.mxu0 0
      %935 = vmatpush.bf16.msra.mxu0 0
      %936 = vmatpush.bf16.msra.mxu0 %v692
      %937 = vmatmul.bf16.gmra.mxu0 %v744
      %v938 = vpop.f32.mrf.mxu0
      %v939 = vadd.f32 %v910, %v938
      %v940 = vpop.f32.mrf.mxu0
      %v941 = vadd.f32 %v912, %v940
      %942 = vmatmul.bf16.gmra.mxu0 %v747
      %v943 = vpop.f32.mrf.mxu0
      %v944 = vadd.f32 %v915, %v943
      %v945 = vpop.f32.mrf.mxu0
      %v946 = vadd.f32 %v917, %v945
      %947 = vmatmul.bf16.gmra.mxu0 %v750
      %v948 = vpop.f32.mrf.mxu0
      %v949 = vadd.f32 %v920, %v948
      %v950 = vpop.f32.mrf.mxu0
      %v951 = vadd.f32 %v922, %v950
      %952 = vmatmul.bf16.gmra.mxu0 %v753
      %v953 = vpop.f32.mrf.mxu0
      %v954 = vadd.f32 %v925, %v953
      %v955 = vpop.f32.mrf.mxu0
      %v956 = vadd.f32 %v927, %v955
      %957 = vdwg.mxu0
      %v958 = vld [vmem:[%s2] sm:$0x1]
      %v959 = vperm.slane %v958, 0
      %v960 = vmul.f32 %v939, %v959
      %v961 = vmul.f32 %v941, %v959
      %v962 = vmul.f32 %v944, %v959
      %v963 = vmul.f32 %v946, %v959
      %v964 = vmul.f32 %v949, %v959
      %v965 = vmul.f32 %v951, %v959
      %v966 = vmul.f32 %v954, %v959
      %v967 = vmul.f32 %v956, %v959
      %v968 = vld [vmem:[%s2 + $0x1] sm:$0x1]
      %v969 = vperm.slane %v968, 0
      %v970 = vadd.f32 %v960, %v969
      %v971 = vadd.f32 %v961, %v969
      %v972 = vadd.f32 %v962, %v969
      %v973 = vadd.f32 %v963, %v969
      %v974 = vadd.f32 %v964, %v969
      %v975 = vadd.f32 %v965, %v969
      %v976 = vadd.f32 %v966, %v969
      %v977 = vadd.f32 %v967, %v969
      %v978 = vpack.c.bf16 %v970, %v970
      %v979 = vpack.c.bf16 %v971, %v971
      %v980 = vpack.c.bf16 %v972, %v972
      %v981 = vpack.c.bf16 %v973, %v973
      %v982 = vpack.c.bf16 %v974, %v974
      %v983 = vpack.c.bf16 %v975, %v975
      %v984 = vpack.c.bf16 %v976, %v976
      %v985 = vpack.c.bf16 %v977, %v977
      %986 = vst [vmem:[%s175] sm:$0xf] %v978
      %987 = vst [vmem:[%s175 + $0x4] sm:$0xf] %v979
      %988 = vst [vmem:[%s175 + $0x8] sm:$0xf] %v980
      %989 = vst [vmem:[%s175 + $0xc] sm:$0xf] %v981
      %990 = vst [vmem:[%s175 + $0x10] sm:$0xf] %v982
      %991 = vst [vmem:[%s175 + $0x14] sm:$0xf] %v983
      %992 = vst [vmem:[%s175 + $0x18] sm:$0xf] %v984
      %993 = vst [vmem:[%s175 + $0x1c] sm:$0xf] %v985
      %s994 = smul.u32 8, %s14
      %p995 = scmp.lt.s32.totalorder %s994, 15
      %s996 = scalar_select %p995, %s994, 15
      %s997 = smul.addr %s996, 4
      %s998 = scalar_lea.vmem %s3, %s997
      // Predicated region
      $region33: #{restnet18_forward.21} parent=31 // pred_check
        %p999 = pneg %p100
      $region34: #{restnet18_forward.21} parent=31 // pred_check_branch
        %1001 = sbr.rel (%p999) target = $region36
      $region35: #{restnet18_forward.21} parent=31 // pred_region
        %s1002 = smul.u32 8, %s14
      $region36: #{restnet18_forward.21} parent=31 // pred_fallthru
        _
    $region32: #{restnet18_forward.21} parent=5 // pred_fallthru
      _
    %p1003 = scmp.le.s32.totalorder 2, %s9
    // Predicated region
    $region37: #{restnet18_forward.21} parent=5 // pred_check
      %p1004 = pneg %p1003
    $region38: #{restnet18_forward.21} parent=5 // pred_check_branch
      %1006 = sbr.rel (%p1004) target = $region40
    $region39: #{restnet18_forward.21} parent=5 // pred_region
      %s1007 = ssub.s32 %s9, 2
      // Predicated region
      $region41: #{restnet18_forward.21} parent=39 // pred_check
        %p1008 = pneg %p106
      $region42: #{restnet18_forward.21} parent=39 // pred_check_branch
        %1010 = sbr.rel (%p1008) target = $region44
      $region43: #{restnet18_forward.21} parent=39 // pred_region
        %s1011 = smul.u32 8, %s15
        %p1012 = scmp.lt.s32.totalorder %s1011, 15
        %s1013 = scalar_select %p1012, %s1011, 15
        %s1014 = smul.addr %s1013, 4
        %s1015 = scalar_lea.vmem %s3, %s1014
      $region44: #{restnet18_forward.21} parent=39 // pred_fallthru
        _
    $region40: #{restnet18_forward.21} parent=5 // pred_fallthru
      _
  $region6: #{restnet18_forward.21} parent=0 // loop_footer
    %s13 = sadd.s32 1, %s9
  $region7: #{restnet18_forward.21} parent=0 // loop_footer_branch
    %8 = sbr.rel target = $region3
  $region8: #{restnet18_forward.21} parent=0 // loop_exit
    _

// kernel: restnet18_forward.23
$region0: #{restnet18_forward.23}
  #allocation0 [shape = 'u32[]', space=smem, size = 0x4, offset = 0x4, fixed_abs, tag = 'smem constant byte address 0x4 - core index']
  #allocation1 [shape = 'u32[72,128]{1,0:T(1,128)}', space=vmem, size = 0x9000, scoped, tag = 'internal scratch']
  %s0 = inlined_call_operand.vmem [shape: bf16[128,288], index: 0, kind: input, shape index: {}]
  %s1 = inlined_call_operand.vmem [shape: bf16[288,128], index: 1, kind: input, shape index: {}]
  %s2 = inlined_call_operand.vmem [shape: f32[2,128], index: 2, kind: input, shape index: {}]
  %s3 = inlined_call_operand.vmem [shape: bf16[128,128], index: 3, kind: input, shape index: {}]
  %s4 = inlined_call_operand.vmem [shape: bf16[128,128], index: 4, kind: output, shape index: {}]
  %s5 = sld [smem:[#allocation0]]
  $region49: #{restnet18_forward.23} parent=0
    _
  %s7 = ssub.s32 1, %s5
  %s8 = scalar_select 0, %s7, %s5
  loop: start=0, step=1, limit=4
  $region2: #{restnet18_forward.23} parent=0 // loop_pre_header
    _
  $region3: #{restnet18_forward.23} parent=0 // loop_header
    %s10 = sphi 0, %s14
    %p11 = scmp.ge.s32.totalorder %s10, 4
    %s20 = sphi 0, %s22
    %s23 = sphi 0, %s20
    %s24 = sphi 0, %s23
    %s40 = sphi 0, %s24
    %s44 = sphi 0, %s44
    %s46 = sphi 0, %s44
    %s47 = sphi 0, %s46
    %s61 = sphi 0, %s47
    %s65 = sphi 0, %s65
    %s67 = sphi 0, %s65
    %s68 = sphi 0, %s67
    %s82 = sphi 0, %s68
    %s88 = sphi 0, %s90
    %s91 = sphi 0, %s88
    %s92 = sphi 0, %s91
    %s108 = sphi 0, %s92
    %s114 = sphi 0, %s116
    %s117 = sphi 0, %s114
    %s118 = sphi 0, %s117
    %s134 = sphi 0, %s118
  $region4: #{restnet18_forward.23} parent=0 // loop_header_branch
    %13 = sbr.rel (%p11) target = $region8
  $region5: #{restnet18_forward.23} parent=0 // loop_body
    %s15 = ssub.s32 %s10, 1
    %s16 = ssub.s32 %s10, 2
    %s17 = sadd.s32 %s10, 1
    %s18 = ssub.s32 %s10, %s17
    %p19 = scmp.eq.s32.totalorder %s18, 0
    %s21 = sadd.s32 %s20, 1
    %s22 = scalar_select %p19, %s20, %s21
    %p25 = pneg %p19
    %p26 = scmp.eq.s32.totalorder %s10, 1
    %p27 = por %p25, %p26
    %p28 = scmp.ne.s32.totalorder %s20, %s23
    %p29 = scmp.eq.s32.totalorder %s10, 0
    %p30 = por %p28, %p29
    %p31 = scmp.ne.s32.totalorder %s20, %s23
    %p32 = scmp.eq.s32.totalorder %s15, 1
    %p33 = por %p31, %p32
    %p34 = scmp.ne.s32.totalorder %s23, %s24
    %p35 = scmp.eq.s32.totalorder %s15, 0
    %p36 = por %p34, %p35
    %p37 = scmp.ne.s32.totalorder %s23, %s24
    %p38 = scmp.eq.s32.totalorder %s16, 1
    %p39 = por %p37, %p38
    %p41 = scmp.ne.s32.totalorder %s24, %s40
    %p42 = scmp.eq.s32.totalorder %s16, 0
    %p43 = por %p41, %p42
    %s45 = sadd.s32 %s44, 1
    %p48 = scmp.eq.s32.totalorder %s10, 1
    %p49 = scmp.ne.s32.totalorder %s44, %s46
    %p50 = scmp.eq.s32.totalorder %s10, 0
    %p51 = por %p49, %p50
    %p52 = scmp.ne.s32.totalorder %s44, %s46
    %p53 = scmp.eq.s32.totalorder %s15, 1
    %p54 = por %p52, %p53
    %p55 = scmp.ne.s32.totalorder %s46, %s47
    %p56 = scmp.eq.s32.totalorder %s15, 0
    %p57 = por %p55, %p56
    %p58 = scmp.ne.s32.totalorder %s46, %s47
    %p59 = scmp.eq.s32.totalorder %s16, 1
    %p60 = por %p58, %p59
    %p62 = scmp.ne.s32.totalorder %s47, %s61
    %p63 = scmp.eq.s32.totalorder %s16, 0
    %p64 = por %p62, %p63
    %s66 = sadd.s32 %s65, 1
    %p69 = scmp.eq.s32.totalorder %s10, 1
    %p70 = scmp.ne.s32.totalorder %s65, %s67
    %p71 = scmp.eq.s32.totalorder %s10, 0
    %p72 = por %p70, %p71
    %p73 = scmp.ne.s32.totalorder %s65, %s67
    %p74 = scmp.eq.s32.totalorder %s15, 1
    %p75 = por %p73, %p74
    %p76 = scmp.ne.s32.totalorder %s67, %s68
    %p77 = scmp.eq.s32.totalorder %s15, 0
    %p78 = por %p76, %p77
    %p79 = scmp.ne.s32.totalorder %s67, %s68
    %p80 = scmp.eq.s32.totalorder %s16, 1
    %p81 = por %p79, %p80
    %p83 = scmp.ne.s32.totalorder %s68, %s82
    %p84 = scmp.eq.s32.totalorder %s16, 0
    %p85 = por %p83, %p84
    %s86 = ssub.s32 %s10, %s17
    %p87 = scmp.eq.s32.totalorder %s86, 0
    %s89 = sadd.s32 %s88, 1
    %s90 = scalar_select %p87, %s88, %s89
    %p93 = pneg %p87
    %p94 = scmp.eq.s32.totalorder %s10, 1
    %p95 = por %p93, %p94
    %p96 = scmp.ne.s32.totalorder %s88, %s91
    %p97 = scmp.eq.s32.totalorder %s10, 0
    %p98 = por %p96, %p97
    %p99 = scmp.ne.s32.totalorder %s88, %s91
    %p100 = scmp.eq.s32.totalorder %s15, 1
    %p101 = por %p99, %p100
    %p102 = scmp.ne.s32.totalorder %s91, %s92
    %p103 = scmp.eq.s32.totalorder %s15, 0
    %p104 = por %p102, %p103
    %p105 = scmp.ne.s32.totalorder %s91, %s92
    %p106 = scmp.eq.s32.totalorder %s16, 1
    %p107 = por %p105, %p106
    %p109 = scmp.ne.s32.totalorder %s92, %s108
    %p110 = scmp.eq.s32.totalorder %s16, 0
    %p111 = por %p109, %p110
    %s112 = ssub.s32 %s10, %s17
    %p113 = scmp.eq.s32.totalorder %s112, 0
    %s115 = sadd.s32 %s114, 1
    %s116 = scalar_select %p113, %s114, %s115
    %p119 = pneg %p113
    %p120 = scmp.eq.s32.totalorder %s10, 1
    %p121 = por %p119, %p120
    %p122 = scmp.ne.s32.totalorder %s114, %s117
    %p123 = scmp.eq.s32.totalorder %s10, 0
    %p124 = por %p122, %p123
    %p125 = scmp.ne.s32.totalorder %s114, %s117
    %p126 = scmp.eq.s32.totalorder %s15, 1
    %p127 = por %p125, %p126
    %p128 = scmp.ne.s32.totalorder %s117, %s118
    %p129 = scmp.eq.s32.totalorder %s15, 0
    %p130 = por %p128, %p129
    %p131 = scmp.ne.s32.totalorder %s117, %s118
    %p132 = scmp.eq.s32.totalorder %s16, 1
    %p133 = por %p131, %p132
    %p135 = scmp.ne.s32.totalorder %s118, %s134
    %p136 = scmp.eq.s32.totalorder %s16, 0
    %p137 = por %p135, %p136
    %p138 = scmp.le.s32.totalorder 1, %s10
    %p139 = scmp.lt.s32.totalorder %s10, 3
    %p140 = pnand %p138, %p139
    %p141 = pneg %p140
    // Predicated region
    $region9: #{restnet18_forward.23} parent=5 // pred_check
      _
    $region10: #{restnet18_forward.23} parent=5 // pred_check_branch
      %143 = sbr.rel (%p140) target = $region12
    $region11: #{restnet18_forward.23} parent=5 // pred_region
      %s144 = ssub.s32 %s10, 1
      // Predicated region
      $region13: #{restnet18_forward.23} parent=11 // pred_check
        %p145 = pneg %p57
      $region14: #{restnet18_forward.23} parent=11 // pred_check_branch
        %147 = sbr.rel (%p145) target = $region16
      $region15: #{restnet18_forward.23} parent=11 // pred_region
        _
      $region16: #{restnet18_forward.23} parent=11 // pred_fallthru
        _
      // Predicated region
      $region17: #{restnet18_forward.23} parent=11 // pred_check
        %p148 = pneg %p78
      $region18: #{restnet18_forward.23} parent=11 // pred_check_branch
        %150 = sbr.rel (%p148) target = $region20
      $region19: #{restnet18_forward.23} parent=11 // pred_region
        _
      $region20: #{restnet18_forward.23} parent=11 // pred_fallthru
        _
    $region12: #{restnet18_forward.23} parent=5 // pred_fallthru
      _
    %p151 = scmp.lt.s32.totalorder %s10, 2
    // Predicated region
    $region21: #{restnet18_forward.23} parent=5 // pred_check
      %p152 = pneg %p151
    $region22: #{restnet18_forward.23} parent=5 // pred_check_branch
      %154 = sbr.rel (%p152) target = $region24
    $region23: #{restnet18_forward.23} parent=5 // pred_region
      // Predicated region
      $region25: #{restnet18_forward.23} parent=23 // pred_check
        %p155 = pneg %p30
      $region26: #{restnet18_forward.23} parent=23 // pred_check_branch
        %157 = sbr.rel (%p155) target = $region28
      $region27: #{restnet18_forward.23} parent=23 // pred_region
        %s158 = smul.u32 8, %s10
        %p159 = scmp.lt.s32.totalorder %s158, 15
        %s160 = scalar_select %p159, %s158, 15
        %s161 = smul.addr %s160, 3
        %s162 = smul.addr %s161, 4
        %s163 = scalar_lea.vmem %s0, %s162
        %s164 = smul.u32 8, %s10
      $region28: #{restnet18_forward.23} parent=23 // pred_fallthru
        _
      // Predicated region
      $region29: #{restnet18_forward.23} parent=23 // pred_check
        %p165 = pneg %p98
      $region30: #{restnet18_forward.23} parent=23 // pred_check_branch
        %167 = sbr.rel (%p165) target = $region32
      $region31: #{restnet18_forward.23} parent=23 // pred_region
        %s168 = smul.u32 8, %s10
        %p169 = scmp.lt.s32.totalorder %s168, 15
        %s170 = scalar_select %p169, %s168, 15
        %s171 = smul.addr %s170, 4
        %s172 = scalar_lea.vmem %s3, %s171
        %s173 = smul.u32 8, %s10
      $region32: #{restnet18_forward.23} parent=23 // pred_fallthru
        _
    $region24: #{restnet18_forward.23} parent=5 // pred_fallthru
      _
    %p174 = scmp.le.s32.totalorder 1, %s10
    %p175 = scmp.lt.s32.totalorder %s10, 3
    %p176 = pnand %p174, %p175
    %p177 = pneg %p176
    // Predicated region
    $region33: #{restnet18_forward.23} parent=5 // pred_check
      _
    $region34: #{restnet18_forward.23} parent=5 // pred_check_branch
      %179 = sbr.rel (%p176) target = $region36
    $region35: #{restnet18_forward.23} parent=5 // pred_region
      %s180 = ssub.s32 %s10, 1
      %s181 = smul.u32 8, %s15
      %p182 = scmp.lt.s32.totalorder %s181, 15
      %s183 = scalar_select %p182, %s181, 15
      %s184 = smul.addr %s183, 3
      %s185 = smul.addr %s184, 4
      %s186 = scalar_lea.vmem %s0, %s185
      %p187 = pneg %p36
      %p188 = pneg %p33
      %p189 = pneg %p57
      %p190 = pneg %p54
      %p191 = pneg %p78
      %p192 = pneg %p75
      %s193 = smul.u32 8, %s15
      %p194 = scmp.lt.s32.totalorder %s193, 15
      %s195 = scalar_select %p194, %s193, 15
      %s196 = smul.addr %s195, 4
      %s197 = scalar_lea.vmem %s3, %s196
      %p198 = pneg %p104
      %p199 = pneg %p101
      %p200 = pneg %p130
      %p201 = pneg %p127
      %s202 = smul.u32 8, %s15
      %p203 = scmp.lt.s32.totalorder %s202, 15
      %s204 = scalar_select %p203, %s202, 15
      %s205 = smul.addr %s204, 4
      %s206 = scalar_lea.vmem %s4, %s205
      %s207 = smul.u32 8, %s15
      %p208 = scmp.lt.s32.totalorder %s207, 15
      %s209 = scalar_select %p208, %s207, 15
      %s210 = smul.addr %s209, 3
      %s211 = smul.addr %s210, 4
      %s212 = scalar_lea.vmem %s0, %s211
      %s213 = smul.u32 8, %s15
      %s214 = smul.u32 8, %s15
      %p215 = scmp.lt.s32.totalorder %s214, 15
      %s216 = scalar_select %p215, %s214, 15
      %s217 = smul.addr %s216, 4
      %s218 = scalar_lea.vmem %s3, %s217
      %s219 = smul.u32 8, %s15
      %s220 = smul.u32 8, %s15
      %p221 = scmp.lt.s32.totalorder %s220, 15
      %s222 = scalar_select %p221, %s220, 15
      %s223 = smul.addr %s222, 4
      %s224 = scalar_lea.vmem %s4, %s223
      %s225 = smul.u32 8, %s15
      %v227 = vld [vmem:[%s212] sm:$0xff]
      %v228 = vld [vmem:[%s212 + $0x8] sm:$0xf]
      %v229 = vld [vmem:[%s212 + $0xc] sm:$0xff]
      %v230 = vld [vmem:[%s212 + $0x14] sm:$0xf]
      %v231 = vld [vmem:[%s212 + $0x18] sm:$0xff]
      %v232 = vld [vmem:[%s212 + $0x20] sm:$0xf]
      %v233 = vld [vmem:[%s212 + $0x24] sm:$0xff]
      %v234 = vld [vmem:[%s212 + $0x2c] sm:$0xf]
      %v235 = vld [vmem:[%s212 + $0x30] sm:$0xff]
      %v236 = vld [vmem:[%s212 + $0x38] sm:$0xf]
      %v237 = vld [vmem:[%s212 + $0x3c] sm:$0xff]
      %v238 = vld [vmem:[%s212 + $0x44] sm:$0xf]
      %v239 = vld [vmem:[%s212 + $0x48] sm:$0xff]
      %v240 = vld [vmem:[%s212 + $0x50] sm:$0xf]
      %v241 = vld [vmem:[%s212 + $0x54] sm:$0xff]
      %v242 = vld [vmem:[%s212 + $0x5c] sm:$0xf]
      %v243 = vld [vmem:[%s1] sm:$0xf]
      %v244 = vld [vmem:[%s1 + $0x4] sm:$0xf]
      %v245 = vld [vmem:[%s1 + $0x8] sm:$0xf]
      %v246 = vld [vmem:[%s1 + $0xc] sm:$0xf]
      %v247 = vld [vmem:[%s1 + $0x10] sm:$0xf]
      %v248 = vld [vmem:[%s1 + $0x14] sm:$0xf]
      %v249 = vld [vmem:[%s1 + $0x18] sm:$0xf]
      %v250 = vld [vmem:[%s1 + $0x1c] sm:$0xf]
      %v251 = vld [vmem:[%s1 + $0x20] sm:$0xf]
      %v252 = vld [vmem:[%s1 + $0x24] sm:$0xf]
      %v253 = vld [vmem:[%s1 + $0x28] sm:$0xf]
      %v254 = vld [vmem:[%s1 + $0x2c] sm:$0xf]
      %v255 = vld [vmem:[%s1 + $0x30] sm:$0xf]
      %v256 = vld [vmem:[%s1 + $0x34] sm:$0xf]
      %v257 = vld [vmem:[%s1 + $0x38] sm:$0xf]
      %v258 = vld [vmem:[%s1 + $0x3c] sm:$0xf]
      %v259 = vld [vmem:[%s1 + $0x40] sm:$0xf]
      %v260 = vld [vmem:[%s1 + $0x44] sm:$0xf]
      %v261 = vld [vmem:[%s1 + $0x48] sm:$0xf]
      %v262 = vld [vmem:[%s1 + $0x4c] sm:$0xf]
      %v263 = vld [vmem:[%s1 + $0x50] sm:$0xf]
      %v264 = vld [vmem:[%s1 + $0x54] sm:$0xf]
      %v265 = vld [vmem:[%s1 + $0x58] sm:$0xf]
      %v266 = vld [vmem:[%s1 + $0x5c] sm:$0xf]
      %v267 = vld [vmem:[%s1 + $0x60] sm:$0xf]
      %v268 = vld [vmem:[%s1 + $0x64] sm:$0xf]
      %v269 = vld [vmem:[%s1 + $0x68] sm:$0xf]
      %v270 = vld [vmem:[%s1 + $0x6c] sm:$0xf]
      %v271 = vld [vmem:[%s1 + $0x70] sm:$0xf]
      %v272 = vld [vmem:[%s1 + $0x74] sm:$0xf]
      %v273 = vld [vmem:[%s1 + $0x78] sm:$0xf]
      %v274 = vld [vmem:[%s1 + $0x7c] sm:$0xf]
      %v275 = vld [vmem:[%s1 + $0x80] sm:$0xf]
      %v276 = vld [vmem:[%s1 + $0x84] sm:$0xf]
      %v277 = vld [vmem:[%s1 + $0x88] sm:$0xf]
      %v278 = vld [vmem:[%s1 + $0x8c] sm:$0xf]
      %v295 = vunpack.c.l.b16 %v227
      %v296 = vunpack.c.h.b16 %v227
      %v297 = vunpack.c.l.b16 %v228
      %v298 = vunpack.c.l.b16 %v229
      %v299 = vunpack.c.h.b16 %v229
      %v300 = vunpack.c.l.b16 %v230
      %v301 = vunpack.c.l.b16 %v231
      %v302 = vunpack.c.h.b16 %v231
      %v303 = vunpack.c.l.b16 %v232
      %v304 = vunpack.c.l.b16 %v233
      %v305 = vunpack.c.h.b16 %v233
      %v306 = vunpack.c.l.b16 %v234
      %v307 = vunpack.c.l.b16 %v235
      %v308 = vunpack.c.h.b16 %v235
      %v309 = vunpack.c.l.b16 %v236
      %v310 = vunpack.c.l.b16 %v237
      %v311 = vunpack.c.h.b16 %v237
      %v312 = vunpack.c.l.b16 %v238
      %v313 = vunpack.c.l.b16 %v239
      %v314 = vunpack.c.h.b16 %v239
      %v315 = vunpack.c.l.b16 %v240
      %v316 = vunpack.c.l.b16 %v241
      %v317 = vunpack.c.h.b16 %v241
      %v318 = vunpack.c.l.b16 %v242
      %v319 = vpack.c.b16 %v298, %v295
      %v320 = vpack.c.b16 %v299, %v296
      %v321 = vpack.c.b16 %v300, %v297
      %v322 = vpack.c.b16 %v304, %v301
      %v323 = vpack.c.b16 %v305, %v302
      %v324 = vpack.c.b16 %v306, %v303
      %v325 = vpack.c.b16 %v310, %v307
      %v326 = vpack.c.b16 %v311, %v308
      %v327 = vpack.c.b16 %v312, %v309
      %v328 = vpack.c.b16 %v316, %v313
      %v329 = vpack.c.b16 %v317, %v314
      %v330 = vpack.c.b16 %v318, %v315
      %v375 = vunpack.c.l.b16 %v243
      %v376 = vunpack.c.l.b16 %v244
      %v377 = vunpack.c.l.b16 %v245
      %v378 = vunpack.c.l.b16 %v246
      %v379 = vunpack.c.l.b16 %v247
      %v380 = vunpack.c.l.b16 %v248
      %v381 = vunpack.c.l.b16 %v249
      %v382 = vunpack.c.l.b16 %v250
      %v383 = vunpack.c.l.b16 %v251
      %v384 = vunpack.c.l.b16 %v252
      %v385 = vunpack.c.l.b16 %v253
      %v386 = vunpack.c.l.b16 %v254
      %v387 = vunpack.c.l.b16 %v255
      %v388 = vunpack.c.l.b16 %v256
      %v389 = vunpack.c.l.b16 %v257
      %v390 = vunpack.c.l.b16 %v258
      %v391 = vunpack.c.l.b16 %v259
      %v392 = vunpack.c.l.b16 %v260
      %v393 = vunpack.c.l.b16 %v261
      %v394 = vunpack.c.l.b16 %v262
      %v395 = vunpack.c.l.b16 %v263
      %v396 = vunpack.c.l.b16 %v264
      %v397 = vunpack.c.l.b16 %v265
      %v398 = vunpack.c.l.b16 %v266
      %v399 = vunpack.c.l.b16 %v267
      %v400 = vunpack.c.l.b16 %v268
      %v401 = vunpack.c.l.b16 %v269
      %v402 = vunpack.c.l.b16 %v270
      %v403 = vunpack.c.l.b16 %v271
      %v404 = vunpack.c.l.b16 %v272
      %v405 = vunpack.c.l.b16 %v273
      %v406 = vunpack.c.l.b16 %v274
      %v407 = vunpack.c.l.b16 %v275
      %v408 = vunpack.c.l.b16 %v276
      %v409 = vunpack.c.l.b16 %v277
      %v410 = vunpack.c.l.b16 %v278
      %v411 = vpack.c.b16 %v376, %v375
      %v412 = vpack.c.b16 %v378, %v377
      %v413 = vpack.c.b16 %v380, %v379
      %v414 = vpack.c.b16 %v382, %v381
      %v415 = vpack.c.b16 %v384, %v383
      %v416 = vpack.c.b16 %v386, %v385
      %v417 = vpack.c.b16 %v388, %v387
      %v418 = vpack.c.b16 %v390, %v389
      %v419 = vpack.c.b16 %v392, %v391
      %v420 = vpack.c.b16 %v394, %v393
      %v421 = vpack.c.b16 %v396, %v395
      %v422 = vpack.c.b16 %v398, %v397
      %v423 = vpack.c.b16 %v400, %v399
      %v424 = vpack.c.b16 %v402, %v401
      %v425 = vpack.c.b16 %v404, %v403
      %v426 = vpack.c.b16 %v406, %v405
      %v427 = vpack.c.b16 %v408, %v407
      %v428 = vpack.c.b16 %v410, %v409
      %vm447 = vcmask 261120
      %v449 = vsel %vm447, %v321, 0
      %v452 = vsel %vm447, %v324, 0
      %v455 = vsel %vm447, %v327, 0
      %v458 = vsel %vm447, %v330, 0
      %460 = vmatpush.bf16.msra.mxu0 %v418
      %461 = vmatpush.bf16.msra.mxu0 %v417
      %462 = vmatpush.bf16.msra.mxu0 %v416
      %463 = vmatpush.bf16.msra.mxu0 %v415
      %464 = vmatpush.bf16.msra.mxu0 %v414
      %465 = vmatpush.bf16.msra.mxu0 %v413
      %466 = vmatpush.bf16.msra.mxu0 %v412
      %467 = vmatpush.bf16.msra.mxu0 %v411
      %468 = vmatmul.bf16.gmra.mxu0 %v319
      %v469 = vpop.f32.mrf.mxu0
      %v470 = vadd.f32 0.0, %v469
      %v471 = vpop.f32.mrf.mxu0
      %v472 = vadd.f32 0.0, %v471
      %473 = vmatmul.bf16.gmra.mxu0 %v322
      %v474 = vpop.f32.mrf.mxu0
      %v475 = vadd.f32 0.0, %v474
      %v476 = vpop.f32.mrf.mxu0
      %v477 = vadd.f32 0.0, %v476
      %478 = vmatmul.bf16.gmra.mxu0 %v325
      %v479 = vpop.f32.mrf.mxu0
      %v480 = vadd.f32 0.0, %v479
      %v481 = vpop.f32.mrf.mxu0
      %v482 = vadd.f32 0.0, %v481
      %483 = vmatmul.bf16.gmra.mxu0 %v328
      %v484 = vpop.f32.mrf.mxu0
      %v485 = vadd.f32 0.0, %v484
      %v486 = vpop.f32.mrf.mxu0
      %v487 = vadd.f32 0.0, %v486
      %488 = vdwg.mxu0
      %489 = vmatpush.bf16.msra.mxu0 %v426
      %490 = vmatpush.bf16.msra.mxu0 %v425
      %491 = vmatpush.bf16.msra.mxu0 %v424
      %492 = vmatpush.bf16.msra.mxu0 %v423
      %493 = vmatpush.bf16.msra.mxu0 %v422
      %494 = vmatpush.bf16.msra.mxu0 %v421
      %495 = vmatpush.bf16.msra.mxu0 %v420
      %496 = vmatpush.bf16.msra.mxu0 %v419
      %497 = vmatmul.bf16.gmra.mxu0 %v320
      %v498 = vpop.f32.mrf.mxu0
      %v499 = vadd.f32 %v470, %v498
      %v500 = vpop.f32.mrf.mxu0
      %v501 = vadd.f32 %v472, %v500
      %502 = vmatmul.bf16.gmra.mxu0 %v323
      %v503 = vpop.f32.mrf.mxu0
      %v504 = vadd.f32 %v475, %v503
      %v505 = vpop.f32.mrf.mxu0
      %v506 = vadd.f32 %v477, %v505
      %507 = vmatmul.bf16.gmra.mxu0 %v326
      %v508 = vpop.f32.mrf.mxu0
      %v509 = vadd.f32 %v480, %v508
      %v510 = vpop.f32.mrf.mxu0
      %v511 = vadd.f32 %v482, %v510
      %512 = vmatmul.bf16.gmra.mxu0 %v329
      %v513 = vpop.f32.mrf.mxu0
      %v514 = vadd.f32 %v485, %v513
      %v515 = vpop.f32.mrf.mxu0
      %v516 = vadd.f32 %v487, %v515
      %517 = vdwg.mxu0
      %518 = vmatpush.bf16.msra.mxu0 0
      %519 = vmatpush.bf16.msra.mxu0 0
      %520 = vmatpush.bf16.msra.mxu0 0
      %521 = vmatpush.bf16.msra.mxu0 0
      %522 = vmatpush.bf16.msra.mxu0 0
      %523 = vmatpush.bf16.msra.mxu0 0
      %524 = vmatpush.bf16.msra.mxu0 %v428
      %525 = vmatpush.bf16.msra.mxu0 %v427
      %526 = vmatmul.bf16.gmra.mxu0 %v449
      %v527 = vpop.f32.mrf.mxu0
      %v528 = vadd.f32 %v499, %v527
      %v529 = vpop.f32.mrf.mxu0
      %v530 = vadd.f32 %v501, %v529
      %531 = vmatmul.bf16.gmra.mxu0 %v452
      %v532 = vpop.f32.mrf.mxu0
      %v533 = vadd.f32 %v504, %v532
      %v534 = vpop.f32.mrf.mxu0
      %v535 = vadd.f32 %v506, %v534
      %536 = vmatmul.bf16.gmra.mxu0 %v455
      %v537 = vpop.f32.mrf.mxu0
      %v538 = vadd.f32 %v509, %v537
      %v539 = vpop.f32.mrf.mxu0
      %v540 = vadd.f32 %v511, %v539
      %541 = vmatmul.bf16.gmra.mxu0 %v458
      %v542 = vpop.f32.mrf.mxu0
      %v543 = vadd.f32 %v514, %v542
      %v544 = vpop.f32.mrf.mxu0
      %v545 = vadd.f32 %v516, %v544
      %546 = vdwg.mxu0
      %v547 = vld [vmem:[%s2] sm:$0x1]
      %v548 = vperm.slane %v547, 0
      %v549 = vmul.f32 %v528, %v548
      %v550 = vmul.f32 %v530, %v548
      %v551 = vmul.f32 %v533, %v548
      %v552 = vmul.f32 %v535, %v548
      %v553 = vmul.f32 %v538, %v548
      %v554 = vmul.f32 %v540, %v548
      %v555 = vmul.f32 %v543, %v548
      %v556 = vmul.f32 %v545, %v548
      %v557 = vld [vmem:[%s2 + $0x1] sm:$0x1]
      %v558 = vperm.slane %v557, 0
      %v559 = vadd.f32 %v549, %v558
      %v560 = vadd.f32 %v550, %v558
      %v561 = vadd.f32 %v551, %v558
      %v562 = vadd.f32 %v552, %v558
      %v563 = vadd.f32 %v553, %v558
      %v564 = vadd.f32 %v554, %v558
      %v565 = vadd.f32 %v555, %v558
      %v566 = vadd.f32 %v556, %v558
      %v567 = vld [vmem:[%s218] sm:$0xf]
      %v568 = vld [vmem:[%s218 + $0x4] sm:$0xf]
      %v569 = vld [vmem:[%s218 + $0x8] sm:$0xf]
      %v570 = vld [vmem:[%s218 + $0xc] sm:$0xf]
      %v571 = vld [vmem:[%s218 + $0x10] sm:$0xf]
      %v572 = vld [vmem:[%s218 + $0x14] sm:$0xf]
      %v573 = vld [vmem:[%s218 + $0x18] sm:$0xf]
      %v574 = vld [vmem:[%s218 + $0x1c] sm:$0xf]
      %v575 = vunpack.c.l.bf16 %v567
      %v576 = vunpack.c.l.bf16 %v568
      %v577 = vunpack.c.l.bf16 %v569
      %v578 = vunpack.c.l.bf16 %v570
      %v579 = vunpack.c.l.bf16 %v571
      %v580 = vunpack.c.l.bf16 %v572
      %v581 = vunpack.c.l.bf16 %v573
      %v582 = vunpack.c.l.bf16 %v574
      %v583 = vadd.f32 %v559, %v575
      %v584 = vadd.f32 %v560, %v576
      %v585 = vadd.f32 %v561, %v577
      %v586 = vadd.f32 %v562, %v578
      %v587 = vadd.f32 %v563, %v579
      %v588 = vadd.f32 %v564, %v580
      %v589 = vadd.f32 %v565, %v581
      %v590 = vadd.f32 %v566, %v582
      %v591 = vmax.f32 %v583, 0.0
      %v592 = vmax.f32 %v584, 0.0
      %v593 = vmax.f32 %v585, 0.0
      %v594 = vmax.f32 %v586, 0.0
      %v595 = vmax.f32 %v587, 0.0
      %v596 = vmax.f32 %v588, 0.0
      %v597 = vmax.f32 %v589, 0.0
      %v598 = vmax.f32 %v590, 0.0
      %v599 = vpack.c.bf16 %v591, %v591
      %v600 = vpack.c.bf16 %v592, %v592
      %v601 = vpack.c.bf16 %v593, %v593
      %v602 = vpack.c.bf16 %v594, %v594
      %v603 = vpack.c.bf16 %v595, %v595
      %v604 = vpack.c.bf16 %v596, %v596
      %v605 = vpack.c.bf16 %v597, %v597
      %v606 = vpack.c.bf16 %v598, %v598
      %607 = vst [vmem:[%s224] sm:$0xf] %v599
      %608 = vst [vmem:[%s224 + $0x4] sm:$0xf] %v600
      %609 = vst [vmem:[%s224 + $0x8] sm:$0xf] %v601
      %610 = vst [vmem:[%s224 + $0xc] sm:$0xf] %v602
      %611 = vst [vmem:[%s224 + $0x10] sm:$0xf] %v603
      %612 = vst [vmem:[%s224 + $0x14] sm:$0xf] %v604
      %613 = vst [vmem:[%s224 + $0x18] sm:$0xf] %v605
      %614 = vst [vmem:[%s224 + $0x1c] sm:$0xf] %v606
      %s615 = smul.u32 8, %s15
      %p616 = scmp.lt.s32.totalorder %s615, 15
      %s617 = scalar_select %p616, %s615, 15
      %s618 = smul.addr %s617, 4
      %s619 = scalar_lea.vmem %s4, %s618
      // Predicated region
      $region37: #{restnet18_forward.23} parent=35 // pred_check
        %p620 = pneg %p127
      $region38: #{restnet18_forward.23} parent=35 // pred_check_branch
        %622 = sbr.rel (%p620) target = $region40
      $region39: #{restnet18_forward.23} parent=35 // pred_region
        %s623 = smul.u32 8, %s15
      $region40: #{restnet18_forward.23} parent=35 // pred_fallthru
        _
    $region36: #{restnet18_forward.23} parent=5 // pred_fallthru
      _
    %p624 = scmp.le.s32.totalorder 2, %s10
    // Predicated region
    $region41: #{restnet18_forward.23} parent=5 // pred_check
      %p625 = pneg %p624
    $region42: #{restnet18_forward.23} parent=5 // pred_check_branch
      %627 = sbr.rel (%p625) target = $region44
    $region43: #{restnet18_forward.23} parent=5 // pred_region
      %s628 = ssub.s32 %s10, 2
      // Predicated region
      $region45: #{restnet18_forward.23} parent=43 // pred_check
        %p629 = pneg %p133
      $region46: #{restnet18_forward.23} parent=43 // pred_check_branch
        %631 = sbr.rel (%p629) target = $region48
      $region47: #{restnet18_forward.23} parent=43 // pred_region
        %s632 = smul.u32 8, %s16
        %p633 = scmp.lt.s32.totalorder %s632, 15
        %s634 = scalar_select %p633, %s632, 15
        %s635 = smul.addr %s634, 4
        %s636 = scalar_lea.vmem %s4, %s635
      $region48: #{restnet18_forward.23} parent=43 // pred_fallthru
        _
    $region44: #{restnet18_forward.23} parent=5 // pred_fallthru
      _
  $region6: #{restnet18_forward.23} parent=0 // loop_footer
    %s14 = sadd.s32 1, %s10
  $region7: #{restnet18_forward.23} parent=0 // loop_footer_branch
    %9 = sbr.rel target = $region3
  $region8: #{restnet18_forward.23} parent=0 // loop_exit
    _

// kernel: restnet18_forward.27
$region0: #{restnet18_forward.27}
  #allocation0 [shape = 'u32[]', space=smem, size = 0x4, offset = 0x4, fixed_abs, tag = 'smem constant byte address 0x4 - core index']
  #allocation1 [shape = 'u32[72,128]{1,0:T(1,128)}', space=vmem, size = 0x9000, scoped, tag = 'internal scratch']
  %s0 = inlined_call_operand.vmem [shape: bf16[32,576], index: 0, kind: input, shape index: {}]
  %s1 = inlined_call_operand.vmem [shape: bf16[576,128], index: 1, kind: input, shape index: {}]
  %s2 = inlined_call_operand.vmem [shape: f32[2,128], index: 2, kind: input, shape index: {}]
  %s3 = inlined_call_operand.vmem [shape: bf16[32,128], index: 3, kind: input, shape index: {}]
  %s4 = inlined_call_operand.vmem [shape: bf16[32,128], index: 4, kind: output, shape index: {}]
  %s5 = sld [smem:[#allocation0]]
  $region49: #{restnet18_forward.27} parent=0
    _
  %s7 = ssub.s32 1, %s5
  %s8 = scalar_select 0, %s7, %s5
  loop: start=0, step=1, limit=4
  $region2: #{restnet18_forward.27} parent=0 // loop_pre_header
    _
  $region3: #{restnet18_forward.27} parent=0 // loop_header
    %s10 = sphi 0, %s14
    %p11 = scmp.ge.s32.totalorder %s10, 4
    %s20 = sphi 0, %s22
    %s23 = sphi 0, %s20
    %s24 = sphi 0, %s23
    %s40 = sphi 0, %s24
    %s44 = sphi 0, %s44
    %s46 = sphi 0, %s44
    %s47 = sphi 0, %s46
    %s61 = sphi 0, %s47
    %s65 = sphi 0, %s65
    %s67 = sphi 0, %s65
    %s68 = sphi 0, %s67
    %s82 = sphi 0, %s68
    %s88 = sphi 0, %s90
    %s91 = sphi 0, %s88
    %s92 = sphi 0, %s91
    %s108 = sphi 0, %s92
    %s114 = sphi 0, %s116
    %s117 = sphi 0, %s114
    %s118 = sphi 0, %s117
    %s134 = sphi 0, %s118
  $region4: #{restnet18_forward.27} parent=0 // loop_header_branch
    %13 = sbr.rel (%p11) target = $region8
  $region5: #{restnet18_forward.27} parent=0 // loop_body
    %s15 = ssub.s32 %s10, 1
    %s16 = ssub.s32 %s10, 2
    %s17 = sadd.s32 %s10, 1
    %s18 = ssub.s32 %s10, %s17
    %p19 = scmp.eq.s32.totalorder %s18, 0
    %s21 = sadd.s32 %s20, 1
    %s22 = scalar_select %p19, %s20, %s21
    %p25 = pneg %p19
    %p26 = scmp.eq.s32.totalorder %s10, 1
    %p27 = por %p25, %p26
    %p28 = scmp.ne.s32.totalorder %s20, %s23
    %p29 = scmp.eq.s32.totalorder %s10, 0
    %p30 = por %p28, %p29
    %p31 = scmp.ne.s32.totalorder %s20, %s23
    %p32 = scmp.eq.s32.totalorder %s15, 1
    %p33 = por %p31, %p32
    %p34 = scmp.ne.s32.totalorder %s23, %s24
    %p35 = scmp.eq.s32.totalorder %s15, 0
    %p36 = por %p34, %p35
    %p37 = scmp.ne.s32.totalorder %s23, %s24
    %p38 = scmp.eq.s32.totalorder %s16, 1
    %p39 = por %p37, %p38
    %p41 = scmp.ne.s32.totalorder %s24, %s40
    %p42 = scmp.eq.s32.totalorder %s16, 0
    %p43 = por %p41, %p42
    %s45 = sadd.s32 %s44, 1
    %p48 = scmp.eq.s32.totalorder %s10, 1
    %p49 = scmp.ne.s32.totalorder %s44, %s46
    %p50 = scmp.eq.s32.totalorder %s10, 0
    %p51 = por %p49, %p50
    %p52 = scmp.ne.s32.totalorder %s44, %s46
    %p53 = scmp.eq.s32.totalorder %s15, 1
    %p54 = por %p52, %p53
    %p55 = scmp.ne.s32.totalorder %s46, %s47
    %p56 = scmp.eq.s32.totalorder %s15, 0
    %p57 = por %p55, %p56
    %p58 = scmp.ne.s32.totalorder %s46, %s47
    %p59 = scmp.eq.s32.totalorder %s16, 1
    %p60 = por %p58, %p59
    %p62 = scmp.ne.s32.totalorder %s47, %s61
    %p63 = scmp.eq.s32.totalorder %s16, 0
    %p64 = por %p62, %p63
    %s66 = sadd.s32 %s65, 1
    %p69 = scmp.eq.s32.totalorder %s10, 1
    %p70 = scmp.ne.s32.totalorder %s65, %s67
    %p71 = scmp.eq.s32.totalorder %s10, 0
    %p72 = por %p70, %p71
    %p73 = scmp.ne.s32.totalorder %s65, %s67
    %p74 = scmp.eq.s32.totalorder %s15, 1
    %p75 = por %p73, %p74
    %p76 = scmp.ne.s32.totalorder %s67, %s68
    %p77 = scmp.eq.s32.totalorder %s15, 0
    %p78 = por %p76, %p77
    %p79 = scmp.ne.s32.totalorder %s67, %s68
    %p80 = scmp.eq.s32.totalorder %s16, 1
    %p81 = por %p79, %p80
    %p83 = scmp.ne.s32.totalorder %s68, %s82
    %p84 = scmp.eq.s32.totalorder %s16, 0
    %p85 = por %p83, %p84
    %s86 = ssub.s32 %s10, %s17
    %p87 = scmp.eq.s32.totalorder %s86, 0
    %s89 = sadd.s32 %s88, 1
    %s90 = scalar_select %p87, %s88, %s89
    %p93 = pneg %p87
    %p94 = scmp.eq.s32.totalorder %s10, 1
    %p95 = por %p93, %p94
    %p96 = scmp.ne.s32.totalorder %s88, %s91
    %p97 = scmp.eq.s32.totalorder %s10, 0
    %p98 = por %p96, %p97
    %p99 = scmp.ne.s32.totalorder %s88, %s91
    %p100 = scmp.eq.s32.totalorder %s15, 1
    %p101 = por %p99, %p100
    %p102 = scmp.ne.s32.totalorder %s91, %s92
    %p103 = scmp.eq.s32.totalorder %s15, 0
    %p104 = por %p102, %p103
    %p105 = scmp.ne.s32.totalorder %s91, %s92
    %p106 = scmp.eq.s32.totalorder %s16, 1
    %p107 = por %p105, %p106
    %p109 = scmp.ne.s32.totalorder %s92, %s108
    %p110 = scmp.eq.s32.totalorder %s16, 0
    %p111 = por %p109, %p110
    %s112 = ssub.s32 %s10, %s17
    %p113 = scmp.eq.s32.totalorder %s112, 0
    %s115 = sadd.s32 %s114, 1
    %s116 = scalar_select %p113, %s114, %s115
    %p119 = pneg %p113
    %p120 = scmp.eq.s32.totalorder %s10, 1
    %p121 = por %p119, %p120
    %p122 = scmp.ne.s32.totalorder %s114, %s117
    %p123 = scmp.eq.s32.totalorder %s10, 0
    %p124 = por %p122, %p123
    %p125 = scmp.ne.s32.totalorder %s114, %s117
    %p126 = scmp.eq.s32.totalorder %s15, 1
    %p127 = por %p125, %p126
    %p128 = scmp.ne.s32.totalorder %s117, %s118
    %p129 = scmp.eq.s32.totalorder %s15, 0
    %p130 = por %p128, %p129
    %p131 = scmp.ne.s32.totalorder %s117, %s118
    %p132 = scmp.eq.s32.totalorder %s16, 1
    %p133 = por %p131, %p132
    %p135 = scmp.ne.s32.totalorder %s118, %s134
    %p136 = scmp.eq.s32.totalorder %s16, 0
    %p137 = por %p135, %p136
    %p138 = scmp.le.s32.totalorder 1, %s10
    %p139 = scmp.lt.s32.totalorder %s10, 3
    %p140 = pnand %p138, %p139
    %p141 = pneg %p140
    // Predicated region
    $region9: #{restnet18_forward.27} parent=5 // pred_check
      _
    $region10: #{restnet18_forward.27} parent=5 // pred_check_branch
      %143 = sbr.rel (%p140) target = $region12
    $region11: #{restnet18_forward.27} parent=5 // pred_region
      %s144 = ssub.s32 %s10, 1
      // Predicated region
      $region13: #{restnet18_forward.27} parent=11 // pred_check
        %p145 = pneg %p57
      $region14: #{restnet18_forward.27} parent=11 // pred_check_branch
        %147 = sbr.rel (%p145) target = $region16
      $region15: #{restnet18_forward.27} parent=11 // pred_region
        _
      $region16: #{restnet18_forward.27} parent=11 // pred_fallthru
        _
      // Predicated region
      $region17: #{restnet18_forward.27} parent=11 // pred_check
        %p148 = pneg %p78
      $region18: #{restnet18_forward.27} parent=11 // pred_check_branch
        %150 = sbr.rel (%p148) target = $region20
      $region19: #{restnet18_forward.27} parent=11 // pred_region
        _
      $region20: #{restnet18_forward.27} parent=11 // pred_fallthru
        _
    $region12: #{restnet18_forward.27} parent=5 // pred_fallthru
      _
    %p151 = scmp.lt.s32.totalorder %s10, 2
    // Predicated region
    $region21: #{restnet18_forward.27} parent=5 // pred_check
      %p152 = pneg %p151
    $region22: #{restnet18_forward.27} parent=5 // pred_check_branch
      %154 = sbr.rel (%p152) target = $region24
    $region23: #{restnet18_forward.27} parent=5 // pred_region
      // Predicated region
      $region25: #{restnet18_forward.27} parent=23 // pred_check
        %p155 = pneg %p30
      $region26: #{restnet18_forward.27} parent=23 // pred_check_branch
        %157 = sbr.rel (%p155) target = $region28
      $region27: #{restnet18_forward.27} parent=23 // pred_region
        %s158 = smul.u32 2, %s10
        %p159 = scmp.lt.s32.totalorder %s158, 3
        %s160 = scalar_select %p159, %s158, 3
        %s161 = smul.addr %s160, 5
        %s162 = smul.addr %s161, 4
        %s163 = scalar_lea.vmem %s0, %s162
        %s164 = smul.u32 2, %s10
      $region28: #{restnet18_forward.27} parent=23 // pred_fallthru
        _
      // Predicated region
      $region29: #{restnet18_forward.27} parent=23 // pred_check
        %p165 = pneg %p98
      $region30: #{restnet18_forward.27} parent=23 // pred_check_branch
        %167 = sbr.rel (%p165) target = $region32
      $region31: #{restnet18_forward.27} parent=23 // pred_region
        %s168 = smul.u32 2, %s10
        %p169 = scmp.lt.s32.totalorder %s168, 3
        %s170 = scalar_select %p169, %s168, 3
        %s171 = smul.addr %s170, 4
        %s172 = scalar_lea.vmem %s3, %s171
        %s173 = smul.u32 2, %s10
      $region32: #{restnet18_forward.27} parent=23 // pred_fallthru
        _
    $region24: #{restnet18_forward.27} parent=5 // pred_fallthru
      _
    %p174 = scmp.le.s32.totalorder 1, %s10
    %p175 = scmp.lt.s32.totalorder %s10, 3
    %p176 = pnand %p174, %p175
    %p177 = pneg %p176
    // Predicated region
    $region33: #{restnet18_forward.27} parent=5 // pred_check
      _
    $region34: #{restnet18_forward.27} parent=5 // pred_check_branch
      %179 = sbr.rel (%p176) target = $region36
    $region35: #{restnet18_forward.27} parent=5 // pred_region
      %s180 = ssub.s32 %s10, 1
      %s181 = smul.u32 2, %s15
      %p182 = scmp.lt.s32.totalorder %s181, 3
      %s183 = scalar_select %p182, %s181, 3
      %s184 = smul.addr %s183, 5
      %s185 = smul.addr %s184, 4
      %s186 = scalar_lea.vmem %s0, %s185
      %p187 = pneg %p36
      %p188 = pneg %p33
      %p189 = pneg %p57
      %p190 = pneg %p54
      %p191 = pneg %p78
      %p192 = pneg %p75
      %s193 = smul.u32 2, %s15
      %p194 = scmp.lt.s32.totalorder %s193, 3
      %s195 = scalar_select %p194, %s193, 3
      %s196 = smul.addr %s195, 4
      %s197 = scalar_lea.vmem %s3, %s196
      %p198 = pneg %p104
      %p199 = pneg %p101
      %p200 = pneg %p130
      %p201 = pneg %p127
      %s202 = smul.u32 2, %s15
      %p203 = scmp.lt.s32.totalorder %s202, 3
      %s204 = scalar_select %p203, %s202, 3
      %s205 = smul.addr %s204, 4
      %s206 = scalar_lea.vmem %s4, %s205
      %s207 = smul.u32 2, %s15
      %p208 = scmp.lt.s32.totalorder %s207, 3
      %s209 = scalar_select %p208, %s207, 3
      %s210 = smul.addr %s209, 5
      %s211 = smul.addr %s210, 4
      %s212 = scalar_lea.vmem %s0, %s211
      %s213 = smul.u32 2, %s15
      %s214 = smul.u32 2, %s15
      %p215 = scmp.lt.s32.totalorder %s214, 3
      %s216 = scalar_select %p215, %s214, 3
      %s217 = smul.addr %s216, 4
      %s218 = scalar_lea.vmem %s3, %s217
      %s219 = smul.u32 2, %s15
      %s220 = smul.u32 2, %s15
      %p221 = scmp.lt.s32.totalorder %s220, 3
      %s222 = scalar_select %p221, %s220, 3
      %s223 = smul.addr %s222, 4
      %s224 = scalar_lea.vmem %s4, %s223
      %s225 = smul.u32 2, %s15
      %v227 = vld [vmem:[%s212] sm:$0xff]
      %v228 = vld [vmem:[%s212 + $0x8] sm:$0xff]
      %v229 = vld [vmem:[%s212 + $0x10] sm:$0xf]
      %v230 = vld [vmem:[%s212 + $0x14] sm:$0xff]
      %v231 = vld [vmem:[%s212 + $0x1c] sm:$0xff]
      %v232 = vld [vmem:[%s212 + $0x24] sm:$0xf]
      %v233 = vld [vmem:[%s1] sm:$0xf]
      %v234 = vld [vmem:[%s1 + $0x4] sm:$0xf]
      %v235 = vld [vmem:[%s1 + $0x8] sm:$0xf]
      %v236 = vld [vmem:[%s1 + $0xc] sm:$0xf]
      %v237 = vld [vmem:[%s1 + $0x10] sm:$0xf]
      %v238 = vld [vmem:[%s1 + $0x14] sm:$0xf]
      %v239 = vld [vmem:[%s1 + $0x18] sm:$0xf]
      %v240 = vld [vmem:[%s1 + $0x1c] sm:$0xf]
      %v241 = vld [vmem:[%s1 + $0x20] sm:$0xf]
      %v242 = vld [vmem:[%s1 + $0x24] sm:$0xf]
      %v243 = vld [vmem:[%s1 + $0x28] sm:$0xf]
      %v244 = vld [vmem:[%s1 + $0x2c] sm:$0xf]
      %v245 = vld [vmem:[%s1 + $0x30] sm:$0xf]
      %v246 = vld [vmem:[%s1 + $0x34] sm:$0xf]
      %v247 = vld [vmem:[%s1 + $0x38] sm:$0xf]
      %v248 = vld [vmem:[%s1 + $0x3c] sm:$0xf]
      %v249 = vld [vmem:[%s1 + $0x40] sm:$0xf]
      %v250 = vld [vmem:[%s1 + $0x44] sm:$0xf]
      %v251 = vld [vmem:[%s1 + $0x48] sm:$0xf]
      %v252 = vld [vmem:[%s1 + $0x4c] sm:$0xf]
      %v253 = vld [vmem:[%s1 + $0x50] sm:$0xf]
      %v254 = vld [vmem:[%s1 + $0x54] sm:$0xf]
      %v255 = vld [vmem:[%s1 + $0x58] sm:$0xf]
      %v256 = vld [vmem:[%s1 + $0x5c] sm:$0xf]
      %v257 = vld [vmem:[%s1 + $0x60] sm:$0xf]
      %v258 = vld [vmem:[%s1 + $0x64] sm:$0xf]
      %v259 = vld [vmem:[%s1 + $0x68] sm:$0xf]
      %v260 = vld [vmem:[%s1 + $0x6c] sm:$0xf]
      %v261 = vld [vmem:[%s1 + $0x70] sm:$0xf]
      %v262 = vld [vmem:[%s1 + $0x74] sm:$0xf]
      %v263 = vld [vmem:[%s1 + $0x78] sm:$0xf]
      %v264 = vld [vmem:[%s1 + $0x7c] sm:$0xf]
      %v265 = vld [vmem:[%s1 + $0x80] sm:$0xf]
      %v266 = vld [vmem:[%s1 + $0x84] sm:$0xf]
      %v267 = vld [vmem:[%s1 + $0x88] sm:$0xf]
      %v268 = vld [vmem:[%s1 + $0x8c] sm:$0xf]
      %v269 = vld [vmem:[%s1 + $0x90] sm:$0xf]
      %v270 = vld [vmem:[%s1 + $0x94] sm:$0xf]
      %v271 = vld [vmem:[%s1 + $0x98] sm:$0xf]
      %v272 = vld [vmem:[%s1 + $0x9c] sm:$0xf]
      %v273 = vld [vmem:[%s1 + $0xa0] sm:$0xf]
      %v274 = vld [vmem:[%s1 + $0xa4] sm:$0xf]
      %v275 = vld [vmem:[%s1 + $0xa8] sm:$0xf]
      %v276 = vld [vmem:[%s1 + $0xac] sm:$0xf]
      %v277 = vld [vmem:[%s1 + $0xb0] sm:$0xf]
      %v278 = vld [vmem:[%s1 + $0xb4] sm:$0xf]
      %v279 = vld [vmem:[%s1 + $0xb8] sm:$0xf]
      %v280 = vld [vmem:[%s1 + $0xbc] sm:$0xf]
      %v281 = vld [vmem:[%s1 + $0xc0] sm:$0xf]
      %v282 = vld [vmem:[%s1 + $0xc4] sm:$0xf]
      %v283 = vld [vmem:[%s1 + $0xc8] sm:$0xf]
      %v284 = vld [vmem:[%s1 + $0xcc] sm:$0xf]
      %v285 = vld [vmem:[%s1 + $0xd0] sm:$0xf]
      %v286 = vld [vmem:[%s1 + $0xd4] sm:$0xf]
      %v287 = vld [vmem:[%s1 + $0xd8] sm:$0xf]
      %v288 = vld [vmem:[%s1 + $0xdc] sm:$0xf]
      %v289 = vld [vmem:[%s1 + $0xe0] sm:$0xf]
      %v290 = vld [vmem:[%s1 + $0xe4] sm:$0xf]
      %v291 = vld [vmem:[%s1 + $0xe8] sm:$0xf]
      %v292 = vld [vmem:[%s1 + $0xec] sm:$0xf]
      %v293 = vld [vmem:[%s1 + $0xf0] sm:$0xf]
      %v294 = vld [vmem:[%s1 + $0xf4] sm:$0xf]
      %v295 = vld [vmem:[%s1 + $0xf8] sm:$0xf]
      %v296 = vld [vmem:[%s1 + $0xfc] sm:$0xf]
      %v297 = vld [vmem:[%s1 + $0x100] sm:$0xf]
      %v298 = vld [vmem:[%s1 + $0x104] sm:$0xf]
      %v299 = vld [vmem:[%s1 + $0x108] sm:$0xf]
      %v300 = vld [vmem:[%s1 + $0x10c] sm:$0xf]
      %v301 = vld [vmem:[%s1 + $0x110] sm:$0xf]
      %v302 = vld [vmem:[%s1 + $0x114] sm:$0xf]
      %v303 = vld [vmem:[%s1 + $0x118] sm:$0xf]
      %v304 = vld [vmem:[%s1 + $0x11c] sm:$0xf]
      %v311 = vunpack.c.l.b16 %v227
      %v312 = vunpack.c.h.b16 %v227
      %v313 = vunpack.c.l.b16 %v228
      %v314 = vunpack.c.h.b16 %v228
      %v315 = vunpack.c.l.b16 %v229
      %v316 = vunpack.c.l.b16 %v230
      %v317 = vunpack.c.h.b16 %v230
      %v318 = vunpack.c.l.b16 %v231
      %v319 = vunpack.c.h.b16 %v231
      %v320 = vunpack.c.l.b16 %v232
      %v321 = vpack.c.b16 %v316, %v311
      %v322 = vpack.c.b16 %v317, %v312
      %v323 = vpack.c.b16 %v318, %v313
      %v324 = vpack.c.b16 %v319, %v314
      %v325 = vpack.c.b16 %v320, %v315
      %v402 = vunpack.c.l.b16 %v233
      %v403 = vunpack.c.l.b16 %v234
      %v404 = vunpack.c.l.b16 %v235
      %v405 = vunpack.c.l.b16 %v236
      %v406 = vunpack.c.l.b16 %v237
      %v407 = vunpack.c.l.b16 %v238
      %v408 = vunpack.c.l.b16 %v239
      %v409 = vunpack.c.l.b16 %v240
      %v410 = vunpack.c.l.b16 %v241
      %v411 = vunpack.c.l.b16 %v242
      %v412 = vunpack.c.l.b16 %v243
      %v413 = vunpack.c.l.b16 %v244
      %v414 = vunpack.c.l.b16 %v245
      %v415 = vunpack.c.l.b16 %v246
      %v416 = vunpack.c.l.b16 %v247
      %v417 = vunpack.c.l.b16 %v248
      %v418 = vunpack.c.l.b16 %v249
      %v419 = vunpack.c.l.b16 %v250
      %v420 = vunpack.c.l.b16 %v251
      %v421 = vunpack.c.l.b16 %v252
      %v422 = vunpack.c.l.b16 %v253
      %v423 = vunpack.c.l.b16 %v254
      %v424 = vunpack.c.l.b16 %v255
      %v425 = vunpack.c.l.b16 %v256
      %v426 = vunpack.c.l.b16 %v257
      %v427 = vunpack.c.l.b16 %v258
      %v428 = vunpack.c.l.b16 %v259
      %v429 = vunpack.c.l.b16 %v260
      %v430 = vunpack.c.l.b16 %v261
      %v431 = vunpack.c.l.b16 %v262
      %v432 = vunpack.c.l.b16 %v263
      %v433 = vunpack.c.l.b16 %v264
      %v434 = vunpack.c.l.b16 %v265
      %v435 = vunpack.c.l.b16 %v266
      %v436 = vunpack.c.l.b16 %v267
      %v437 = vunpack.c.l.b16 %v268
      %v438 = vunpack.c.l.b16 %v269
      %v439 = vunpack.c.l.b16 %v270
      %v440 = vunpack.c.l.b16 %v271
      %v441 = vunpack.c.l.b16 %v272
      %v442 = vunpack.c.l.b16 %v273
      %v443 = vunpack.c.l.b16 %v274
      %v444 = vunpack.c.l.b16 %v275
      %v445 = vunpack.c.l.b16 %v276
      %v446 = vunpack.c.l.b16 %v277
      %v447 = vunpack.c.l.b16 %v278
      %v448 = vunpack.c.l.b16 %v279
      %v449 = vunpack.c.l.b16 %v280
      %v450 = vunpack.c.l.b16 %v281
      %v451 = vunpack.c.l.b16 %v282
      %v452 = vunpack.c.l.b16 %v283
      %v453 = vunpack.c.l.b16 %v284
      %v454 = vunpack.c.l.b16 %v285
      %v455 = vunpack.c.l.b16 %v286
      %v456 = vunpack.c.l.b16 %v287
      %v457 = vunpack.c.l.b16 %v288
      %v458 = vunpack.c.l.b16 %v289
      %v459 = vunpack.c.l.b16 %v290
      %v460 = vunpack.c.l.b16 %v291
      %v461 = vunpack.c.l.b16 %v292
      %v462 = vunpack.c.l.b16 %v293
      %v463 = vunpack.c.l.b16 %v294
      %v464 = vunpack.c.l.b16 %v295
      %v465 = vunpack.c.l.b16 %v296
      %v466 = vunpack.c.l.b16 %v297
      %v467 = vunpack.c.l.b16 %v298
      %v468 = vunpack.c.l.b16 %v299
      %v469 = vunpack.c.l.b16 %v300
      %v470 = vunpack.c.l.b16 %v301
      %v471 = vunpack.c.l.b16 %v302
      %v472 = vunpack.c.l.b16 %v303
      %v473 = vunpack.c.l.b16 %v304
      %v474 = vpack.c.b16 %v403, %v402
      %v475 = vpack.c.b16 %v405, %v404
      %v476 = vpack.c.b16 %v407, %v406
      %v477 = vpack.c.b16 %v409, %v408
      %v478 = vpack.c.b16 %v411, %v410
      %v479 = vpack.c.b16 %v413, %v412
      %v480 = vpack.c.b16 %v415, %v414
      %v481 = vpack.c.b16 %v417, %v416
      %v482 = vpack.c.b16 %v419, %v418
      %v483 = vpack.c.b16 %v421, %v420
      %v484 = vpack.c.b16 %v423, %v422
      %v485 = vpack.c.b16 %v425, %v424
      %v486 = vpack.c.b16 %v427, %v426
      %v487 = vpack.c.b16 %v429, %v428
      %v488 = vpack.c.b16 %v431, %v430
      %v489 = vpack.c.b16 %v433, %v432
      %v490 = vpack.c.b16 %v435, %v434
      %v491 = vpack.c.b16 %v437, %v436
      %v492 = vpack.c.b16 %v439, %v438
      %v493 = vpack.c.b16 %v441, %v440
      %v494 = vpack.c.b16 %v443, %v442
      %v495 = vpack.c.b16 %v445, %v444
      %v496 = vpack.c.b16 %v447, %v446
      %v497 = vpack.c.b16 %v449, %v448
      %v498 = vpack.c.b16 %v451, %v450
      %v499 = vpack.c.b16 %v453, %v452
      %v500 = vpack.c.b16 %v455, %v454
      %v501 = vpack.c.b16 %v457, %v456
      %v502 = vpack.c.b16 %v459, %v458
      %v503 = vpack.c.b16 %v461, %v460
      %v504 = vpack.c.b16 %v463, %v462
      %v505 = vpack.c.b16 %v465, %v464
      %v506 = vpack.c.b16 %v467, %v466
      %v507 = vpack.c.b16 %v469, %v468
      %v508 = vpack.c.b16 %v471, %v470
      %v509 = vpack.c.b16 %v473, %v472
      %vm546 = vcmask 523264
      %v548 = vsel %vm546, %v325, 0
      %550 = vmatpush.bf16.msra.mxu0 %v481
      %551 = vmatpush.bf16.msra.mxu0 %v480
      %552 = vmatpush.bf16.msra.mxu0 %v479
      %553 = vmatpush.bf16.msra.mxu0 %v478
      %554 = vmatpush.bf16.msra.mxu0 %v477
      %555 = vmatpush.bf16.msra.mxu0 %v476
      %556 = vmatpush.bf16.msra.mxu0 %v475
      %557 = vmatpush.bf16.msra.mxu0 %v474
      %558 = vmatmul.bf16.gmra.mxu0 %v321
      %v559 = vpop.f32.mrf.mxu0
      %v560 = vadd.f32 0.0, %v559
      %v561 = vpop.f32.mrf.mxu0
      %v562 = vadd.f32 0.0, %v561
      %563 = vdwg.mxu0
      %564 = vmatpush.bf16.msra.mxu0 %v489
      %565 = vmatpush.bf16.msra.mxu0 %v488
      %566 = vmatpush.bf16.msra.mxu0 %v487
      %567 = vmatpush.bf16.msra.mxu0 %v486
      %568 = vmatpush.bf16.msra.mxu0 %v485
      %569 = vmatpush.bf16.msra.mxu0 %v484
      %570 = vmatpush.bf16.msra.mxu0 %v483
      %571 = vmatpush.bf16.msra.mxu0 %v482
      %572 = vmatmul.bf16.gmra.mxu0 %v322
      %v573 = vpop.f32.mrf.mxu0
      %v574 = vadd.f32 %v560, %v573
      %v575 = vpop.f32.mrf.mxu0
      %v576 = vadd.f32 %v562, %v575
      %577 = vdwg.mxu0
      %578 = vmatpush.bf16.msra.mxu0 %v497
      %579 = vmatpush.bf16.msra.mxu0 %v496
      %580 = vmatpush.bf16.msra.mxu0 %v495
      %581 = vmatpush.bf16.msra.mxu0 %v494
      %582 = vmatpush.bf16.msra.mxu0 %v493
      %583 = vmatpush.bf16.msra.mxu0 %v492
      %584 = vmatpush.bf16.msra.mxu0 %v491
      %585 = vmatpush.bf16.msra.mxu0 %v490
      %586 = vmatmul.bf16.gmra.mxu0 %v323
      %v587 = vpop.f32.mrf.mxu0
      %v588 = vadd.f32 %v574, %v587
      %v589 = vpop.f32.mrf.mxu0
      %v590 = vadd.f32 %v576, %v589
      %591 = vdwg.mxu0
      %592 = vmatpush.bf16.msra.mxu0 %v505
      %593 = vmatpush.bf16.msra.mxu0 %v504
      %594 = vmatpush.bf16.msra.mxu0 %v503
      %595 = vmatpush.bf16.msra.mxu0 %v502
      %596 = vmatpush.bf16.msra.mxu0 %v501
      %597 = vmatpush.bf16.msra.mxu0 %v500
      %598 = vmatpush.bf16.msra.mxu0 %v499
      %599 = vmatpush.bf16.msra.mxu0 %v498
      %600 = vmatmul.bf16.gmra.mxu0 %v324
      %v601 = vpop.f32.mrf.mxu0
      %v602 = vadd.f32 %v588, %v601
      %v603 = vpop.f32.mrf.mxu0
      %v604 = vadd.f32 %v590, %v603
      %605 = vdwg.mxu0
      %606 = vmatpush.bf16.msra.mxu0 0
      %607 = vmatpush.bf16.msra.mxu0 0
      %608 = vmatpush.bf16.msra.mxu0 0
      %609 = vmatpush.bf16.msra.mxu0 0
      %610 = vmatpush.bf16.msra.mxu0 %v509
      %611 = vmatpush.bf16.msra.mxu0 %v508
      %612 = vmatpush.bf16.msra.mxu0 %v507
      %613 = vmatpush.bf16.msra.mxu0 %v506
      %614 = vmatmul.bf16.gmra.mxu0 %v548
      %v615 = vpop.f32.mrf.mxu0
      %v616 = vadd.f32 %v602, %v615
      %v617 = vpop.f32.mrf.mxu0
      %v618 = vadd.f32 %v604, %v617
      %619 = vdwg.mxu0
      %v620 = vld [vmem:[%s2] sm:$0x1]
      %v621 = vperm.slane %v620, 0
      %v622 = vmul.f32 %v616, %v621
      %v623 = vmul.f32 %v618, %v621
      %v624 = vld [vmem:[%s2 + $0x1] sm:$0x1]
      %v625 = vperm.slane %v624, 0
      %v626 = vadd.f32 %v622, %v625
      %v627 = vadd.f32 %v623, %v625
      %v628 = vld [vmem:[%s218] sm:$0xf]
      %v629 = vld [vmem:[%s218 + $0x4] sm:$0xf]
      %v630 = vunpack.c.l.bf16 %v628
      %v631 = vunpack.c.l.bf16 %v629
      %v632 = vadd.f32 %v626, %v630
      %v633 = vadd.f32 %v627, %v631
      %v634 = vmax.f32 %v632, 0.0
      %v635 = vmax.f32 %v633, 0.0
      %v636 = vpack.c.bf16 %v634, %v634
      %v637 = vpack.c.bf16 %v635, %v635
      %638 = vst [vmem:[%s224] sm:$0xf] %v636
      %639 = vst [vmem:[%s224 + $0x4] sm:$0xf] %v637
      %s640 = smul.u32 2, %s15
      %p641 = scmp.lt.s32.totalorder %s640, 3
      %s642 = scalar_select %p641, %s640, 3
      %s643 = smul.addr %s642, 4
      %s644 = scalar_lea.vmem %s4, %s643
      // Predicated region
      $region37: #{restnet18_forward.27} parent=35 // pred_check
        %p645 = pneg %p127
      $region38: #{restnet18_forward.27} parent=35 // pred_check_branch
        %647 = sbr.rel (%p645) target = $region40
      $region39: #{restnet18_forward.27} parent=35 // pred_region
        %s648 = smul.u32 2, %s15
      $region40: #{restnet18_forward.27} parent=35 // pred_fallthru
        _
    $region36: #{restnet18_forward.27} parent=5 // pred_fallthru
      _
    %p649 = scmp.le.s32.totalorder 2, %s10
    // Predicated region
    $region41: #{restnet18_forward.27} parent=5 // pred_check
      %p650 = pneg %p649
    $region42: #{restnet18_forward.27} parent=5 // pred_check_branch
      %652 = sbr.rel (%p650) target = $region44
    $region43: #{restnet18_forward.27} parent=5 // pred_region
      %s653 = ssub.s32 %s10, 2
      // Predicated region
      $region45: #{restnet18_forward.27} parent=43 // pred_check
        %p654 = pneg %p133
      $region46: #{restnet18_forward.27} parent=43 // pred_check_branch
        %656 = sbr.rel (%p654) target = $region48
      $region47: #{restnet18_forward.27} parent=43 // pred_region
        %s657 = smul.u32 2, %s16
        %p658 = scmp.lt.s32.totalorder %s657, 3
        %s659 = scalar_select %p658, %s657, 3
        %s660 = smul.addr %s659, 4
        %s661 = scalar_lea.vmem %s4, %s660
      $region48: #{restnet18_forward.27} parent=43 // pred_fallthru
        _
    $region44: #{restnet18_forward.27} parent=5 // pred_fallthru
      _
  $region6: #{restnet18_forward.27} parent=0 // loop_footer
    %s14 = sadd.s32 1, %s10
  $region7: #{restnet18_forward.27} parent=0 // loop_footer_branch
    %9 = sbr.rel target = $region3
  $region8: #{restnet18_forward.27} parent=0 // loop_exit
    _

// kernel: restnet18_forward.26
$region0: #{restnet18_forward.26}
  #allocation0 [shape = 'u32[]', space=smem, size = 0x4, offset = 0x4, fixed_abs, tag = 'smem constant byte address 0x4 - core index']
  #allocation1 [shape = 'u32[72,128]{1,0:T(1,128)}', space=vmem, size = 0x9000, scoped, tag = 'internal scratch']
  %s0 = inlined_call_operand.vmem [shape: bf16[32,288], index: 0, kind: input, shape index: {}]
  %s1 = inlined_call_operand.vmem [shape: bf16[288,768], index: 1, kind: input, shape index: {}]
  %s2 = inlined_call_operand.vmem [shape: f32[2,768], index: 2, kind: input, shape index: {}]
  %s3 = inlined_call_operand.vmem [shape: bf16[32,128], index: 3, kind: output, shape index: {0}]
  %s4 = inlined_call_operand.vmem [shape: bf16[32,128], index: 4, kind: output, shape index: {1}]
  %s5 = inlined_call_operand.vmem [shape: bf16[32,128], index: 5, kind: output, shape index: {2}]
  %s6 = inlined_call_operand.vmem [shape: bf16[32,128], index: 6, kind: output, shape index: {3}]
  %s7 = inlined_call_operand.vmem [shape: bf16[32,128], index: 7, kind: output, shape index: {4}]
  %s8 = inlined_call_operand.vmem [shape: bf16[32,128], index: 8, kind: output, shape index: {5}]
  %9 = xla_tuple %s3, %s4, %s5, %s6, %s7, %s8
  %s10 = sld [smem:[#allocation0]]
  $region85: #{restnet18_forward.26} parent=0
    _
  %s12 = ssub.s32 1, %s10
  %s13 = scalar_select 0, %s12, %s10
  loop: start=0, step=1, limit=4
  $region2: #{restnet18_forward.26} parent=0 // loop_pre_header
    _
  $region3: #{restnet18_forward.26} parent=0 // loop_header
    %s15 = sphi 0, %s19
    %p16 = scmp.ge.s32.totalorder %s15, 4
    %s25 = sphi 0, %s27
    %s28 = sphi 0, %s25
    %s29 = sphi 0, %s28
    %s45 = sphi 0, %s29
    %s49 = sphi 0, %s49
    %s51 = sphi 0, %s49
    %s52 = sphi 0, %s51
    %s66 = sphi 0, %s52
    %s70 = sphi 0, %s70
    %s72 = sphi 0, %s70
    %s73 = sphi 0, %s72
    %s87 = sphi 0, %s73
    %s93 = sphi 0, %s95
    %s96 = sphi 0, %s93
    %s97 = sphi 0, %s96
    %s113 = sphi 0, %s97
    %s119 = sphi 0, %s121
    %s122 = sphi 0, %s119
    %s123 = sphi 0, %s122
    %s139 = sphi 0, %s123
    %s145 = sphi 0, %s147
    %s148 = sphi 0, %s145
    %s149 = sphi 0, %s148
    %s165 = sphi 0, %s149
    %s171 = sphi 0, %s173
    %s174 = sphi 0, %s171
    %s175 = sphi 0, %s174
    %s191 = sphi 0, %s175
    %s197 = sphi 0, %s199
    %s200 = sphi 0, %s197
    %s201 = sphi 0, %s200
    %s217 = sphi 0, %s201
    %s223 = sphi 0, %s225
    %s226 = sphi 0, %s223
    %s227 = sphi 0, %s226
    %s243 = sphi 0, %s227
  $region4: #{restnet18_forward.26} parent=0 // loop_header_branch
    %18 = sbr.rel (%p16) target = $region8
  $region5: #{restnet18_forward.26} parent=0 // loop_body
    %s20 = ssub.s32 %s15, 1
    %s21 = ssub.s32 %s15, 2
    %s22 = sadd.s32 %s15, 1
    %s23 = ssub.s32 %s15, %s22
    %p24 = scmp.eq.s32.totalorder %s23, 0
    %s26 = sadd.s32 %s25, 1
    %s27 = scalar_select %p24, %s25, %s26
    %p30 = pneg %p24
    %p31 = scmp.eq.s32.totalorder %s15, 1
    %p32 = por %p30, %p31
    %p33 = scmp.ne.s32.totalorder %s25, %s28
    %p34 = scmp.eq.s32.totalorder %s15, 0
    %p35 = por %p33, %p34
    %p36 = scmp.ne.s32.totalorder %s25, %s28
    %p37 = scmp.eq.s32.totalorder %s20, 1
    %p38 = por %p36, %p37
    %p39 = scmp.ne.s32.totalorder %s28, %s29
    %p40 = scmp.eq.s32.totalorder %s20, 0
    %p41 = por %p39, %p40
    %p42 = scmp.ne.s32.totalorder %s28, %s29
    %p43 = scmp.eq.s32.totalorder %s21, 1
    %p44 = por %p42, %p43
    %p46 = scmp.ne.s32.totalorder %s29, %s45
    %p47 = scmp.eq.s32.totalorder %s21, 0
    %p48 = por %p46, %p47
    %s50 = sadd.s32 %s49, 1
    %p53 = scmp.eq.s32.totalorder %s15, 1
    %p54 = scmp.ne.s32.totalorder %s49, %s51
    %p55 = scmp.eq.s32.totalorder %s15, 0
    %p56 = por %p54, %p55
    %p57 = scmp.ne.s32.totalorder %s49, %s51
    %p58 = scmp.eq.s32.totalorder %s20, 1
    %p59 = por %p57, %p58
    %p60 = scmp.ne.s32.totalorder %s51, %s52
    %p61 = scmp.eq.s32.totalorder %s20, 0
    %p62 = por %p60, %p61
    %p63 = scmp.ne.s32.totalorder %s51, %s52
    %p64 = scmp.eq.s32.totalorder %s21, 1
    %p65 = por %p63, %p64
    %p67 = scmp.ne.s32.totalorder %s52, %s66
    %p68 = scmp.eq.s32.totalorder %s21, 0
    %p69 = por %p67, %p68
    %s71 = sadd.s32 %s70, 1
    %p74 = scmp.eq.s32.totalorder %s15, 1
    %p75 = scmp.ne.s32.totalorder %s70, %s72
    %p76 = scmp.eq.s32.totalorder %s15, 0
    %p77 = por %p75, %p76
    %p78 = scmp.ne.s32.totalorder %s70, %s72
    %p79 = scmp.eq.s32.totalorder %s20, 1
    %p80 = por %p78, %p79
    %p81 = scmp.ne.s32.totalorder %s72, %s73
    %p82 = scmp.eq.s32.totalorder %s20, 0
    %p83 = por %p81, %p82
    %p84 = scmp.ne.s32.totalorder %s72, %s73
    %p85 = scmp.eq.s32.totalorder %s21, 1
    %p86 = por %p84, %p85
    %p88 = scmp.ne.s32.totalorder %s73, %s87
    %p89 = scmp.eq.s32.totalorder %s21, 0
    %p90 = por %p88, %p89
    %s91 = ssub.s32 %s15, %s22
    %p92 = scmp.eq.s32.totalorder %s91, 0
    %s94 = sadd.s32 %s93, 1
    %s95 = scalar_select %p92, %s93, %s94
    %p98 = pneg %p92
    %p99 = scmp.eq.s32.totalorder %s15, 1
    %p100 = por %p98, %p99
    %p101 = scmp.ne.s32.totalorder %s93, %s96
    %p102 = scmp.eq.s32.totalorder %s15, 0
    %p103 = por %p101, %p102
    %p104 = scmp.ne.s32.totalorder %s93, %s96
    %p105 = scmp.eq.s32.totalorder %s20, 1
    %p106 = por %p104, %p105
    %p107 = scmp.ne.s32.totalorder %s96, %s97
    %p108 = scmp.eq.s32.totalorder %s20, 0
    %p109 = por %p107, %p108
    %p110 = scmp.ne.s32.totalorder %s96, %s97
    %p111 = scmp.eq.s32.totalorder %s21, 1
    %p112 = por %p110, %p111
    %p114 = scmp.ne.s32.totalorder %s97, %s113
    %p115 = scmp.eq.s32.totalorder %s21, 0
    %p116 = por %p114, %p115
    %s117 = ssub.s32 %s15, %s22
    %p118 = scmp.eq.s32.totalorder %s117, 0
    %s120 = sadd.s32 %s119, 1
    %s121 = scalar_select %p118, %s119, %s120
    %p124 = pneg %p118
    %p125 = scmp.eq.s32.totalorder %s15, 1
    %p126 = por %p124, %p125
    %p127 = scmp.ne.s32.totalorder %s119, %s122
    %p128 = scmp.eq.s32.totalorder %s15, 0
    %p129 = por %p127, %p128
    %p130 = scmp.ne.s32.totalorder %s119, %s122
    %p131 = scmp.eq.s32.totalorder %s20, 1
    %p132 = por %p130, %p131
    %p133 = scmp.ne.s32.totalorder %s122, %s123
    %p134 = scmp.eq.s32.totalorder %s20, 0
    %p135 = por %p133, %p134
    %p136 = scmp.ne.s32.totalorder %s122, %s123
    %p137 = scmp.eq.s32.totalorder %s21, 1
    %p138 = por %p136, %p137
    %p140 = scmp.ne.s32.totalorder %s123, %s139
    %p141 = scmp.eq.s32.totalorder %s21, 0
    %p142 = por %p140, %p141
    %s143 = ssub.s32 %s15, %s22
    %p144 = scmp.eq.s32.totalorder %s143, 0
    %s146 = sadd.s32 %s145, 1
    %s147 = scalar_select %p144, %s145, %s146
    %p150 = pneg %p144
    %p151 = scmp.eq.s32.totalorder %s15, 1
    %p152 = por %p150, %p151
    %p153 = scmp.ne.s32.totalorder %s145, %s148
    %p154 = scmp.eq.s32.totalorder %s15, 0
    %p155 = por %p153, %p154
    %p156 = scmp.ne.s32.totalorder %s145, %s148
    %p157 = scmp.eq.s32.totalorder %s20, 1
    %p158 = por %p156, %p157
    %p159 = scmp.ne.s32.totalorder %s148, %s149
    %p160 = scmp.eq.s32.totalorder %s20, 0
    %p161 = por %p159, %p160
    %p162 = scmp.ne.s32.totalorder %s148, %s149
    %p163 = scmp.eq.s32.totalorder %s21, 1
    %p164 = por %p162, %p163
    %p166 = scmp.ne.s32.totalorder %s149, %s165
    %p167 = scmp.eq.s32.totalorder %s21, 0
    %p168 = por %p166, %p167
    %s169 = ssub.s32 %s15, %s22
    %p170 = scmp.eq.s32.totalorder %s169, 0
    %s172 = sadd.s32 %s171, 1
    %s173 = scalar_select %p170, %s171, %s172
    %p176 = pneg %p170
    %p177 = scmp.eq.s32.totalorder %s15, 1
    %p178 = por %p176, %p177
    %p179 = scmp.ne.s32.totalorder %s171, %s174
    %p180 = scmp.eq.s32.totalorder %s15, 0
    %p181 = por %p179, %p180
    %p182 = scmp.ne.s32.totalorder %s171, %s174
    %p183 = scmp.eq.s32.totalorder %s20, 1
    %p184 = por %p182, %p183
    %p185 = scmp.ne.s32.totalorder %s174, %s175
    %p186 = scmp.eq.s32.totalorder %s20, 0
    %p187 = por %p185, %p186
    %p188 = scmp.ne.s32.totalorder %s174, %s175
    %p189 = scmp.eq.s32.totalorder %s21, 1
    %p190 = por %p188, %p189
    %p192 = scmp.ne.s32.totalorder %s175, %s191
    %p193 = scmp.eq.s32.totalorder %s21, 0
    %p194 = por %p192, %p193
    %s195 = ssub.s32 %s15, %s22
    %p196 = scmp.eq.s32.totalorder %s195, 0
    %s198 = sadd.s32 %s197, 1
    %s199 = scalar_select %p196, %s197, %s198
    %p202 = pneg %p196
    %p203 = scmp.eq.s32.totalorder %s15, 1
    %p204 = por %p202, %p203
    %p205 = scmp.ne.s32.totalorder %s197, %s200
    %p206 = scmp.eq.s32.totalorder %s15, 0
    %p207 = por %p205, %p206
    %p208 = scmp.ne.s32.totalorder %s197, %s200
    %p209 = scmp.eq.s32.totalorder %s20, 1
    %p210 = por %p208, %p209
    %p211 = scmp.ne.s32.totalorder %s200, %s201
    %p212 = scmp.eq.s32.totalorder %s20, 0
    %p213 = por %p211, %p212
    %p214 = scmp.ne.s32.totalorder %s200, %s201
    %p215 = scmp.eq.s32.totalorder %s21, 1
    %p216 = por %p214, %p215
    %p218 = scmp.ne.s32.totalorder %s201, %s217
    %p219 = scmp.eq.s32.totalorder %s21, 0
    %p220 = por %p218, %p219
    %s221 = ssub.s32 %s15, %s22
    %p222 = scmp.eq.s32.totalorder %s221, 0
    %s224 = sadd.s32 %s223, 1
    %s225 = scalar_select %p222, %s223, %s224
    %p228 = pneg %p222
    %p229 = scmp.eq.s32.totalorder %s15, 1
    %p230 = por %p228, %p229
    %p231 = scmp.ne.s32.totalorder %s223, %s226
    %p232 = scmp.eq.s32.totalorder %s15, 0
    %p233 = por %p231, %p232
    %p234 = scmp.ne.s32.totalorder %s223, %s226
    %p235 = scmp.eq.s32.totalorder %s20, 1
    %p236 = por %p234, %p235
    %p237 = scmp.ne.s32.totalorder %s226, %s227
    %p238 = scmp.eq.s32.totalorder %s20, 0
    %p239 = por %p237, %p238
    %p240 = scmp.ne.s32.totalorder %s226, %s227
    %p241 = scmp.eq.s32.totalorder %s21, 1
    %p242 = por %p240, %p241
    %p244 = scmp.ne.s32.totalorder %s227, %s243
    %p245 = scmp.eq.s32.totalorder %s21, 0
    %p246 = por %p244, %p245
    %p247 = scmp.le.s32.totalorder 1, %s15
    %p248 = scmp.lt.s32.totalorder %s15, 3
    %p249 = pnand %p247, %p248
    %p250 = pneg %p249
    // Predicated region
    $region9: #{restnet18_forward.26} parent=5 // pred_check
      _
    $region10: #{restnet18_forward.26} parent=5 // pred_check_branch
      %252 = sbr.rel (%p249) target = $region12
    $region11: #{restnet18_forward.26} parent=5 // pred_region
      %s253 = ssub.s32 %s15, 1
      // Predicated region
      $region13: #{restnet18_forward.26} parent=11 // pred_check
        %p254 = pneg %p62
      $region14: #{restnet18_forward.26} parent=11 // pred_check_branch
        %256 = sbr.rel (%p254) target = $region16
      $region15: #{restnet18_forward.26} parent=11 // pred_region
        _
      $region16: #{restnet18_forward.26} parent=11 // pred_fallthru
        _
      // Predicated region
      $region17: #{restnet18_forward.26} parent=11 // pred_check
        %p257 = pneg %p83
      $region18: #{restnet18_forward.26} parent=11 // pred_check_branch
        %259 = sbr.rel (%p257) target = $region20
      $region19: #{restnet18_forward.26} parent=11 // pred_region
        _
      $region20: #{restnet18_forward.26} parent=11 // pred_fallthru
        _
    $region12: #{restnet18_forward.26} parent=5 // pred_fallthru
      _
    %p260 = scmp.lt.s32.totalorder %s15, 2
    // Predicated region
    $region21: #{restnet18_forward.26} parent=5 // pred_check
      %p261 = pneg %p260
    $region22: #{restnet18_forward.26} parent=5 // pred_check_branch
      %263 = sbr.rel (%p261) target = $region24
    $region23: #{restnet18_forward.26} parent=5 // pred_region
      // Predicated region
      $region25: #{restnet18_forward.26} parent=23 // pred_check
        %p264 = pneg %p35
      $region26: #{restnet18_forward.26} parent=23 // pred_check_branch
        %266 = sbr.rel (%p264) target = $region28
      $region27: #{restnet18_forward.26} parent=23 // pred_region
        %s267 = smul.u32 2, %s15
        %p268 = scmp.lt.s32.totalorder %s267, 3
        %s269 = scalar_select %p268, %s267, 3
        %s270 = smul.addr %s269, 3
        %s271 = smul.addr %s270, 4
        %s272 = scalar_lea.vmem %s0, %s271
        %s273 = smul.u32 2, %s15
      $region28: #{restnet18_forward.26} parent=23 // pred_fallthru
        _
    $region24: #{restnet18_forward.26} parent=5 // pred_fallthru
      _
    %p274 = scmp.le.s32.totalorder 1, %s15
    %p275 = scmp.lt.s32.totalorder %s15, 3
    %p276 = pnand %p274, %p275
    %p277 = pneg %p276
    // Predicated region
    $region29: #{restnet18_forward.26} parent=5 // pred_check
      _
    $region30: #{restnet18_forward.26} parent=5 // pred_check_branch
      %279 = sbr.rel (%p276) target = $region32
    $region31: #{restnet18_forward.26} parent=5 // pred_region
      %s280 = ssub.s32 %s15, 1
      %s281 = smul.u32 2, %s20
      %p282 = scmp.lt.s32.totalorder %s281, 3
      %s283 = scalar_select %p282, %s281, 3
      %s284 = smul.addr %s283, 3
      %s285 = smul.addr %s284, 4
      %s286 = scalar_lea.vmem %s0, %s285
      %p287 = pneg %p41
      %p288 = pneg %p38
      %p289 = pneg %p62
      %p290 = pneg %p59
      %p291 = pneg %p83
      %p292 = pneg %p80
      %p293 = pneg %p109
      %p294 = pneg %p106
      %s295 = smul.u32 2, %s20
      %p296 = scmp.lt.s32.totalorder %s295, 3
      %s297 = scalar_select %p296, %s295, 3
      %s298 = smul.addr %s297, 4
      %s299 = scalar_lea.vmem %s3, %s298
      %p300 = pneg %p135
      %p301 = pneg %p132
      %s302 = smul.u32 2, %s20
      %p303 = scmp.lt.s32.totalorder %s302, 3
      %s304 = scalar_select %p303, %s302, 3
      %s305 = smul.addr %s304, 4
      %s306 = scalar_lea.vmem %s4, %s305
      %p307 = pneg %p161
      %p308 = pneg %p158
      %s309 = smul.u32 2, %s20
      %p310 = scmp.lt.s32.totalorder %s309, 3
      %s311 = scalar_select %p310, %s309, 3
      %s312 = smul.addr %s311, 4
      %s313 = scalar_lea.vmem %s5, %s312
      %p314 = pneg %p187
      %p315 = pneg %p184
      %s316 = smul.u32 2, %s20
      %p317 = scmp.lt.s32.totalorder %s316, 3
      %s318 = scalar_select %p317, %s316, 3
      %s319 = smul.addr %s318, 4
      %s320 = scalar_lea.vmem %s6, %s319
      %p321 = pneg %p213
      %p322 = pneg %p210
      %s323 = smul.u32 2, %s20
      %p324 = scmp.lt.s32.totalorder %s323, 3
      %s325 = scalar_select %p324, %s323, 3
      %s326 = smul.addr %s325, 4
      %s327 = scalar_lea.vmem %s7, %s326
      %p328 = pneg %p239
      %p329 = pneg %p236
      %s330 = smul.u32 2, %s20
      %p331 = scmp.lt.s32.totalorder %s330, 3
      %s332 = scalar_select %p331, %s330, 3
      %s333 = smul.addr %s332, 4
      %s334 = scalar_lea.vmem %s8, %s333
      %s335 = smul.u32 2, %s20
      %p336 = scmp.lt.s32.totalorder %s335, 3
      %s337 = scalar_select %p336, %s335, 3
      %s338 = smul.addr %s337, 3
      %s339 = smul.addr %s338, 4
      %s340 = scalar_lea.vmem %s0, %s339
      %s341 = smul.u32 2, %s20
      %s342 = smul.u32 2, %s20
      %p343 = scmp.lt.s32.totalorder %s342, 3
      %s344 = scalar_select %p343, %s342, 3
      %s345 = smul.addr %s344, 4
      %s346 = scalar_lea.vmem %s3, %s345
      %s347 = smul.u32 2, %s20
      %s348 = smul.u32 2, %s20
      %p349 = scmp.lt.s32.totalorder %s348, 3
      %s350 = scalar_select %p349, %s348, 3
      %s351 = smul.addr %s350, 4
      %s352 = scalar_lea.vmem %s4, %s351
      %s353 = smul.u32 2, %s20
      %s354 = smul.u32 2, %s20
      %p355 = scmp.lt.s32.totalorder %s354, 3
      %s356 = scalar_select %p355, %s354, 3
      %s357 = smul.addr %s356, 4
      %s358 = scalar_lea.vmem %s5, %s357
      %s359 = smul.u32 2, %s20
      %s360 = smul.u32 2, %s20
      %p361 = scmp.lt.s32.totalorder %s360, 3
      %s362 = scalar_select %p361, %s360, 3
      %s363 = smul.addr %s362, 4
      %s364 = scalar_lea.vmem %s6, %s363
      %s365 = smul.u32 2, %s20
      %s366 = smul.u32 2, %s20
      %p367 = scmp.lt.s32.totalorder %s366, 3
      %s368 = scalar_select %p367, %s366, 3
      %s369 = smul.addr %s368, 4
      %s370 = scalar_lea.vmem %s7, %s369
      %s371 = smul.u32 2, %s20
      %s372 = smul.u32 2, %s20
      %p373 = scmp.lt.s32.totalorder %s372, 3
      %s374 = scalar_select %p373, %s372, 3
      %s375 = smul.addr %s374, 4
      %s376 = scalar_lea.vmem %s8, %s375
      %s377 = smul.u32 2, %s20
      %v379 = vld [vmem:[%s340] sm:$0xff]
      %v380 = vld [vmem:[%s340 + $0x8] sm:$0xf]
      %v381 = vld [vmem:[%s340 + $0xc] sm:$0xff]
      %v382 = vld [vmem:[%s340 + $0x14] sm:$0xf]
      %v383 = vld [vmem:[%s1] sm:$0xff]
      %v384 = vld [vmem:[%s1 + $0x8] sm:$0xff]
      %v385 = vld [vmem:[%s1 + $0x10] sm:$0xff]
      %v386 = vld [vmem:[%s1 + $0x18] sm:$0xff]
      %v387 = vld [vmem:[%s1 + $0x20] sm:$0xff]
      %v388 = vld [vmem:[%s1 + $0x28] sm:$0xff]
      %v389 = vld [vmem:[%s1 + $0x30] sm:$0xff]
      %v390 = vld [vmem:[%s1 + $0x38] sm:$0xff]
      %v391 = vld [vmem:[%s1 + $0x40] sm:$0xff]
      %v392 = vld [vmem:[%s1 + $0x48] sm:$0xff]
      %v393 = vld [vmem:[%s1 + $0x50] sm:$0xff]
      %v394 = vld [vmem:[%s1 + $0x58] sm:$0xff]
      %v395 = vld [vmem:[%s1 + $0x60] sm:$0xff]
      %v396 = vld [vmem:[%s1 + $0x68] sm:$0xff]
      %v397 = vld [vmem:[%s1 + $0x70] sm:$0xff]
      %v398 = vld [vmem:[%s1 + $0x78] sm:$0xff]
      %v399 = vld [vmem:[%s1 + $0x80] sm:$0xff]
      %v400 = vld [vmem:[%s1 + $0x88] sm:$0xff]
      %v401 = vld [vmem:[%s1 + $0x90] sm:$0xff]
      %v402 = vld [vmem:[%s1 + $0x98] sm:$0xff]
      %v403 = vld [vmem:[%s1 + $0xa0] sm:$0xff]
      %v404 = vld [vmem:[%s1 + $0xa8] sm:$0xff]
      %v405 = vld [vmem:[%s1 + $0xb0] sm:$0xff]
      %v406 = vld [vmem:[%s1 + $0xb8] sm:$0xff]
      %v407 = vld [vmem:[%s1 + $0xc0] sm:$0xff]
      %v408 = vld [vmem:[%s1 + $0xc8] sm:$0xff]
      %v409 = vld [vmem:[%s1 + $0xd0] sm:$0xff]
      %v410 = vld [vmem:[%s1 + $0xd8] sm:$0xff]
      %v411 = vld [vmem:[%s1 + $0xe0] sm:$0xff]
      %v412 = vld [vmem:[%s1 + $0xe8] sm:$0xff]
      %v413 = vld [vmem:[%s1 + $0xf0] sm:$0xff]
      %v414 = vld [vmem:[%s1 + $0xf8] sm:$0xff]
      %v415 = vld [vmem:[%s1 + $0x100] sm:$0xff]
      %v416 = vld [vmem:[%s1 + $0x108] sm:$0xff]
      %v417 = vld [vmem:[%s1 + $0x110] sm:$0xff]
      %v418 = vld [vmem:[%s1 + $0x118] sm:$0xff]
      %v419 = vld [vmem:[%s1 + $0x120] sm:$0xff]
      %v420 = vld [vmem:[%s1 + $0x128] sm:$0xff]
      %v421 = vld [vmem:[%s1 + $0x130] sm:$0xff]
      %v422 = vld [vmem:[%s1 + $0x138] sm:$0xff]
      %v423 = vld [vmem:[%s1 + $0x140] sm:$0xff]
      %v424 = vld [vmem:[%s1 + $0x148] sm:$0xff]
      %v425 = vld [vmem:[%s1 + $0x150] sm:$0xff]
      %v426 = vld [vmem:[%s1 + $0x158] sm:$0xff]
      %v427 = vld [vmem:[%s1 + $0x160] sm:$0xff]
      %v428 = vld [vmem:[%s1 + $0x168] sm:$0xff]
      %v429 = vld [vmem:[%s1 + $0x170] sm:$0xff]
      %v430 = vld [vmem:[%s1 + $0x178] sm:$0xff]
      %v431 = vld [vmem:[%s1 + $0x180] sm:$0xff]
      %v432 = vld [vmem:[%s1 + $0x188] sm:$0xff]
      %v433 = vld [vmem:[%s1 + $0x190] sm:$0xff]
      %v434 = vld [vmem:[%s1 + $0x198] sm:$0xff]
      %v435 = vld [vmem:[%s1 + $0x1a0] sm:$0xff]
      %v436 = vld [vmem:[%s1 + $0x1a8] sm:$0xff]
      %v437 = vld [vmem:[%s1 + $0x1b0] sm:$0xff]
      %v438 = vld [vmem:[%s1 + $0x1b8] sm:$0xff]
      %v439 = vld [vmem:[%s1 + $0x1c0] sm:$0xff]
      %v440 = vld [vmem:[%s1 + $0x1c8] sm:$0xff]
      %v441 = vld [vmem:[%s1 + $0x1d0] sm:$0xff]
      %v442 = vld [vmem:[%s1 + $0x1d8] sm:$0xff]
      %v443 = vld [vmem:[%s1 + $0x1e0] sm:$0xff]
      %v444 = vld [vmem:[%s1 + $0x1e8] sm:$0xff]
      %v445 = vld [vmem:[%s1 + $0x1f0] sm:$0xff]
      %v446 = vld [vmem:[%s1 + $0x1f8] sm:$0xff]
      %v447 = vld [vmem:[%s1 + $0x200] sm:$0xff]
      %v448 = vld [vmem:[%s1 + $0x208] sm:$0xff]
      %v449 = vld [vmem:[%s1 + $0x210] sm:$0xff]
      %v450 = vld [vmem:[%s1 + $0x218] sm:$0xff]
      %v451 = vld [vmem:[%s1 + $0x220] sm:$0xff]
      %v452 = vld [vmem:[%s1 + $0x228] sm:$0xff]
      %v453 = vld [vmem:[%s1 + $0x230] sm:$0xff]
      %v454 = vld [vmem:[%s1 + $0x238] sm:$0xff]
      %v455 = vld [vmem:[%s1 + $0x240] sm:$0xff]
      %v456 = vld [vmem:[%s1 + $0x248] sm:$0xff]
      %v457 = vld [vmem:[%s1 + $0x250] sm:$0xff]
      %v458 = vld [vmem:[%s1 + $0x258] sm:$0xff]
      %v459 = vld [vmem:[%s1 + $0x260] sm:$0xff]
      %v460 = vld [vmem:[%s1 + $0x268] sm:$0xff]
      %v461 = vld [vmem:[%s1 + $0x270] sm:$0xff]
      %v462 = vld [vmem:[%s1 + $0x278] sm:$0xff]
      %v463 = vld [vmem:[%s1 + $0x280] sm:$0xff]
      %v464 = vld [vmem:[%s1 + $0x288] sm:$0xff]
      %v465 = vld [vmem:[%s1 + $0x290] sm:$0xff]
      %v466 = vld [vmem:[%s1 + $0x298] sm:$0xff]
      %v467 = vld [vmem:[%s1 + $0x2a0] sm:$0xff]
      %v468 = vld [vmem:[%s1 + $0x2a8] sm:$0xff]
      %v469 = vld [vmem:[%s1 + $0x2b0] sm:$0xff]
      %v470 = vld [vmem:[%s1 + $0x2b8] sm:$0xff]
      %v471 = vld [vmem:[%s1 + $0x2c0] sm:$0xff]
      %v472 = vld [vmem:[%s1 + $0x2c8] sm:$0xff]
      %v473 = vld [vmem:[%s1 + $0x2d0] sm:$0xff]
      %v474 = vld [vmem:[%s1 + $0x2d8] sm:$0xff]
      %v475 = vld [vmem:[%s1 + $0x2e0] sm:$0xff]
      %v476 = vld [vmem:[%s1 + $0x2e8] sm:$0xff]
      %v477 = vld [vmem:[%s1 + $0x2f0] sm:$0xff]
      %v478 = vld [vmem:[%s1 + $0x2f8] sm:$0xff]
      %v479 = vld [vmem:[%s1 + $0x300] sm:$0xff]
      %v480 = vld [vmem:[%s1 + $0x308] sm:$0xff]
      %v481 = vld [vmem:[%s1 + $0x310] sm:$0xff]
      %v482 = vld [vmem:[%s1 + $0x318] sm:$0xff]
      %v483 = vld [vmem:[%s1 + $0x320] sm:$0xff]
      %v484 = vld [vmem:[%s1 + $0x328] sm:$0xff]
      %v485 = vld [vmem:[%s1 + $0x330] sm:$0xff]
      %v486 = vld [vmem:[%s1 + $0x338] sm:$0xff]
      %v487 = vld [vmem:[%s1 + $0x340] sm:$0xff]
      %v488 = vld [vmem:[%s1 + $0x348] sm:$0xff]
      %v489 = vld [vmem:[%s1 + $0x350] sm:$0xff]
      %v490 = vld [vmem:[%s1 + $0x358] sm:$0xff]
      %v495 = vunpack.c.l.b16 %v379
      %v496 = vunpack.c.h.b16 %v379
      %v497 = vunpack.c.l.b16 %v380
      %v498 = vunpack.c.l.b16 %v381
      %v499 = vunpack.c.h.b16 %v381
      %v500 = vunpack.c.l.b16 %v382
      %v501 = vpack.c.b16 %v498, %v495
      %v502 = vpack.c.b16 %v499, %v496
      %v503 = vpack.c.b16 %v500, %v497
      %v614 = vunpack.c.l.b16 %v383
      %v615 = vunpack.c.h.b16 %v383
      %v616 = vunpack.c.l.b16 %v384
      %v617 = vunpack.c.h.b16 %v384
      %v618 = vunpack.c.l.b16 %v385
      %v619 = vunpack.c.h.b16 %v385
      %v620 = vunpack.c.l.b16 %v386
      %v621 = vunpack.c.h.b16 %v386
      %v622 = vunpack.c.l.b16 %v387
      %v623 = vunpack.c.h.b16 %v387
      %v624 = vunpack.c.l.b16 %v388
      %v625 = vunpack.c.h.b16 %v388
      %v626 = vunpack.c.l.b16 %v389
      %v627 = vunpack.c.h.b16 %v389
      %v628 = vunpack.c.l.b16 %v390
      %v629 = vunpack.c.h.b16 %v390
      %v630 = vunpack.c.l.b16 %v391
      %v631 = vunpack.c.h.b16 %v391
      %v632 = vunpack.c.l.b16 %v392
      %v633 = vunpack.c.h.b16 %v392
      %v634 = vunpack.c.l.b16 %v393
      %v635 = vunpack.c.h.b16 %v393
      %v636 = vunpack.c.l.b16 %v394
      %v637 = vunpack.c.h.b16 %v394
      %v638 = vunpack.c.l.b16 %v395
      %v639 = vunpack.c.h.b16 %v395
      %v640 = vunpack.c.l.b16 %v396
      %v641 = vunpack.c.h.b16 %v396
      %v642 = vunpack.c.l.b16 %v397
      %v643 = vunpack.c.h.b16 %v397
      %v644 = vunpack.c.l.b16 %v398
      %v645 = vunpack.c.h.b16 %v398
      %v646 = vunpack.c.l.b16 %v399
      %v647 = vunpack.c.h.b16 %v399
      %v648 = vunpack.c.l.b16 %v400
      %v649 = vunpack.c.h.b16 %v400
      %v650 = vunpack.c.l.b16 %v401
      %v651 = vunpack.c.h.b16 %v401
      %v652 = vunpack.c.l.b16 %v402
      %v653 = vunpack.c.h.b16 %v402
      %v654 = vunpack.c.l.b16 %v403
      %v655 = vunpack.c.h.b16 %v403
      %v656 = vunpack.c.l.b16 %v404
      %v657 = vunpack.c.h.b16 %v404
      %v658 = vunpack.c.l.b16 %v405
      %v659 = vunpack.c.h.b16 %v405
      %v660 = vunpack.c.l.b16 %v406
      %v661 = vunpack.c.h.b16 %v406
      %v662 = vunpack.c.l.b16 %v407
      %v663 = vunpack.c.h.b16 %v407
      %v664 = vunpack.c.l.b16 %v408
      %v665 = vunpack.c.h.b16 %v408
      %v666 = vunpack.c.l.b16 %v409
      %v667 = vunpack.c.h.b16 %v409
      %v668 = vunpack.c.l.b16 %v410
      %v669 = vunpack.c.h.b16 %v410
      %v670 = vunpack.c.l.b16 %v411
      %v671 = vunpack.c.h.b16 %v411
      %v672 = vunpack.c.l.b16 %v412
      %v673 = vunpack.c.h.b16 %v412
      %v674 = vunpack.c.l.b16 %v413
      %v675 = vunpack.c.h.b16 %v413
      %v676 = vunpack.c.l.b16 %v414
      %v677 = vunpack.c.h.b16 %v414
      %v678 = vunpack.c.l.b16 %v415
      %v679 = vunpack.c.h.b16 %v415
      %v680 = vunpack.c.l.b16 %v416
      %v681 = vunpack.c.h.b16 %v416
      %v682 = vunpack.c.l.b16 %v417
      %v683 = vunpack.c.h.b16 %v417
      %v684 = vunpack.c.l.b16 %v418
      %v685 = vunpack.c.h.b16 %v418
      %v686 = vunpack.c.l.b16 %v419
      %v687 = vunpack.c.h.b16 %v419
      %v688 = vunpack.c.l.b16 %v420
      %v689 = vunpack.c.h.b16 %v420
      %v690 = vunpack.c.l.b16 %v421
      %v691 = vunpack.c.h.b16 %v421
      %v692 = vunpack.c.l.b16 %v422
      %v693 = vunpack.c.h.b16 %v422
      %v694 = vunpack.c.l.b16 %v423
      %v695 = vunpack.c.h.b16 %v423
      %v696 = vunpack.c.l.b16 %v424
      %v697 = vunpack.c.h.b16 %v424
      %v698 = vunpack.c.l.b16 %v425
      %v699 = vunpack.c.h.b16 %v425
      %v700 = vunpack.c.l.b16 %v426
      %v701 = vunpack.c.h.b16 %v426
      %v702 = vunpack.c.l.b16 %v427
      %v703 = vunpack.c.h.b16 %v427
      %v704 = vunpack.c.l.b16 %v428
      %v705 = vunpack.c.h.b16 %v428
      %v706 = vunpack.c.l.b16 %v429
      %v707 = vunpack.c.h.b16 %v429
      %v708 = vunpack.c.l.b16 %v430
      %v709 = vunpack.c.h.b16 %v430
      %v710 = vunpack.c.l.b16 %v431
      %v711 = vunpack.c.h.b16 %v431
      %v712 = vunpack.c.l.b16 %v432
      %v713 = vunpack.c.h.b16 %v432
      %v714 = vunpack.c.l.b16 %v433
      %v715 = vunpack.c.h.b16 %v433
      %v716 = vunpack.c.l.b16 %v434
      %v717 = vunpack.c.h.b16 %v434
      %v718 = vunpack.c.l.b16 %v435
      %v719 = vunpack.c.h.b16 %v435
      %v720 = vunpack.c.l.b16 %v436
      %v721 = vunpack.c.h.b16 %v436
      %v722 = vunpack.c.l.b16 %v437
      %v723 = vunpack.c.h.b16 %v437
      %v724 = vunpack.c.l.b16 %v438
      %v725 = vunpack.c.h.b16 %v438
      %v726 = vunpack.c.l.b16 %v439
      %v727 = vunpack.c.h.b16 %v439
      %v728 = vunpack.c.l.b16 %v440
      %v729 = vunpack.c.h.b16 %v440
      %v730 = vunpack.c.l.b16 %v441
      %v731 = vunpack.c.h.b16 %v441
      %v732 = vunpack.c.l.b16 %v442
      %v733 = vunpack.c.h.b16 %v442
      %v734 = vunpack.c.l.b16 %v443
      %v735 = vunpack.c.h.b16 %v443
      %v736 = vunpack.c.l.b16 %v444
      %v737 = vunpack.c.h.b16 %v444
      %v738 = vunpack.c.l.b16 %v445
      %v739 = vunpack.c.h.b16 %v445
      %v740 = vunpack.c.l.b16 %v446
      %v741 = vunpack.c.h.b16 %v446
      %v742 = vunpack.c.l.b16 %v447
      %v743 = vunpack.c.h.b16 %v447
      %v744 = vunpack.c.l.b16 %v448
      %v745 = vunpack.c.h.b16 %v448
      %v746 = vunpack.c.l.b16 %v449
      %v747 = vunpack.c.h.b16 %v449
      %v748 = vunpack.c.l.b16 %v450
      %v749 = vunpack.c.h.b16 %v450
      %v750 = vunpack.c.l.b16 %v451
      %v751 = vunpack.c.h.b16 %v451
      %v752 = vunpack.c.l.b16 %v452
      %v753 = vunpack.c.h.b16 %v452
      %v754 = vunpack.c.l.b16 %v453
      %v755 = vunpack.c.h.b16 %v453
      %v756 = vunpack.c.l.b16 %v454
      %v757 = vunpack.c.h.b16 %v454
      %v758 = vunpack.c.l.b16 %v455
      %v759 = vunpack.c.h.b16 %v455
      %v760 = vunpack.c.l.b16 %v456
      %v761 = vunpack.c.h.b16 %v456
      %v762 = vunpack.c.l.b16 %v457
      %v763 = vunpack.c.h.b16 %v457
      %v764 = vunpack.c.l.b16 %v458
      %v765 = vunpack.c.h.b16 %v458
      %v766 = vunpack.c.l.b16 %v459
      %v767 = vunpack.c.h.b16 %v459
      %v768 = vunpack.c.l.b16 %v460
      %v769 = vunpack.c.h.b16 %v460
      %v770 = vunpack.c.l.b16 %v461
      %v771 = vunpack.c.h.b16 %v461
      %v772 = vunpack.c.l.b16 %v462
      %v773 = vunpack.c.h.b16 %v462
      %v774 = vunpack.c.l.b16 %v463
      %v775 = vunpack.c.h.b16 %v463
      %v776 = vunpack.c.l.b16 %v464
      %v777 = vunpack.c.h.b16 %v464
      %v778 = vunpack.c.l.b16 %v465
      %v779 = vunpack.c.h.b16 %v465
      %v780 = vunpack.c.l.b16 %v466
      %v781 = vunpack.c.h.b16 %v466
      %v782 = vunpack.c.l.b16 %v467
      %v783 = vunpack.c.h.b16 %v467
      %v784 = vunpack.c.l.b16 %v468
      %v785 = vunpack.c.h.b16 %v468
      %v786 = vunpack.c.l.b16 %v469
      %v787 = vunpack.c.h.b16 %v469
      %v788 = vunpack.c.l.b16 %v470
      %v789 = vunpack.c.h.b16 %v470
      %v790 = vunpack.c.l.b16 %v471
      %v791 = vunpack.c.h.b16 %v471
      %v792 = vunpack.c.l.b16 %v472
      %v793 = vunpack.c.h.b16 %v472
      %v794 = vunpack.c.l.b16 %v473
      %v795 = vunpack.c.h.b16 %v473
      %v796 = vunpack.c.l.b16 %v474
      %v797 = vunpack.c.h.b16 %v474
      %v798 = vunpack.c.l.b16 %v475
      %v799 = vunpack.c.h.b16 %v475
      %v800 = vunpack.c.l.b16 %v476
      %v801 = vunpack.c.h.b16 %v476
      %v802 = vunpack.c.l.b16 %v477
      %v803 = vunpack.c.h.b16 %v477
      %v804 = vunpack.c.l.b16 %v478
      %v805 = vunpack.c.h.b16 %v478
      %v806 = vunpack.c.l.b16 %v479
      %v807 = vunpack.c.h.b16 %v479
      %v808 = vunpack.c.l.b16 %v480
      %v809 = vunpack.c.h.b16 %v480
      %v810 = vunpack.c.l.b16 %v481
      %v811 = vunpack.c.h.b16 %v481
      %v812 = vunpack.c.l.b16 %v482
      %v813 = vunpack.c.h.b16 %v482
      %v814 = vunpack.c.l.b16 %v483
      %v815 = vunpack.c.h.b16 %v483
      %v816 = vunpack.c.l.b16 %v484
      %v817 = vunpack.c.h.b16 %v484
      %v818 = vunpack.c.l.b16 %v485
      %v819 = vunpack.c.h.b16 %v485
      %v820 = vunpack.c.l.b16 %v486
      %v821 = vunpack.c.h.b16 %v486
      %v822 = vunpack.c.l.b16 %v487
      %v823 = vunpack.c.h.b16 %v487
      %v824 = vunpack.c.l.b16 %v488
      %v825 = vunpack.c.h.b16 %v488
      %v826 = vunpack.c.l.b16 %v489
      %v827 = vunpack.c.h.b16 %v489
      %v828 = vunpack.c.l.b16 %v490
      %v829 = vunpack.c.h.b16 %v490
      %v830 = vpack.c.b16 %v620, %v614
      %v831 = vpack.c.b16 %v621, %v615
      %v832 = vpack.c.b16 %v622, %v616
      %v833 = vpack.c.b16 %v623, %v617
      %v834 = vpack.c.b16 %v624, %v618
      %v835 = vpack.c.b16 %v625, %v619
      %v836 = vpack.c.b16 %v632, %v626
      %v837 = vpack.c.b16 %v633, %v627
      %v838 = vpack.c.b16 %v634, %v628
      %v839 = vpack.c.b16 %v635, %v629
      %v840 = vpack.c.b16 %v636, %v630
      %v841 = vpack.c.b16 %v637, %v631
      %v842 = vpack.c.b16 %v644, %v638
      %v843 = vpack.c.b16 %v645, %v639
      %v844 = vpack.c.b16 %v646, %v640
      %v845 = vpack.c.b16 %v647, %v641
      %v846 = vpack.c.b16 %v648, %v642
      %v847 = vpack.c.b16 %v649, %v643
      %v848 = vpack.c.b16 %v656, %v650
      %v849 = vpack.c.b16 %v657, %v651
      %v850 = vpack.c.b16 %v658, %v652
      %v851 = vpack.c.b16 %v659, %v653
      %v852 = vpack.c.b16 %v660, %v654
      %v853 = vpack.c.b16 %v661, %v655
      %v854 = vpack.c.b16 %v668, %v662
      %v855 = vpack.c.b16 %v669, %v663
      %v856 = vpack.c.b16 %v670, %v664
      %v857 = vpack.c.b16 %v671, %v665
      %v858 = vpack.c.b16 %v672, %v666
      %v859 = vpack.c.b16 %v673, %v667
      %v860 = vpack.c.b16 %v680, %v674
      %v861 = vpack.c.b16 %v681, %v675
      %v862 = vpack.c.b16 %v682, %v676
      %v863 = vpack.c.b16 %v683, %v677
      %v864 = vpack.c.b16 %v684, %v678
      %v865 = vpack.c.b16 %v685, %v679
      %v866 = vpack.c.b16 %v692, %v686
      %v867 = vpack.c.b16 %v693, %v687
      %v868 = vpack.c.b16 %v694, %v688
      %v869 = vpack.c.b16 %v695, %v689
      %v870 = vpack.c.b16 %v696, %v690
      %v871 = vpack.c.b16 %v697, %v691
      %v872 = vpack.c.b16 %v704, %v698
      %v873 = vpack.c.b16 %v705, %v699
      %v874 = vpack.c.b16 %v706, %v700
      %v875 = vpack.c.b16 %v707, %v701
      %v876 = vpack.c.b16 %v708, %v702
      %v877 = vpack.c.b16 %v709, %v703
      %v878 = vpack.c.b16 %v716, %v710
      %v879 = vpack.c.b16 %v717, %v711
      %v880 = vpack.c.b16 %v718, %v712
      %v881 = vpack.c.b16 %v719, %v713
      %v882 = vpack.c.b16 %v720, %v714
      %v883 = vpack.c.b16 %v721, %v715
      %v884 = vpack.c.b16 %v728, %v722
      %v885 = vpack.c.b16 %v729, %v723
      %v886 = vpack.c.b16 %v730, %v724
      %v887 = vpack.c.b16 %v731, %v725
      %v888 = vpack.c.b16 %v732, %v726
      %v889 = vpack.c.b16 %v733, %v727
      %v890 = vpack.c.b16 %v740, %v734
      %v891 = vpack.c.b16 %v741, %v735
      %v892 = vpack.c.b16 %v742, %v736
      %v893 = vpack.c.b16 %v743, %v737
      %v894 = vpack.c.b16 %v744, %v738
      %v895 = vpack.c.b16 %v745, %v739
      %v896 = vpack.c.b16 %v752, %v746
      %v897 = vpack.c.b16 %v753, %v747
      %v898 = vpack.c.b16 %v754, %v748
      %v899 = vpack.c.b16 %v755, %v749
      %v900 = vpack.c.b16 %v756, %v750
      %v901 = vpack.c.b16 %v757, %v751
      %v902 = vpack.c.b16 %v764, %v758
      %v903 = vpack.c.b16 %v765, %v759
      %v904 = vpack.c.b16 %v766, %v760
      %v905 = vpack.c.b16 %v767, %v761
      %v906 = vpack.c.b16 %v768, %v762
      %v907 = vpack.c.b16 %v769, %v763
      %v908 = vpack.c.b16 %v776, %v770
      %v909 = vpack.c.b16 %v777, %v771
      %v910 = vpack.c.b16 %v778, %v772
      %v911 = vpack.c.b16 %v779, %v773
      %v912 = vpack.c.b16 %v780, %v774
      %v913 = vpack.c.b16 %v781, %v775
      %v914 = vpack.c.b16 %v788, %v782
      %v915 = vpack.c.b16 %v789, %v783
      %v916 = vpack.c.b16 %v790, %v784
      %v917 = vpack.c.b16 %v791, %v785
      %v918 = vpack.c.b16 %v792, %v786
      %v919 = vpack.c.b16 %v793, %v787
      %v920 = vpack.c.b16 %v800, %v794
      %v921 = vpack.c.b16 %v801, %v795
      %v922 = vpack.c.b16 %v802, %v796
      %v923 = vpack.c.b16 %v803, %v797
      %v924 = vpack.c.b16 %v804, %v798
      %v925 = vpack.c.b16 %v805, %v799
      %v926 = vpack.c.b16 %v812, %v806
      %v927 = vpack.c.b16 %v813, %v807
      %v928 = vpack.c.b16 %v814, %v808
      %v929 = vpack.c.b16 %v815, %v809
      %v930 = vpack.c.b16 %v816, %v810
      %v931 = vpack.c.b16 %v817, %v811
      %v932 = vpack.c.b16 %v824, %v818
      %v933 = vpack.c.b16 %v825, %v819
      %v934 = vpack.c.b16 %v826, %v820
      %v935 = vpack.c.b16 %v827, %v821
      %v936 = vpack.c.b16 %v828, %v822
      %v937 = vpack.c.b16 %v829, %v823
      %vm1046 = vcmask 261120
      %v1048 = vsel %vm1046, %v503, 0
      %1050 = vmatpush.bf16.msra.mxu0 %v872
      %1051 = vmatpush.bf16.msra.mxu0 %v866
      %1052 = vmatpush.bf16.msra.mxu0 %v860
      %1053 = vmatpush.bf16.msra.mxu0 %v854
      %1054 = vmatpush.bf16.msra.mxu0 %v848
      %1055 = vmatpush.bf16.msra.mxu0 %v842
      %1056 = vmatpush.bf16.msra.mxu0 %v836
      %1057 = vmatpush.bf16.msra.mxu0 %v830
      %1058 = vmatmul.bf16.gmra.mxu0 %v501
      %v1059 = vpop.f32.mrf.mxu0
      %v1060 = vadd.f32 0.0, %v1059
      %v1061 = vpop.f32.mrf.mxu0
      %v1062 = vadd.f32 0.0, %v1061
      %1063 = vdwg.mxu0
      %1064 = vmatpush.bf16.msra.mxu0 %v920
      %1065 = vmatpush.bf16.msra.mxu0 %v914
      %1066 = vmatpush.bf16.msra.mxu0 %v908
      %1067 = vmatpush.bf16.msra.mxu0 %v902
      %1068 = vmatpush.bf16.msra.mxu0 %v896
      %1069 = vmatpush.bf16.msra.mxu0 %v890
      %1070 = vmatpush.bf16.msra.mxu0 %v884
      %1071 = vmatpush.bf16.msra.mxu0 %v878
      %1072 = vmatmul.bf16.gmra.mxu0 %v502
      %v1073 = vpop.f32.mrf.mxu0
      %v1074 = vadd.f32 %v1060, %v1073
      %v1075 = vpop.f32.mrf.mxu0
      %v1076 = vadd.f32 %v1062, %v1075
      %1077 = vdwg.mxu0
      %1078 = vmatpush.bf16.msra.mxu0 0
      %1079 = vmatpush.bf16.msra.mxu0 0
      %1080 = vmatpush.bf16.msra.mxu0 0
      %1081 = vmatpush.bf16.msra.mxu0 0
      %1082 = vmatpush.bf16.msra.mxu0 0
      %1083 = vmatpush.bf16.msra.mxu0 0
      %1084 = vmatpush.bf16.msra.mxu0 %v932
      %1085 = vmatpush.bf16.msra.mxu0 %v926
      %1086 = vmatmul.bf16.gmra.mxu0 %v1048
      %v1087 = vpop.f32.mrf.mxu0
      %v1088 = vadd.f32 %v1074, %v1087
      %v1089 = vpop.f32.mrf.mxu0
      %v1090 = vadd.f32 %v1076, %v1089
      %1091 = vdwg.mxu0
      %1092 = vmatpush.bf16.msra.mxu0 %v873
      %1093 = vmatpush.bf16.msra.mxu0 %v867
      %1094 = vmatpush.bf16.msra.mxu0 %v861
      %1095 = vmatpush.bf16.msra.mxu0 %v855
      %1096 = vmatpush.bf16.msra.mxu0 %v849
      %1097 = vmatpush.bf16.msra.mxu0 %v843
      %1098 = vmatpush.bf16.msra.mxu0 %v837
      %1099 = vmatpush.bf16.msra.mxu0 %v831
      %1100 = vmatmul.bf16.gmra.mxu0 %v501
      %v1101 = vpop.f32.mrf.mxu0
      %v1102 = vadd.f32 0.0, %v1101
      %v1103 = vpop.f32.mrf.mxu0
      %v1104 = vadd.f32 0.0, %v1103
      %1105 = vdwg.mxu0
      %1106 = vmatpush.bf16.msra.mxu0 %v921
      %1107 = vmatpush.bf16.msra.mxu0 %v915
      %1108 = vmatpush.bf16.msra.mxu0 %v909
      %1109 = vmatpush.bf16.msra.mxu0 %v903
      %1110 = vmatpush.bf16.msra.mxu0 %v897
      %1111 = vmatpush.bf16.msra.mxu0 %v891
      %1112 = vmatpush.bf16.msra.mxu0 %v885
      %1113 = vmatpush.bf16.msra.mxu0 %v879
      %1114 = vmatmul.bf16.gmra.mxu0 %v502
      %v1115 = vpop.f32.mrf.mxu0
      %v1116 = vadd.f32 %v1102, %v1115
      %v1117 = vpop.f32.mrf.mxu0
      %v1118 = vadd.f32 %v1104, %v1117
      %1119 = vdwg.mxu0
      %1120 = vmatpush.bf16.msra.mxu0 0
      %1121 = vmatpush.bf16.msra.mxu0 0
      %1122 = vmatpush.bf16.msra.mxu0 0
      %1123 = vmatpush.bf16.msra.mxu0 0
      %1124 = vmatpush.bf16.msra.mxu0 0
      %1125 = vmatpush.bf16.msra.mxu0 0
      %1126 = vmatpush.bf16.msra.mxu0 %v933
      %1127 = vmatpush.bf16.msra.mxu0 %v927
      %1128 = vmatmul.bf16.gmra.mxu0 %v1048
      %v1129 = vpop.f32.mrf.mxu0
      %v1130 = vadd.f32 %v1116, %v1129
      %v1131 = vpop.f32.mrf.mxu0
      %v1132 = vadd.f32 %v1118, %v1131
      %1133 = vdwg.mxu0
      %1134 = vmatpush.bf16.msra.mxu0 %v874
      %1135 = vmatpush.bf16.msra.mxu0 %v868
      %1136 = vmatpush.bf16.msra.mxu0 %v862
      %1137 = vmatpush.bf16.msra.mxu0 %v856
      %1138 = vmatpush.bf16.msra.mxu0 %v850
      %1139 = vmatpush.bf16.msra.mxu0 %v844
      %1140 = vmatpush.bf16.msra.mxu0 %v838
      %1141 = vmatpush.bf16.msra.mxu0 %v832
      %1142 = vmatmul.bf16.gmra.mxu0 %v501
      %v1143 = vpop.f32.mrf.mxu0
      %v1144 = vadd.f32 0.0, %v1143
      %v1145 = vpop.f32.mrf.mxu0
      %v1146 = vadd.f32 0.0, %v1145
      %1147 = vdwg.mxu0
      %1148 = vmatpush.bf16.msra.mxu0 %v922
      %1149 = vmatpush.bf16.msra.mxu0 %v916
      %1150 = vmatpush.bf16.msra.mxu0 %v910
      %1151 = vmatpush.bf16.msra.mxu0 %v904
      %1152 = vmatpush.bf16.msra.mxu0 %v898
      %1153 = vmatpush.bf16.msra.mxu0 %v892
      %1154 = vmatpush.bf16.msra.mxu0 %v886
      %1155 = vmatpush.bf16.msra.mxu0 %v880
      %1156 = vmatmul.bf16.gmra.mxu0 %v502
      %v1157 = vpop.f32.mrf.mxu0
      %v1158 = vadd.f32 %v1144, %v1157
      %v1159 = vpop.f32.mrf.mxu0
      %v1160 = vadd.f32 %v1146, %v1159
      %1161 = vdwg.mxu0
      %1162 = vmatpush.bf16.msra.mxu0 0
      %1163 = vmatpush.bf16.msra.mxu0 0
      %1164 = vmatpush.bf16.msra.mxu0 0
      %1165 = vmatpush.bf16.msra.mxu0 0
      %1166 = vmatpush.bf16.msra.mxu0 0
      %1167 = vmatpush.bf16.msra.mxu0 0
      %1168 = vmatpush.bf16.msra.mxu0 %v934
      %1169 = vmatpush.bf16.msra.mxu0 %v928
      %1170 = vmatmul.bf16.gmra.mxu0 %v1048
      %v1171 = vpop.f32.mrf.mxu0
      %v1172 = vadd.f32 %v1158, %v1171
      %v1173 = vpop.f32.mrf.mxu0
      %v1174 = vadd.f32 %v1160, %v1173
      %1175 = vdwg.mxu0
      %1176 = vmatpush.bf16.msra.mxu0 %v875
      %1177 = vmatpush.bf16.msra.mxu0 %v869
      %1178 = vmatpush.bf16.msra.mxu0 %v863
      %1179 = vmatpush.bf16.msra.mxu0 %v857
      %1180 = vmatpush.bf16.msra.mxu0 %v851
      %1181 = vmatpush.bf16.msra.mxu0 %v845
      %1182 = vmatpush.bf16.msra.mxu0 %v839
      %1183 = vmatpush.bf16.msra.mxu0 %v833
      %1184 = vmatmul.bf16.gmra.mxu0 %v501
      %v1185 = vpop.f32.mrf.mxu0
      %v1186 = vadd.f32 0.0, %v1185
      %v1187 = vpop.f32.mrf.mxu0
      %v1188 = vadd.f32 0.0, %v1187
      %1189 = vdwg.mxu0
      %1190 = vmatpush.bf16.msra.mxu0 %v923
      %1191 = vmatpush.bf16.msra.mxu0 %v917
      %1192 = vmatpush.bf16.msra.mxu0 %v911
      %1193 = vmatpush.bf16.msra.mxu0 %v905
      %1194 = vmatpush.bf16.msra.mxu0 %v899
      %1195 = vmatpush.bf16.msra.mxu0 %v893
      %1196 = vmatpush.bf16.msra.mxu0 %v887
      %1197 = vmatpush.bf16.msra.mxu0 %v881
      %1198 = vmatmul.bf16.gmra.mxu0 %v502
      %v1199 = vpop.f32.mrf.mxu0
      %v1200 = vadd.f32 %v1186, %v1199
      %v1201 = vpop.f32.mrf.mxu0
      %v1202 = vadd.f32 %v1188, %v1201
      %1203 = vdwg.mxu0
      %1204 = vmatpush.bf16.msra.mxu0 0
      %1205 = vmatpush.bf16.msra.mxu0 0
      %1206 = vmatpush.bf16.msra.mxu0 0
      %1207 = vmatpush.bf16.msra.mxu0 0
      %1208 = vmatpush.bf16.msra.mxu0 0
      %1209 = vmatpush.bf16.msra.mxu0 0
      %1210 = vmatpush.bf16.msra.mxu0 %v935
      %1211 = vmatpush.bf16.msra.mxu0 %v929
      %1212 = vmatmul.bf16.gmra.mxu0 %v1048
      %v1213 = vpop.f32.mrf.mxu0
      %v1214 = vadd.f32 %v1200, %v1213
      %v1215 = vpop.f32.mrf.mxu0
      %v1216 = vadd.f32 %v1202, %v1215
      %1217 = vdwg.mxu0
      %1218 = vmatpush.bf16.msra.mxu0 %v876
      %1219 = vmatpush.bf16.msra.mxu0 %v870
      %1220 = vmatpush.bf16.msra.mxu0 %v864
      %1221 = vmatpush.bf16.msra.mxu0 %v858
      %1222 = vmatpush.bf16.msra.mxu0 %v852
      %1223 = vmatpush.bf16.msra.mxu0 %v846
      %1224 = vmatpush.bf16.msra.mxu0 %v840
      %1225 = vmatpush.bf16.msra.mxu0 %v834
      %1226 = vmatmul.bf16.gmra.mxu0 %v501
      %v1227 = vpop.f32.mrf.mxu0
      %v1228 = vadd.f32 0.0, %v1227
      %v1229 = vpop.f32.mrf.mxu0
      %v1230 = vadd.f32 0.0, %v1229
      %1231 = vdwg.mxu0
      %1232 = vmatpush.bf16.msra.mxu0 %v924
      %1233 = vmatpush.bf16.msra.mxu0 %v918
      %1234 = vmatpush.bf16.msra.mxu0 %v912
      %1235 = vmatpush.bf16.msra.mxu0 %v906
      %1236 = vmatpush.bf16.msra.mxu0 %v900
      %1237 = vmatpush.bf16.msra.mxu0 %v894
      %1238 = vmatpush.bf16.msra.mxu0 %v888
      %1239 = vmatpush.bf16.msra.mxu0 %v882
      %1240 = vmatmul.bf16.gmra.mxu0 %v502
      %v1241 = vpop.f32.mrf.mxu0
      %v1242 = vadd.f32 %v1228, %v1241
      %v1243 = vpop.f32.mrf.mxu0
      %v1244 = vadd.f32 %v1230, %v1243
      %1245 = vdwg.mxu0
      %1246 = vmatpush.bf16.msra.mxu0 0
      %1247 = vmatpush.bf16.msra.mxu0 0
      %1248 = vmatpush.bf16.msra.mxu0 0
      %1249 = vmatpush.bf16.msra.mxu0 0
      %1250 = vmatpush.bf16.msra.mxu0 0
      %1251 = vmatpush.bf16.msra.mxu0 0
      %1252 = vmatpush.bf16.msra.mxu0 %v936
      %1253 = vmatpush.bf16.msra.mxu0 %v930
      %1254 = vmatmul.bf16.gmra.mxu0 %v1048
      %v1255 = vpop.f32.mrf.mxu0
      %v1256 = vadd.f32 %v1242, %v1255
      %v1257 = vpop.f32.mrf.mxu0
      %v1258 = vadd.f32 %v1244, %v1257
      %1259 = vdwg.mxu0
      %1260 = vmatpush.bf16.msra.mxu0 %v877
      %1261 = vmatpush.bf16.msra.mxu0 %v871
      %1262 = vmatpush.bf16.msra.mxu0 %v865
      %1263 = vmatpush.bf16.msra.mxu0 %v859
      %1264 = vmatpush.bf16.msra.mxu0 %v853
      %1265 = vmatpush.bf16.msra.mxu0 %v847
      %1266 = vmatpush.bf16.msra.mxu0 %v841
      %1267 = vmatpush.bf16.msra.mxu0 %v835
      %1268 = vmatmul.bf16.gmra.mxu0 %v501
      %v1269 = vpop.f32.mrf.mxu0
      %v1270 = vadd.f32 0.0, %v1269
      %v1271 = vpop.f32.mrf.mxu0
      %v1272 = vadd.f32 0.0, %v1271
      %1273 = vdwg.mxu0
      %1274 = vmatpush.bf16.msra.mxu0 %v925
      %1275 = vmatpush.bf16.msra.mxu0 %v919
      %1276 = vmatpush.bf16.msra.mxu0 %v913
      %1277 = vmatpush.bf16.msra.mxu0 %v907
      %1278 = vmatpush.bf16.msra.mxu0 %v901
      %1279 = vmatpush.bf16.msra.mxu0 %v895
      %1280 = vmatpush.bf16.msra.mxu0 %v889
      %1281 = vmatpush.bf16.msra.mxu0 %v883
      %1282 = vmatmul.bf16.gmra.mxu0 %v502
      %v1283 = vpop.f32.mrf.mxu0
      %v1284 = vadd.f32 %v1270, %v1283
      %v1285 = vpop.f32.mrf.mxu0
      %v1286 = vadd.f32 %v1272, %v1285
      %1287 = vdwg.mxu0
      %1288 = vmatpush.bf16.msra.mxu0 0
      %1289 = vmatpush.bf16.msra.mxu0 0
      %1290 = vmatpush.bf16.msra.mxu0 0
      %1291 = vmatpush.bf16.msra.mxu0 0
      %1292 = vmatpush.bf16.msra.mxu0 0
      %1293 = vmatpush.bf16.msra.mxu0 0
      %1294 = vmatpush.bf16.msra.mxu0 %v937
      %1295 = vmatpush.bf16.msra.mxu0 %v931
      %1296 = vmatmul.bf16.gmra.mxu0 %v1048
      %v1297 = vpop.f32.mrf.mxu0
      %v1298 = vadd.f32 %v1284, %v1297
      %v1299 = vpop.f32.mrf.mxu0
      %v1300 = vadd.f32 %v1286, %v1299
      %1301 = vdwg.mxu0
      %v1302 = vld [vmem:[%s2] ss:$2 sm:$0x3f]
      %v1304 = vperm.slane %v1302, 0
      %v1305 = vperm.slane %v1302, 1
      %v1306 = vperm.slane %v1302, 2
      %v1307 = vperm.slane %v1302, 3
      %v1308 = vperm.slane %v1302, 4
      %v1309 = vperm.slane %v1302, 5
      %v1316 = vmul.f32 %v1088, %v1304
      %v1317 = vmul.f32 %v1130, %v1305
      %v1318 = vmul.f32 %v1172, %v1306
      %v1319 = vmul.f32 %v1214, %v1307
      %v1320 = vmul.f32 %v1256, %v1308
      %v1321 = vmul.f32 %v1298, %v1309
      %v1322 = vmul.f32 %v1090, %v1304
      %v1323 = vmul.f32 %v1132, %v1305
      %v1324 = vmul.f32 %v1174, %v1306
      %v1325 = vmul.f32 %v1216, %v1307
      %v1326 = vmul.f32 %v1258, %v1308
      %v1327 = vmul.f32 %v1300, %v1309
      %s1328 = scalar_lea.vmem %s2, 1
      %v1329 = vld [vmem:[%s1328] ss:$2 sm:$0x3f]
      %v1331 = vperm.slane %v1329, 0
      %v1332 = vperm.slane %v1329, 1
      %v1333 = vperm.slane %v1329, 2
      %v1334 = vperm.slane %v1329, 3
      %v1335 = vperm.slane %v1329, 4
      %v1336 = vperm.slane %v1329, 5
      %v1343 = vadd.f32 %v1316, %v1331
      %v1344 = vadd.f32 %v1317, %v1332
      %v1345 = vadd.f32 %v1318, %v1333
      %v1346 = vadd.f32 %v1319, %v1334
      %v1347 = vadd.f32 %v1320, %v1335
      %v1348 = vadd.f32 %v1321, %v1336
      %v1349 = vadd.f32 %v1322, %v1331
      %v1350 = vadd.f32 %v1323, %v1332
      %v1351 = vadd.f32 %v1324, %v1333
      %v1352 = vadd.f32 %v1325, %v1334
      %v1353 = vadd.f32 %v1326, %v1335
      %v1354 = vadd.f32 %v1327, %v1336
      %v1355 = vmax.f32 %v1343, 0.0
      %v1356 = vmax.f32 %v1349, 0.0
      %v1357 = vpack.c.bf16 %v1355, %v1355
      %v1358 = vpack.c.bf16 %v1356, %v1356
      %1359 = vst [vmem:[%s346] sm:$0xf] %v1357
      %1360 = vst [vmem:[%s346 + $0x4] sm:$0xf] %v1358
      %v1361 = vpack.c.bf16 %v1344, %v1344
      %v1362 = vpack.c.bf16 %v1350, %v1350
      %1363 = vst [vmem:[%s352] sm:$0xf] %v1361
      %1364 = vst [vmem:[%s352 + $0x4] sm:$0xf] %v1362
      %v1365 = vmax.f32 %v1345, 0.0
      %v1366 = vmax.f32 %v1351, 0.0
      %v1367 = vpack.c.bf16 %v1365, %v1365
      %v1368 = vpack.c.bf16 %v1366, %v1366
      %1369 = vst [vmem:[%s358] sm:$0xf] %v1367
      %1370 = vst [vmem:[%s358 + $0x4] sm:$0xf] %v1368
      %v1371 = vpack.c.bf16 %v1346, %v1346
      %v1372 = vpack.c.bf16 %v1352, %v1352
      %1373 = vst [vmem:[%s364] sm:$0xf] %v1371
      %1374 = vst [vmem:[%s364 + $0x4] sm:$0xf] %v1372
      %v1375 = vmax.f32 %v1347, 0.0
      %v1376 = vmax.f32 %v1353, 0.0
      %v1377 = vpack.c.bf16 %v1375, %v1375
      %v1378 = vpack.c.bf16 %v1376, %v1376
      %1379 = vst [vmem:[%s370] sm:$0xf] %v1377
      %1380 = vst [vmem:[%s370 + $0x4] sm:$0xf] %v1378
      %v1381 = vpack.c.bf16 %v1348, %v1348
      %v1382 = vpack.c.bf16 %v1354, %v1354
      %1383 = vst [vmem:[%s376] sm:$0xf] %v1381
      %1384 = vst [vmem:[%s376 + $0x4] sm:$0xf] %v1382
      %s1385 = smul.u32 2, %s20
      %p1386 = scmp.lt.s32.totalorder %s1385, 3
      %s1387 = scalar_select %p1386, %s1385, 3
      %s1388 = smul.addr %s1387, 4
      %s1389 = scalar_lea.vmem %s3, %s1388
      %s1390 = smul.u32 2, %s20
      %p1391 = scmp.lt.s32.totalorder %s1390, 3
      %s1392 = scalar_select %p1391, %s1390, 3
      %s1393 = smul.addr %s1392, 4
      %s1394 = scalar_lea.vmem %s4, %s1393
      %s1395 = smul.u32 2, %s20
      %p1396 = scmp.lt.s32.totalorder %s1395, 3
      %s1397 = scalar_select %p1396, %s1395, 3
      %s1398 = smul.addr %s1397, 4
      %s1399 = scalar_lea.vmem %s5, %s1398
      %s1400 = smul.u32 2, %s20
      %p1401 = scmp.lt.s32.totalorder %s1400, 3
      %s1402 = scalar_select %p1401, %s1400, 3
      %s1403 = smul.addr %s1402, 4
      %s1404 = scalar_lea.vmem %s6, %s1403
      %s1405 = smul.u32 2, %s20
      %p1406 = scmp.lt.s32.totalorder %s1405, 3
      %s1407 = scalar_select %p1406, %s1405, 3
      %s1408 = smul.addr %s1407, 4
      %s1409 = scalar_lea.vmem %s7, %s1408
      %s1410 = smul.u32 2, %s20
      %p1411 = scmp.lt.s32.totalorder %s1410, 3
      %s1412 = scalar_select %p1411, %s1410, 3
      %s1413 = smul.addr %s1412, 4
      %s1414 = scalar_lea.vmem %s8, %s1413
      // Predicated region
      $region33: #{restnet18_forward.26} parent=31 // pred_check
        %p1415 = pneg %p106
      $region34: #{restnet18_forward.26} parent=31 // pred_check_branch
        %1417 = sbr.rel (%p1415) target = $region36
      $region35: #{restnet18_forward.26} parent=31 // pred_region
        %s1418 = smul.u32 2, %s20
      $region36: #{restnet18_forward.26} parent=31 // pred_fallthru
        _
      // Predicated region
      $region37: #{restnet18_forward.26} parent=31 // pred_check
        %p1419 = pneg %p132
      $region38: #{restnet18_forward.26} parent=31 // pred_check_branch
        %1421 = sbr.rel (%p1419) target = $region40
      $region39: #{restnet18_forward.26} parent=31 // pred_region
        %s1422 = smul.u32 2, %s20
      $region40: #{restnet18_forward.26} parent=31 // pred_fallthru
        _
      // Predicated region
      $region41: #{restnet18_forward.26} parent=31 // pred_check
        %p1423 = pneg %p158
      $region42: #{restnet18_forward.26} parent=31 // pred_check_branch
        %1425 = sbr.rel (%p1423) target = $region44
      $region43: #{restnet18_forward.26} parent=31 // pred_region
        %s1426 = smul.u32 2, %s20
      $region44: #{restnet18_forward.26} parent=31 // pred_fallthru
        _
      // Predicated region
      $region45: #{restnet18_forward.26} parent=31 // pred_check
        %p1427 = pneg %p184
      $region46: #{restnet18_forward.26} parent=31 // pred_check_branch
        %1429 = sbr.rel (%p1427) target = $region48
      $region47: #{restnet18_forward.26} parent=31 // pred_region
        %s1430 = smul.u32 2, %s20
      $region48: #{restnet18_forward.26} parent=31 // pred_fallthru
        _
      // Predicated region
      $region49: #{restnet18_forward.26} parent=31 // pred_check
        %p1431 = pneg %p210
      $region50: #{restnet18_forward.26} parent=31 // pred_check_branch
        %1433 = sbr.rel (%p1431) target = $region52
      $region51: #{restnet18_forward.26} parent=31 // pred_region
        %s1434 = smul.u32 2, %s20
      $region52: #{restnet18_forward.26} parent=31 // pred_fallthru
        _
      // Predicated region
      $region53: #{restnet18_forward.26} parent=31 // pred_check
        %p1435 = pneg %p236
      $region54: #{restnet18_forward.26} parent=31 // pred_check_branch
        %1437 = sbr.rel (%p1435) target = $region56
      $region55: #{restnet18_forward.26} parent=31 // pred_region
        %s1438 = smul.u32 2, %s20
      $region56: #{restnet18_forward.26} parent=31 // pred_fallthru
        _
    $region32: #{restnet18_forward.26} parent=5 // pred_fallthru
      _
    %p1439 = scmp.le.s32.totalorder 2, %s15
    // Predicated region
    $region57: #{restnet18_forward.26} parent=5 // pred_check
      %p1440 = pneg %p1439
    $region58: #{restnet18_forward.26} parent=5 // pred_check_branch
      %1442 = sbr.rel (%p1440) target = $region60
    $region59: #{restnet18_forward.26} parent=5 // pred_region
      %s1443 = ssub.s32 %s15, 2
      // Predicated region
      $region61: #{restnet18_forward.26} parent=59 // pred_check
        %p1444 = pneg %p112
      $region62: #{restnet18_forward.26} parent=59 // pred_check_branch
        %1446 = sbr.rel (%p1444) target = $region64
      $region63: #{restnet18_forward.26} parent=59 // pred_region
        %s1447 = smul.u32 2, %s21
        %p1448 = scmp.lt.s32.totalorder %s1447, 3
        %s1449 = scalar_select %p1448, %s1447, 3
        %s1450 = smul.addr %s1449, 4
        %s1451 = scalar_lea.vmem %s3, %s1450
      $region64: #{restnet18_forward.26} parent=59 // pred_fallthru
        _
      // Predicated region
      $region65: #{restnet18_forward.26} parent=59 // pred_check
        %p1452 = pneg %p138
      $region66: #{restnet18_forward.26} parent=59 // pred_check_branch
        %1454 = sbr.rel (%p1452) target = $region68
      $region67: #{restnet18_forward.26} parent=59 // pred_region
        %s1455 = smul.u32 2, %s21
        %p1456 = scmp.lt.s32.totalorder %s1455, 3
        %s1457 = scalar_select %p1456, %s1455, 3
        %s1458 = smul.addr %s1457, 4
        %s1459 = scalar_lea.vmem %s4, %s1458
      $region68: #{restnet18_forward.26} parent=59 // pred_fallthru
        _
      // Predicated region
      $region69: #{restnet18_forward.26} parent=59 // pred_check
        %p1460 = pneg %p164
      $region70: #{restnet18_forward.26} parent=59 // pred_check_branch
        %1462 = sbr.rel (%p1460) target = $region72
      $region71: #{restnet18_forward.26} parent=59 // pred_region
        %s1463 = smul.u32 2, %s21
        %p1464 = scmp.lt.s32.totalorder %s1463, 3
        %s1465 = scalar_select %p1464, %s1463, 3
        %s1466 = smul.addr %s1465, 4
        %s1467 = scalar_lea.vmem %s5, %s1466
      $region72: #{restnet18_forward.26} parent=59 // pred_fallthru
        _
      // Predicated region
      $region73: #{restnet18_forward.26} parent=59 // pred_check
        %p1468 = pneg %p190
      $region74: #{restnet18_forward.26} parent=59 // pred_check_branch
        %1470 = sbr.rel (%p1468) target = $region76
      $region75: #{restnet18_forward.26} parent=59 // pred_region
        %s1471 = smul.u32 2, %s21
        %p1472 = scmp.lt.s32.totalorder %s1471, 3
        %s1473 = scalar_select %p1472, %s1471, 3
        %s1474 = smul.addr %s1473, 4
        %s1475 = scalar_lea.vmem %s6, %s1474
      $region76: #{restnet18_forward.26} parent=59 // pred_fallthru
        _
      // Predicated region
      $region77: #{restnet18_forward.26} parent=59 // pred_check
        %p1476 = pneg %p216
      $region78: #{restnet18_forward.26} parent=59 // pred_check_branch
        %1478 = sbr.rel (%p1476) target = $region80
      $region79: #{restnet18_forward.26} parent=59 // pred_region
        %s1479 = smul.u32 2, %s21
        %p1480 = scmp.lt.s32.totalorder %s1479, 3
        %s1481 = scalar_select %p1480, %s1479, 3
        %s1482 = smul.addr %s1481, 4
        %s1483 = scalar_lea.vmem %s7, %s1482
      $region80: #{restnet18_forward.26} parent=59 // pred_fallthru
        _
      // Predicated region
      $region81: #{restnet18_forward.26} parent=59 // pred_check
        %p1484 = pneg %p242
      $region82: #{restnet18_forward.26} parent=59 // pred_check_branch
        %1486 = sbr.rel (%p1484) target = $region84
      $region83: #{restnet18_forward.26} parent=59 // pred_region
        %s1487 = smul.u32 2, %s21
        %p1488 = scmp.lt.s32.totalorder %s1487, 3
        %s1489 = scalar_select %p1488, %s1487, 3
        %s1490 = smul.addr %s1489, 4
        %s1491 = scalar_lea.vmem %s8, %s1490
      $region84: #{restnet18_forward.26} parent=59 // pred_fallthru
        _
    $region60: #{restnet18_forward.26} parent=5 // pred_fallthru
      _
  $region6: #{restnet18_forward.26} parent=0 // loop_footer
    %s19 = sadd.s32 1, %s15
  $region7: #{restnet18_forward.26} parent=0 // loop_footer_branch
    %14 = sbr.rel target = $region3
  $region8: #{restnet18_forward.26} parent=0 // loop_exit
    _

// kernel: restnet18_forward.28
$region0: #{restnet18_forward.28}
  #allocation0 [shape = 'u32[]', space=smem, size = 0x4, offset = 0x4, fixed_abs, tag = 'smem constant byte address 0x4 - core index']
  #allocation1 [shape = 'u32[72,128]{1,0:T(1,128)}', space=vmem, size = 0x9000, scoped, tag = 'internal scratch']
  %s0 = inlined_call_operand.vmem [shape: bf16[32,576], index: 0, kind: input, shape index: {}]
  %s1 = inlined_call_operand.vmem [shape: bf16[576,128], index: 1, kind: input, shape index: {}]
  %s2 = inlined_call_operand.vmem [shape: f32[2,128], index: 2, kind: input, shape index: {}]
  %s3 = inlined_call_operand.vmem [shape: bf16[32,128], index: 3, kind: output, shape index: {}]
  %s4 = sld [smem:[#allocation0]]
  $region45: #{restnet18_forward.28} parent=0
    _
  %s6 = ssub.s32 1, %s4
  %s7 = scalar_select 0, %s6, %s4
  loop: start=0, step=1, limit=4
  $region2: #{restnet18_forward.28} parent=0 // loop_pre_header
    _
  $region3: #{restnet18_forward.28} parent=0 // loop_header
    %s9 = sphi 0, %s13
    %p10 = scmp.ge.s32.totalorder %s9, 4
    %s19 = sphi 0, %s21
    %s22 = sphi 0, %s19
    %s23 = sphi 0, %s22
    %s39 = sphi 0, %s23
    %s43 = sphi 0, %s43
    %s45 = sphi 0, %s43
    %s46 = sphi 0, %s45
    %s60 = sphi 0, %s46
    %s64 = sphi 0, %s64
    %s66 = sphi 0, %s64
    %s67 = sphi 0, %s66
    %s81 = sphi 0, %s67
    %s87 = sphi 0, %s89
    %s90 = sphi 0, %s87
    %s91 = sphi 0, %s90
    %s107 = sphi 0, %s91
  $region4: #{restnet18_forward.28} parent=0 // loop_header_branch
    %12 = sbr.rel (%p10) target = $region8
  $region5: #{restnet18_forward.28} parent=0 // loop_body
    %s14 = ssub.s32 %s9, 1
    %s15 = ssub.s32 %s9, 2
    %s16 = sadd.s32 %s9, 1
    %s17 = ssub.s32 %s9, %s16
    %p18 = scmp.eq.s32.totalorder %s17, 0
    %s20 = sadd.s32 %s19, 1
    %s21 = scalar_select %p18, %s19, %s20
    %p24 = pneg %p18
    %p25 = scmp.eq.s32.totalorder %s9, 1
    %p26 = por %p24, %p25
    %p27 = scmp.ne.s32.totalorder %s19, %s22
    %p28 = scmp.eq.s32.totalorder %s9, 0
    %p29 = por %p27, %p28
    %p30 = scmp.ne.s32.totalorder %s19, %s22
    %p31 = scmp.eq.s32.totalorder %s14, 1
    %p32 = por %p30, %p31
    %p33 = scmp.ne.s32.totalorder %s22, %s23
    %p34 = scmp.eq.s32.totalorder %s14, 0
    %p35 = por %p33, %p34
    %p36 = scmp.ne.s32.totalorder %s22, %s23
    %p37 = scmp.eq.s32.totalorder %s15, 1
    %p38 = por %p36, %p37
    %p40 = scmp.ne.s32.totalorder %s23, %s39
    %p41 = scmp.eq.s32.totalorder %s15, 0
    %p42 = por %p40, %p41
    %s44 = sadd.s32 %s43, 1
    %p47 = scmp.eq.s32.totalorder %s9, 1
    %p48 = scmp.ne.s32.totalorder %s43, %s45
    %p49 = scmp.eq.s32.totalorder %s9, 0
    %p50 = por %p48, %p49
    %p51 = scmp.ne.s32.totalorder %s43, %s45
    %p52 = scmp.eq.s32.totalorder %s14, 1
    %p53 = por %p51, %p52
    %p54 = scmp.ne.s32.totalorder %s45, %s46
    %p55 = scmp.eq.s32.totalorder %s14, 0
    %p56 = por %p54, %p55
    %p57 = scmp.ne.s32.totalorder %s45, %s46
    %p58 = scmp.eq.s32.totalorder %s15, 1
    %p59 = por %p57, %p58
    %p61 = scmp.ne.s32.totalorder %s46, %s60
    %p62 = scmp.eq.s32.totalorder %s15, 0
    %p63 = por %p61, %p62
    %s65 = sadd.s32 %s64, 1
    %p68 = scmp.eq.s32.totalorder %s9, 1
    %p69 = scmp.ne.s32.totalorder %s64, %s66
    %p70 = scmp.eq.s32.totalorder %s9, 0
    %p71 = por %p69, %p70
    %p72 = scmp.ne.s32.totalorder %s64, %s66
    %p73 = scmp.eq.s32.totalorder %s14, 1
    %p74 = por %p72, %p73
    %p75 = scmp.ne.s32.totalorder %s66, %s67
    %p76 = scmp.eq.s32.totalorder %s14, 0
    %p77 = por %p75, %p76
    %p78 = scmp.ne.s32.totalorder %s66, %s67
    %p79 = scmp.eq.s32.totalorder %s15, 1
    %p80 = por %p78, %p79
    %p82 = scmp.ne.s32.totalorder %s67, %s81
    %p83 = scmp.eq.s32.totalorder %s15, 0
    %p84 = por %p82, %p83
    %s85 = ssub.s32 %s9, %s16
    %p86 = scmp.eq.s32.totalorder %s85, 0
    %s88 = sadd.s32 %s87, 1
    %s89 = scalar_select %p86, %s87, %s88
    %p92 = pneg %p86
    %p93 = scmp.eq.s32.totalorder %s9, 1
    %p94 = por %p92, %p93
    %p95 = scmp.ne.s32.totalorder %s87, %s90
    %p96 = scmp.eq.s32.totalorder %s9, 0
    %p97 = por %p95, %p96
    %p98 = scmp.ne.s32.totalorder %s87, %s90
    %p99 = scmp.eq.s32.totalorder %s14, 1
    %p100 = por %p98, %p99
    %p101 = scmp.ne.s32.totalorder %s90, %s91
    %p102 = scmp.eq.s32.totalorder %s14, 0
    %p103 = por %p101, %p102
    %p104 = scmp.ne.s32.totalorder %s90, %s91
    %p105 = scmp.eq.s32.totalorder %s15, 1
    %p106 = por %p104, %p105
    %p108 = scmp.ne.s32.totalorder %s91, %s107
    %p109 = scmp.eq.s32.totalorder %s15, 0
    %p110 = por %p108, %p109
    %p111 = scmp.le.s32.totalorder 1, %s9
    %p112 = scmp.lt.s32.totalorder %s9, 3
    %p113 = pnand %p111, %p112
    %p114 = pneg %p113
    // Predicated region
    $region9: #{restnet18_forward.28} parent=5 // pred_check
      _
    $region10: #{restnet18_forward.28} parent=5 // pred_check_branch
      %116 = sbr.rel (%p113) target = $region12
    $region11: #{restnet18_forward.28} parent=5 // pred_region
      %s117 = ssub.s32 %s9, 1
      // Predicated region
      $region13: #{restnet18_forward.28} parent=11 // pred_check
        %p118 = pneg %p56
      $region14: #{restnet18_forward.28} parent=11 // pred_check_branch
        %120 = sbr.rel (%p118) target = $region16
      $region15: #{restnet18_forward.28} parent=11 // pred_region
        _
      $region16: #{restnet18_forward.28} parent=11 // pred_fallthru
        _
      // Predicated region
      $region17: #{restnet18_forward.28} parent=11 // pred_check
        %p121 = pneg %p77
      $region18: #{restnet18_forward.28} parent=11 // pred_check_branch
        %123 = sbr.rel (%p121) target = $region20
      $region19: #{restnet18_forward.28} parent=11 // pred_region
        _
      $region20: #{restnet18_forward.28} parent=11 // pred_fallthru
        _
    $region12: #{restnet18_forward.28} parent=5 // pred_fallthru
      _
    %p124 = scmp.lt.s32.totalorder %s9, 2
    // Predicated region
    $region21: #{restnet18_forward.28} parent=5 // pred_check
      %p125 = pneg %p124
    $region22: #{restnet18_forward.28} parent=5 // pred_check_branch
      %127 = sbr.rel (%p125) target = $region24
    $region23: #{restnet18_forward.28} parent=5 // pred_region
      // Predicated region
      $region25: #{restnet18_forward.28} parent=23 // pred_check
        %p128 = pneg %p29
      $region26: #{restnet18_forward.28} parent=23 // pred_check_branch
        %130 = sbr.rel (%p128) target = $region28
      $region27: #{restnet18_forward.28} parent=23 // pred_region
        %s131 = smul.u32 2, %s9
        %p132 = scmp.lt.s32.totalorder %s131, 3
        %s133 = scalar_select %p132, %s131, 3
        %s134 = smul.addr %s133, 5
        %s135 = smul.addr %s134, 4
        %s136 = scalar_lea.vmem %s0, %s135
        %s137 = smul.u32 2, %s9
      $region28: #{restnet18_forward.28} parent=23 // pred_fallthru
        _
    $region24: #{restnet18_forward.28} parent=5 // pred_fallthru
      _
    %p138 = scmp.le.s32.totalorder 1, %s9
    %p139 = scmp.lt.s32.totalorder %s9, 3
    %p140 = pnand %p138, %p139
    %p141 = pneg %p140
    // Predicated region
    $region29: #{restnet18_forward.28} parent=5 // pred_check
      _
    $region30: #{restnet18_forward.28} parent=5 // pred_check_branch
      %143 = sbr.rel (%p140) target = $region32
    $region31: #{restnet18_forward.28} parent=5 // pred_region
      %s144 = ssub.s32 %s9, 1
      %s145 = smul.u32 2, %s14
      %p146 = scmp.lt.s32.totalorder %s145, 3
      %s147 = scalar_select %p146, %s145, 3
      %s148 = smul.addr %s147, 5
      %s149 = smul.addr %s148, 4
      %s150 = scalar_lea.vmem %s0, %s149
      %p151 = pneg %p35
      %p152 = pneg %p32
      %p153 = pneg %p56
      %p154 = pneg %p53
      %p155 = pneg %p77
      %p156 = pneg %p74
      %p157 = pneg %p103
      %p158 = pneg %p100
      %s159 = smul.u32 2, %s14
      %p160 = scmp.lt.s32.totalorder %s159, 3
      %s161 = scalar_select %p160, %s159, 3
      %s162 = smul.addr %s161, 4
      %s163 = scalar_lea.vmem %s3, %s162
      %s164 = smul.u32 2, %s14
      %p165 = scmp.lt.s32.totalorder %s164, 3
      %s166 = scalar_select %p165, %s164, 3
      %s167 = smul.addr %s166, 5
      %s168 = smul.addr %s167, 4
      %s169 = scalar_lea.vmem %s0, %s168
      %s170 = smul.u32 2, %s14
      %s171 = smul.u32 2, %s14
      %p172 = scmp.lt.s32.totalorder %s171, 3
      %s173 = scalar_select %p172, %s171, 3
      %s174 = smul.addr %s173, 4
      %s175 = scalar_lea.vmem %s3, %s174
      %s176 = smul.u32 2, %s14
      %v178 = vld [vmem:[%s169] sm:$0xff]
      %v179 = vld [vmem:[%s169 + $0x8] sm:$0xff]
      %v180 = vld [vmem:[%s169 + $0x10] sm:$0xf]
      %v181 = vld [vmem:[%s169 + $0x14] sm:$0xff]
      %v182 = vld [vmem:[%s169 + $0x1c] sm:$0xff]
      %v183 = vld [vmem:[%s169 + $0x24] sm:$0xf]
      %v184 = vld [vmem:[%s1] sm:$0xf]
      %v185 = vld [vmem:[%s1 + $0x4] sm:$0xf]
      %v186 = vld [vmem:[%s1 + $0x8] sm:$0xf]
      %v187 = vld [vmem:[%s1 + $0xc] sm:$0xf]
      %v188 = vld [vmem:[%s1 + $0x10] sm:$0xf]
      %v189 = vld [vmem:[%s1 + $0x14] sm:$0xf]
      %v190 = vld [vmem:[%s1 + $0x18] sm:$0xf]
      %v191 = vld [vmem:[%s1 + $0x1c] sm:$0xf]
      %v192 = vld [vmem:[%s1 + $0x20] sm:$0xf]
      %v193 = vld [vmem:[%s1 + $0x24] sm:$0xf]
      %v194 = vld [vmem:[%s1 + $0x28] sm:$0xf]
      %v195 = vld [vmem:[%s1 + $0x2c] sm:$0xf]
      %v196 = vld [vmem:[%s1 + $0x30] sm:$0xf]
      %v197 = vld [vmem:[%s1 + $0x34] sm:$0xf]
      %v198 = vld [vmem:[%s1 + $0x38] sm:$0xf]
      %v199 = vld [vmem:[%s1 + $0x3c] sm:$0xf]
      %v200 = vld [vmem:[%s1 + $0x40] sm:$0xf]
      %v201 = vld [vmem:[%s1 + $0x44] sm:$0xf]
      %v202 = vld [vmem:[%s1 + $0x48] sm:$0xf]
      %v203 = vld [vmem:[%s1 + $0x4c] sm:$0xf]
      %v204 = vld [vmem:[%s1 + $0x50] sm:$0xf]
      %v205 = vld [vmem:[%s1 + $0x54] sm:$0xf]
      %v206 = vld [vmem:[%s1 + $0x58] sm:$0xf]
      %v207 = vld [vmem:[%s1 + $0x5c] sm:$0xf]
      %v208 = vld [vmem:[%s1 + $0x60] sm:$0xf]
      %v209 = vld [vmem:[%s1 + $0x64] sm:$0xf]
      %v210 = vld [vmem:[%s1 + $0x68] sm:$0xf]
      %v211 = vld [vmem:[%s1 + $0x6c] sm:$0xf]
      %v212 = vld [vmem:[%s1 + $0x70] sm:$0xf]
      %v213 = vld [vmem:[%s1 + $0x74] sm:$0xf]
      %v214 = vld [vmem:[%s1 + $0x78] sm:$0xf]
      %v215 = vld [vmem:[%s1 + $0x7c] sm:$0xf]
      %v216 = vld [vmem:[%s1 + $0x80] sm:$0xf]
      %v217 = vld [vmem:[%s1 + $0x84] sm:$0xf]
      %v218 = vld [vmem:[%s1 + $0x88] sm:$0xf]
      %v219 = vld [vmem:[%s1 + $0x8c] sm:$0xf]
      %v220 = vld [vmem:[%s1 + $0x90] sm:$0xf]
      %v221 = vld [vmem:[%s1 + $0x94] sm:$0xf]
      %v222 = vld [vmem:[%s1 + $0x98] sm:$0xf]
      %v223 = vld [vmem:[%s1 + $0x9c] sm:$0xf]
      %v224 = vld [vmem:[%s1 + $0xa0] sm:$0xf]
      %v225 = vld [vmem:[%s1 + $0xa4] sm:$0xf]
      %v226 = vld [vmem:[%s1 + $0xa8] sm:$0xf]
      %v227 = vld [vmem:[%s1 + $0xac] sm:$0xf]
      %v228 = vld [vmem:[%s1 + $0xb0] sm:$0xf]
      %v229 = vld [vmem:[%s1 + $0xb4] sm:$0xf]
      %v230 = vld [vmem:[%s1 + $0xb8] sm:$0xf]
      %v231 = vld [vmem:[%s1 + $0xbc] sm:$0xf]
      %v232 = vld [vmem:[%s1 + $0xc0] sm:$0xf]
      %v233 = vld [vmem:[%s1 + $0xc4] sm:$0xf]
      %v234 = vld [vmem:[%s1 + $0xc8] sm:$0xf]
      %v235 = vld [vmem:[%s1 + $0xcc] sm:$0xf]
      %v236 = vld [vmem:[%s1 + $0xd0] sm:$0xf]
      %v237 = vld [vmem:[%s1 + $0xd4] sm:$0xf]
      %v238 = vld [vmem:[%s1 + $0xd8] sm:$0xf]
      %v239 = vld [vmem:[%s1 + $0xdc] sm:$0xf]
      %v240 = vld [vmem:[%s1 + $0xe0] sm:$0xf]
      %v241 = vld [vmem:[%s1 + $0xe4] sm:$0xf]
      %v242 = vld [vmem:[%s1 + $0xe8] sm:$0xf]
      %v243 = vld [vmem:[%s1 + $0xec] sm:$0xf]
      %v244 = vld [vmem:[%s1 + $0xf0] sm:$0xf]
      %v245 = vld [vmem:[%s1 + $0xf4] sm:$0xf]
      %v246 = vld [vmem:[%s1 + $0xf8] sm:$0xf]
      %v247 = vld [vmem:[%s1 + $0xfc] sm:$0xf]
      %v248 = vld [vmem:[%s1 + $0x100] sm:$0xf]
      %v249 = vld [vmem:[%s1 + $0x104] sm:$0xf]
      %v250 = vld [vmem:[%s1 + $0x108] sm:$0xf]
      %v251 = vld [vmem:[%s1 + $0x10c] sm:$0xf]
      %v252 = vld [vmem:[%s1 + $0x110] sm:$0xf]
      %v253 = vld [vmem:[%s1 + $0x114] sm:$0xf]
      %v254 = vld [vmem:[%s1 + $0x118] sm:$0xf]
      %v255 = vld [vmem:[%s1 + $0x11c] sm:$0xf]
      %v262 = vunpack.c.l.b16 %v178
      %v263 = vunpack.c.h.b16 %v178
      %v264 = vunpack.c.l.b16 %v179
      %v265 = vunpack.c.h.b16 %v179
      %v266 = vunpack.c.l.b16 %v180
      %v267 = vunpack.c.l.b16 %v181
      %v268 = vunpack.c.h.b16 %v181
      %v269 = vunpack.c.l.b16 %v182
      %v270 = vunpack.c.h.b16 %v182
      %v271 = vunpack.c.l.b16 %v183
      %v272 = vpack.c.b16 %v267, %v262
      %v273 = vpack.c.b16 %v268, %v263
      %v274 = vpack.c.b16 %v269, %v264
      %v275 = vpack.c.b16 %v270, %v265
      %v276 = vpack.c.b16 %v271, %v266
      %v353 = vunpack.c.l.b16 %v184
      %v354 = vunpack.c.l.b16 %v185
      %v355 = vunpack.c.l.b16 %v186
      %v356 = vunpack.c.l.b16 %v187
      %v357 = vunpack.c.l.b16 %v188
      %v358 = vunpack.c.l.b16 %v189
      %v359 = vunpack.c.l.b16 %v190
      %v360 = vunpack.c.l.b16 %v191
      %v361 = vunpack.c.l.b16 %v192
      %v362 = vunpack.c.l.b16 %v193
      %v363 = vunpack.c.l.b16 %v194
      %v364 = vunpack.c.l.b16 %v195
      %v365 = vunpack.c.l.b16 %v196
      %v366 = vunpack.c.l.b16 %v197
      %v367 = vunpack.c.l.b16 %v198
      %v368 = vunpack.c.l.b16 %v199
      %v369 = vunpack.c.l.b16 %v200
      %v370 = vunpack.c.l.b16 %v201
      %v371 = vunpack.c.l.b16 %v202
      %v372 = vunpack.c.l.b16 %v203
      %v373 = vunpack.c.l.b16 %v204
      %v374 = vunpack.c.l.b16 %v205
      %v375 = vunpack.c.l.b16 %v206
      %v376 = vunpack.c.l.b16 %v207
      %v377 = vunpack.c.l.b16 %v208
      %v378 = vunpack.c.l.b16 %v209
      %v379 = vunpack.c.l.b16 %v210
      %v380 = vunpack.c.l.b16 %v211
      %v381 = vunpack.c.l.b16 %v212
      %v382 = vunpack.c.l.b16 %v213
      %v383 = vunpack.c.l.b16 %v214
      %v384 = vunpack.c.l.b16 %v215
      %v385 = vunpack.c.l.b16 %v216
      %v386 = vunpack.c.l.b16 %v217
      %v387 = vunpack.c.l.b16 %v218
      %v388 = vunpack.c.l.b16 %v219
      %v389 = vunpack.c.l.b16 %v220
      %v390 = vunpack.c.l.b16 %v221
      %v391 = vunpack.c.l.b16 %v222
      %v392 = vunpack.c.l.b16 %v223
      %v393 = vunpack.c.l.b16 %v224
      %v394 = vunpack.c.l.b16 %v225
      %v395 = vunpack.c.l.b16 %v226
      %v396 = vunpack.c.l.b16 %v227
      %v397 = vunpack.c.l.b16 %v228
      %v398 = vunpack.c.l.b16 %v229
      %v399 = vunpack.c.l.b16 %v230
      %v400 = vunpack.c.l.b16 %v231
      %v401 = vunpack.c.l.b16 %v232
      %v402 = vunpack.c.l.b16 %v233
      %v403 = vunpack.c.l.b16 %v234
      %v404 = vunpack.c.l.b16 %v235
      %v405 = vunpack.c.l.b16 %v236
      %v406 = vunpack.c.l.b16 %v237
      %v407 = vunpack.c.l.b16 %v238
      %v408 = vunpack.c.l.b16 %v239
      %v409 = vunpack.c.l.b16 %v240
      %v410 = vunpack.c.l.b16 %v241
      %v411 = vunpack.c.l.b16 %v242
      %v412 = vunpack.c.l.b16 %v243
      %v413 = vunpack.c.l.b16 %v244
      %v414 = vunpack.c.l.b16 %v245
      %v415 = vunpack.c.l.b16 %v246
      %v416 = vunpack.c.l.b16 %v247
      %v417 = vunpack.c.l.b16 %v248
      %v418 = vunpack.c.l.b16 %v249
      %v419 = vunpack.c.l.b16 %v250
      %v420 = vunpack.c.l.b16 %v251
      %v421 = vunpack.c.l.b16 %v252
      %v422 = vunpack.c.l.b16 %v253
      %v423 = vunpack.c.l.b16 %v254
      %v424 = vunpack.c.l.b16 %v255
      %v425 = vpack.c.b16 %v354, %v353
      %v426 = vpack.c.b16 %v356, %v355
      %v427 = vpack.c.b16 %v358, %v357
      %v428 = vpack.c.b16 %v360, %v359
      %v429 = vpack.c.b16 %v362, %v361
      %v430 = vpack.c.b16 %v364, %v363
      %v431 = vpack.c.b16 %v366, %v365
      %v432 = vpack.c.b16 %v368, %v367
      %v433 = vpack.c.b16 %v370, %v369
      %v434 = vpack.c.b16 %v372, %v371
      %v435 = vpack.c.b16 %v374, %v373
      %v436 = vpack.c.b16 %v376, %v375
      %v437 = vpack.c.b16 %v378, %v377
      %v438 = vpack.c.b16 %v380, %v379
      %v439 = vpack.c.b16 %v382, %v381
      %v440 = vpack.c.b16 %v384, %v383
      %v441 = vpack.c.b16 %v386, %v385
      %v442 = vpack.c.b16 %v388, %v387
      %v443 = vpack.c.b16 %v390, %v389
      %v444 = vpack.c.b16 %v392, %v391
      %v445 = vpack.c.b16 %v394, %v393
      %v446 = vpack.c.b16 %v396, %v395
      %v447 = vpack.c.b16 %v398, %v397
      %v448 = vpack.c.b16 %v400, %v399
      %v449 = vpack.c.b16 %v402, %v401
      %v450 = vpack.c.b16 %v404, %v403
      %v451 = vpack.c.b16 %v406, %v405
      %v452 = vpack.c.b16 %v408, %v407
      %v453 = vpack.c.b16 %v410, %v409
      %v454 = vpack.c.b16 %v412, %v411
      %v455 = vpack.c.b16 %v414, %v413
      %v456 = vpack.c.b16 %v416, %v415
      %v457 = vpack.c.b16 %v418, %v417
      %v458 = vpack.c.b16 %v420, %v419
      %v459 = vpack.c.b16 %v422, %v421
      %v460 = vpack.c.b16 %v424, %v423
      %vm497 = vcmask 523264
      %v499 = vsel %vm497, %v276, 0
      %501 = vmatpush.bf16.msra.mxu0 %v432
      %502 = vmatpush.bf16.msra.mxu0 %v431
      %503 = vmatpush.bf16.msra.mxu0 %v430
      %504 = vmatpush.bf16.msra.mxu0 %v429
      %505 = vmatpush.bf16.msra.mxu0 %v428
      %506 = vmatpush.bf16.msra.mxu0 %v427
      %507 = vmatpush.bf16.msra.mxu0 %v426
      %508 = vmatpush.bf16.msra.mxu0 %v425
      %509 = vmatmul.bf16.gmra.mxu0 %v272
      %v510 = vpop.f32.mrf.mxu0
      %v511 = vadd.f32 0.0, %v510
      %v512 = vpop.f32.mrf.mxu0
      %v513 = vadd.f32 0.0, %v512
      %514 = vdwg.mxu0
      %515 = vmatpush.bf16.msra.mxu0 %v440
      %516 = vmatpush.bf16.msra.mxu0 %v439
      %517 = vmatpush.bf16.msra.mxu0 %v438
      %518 = vmatpush.bf16.msra.mxu0 %v437
      %519 = vmatpush.bf16.msra.mxu0 %v436
      %520 = vmatpush.bf16.msra.mxu0 %v435
      %521 = vmatpush.bf16.msra.mxu0 %v434
      %522 = vmatpush.bf16.msra.mxu0 %v433
      %523 = vmatmul.bf16.gmra.mxu0 %v273
      %v524 = vpop.f32.mrf.mxu0
      %v525 = vadd.f32 %v511, %v524
      %v526 = vpop.f32.mrf.mxu0
      %v527 = vadd.f32 %v513, %v526
      %528 = vdwg.mxu0
      %529 = vmatpush.bf16.msra.mxu0 %v448
      %530 = vmatpush.bf16.msra.mxu0 %v447
      %531 = vmatpush.bf16.msra.mxu0 %v446
      %532 = vmatpush.bf16.msra.mxu0 %v445
      %533 = vmatpush.bf16.msra.mxu0 %v444
      %534 = vmatpush.bf16.msra.mxu0 %v443
      %535 = vmatpush.bf16.msra.mxu0 %v442
      %536 = vmatpush.bf16.msra.mxu0 %v441
      %537 = vmatmul.bf16.gmra.mxu0 %v274
      %v538 = vpop.f32.mrf.mxu0
      %v539 = vadd.f32 %v525, %v538
      %v540 = vpop.f32.mrf.mxu0
      %v541 = vadd.f32 %v527, %v540
      %542 = vdwg.mxu0
      %543 = vmatpush.bf16.msra.mxu0 %v456
      %544 = vmatpush.bf16.msra.mxu0 %v455
      %545 = vmatpush.bf16.msra.mxu0 %v454
      %546 = vmatpush.bf16.msra.mxu0 %v453
      %547 = vmatpush.bf16.msra.mxu0 %v452
      %548 = vmatpush.bf16.msra.mxu0 %v451
      %549 = vmatpush.bf16.msra.mxu0 %v450
      %550 = vmatpush.bf16.msra.mxu0 %v449
      %551 = vmatmul.bf16.gmra.mxu0 %v275
      %v552 = vpop.f32.mrf.mxu0
      %v553 = vadd.f32 %v539, %v552
      %v554 = vpop.f32.mrf.mxu0
      %v555 = vadd.f32 %v541, %v554
      %556 = vdwg.mxu0
      %557 = vmatpush.bf16.msra.mxu0 0
      %558 = vmatpush.bf16.msra.mxu0 0
      %559 = vmatpush.bf16.msra.mxu0 0
      %560 = vmatpush.bf16.msra.mxu0 0
      %561 = vmatpush.bf16.msra.mxu0 %v460
      %562 = vmatpush.bf16.msra.mxu0 %v459
      %563 = vmatpush.bf16.msra.mxu0 %v458
      %564 = vmatpush.bf16.msra.mxu0 %v457
      %565 = vmatmul.bf16.gmra.mxu0 %v499
      %v566 = vpop.f32.mrf.mxu0
      %v567 = vadd.f32 %v553, %v566
      %v568 = vpop.f32.mrf.mxu0
      %v569 = vadd.f32 %v555, %v568
      %570 = vdwg.mxu0
      %v571 = vld [vmem:[%s2] sm:$0x1]
      %v572 = vperm.slane %v571, 0
      %v573 = vmul.f32 %v567, %v572
      %v574 = vmul.f32 %v569, %v572
      %v575 = vld [vmem:[%s2 + $0x1] sm:$0x1]
      %v576 = vperm.slane %v575, 0
      %v577 = vadd.f32 %v573, %v576
      %v578 = vadd.f32 %v574, %v576
      %v579 = vmax.f32 %v577, 0.0
      %v580 = vmax.f32 %v578, 0.0
      %v581 = vpack.c.bf16 %v579, %v579
      %v582 = vpack.c.bf16 %v580, %v580
      %583 = vst [vmem:[%s175] sm:$0xf] %v581
      %584 = vst [vmem:[%s175 + $0x4] sm:$0xf] %v582
      %s585 = smul.u32 2, %s14
      %p586 = scmp.lt.s32.totalorder %s585, 3
      %s587 = scalar_select %p586, %s585, 3
      %s588 = smul.addr %s587, 4
      %s589 = scalar_lea.vmem %s3, %s588
      // Predicated region
      $region33: #{restnet18_forward.28} parent=31 // pred_check
        %p590 = pneg %p100
      $region34: #{restnet18_forward.28} parent=31 // pred_check_branch
        %592 = sbr.rel (%p590) target = $region36
      $region35: #{restnet18_forward.28} parent=31 // pred_region
        %s593 = smul.u32 2, %s14
      $region36: #{restnet18_forward.28} parent=31 // pred_fallthru
        _
    $region32: #{restnet18_forward.28} parent=5 // pred_fallthru
      _
    %p594 = scmp.le.s32.totalorder 2, %s9
    // Predicated region
    $region37: #{restnet18_forward.28} parent=5 // pred_check
      %p595 = pneg %p594
    $region38: #{restnet18_forward.28} parent=5 // pred_check_branch
      %597 = sbr.rel (%p595) target = $region40
    $region39: #{restnet18_forward.28} parent=5 // pred_region
      %s598 = ssub.s32 %s9, 2
      // Predicated region
      $region41: #{restnet18_forward.28} parent=39 // pred_check
        %p599 = pneg %p106
      $region42: #{restnet18_forward.28} parent=39 // pred_check_branch
        %601 = sbr.rel (%p599) target = $region44
      $region43: #{restnet18_forward.28} parent=39 // pred_region
        %s602 = smul.u32 2, %s15
        %p603 = scmp.lt.s32.totalorder %s602, 3
        %s604 = scalar_select %p603, %s602, 3
        %s605 = smul.addr %s604, 4
        %s606 = scalar_lea.vmem %s3, %s605
      $region44: #{restnet18_forward.28} parent=39 // pred_fallthru
        _
    $region40: #{restnet18_forward.28} parent=5 // pred_fallthru
      _
  $region6: #{restnet18_forward.28} parent=0 // loop_footer
    %s13 = sadd.s32 1, %s9
  $region7: #{restnet18_forward.28} parent=0 // loop_footer_branch
    %8 = sbr.rel target = $region3
  $region8: #{restnet18_forward.28} parent=0 // loop_exit
    _

// kernel: restnet18_forward.32
$region0: #{restnet18_forward.32}
  #allocation0 [shape = 'u32[]', space=smem, size = 0x4, offset = 0x4, fixed_abs, tag = 'smem constant byte address 0x4 - core index']
  #allocation1 [shape = 'u32[72,128]{1,0:T(1,128)}', space=vmem, size = 0x9000, scoped, tag = 'internal scratch']
  %s0 = inlined_call_operand.vmem [shape: bf16[16,864], index: 0, kind: input, shape index: {}]
  %s1 = inlined_call_operand.vmem [shape: bf16[864,128], index: 1, kind: input, shape index: {}]
  %s2 = inlined_call_operand.vmem [shape: f32[2,128], index: 2, kind: input, shape index: {}]
  %s3 = inlined_call_operand.vmem [shape: bf16[16,128], index: 3, kind: input, shape index: {}]
  %s4 = inlined_call_operand.vmem [shape: bf16[16,128], index: 4, kind: output, shape index: {}]
  %s5 = sld [smem:[#allocation0]]
  $region26: #{restnet18_forward.32} parent=0
    _
  %s7 = ssub.s32 1, %s5
  %s8 = scalar_select 0, %s7, %s5
  // Predicated region
  $region2: #{restnet18_forward.32} parent=0 // pred_check
    _
  $region3: #{restnet18_forward.32} parent=0 // pred_check_branch
    %10 = sbr.rel (0) target = $region5
  $region4: #{restnet18_forward.32} parent=0 // pred_region
    _
  $region5: #{restnet18_forward.32} parent=0 // pred_fallthru
    _
  // Predicated region
  $region6: #{restnet18_forward.32} parent=0 // pred_check
    _
  $region7: #{restnet18_forward.32} parent=0 // pred_check_branch
    %12 = sbr.rel (0) target = $region9
  $region8: #{restnet18_forward.32} parent=0 // pred_region
    _
  $region9: #{restnet18_forward.32} parent=0 // pred_fallthru
    _
  // Predicated region
  $region10: #{restnet18_forward.32} parent=0 // pred_check
    _
  $region11: #{restnet18_forward.32} parent=0 // pred_check_branch
    %14 = sbr.rel (0) target = $region13
  $region12: #{restnet18_forward.32} parent=0 // pred_region
    _
  $region13: #{restnet18_forward.32} parent=0 // pred_fallthru
    _
  // Predicated region
  $region14: #{restnet18_forward.32} parent=0 // pred_check
    _
  $region15: #{restnet18_forward.32} parent=0 // pred_check_branch
    %16 = sbr.rel (0) target = $region17
  $region16: #{restnet18_forward.32} parent=0 // pred_region
    _
  $region17: #{restnet18_forward.32} parent=0 // pred_fallthru
    _
  %v18 = vld [vmem:[%s0] sm:$0xff]
  %v19 = vld [vmem:[%s0 + $0x8] sm:$0xff]
  %v20 = vld [vmem:[%s0 + $0x10] sm:$0xff]
  %v21 = vld [vmem:[%s0 + $0x18] sm:$0xf]
  %v22 = vld [vmem:[%s0 + $0x1c] sm:$0xff]
  %v23 = vld [vmem:[%s0 + $0x24] sm:$0xff]
  %v24 = vld [vmem:[%s0 + $0x2c] sm:$0xff]
  %v25 = vld [vmem:[%s0 + $0x34] sm:$0xf]
  %v26 = vld [vmem:[%s1] sm:$0xf]
  %v27 = vld [vmem:[%s1 + $0x4] sm:$0xf]
  %v28 = vld [vmem:[%s1 + $0x8] sm:$0xf]
  %v29 = vld [vmem:[%s1 + $0xc] sm:$0xf]
  %v30 = vld [vmem:[%s1 + $0x10] sm:$0xf]
  %v31 = vld [vmem:[%s1 + $0x14] sm:$0xf]
  %v32 = vld [vmem:[%s1 + $0x18] sm:$0xf]
  %v33 = vld [vmem:[%s1 + $0x1c] sm:$0xf]
  %v34 = vld [vmem:[%s1 + $0x20] sm:$0xf]
  %v35 = vld [vmem:[%s1 + $0x24] sm:$0xf]
  %v36 = vld [vmem:[%s1 + $0x28] sm:$0xf]
  %v37 = vld [vmem:[%s1 + $0x2c] sm:$0xf]
  %v38 = vld [vmem:[%s1 + $0x30] sm:$0xf]
  %v39 = vld [vmem:[%s1 + $0x34] sm:$0xf]
  %v40 = vld [vmem:[%s1 + $0x38] sm:$0xf]
  %v41 = vld [vmem:[%s1 + $0x3c] sm:$0xf]
  %v42 = vld [vmem:[%s1 + $0x40] sm:$0xf]
  %v43 = vld [vmem:[%s1 + $0x44] sm:$0xf]
  %v44 = vld [vmem:[%s1 + $0x48] sm:$0xf]
  %v45 = vld [vmem:[%s1 + $0x4c] sm:$0xf]
  %v46 = vld [vmem:[%s1 + $0x50] sm:$0xf]
  %v47 = vld [vmem:[%s1 + $0x54] sm:$0xf]
  %v48 = vld [vmem:[%s1 + $0x58] sm:$0xf]
  %v49 = vld [vmem:[%s1 + $0x5c] sm:$0xf]
  %v50 = vld [vmem:[%s1 + $0x60] sm:$0xf]
  %v51 = vld [vmem:[%s1 + $0x64] sm:$0xf]
  %v52 = vld [vmem:[%s1 + $0x68] sm:$0xf]
  %v53 = vld [vmem:[%s1 + $0x6c] sm:$0xf]
  %v54 = vld [vmem:[%s1 + $0x70] sm:$0xf]
  %v55 = vld [vmem:[%s1 + $0x74] sm:$0xf]
  %v56 = vld [vmem:[%s1 + $0x78] sm:$0xf]
  %v57 = vld [vmem:[%s1 + $0x7c] sm:$0xf]
  %v58 = vld [vmem:[%s1 + $0x80] sm:$0xf]
  %v59 = vld [vmem:[%s1 + $0x84] sm:$0xf]
  %v60 = vld [vmem:[%s1 + $0x88] sm:$0xf]
  %v61 = vld [vmem:[%s1 + $0x8c] sm:$0xf]
  %v62 = vld [vmem:[%s1 + $0x90] sm:$0xf]
  %v63 = vld [vmem:[%s1 + $0x94] sm:$0xf]
  %v64 = vld [vmem:[%s1 + $0x98] sm:$0xf]
  %v65 = vld [vmem:[%s1 + $0x9c] sm:$0xf]
  %v66 = vld [vmem:[%s1 + $0xa0] sm:$0xf]
  %v67 = vld [vmem:[%s1 + $0xa4] sm:$0xf]
  %v68 = vld [vmem:[%s1 + $0xa8] sm:$0xf]
  %v69 = vld [vmem:[%s1 + $0xac] sm:$0xf]
  %v70 = vld [vmem:[%s1 + $0xb0] sm:$0xf]
  %v71 = vld [vmem:[%s1 + $0xb4] sm:$0xf]
  %v72 = vld [vmem:[%s1 + $0xb8] sm:$0xf]
  %v73 = vld [vmem:[%s1 + $0xbc] sm:$0xf]
  %v74 = vld [vmem:[%s1 + $0xc0] sm:$0xf]
  %v75 = vld [vmem:[%s1 + $0xc4] sm:$0xf]
  %v76 = vld [vmem:[%s1 + $0xc8] sm:$0xf]
  %v77 = vld [vmem:[%s1 + $0xcc] sm:$0xf]
  %v78 = vld [vmem:[%s1 + $0xd0] sm:$0xf]
  %v79 = vld [vmem:[%s1 + $0xd4] sm:$0xf]
  %v80 = vld [vmem:[%s1 + $0xd8] sm:$0xf]
  %v81 = vld [vmem:[%s1 + $0xdc] sm:$0xf]
  %v82 = vld [vmem:[%s1 + $0xe0] sm:$0xf]
  %v83 = vld [vmem:[%s1 + $0xe4] sm:$0xf]
  %v84 = vld [vmem:[%s1 + $0xe8] sm:$0xf]
  %v85 = vld [vmem:[%s1 + $0xec] sm:$0xf]
  %v86 = vld [vmem:[%s1 + $0xf0] sm:$0xf]
  %v87 = vld [vmem:[%s1 + $0xf4] sm:$0xf]
  %v88 = vld [vmem:[%s1 + $0xf8] sm:$0xf]
  %v89 = vld [vmem:[%s1 + $0xfc] sm:$0xf]
  %v90 = vld [vmem:[%s1 + $0x100] sm:$0xf]
  %v91 = vld [vmem:[%s1 + $0x104] sm:$0xf]
  %v92 = vld [vmem:[%s1 + $0x108] sm:$0xf]
  %v93 = vld [vmem:[%s1 + $0x10c] sm:$0xf]
  %v94 = vld [vmem:[%s1 + $0x110] sm:$0xf]
  %v95 = vld [vmem:[%s1 + $0x114] sm:$0xf]
  %v96 = vld [vmem:[%s1 + $0x118] sm:$0xf]
  %v97 = vld [vmem:[%s1 + $0x11c] sm:$0xf]
  %v98 = vld [vmem:[%s1 + $0x120] sm:$0xf]
  %v99 = vld [vmem:[%s1 + $0x124] sm:$0xf]
  %v100 = vld [vmem:[%s1 + $0x128] sm:$0xf]
  %v101 = vld [vmem:[%s1 + $0x12c] sm:$0xf]
  %v102 = vld [vmem:[%s1 + $0x130] sm:$0xf]
  %v103 = vld [vmem:[%s1 + $0x134] sm:$0xf]
  %v104 = vld [vmem:[%s1 + $0x138] sm:$0xf]
  %v105 = vld [vmem:[%s1 + $0x13c] sm:$0xf]
  %v106 = vld [vmem:[%s1 + $0x140] sm:$0xf]
  %v107 = vld [vmem:[%s1 + $0x144] sm:$0xf]
  %v108 = vld [vmem:[%s1 + $0x148] sm:$0xf]
  %v109 = vld [vmem:[%s1 + $0x14c] sm:$0xf]
  %v110 = vld [vmem:[%s1 + $0x150] sm:$0xf]
  %v111 = vld [vmem:[%s1 + $0x154] sm:$0xf]
  %v112 = vld [vmem:[%s1 + $0x158] sm:$0xf]
  %v113 = vld [vmem:[%s1 + $0x15c] sm:$0xf]
  %v114 = vld [vmem:[%s1 + $0x160] sm:$0xf]
  %v115 = vld [vmem:[%s1 + $0x164] sm:$0xf]
  %v116 = vld [vmem:[%s1 + $0x168] sm:$0xf]
  %v117 = vld [vmem:[%s1 + $0x16c] sm:$0xf]
  %v118 = vld [vmem:[%s1 + $0x170] sm:$0xf]
  %v119 = vld [vmem:[%s1 + $0x174] sm:$0xf]
  %v120 = vld [vmem:[%s1 + $0x178] sm:$0xf]
  %v121 = vld [vmem:[%s1 + $0x17c] sm:$0xf]
  %v122 = vld [vmem:[%s1 + $0x180] sm:$0xf]
  %v123 = vld [vmem:[%s1 + $0x184] sm:$0xf]
  %v124 = vld [vmem:[%s1 + $0x188] sm:$0xf]
  %v125 = vld [vmem:[%s1 + $0x18c] sm:$0xf]
  %v126 = vld [vmem:[%s1 + $0x190] sm:$0xf]
  %v127 = vld [vmem:[%s1 + $0x194] sm:$0xf]
  %v128 = vld [vmem:[%s1 + $0x198] sm:$0xf]
  %v129 = vld [vmem:[%s1 + $0x19c] sm:$0xf]
  %v130 = vld [vmem:[%s1 + $0x1a0] sm:$0xf]
  %v131 = vld [vmem:[%s1 + $0x1a4] sm:$0xf]
  %v132 = vld [vmem:[%s1 + $0x1a8] sm:$0xf]
  %v133 = vld [vmem:[%s1 + $0x1ac] sm:$0xf]
  %v142 = vunpack.c.l.b16 %v18
  %v143 = vunpack.c.h.b16 %v18
  %v144 = vunpack.c.l.b16 %v19
  %v145 = vunpack.c.h.b16 %v19
  %v146 = vunpack.c.l.b16 %v20
  %v147 = vunpack.c.h.b16 %v20
  %v148 = vunpack.c.l.b16 %v21
  %v149 = vunpack.c.l.b16 %v22
  %v150 = vunpack.c.h.b16 %v22
  %v151 = vunpack.c.l.b16 %v23
  %v152 = vunpack.c.h.b16 %v23
  %v153 = vunpack.c.l.b16 %v24
  %v154 = vunpack.c.h.b16 %v24
  %v155 = vunpack.c.l.b16 %v25
  %v156 = vpack.c.b16 %v149, %v142
  %v157 = vpack.c.b16 %v150, %v143
  %v158 = vpack.c.b16 %v151, %v144
  %v159 = vpack.c.b16 %v152, %v145
  %v160 = vpack.c.b16 %v153, %v146
  %v161 = vpack.c.b16 %v154, %v147
  %v162 = vpack.c.b16 %v155, %v148
  %v277 = vunpack.c.l.b16 %v26
  %v278 = vunpack.c.l.b16 %v27
  %v279 = vunpack.c.l.b16 %v28
  %v280 = vunpack.c.l.b16 %v29
  %v281 = vunpack.c.l.b16 %v30
  %v282 = vunpack.c.l.b16 %v31
  %v283 = vunpack.c.l.b16 %v32
  %v284 = vunpack.c.l.b16 %v33
  %v285 = vunpack.c.l.b16 %v34
  %v286 = vunpack.c.l.b16 %v35
  %v287 = vunpack.c.l.b16 %v36
  %v288 = vunpack.c.l.b16 %v37
  %v289 = vunpack.c.l.b16 %v38
  %v290 = vunpack.c.l.b16 %v39
  %v291 = vunpack.c.l.b16 %v40
  %v292 = vunpack.c.l.b16 %v41
  %v293 = vunpack.c.l.b16 %v42
  %v294 = vunpack.c.l.b16 %v43
  %v295 = vunpack.c.l.b16 %v44
  %v296 = vunpack.c.l.b16 %v45
  %v297 = vunpack.c.l.b16 %v46
  %v298 = vunpack.c.l.b16 %v47
  %v299 = vunpack.c.l.b16 %v48
  %v300 = vunpack.c.l.b16 %v49
  %v301 = vunpack.c.l.b16 %v50
  %v302 = vunpack.c.l.b16 %v51
  %v303 = vunpack.c.l.b16 %v52
  %v304 = vunpack.c.l.b16 %v53
  %v305 = vunpack.c.l.b16 %v54
  %v306 = vunpack.c.l.b16 %v55
  %v307 = vunpack.c.l.b16 %v56
  %v308 = vunpack.c.l.b16 %v57
  %v309 = vunpack.c.l.b16 %v58
  %v310 = vunpack.c.l.b16 %v59
  %v311 = vunpack.c.l.b16 %v60
  %v312 = vunpack.c.l.b16 %v61
  %v313 = vunpack.c.l.b16 %v62
  %v314 = vunpack.c.l.b16 %v63
  %v315 = vunpack.c.l.b16 %v64
  %v316 = vunpack.c.l.b16 %v65
  %v317 = vunpack.c.l.b16 %v66
  %v318 = vunpack.c.l.b16 %v67
  %v319 = vunpack.c.l.b16 %v68
  %v320 = vunpack.c.l.b16 %v69
  %v321 = vunpack.c.l.b16 %v70
  %v322 = vunpack.c.l.b16 %v71
  %v323 = vunpack.c.l.b16 %v72
  %v324 = vunpack.c.l.b16 %v73
  %v325 = vunpack.c.l.b16 %v74
  %v326 = vunpack.c.l.b16 %v75
  %v327 = vunpack.c.l.b16 %v76
  %v328 = vunpack.c.l.b16 %v77
  %v329 = vunpack.c.l.b16 %v78
  %v330 = vunpack.c.l.b16 %v79
  %v331 = vunpack.c.l.b16 %v80
  %v332 = vunpack.c.l.b16 %v81
  %v333 = vunpack.c.l.b16 %v82
  %v334 = vunpack.c.l.b16 %v83
  %v335 = vunpack.c.l.b16 %v84
  %v336 = vunpack.c.l.b16 %v85
  %v337 = vunpack.c.l.b16 %v86
  %v338 = vunpack.c.l.b16 %v87
  %v339 = vunpack.c.l.b16 %v88
  %v340 = vunpack.c.l.b16 %v89
  %v341 = vunpack.c.l.b16 %v90
  %v342 = vunpack.c.l.b16 %v91
  %v343 = vunpack.c.l.b16 %v92
  %v344 = vunpack.c.l.b16 %v93
  %v345 = vunpack.c.l.b16 %v94
  %v346 = vunpack.c.l.b16 %v95
  %v347 = vunpack.c.l.b16 %v96
  %v348 = vunpack.c.l.b16 %v97
  %v349 = vunpack.c.l.b16 %v98
  %v350 = vunpack.c.l.b16 %v99
  %v351 = vunpack.c.l.b16 %v100
  %v352 = vunpack.c.l.b16 %v101
  %v353 = vunpack.c.l.b16 %v102
  %v354 = vunpack.c.l.b16 %v103
  %v355 = vunpack.c.l.b16 %v104
  %v356 = vunpack.c.l.b16 %v105
  %v357 = vunpack.c.l.b16 %v106
  %v358 = vunpack.c.l.b16 %v107
  %v359 = vunpack.c.l.b16 %v108
  %v360 = vunpack.c.l.b16 %v109
  %v361 = vunpack.c.l.b16 %v110
  %v362 = vunpack.c.l.b16 %v111
  %v363 = vunpack.c.l.b16 %v112
  %v364 = vunpack.c.l.b16 %v113
  %v365 = vunpack.c.l.b16 %v114
  %v366 = vunpack.c.l.b16 %v115
  %v367 = vunpack.c.l.b16 %v116
  %v368 = vunpack.c.l.b16 %v117
  %v369 = vunpack.c.l.b16 %v118
  %v370 = vunpack.c.l.b16 %v119
  %v371 = vunpack.c.l.b16 %v120
  %v372 = vunpack.c.l.b16 %v121
  %v373 = vunpack.c.l.b16 %v122
  %v374 = vunpack.c.l.b16 %v123
  %v375 = vunpack.c.l.b16 %v124
  %v376 = vunpack.c.l.b16 %v125
  %v377 = vunpack.c.l.b16 %v126
  %v378 = vunpack.c.l.b16 %v127
  %v379 = vunpack.c.l.b16 %v128
  %v380 = vunpack.c.l.b16 %v129
  %v381 = vunpack.c.l.b16 %v130
  %v382 = vunpack.c.l.b16 %v131
  %v383 = vunpack.c.l.b16 %v132
  %v384 = vunpack.c.l.b16 %v133
  %v385 = vpack.c.b16 %v278, %v277
  %v386 = vpack.c.b16 %v280, %v279
  %v387 = vpack.c.b16 %v282, %v281
  %v388 = vpack.c.b16 %v284, %v283
  %v389 = vpack.c.b16 %v286, %v285
  %v390 = vpack.c.b16 %v288, %v287
  %v391 = vpack.c.b16 %v290, %v289
  %v392 = vpack.c.b16 %v292, %v291
  %v393 = vpack.c.b16 %v294, %v293
  %v394 = vpack.c.b16 %v296, %v295
  %v395 = vpack.c.b16 %v298, %v297
  %v396 = vpack.c.b16 %v300, %v299
  %v397 = vpack.c.b16 %v302, %v301
  %v398 = vpack.c.b16 %v304, %v303
  %v399 = vpack.c.b16 %v306, %v305
  %v400 = vpack.c.b16 %v308, %v307
  %v401 = vpack.c.b16 %v310, %v309
  %v402 = vpack.c.b16 %v312, %v311
  %v403 = vpack.c.b16 %v314, %v313
  %v404 = vpack.c.b16 %v316, %v315
  %v405 = vpack.c.b16 %v318, %v317
  %v406 = vpack.c.b16 %v320, %v319
  %v407 = vpack.c.b16 %v322, %v321
  %v408 = vpack.c.b16 %v324, %v323
  %v409 = vpack.c.b16 %v326, %v325
  %v410 = vpack.c.b16 %v328, %v327
  %v411 = vpack.c.b16 %v330, %v329
  %v412 = vpack.c.b16 %v332, %v331
  %v413 = vpack.c.b16 %v334, %v333
  %v414 = vpack.c.b16 %v336, %v335
  %v415 = vpack.c.b16 %v338, %v337
  %v416 = vpack.c.b16 %v340, %v339
  %v417 = vpack.c.b16 %v342, %v341
  %v418 = vpack.c.b16 %v344, %v343
  %v419 = vpack.c.b16 %v346, %v345
  %v420 = vpack.c.b16 %v348, %v347
  %v421 = vpack.c.b16 %v350, %v349
  %v422 = vpack.c.b16 %v352, %v351
  %v423 = vpack.c.b16 %v354, %v353
  %v424 = vpack.c.b16 %v356, %v355
  %v425 = vpack.c.b16 %v358, %v357
  %v426 = vpack.c.b16 %v360, %v359
  %v427 = vpack.c.b16 %v362, %v361
  %v428 = vpack.c.b16 %v364, %v363
  %v429 = vpack.c.b16 %v366, %v365
  %v430 = vpack.c.b16 %v368, %v367
  %v431 = vpack.c.b16 %v370, %v369
  %v432 = vpack.c.b16 %v372, %v371
  %v433 = vpack.c.b16 %v374, %v373
  %v434 = vpack.c.b16 %v376, %v375
  %v435 = vpack.c.b16 %v378, %v377
  %v436 = vpack.c.b16 %v380, %v379
  %v437 = vpack.c.b16 %v382, %v381
  %v438 = vpack.c.b16 %v384, %v383
  %vm493 = vcmask 785408
  %v495 = vsel %vm493, %v162, 0
  %497 = vmatpush.bf16.msra.mxu0 %v392
  %498 = vmatpush.bf16.msra.mxu0 %v391
  %499 = vmatpush.bf16.msra.mxu0 %v390
  %500 = vmatpush.bf16.msra.mxu0 %v389
  %501 = vmatpush.bf16.msra.mxu0 %v388
  %502 = vmatpush.bf16.msra.mxu0 %v387
  %503 = vmatpush.bf16.msra.mxu0 %v386
  %504 = vmatpush.bf16.msra.mxu0 %v385
  %505 = vmatmul.bf16.gmra.mxu0 %v156
  %v506 = vpop.f32.mrf.mxu0
  %v507 = vadd.f32 0.0, %v506
  %v508 = vpop.f32.mrf.mxu0
  %v509 = vadd.f32 0.0, %v508
  %510 = vdwg.mxu0
  %511 = vmatpush.bf16.msra.mxu0 %v400
  %512 = vmatpush.bf16.msra.mxu0 %v399
  %513 = vmatpush.bf16.msra.mxu0 %v398
  %514 = vmatpush.bf16.msra.mxu0 %v397
  %515 = vmatpush.bf16.msra.mxu0 %v396
  %516 = vmatpush.bf16.msra.mxu0 %v395
  %517 = vmatpush.bf16.msra.mxu0 %v394
  %518 = vmatpush.bf16.msra.mxu0 %v393
  %519 = vmatmul.bf16.gmra.mxu0 %v157
  %v520 = vpop.f32.mrf.mxu0
  %v521 = vadd.f32 %v507, %v520
  %v522 = vpop.f32.mrf.mxu0
  %v523 = vadd.f32 %v509, %v522
  %524 = vdwg.mxu0
  %525 = vmatpush.bf16.msra.mxu0 %v408
  %526 = vmatpush.bf16.msra.mxu0 %v407
  %527 = vmatpush.bf16.msra.mxu0 %v406
  %528 = vmatpush.bf16.msra.mxu0 %v405
  %529 = vmatpush.bf16.msra.mxu0 %v404
  %530 = vmatpush.bf16.msra.mxu0 %v403
  %531 = vmatpush.bf16.msra.mxu0 %v402
  %532 = vmatpush.bf16.msra.mxu0 %v401
  %533 = vmatmul.bf16.gmra.mxu0 %v158
  %v534 = vpop.f32.mrf.mxu0
  %v535 = vadd.f32 %v521, %v534
  %v536 = vpop.f32.mrf.mxu0
  %v537 = vadd.f32 %v523, %v536
  %538 = vdwg.mxu0
  %539 = vmatpush.bf16.msra.mxu0 %v416
  %540 = vmatpush.bf16.msra.mxu0 %v415
  %541 = vmatpush.bf16.msra.mxu0 %v414
  %542 = vmatpush.bf16.msra.mxu0 %v413
  %543 = vmatpush.bf16.msra.mxu0 %v412
  %544 = vmatpush.bf16.msra.mxu0 %v411
  %545 = vmatpush.bf16.msra.mxu0 %v410
  %546 = vmatpush.bf16.msra.mxu0 %v409
  %547 = vmatmul.bf16.gmra.mxu0 %v159
  %v548 = vpop.f32.mrf.mxu0
  %v549 = vadd.f32 %v535, %v548
  %v550 = vpop.f32.mrf.mxu0
  %v551 = vadd.f32 %v537, %v550
  %552 = vdwg.mxu0
  %553 = vmatpush.bf16.msra.mxu0 %v424
  %554 = vmatpush.bf16.msra.mxu0 %v423
  %555 = vmatpush.bf16.msra.mxu0 %v422
  %556 = vmatpush.bf16.msra.mxu0 %v421
  %557 = vmatpush.bf16.msra.mxu0 %v420
  %558 = vmatpush.bf16.msra.mxu0 %v419
  %559 = vmatpush.bf16.msra.mxu0 %v418
  %560 = vmatpush.bf16.msra.mxu0 %v417
  %561 = vmatmul.bf16.gmra.mxu0 %v160
  %v562 = vpop.f32.mrf.mxu0
  %v563 = vadd.f32 %v549, %v562
  %v564 = vpop.f32.mrf.mxu0
  %v565 = vadd.f32 %v551, %v564
  %566 = vdwg.mxu0
  %567 = vmatpush.bf16.msra.mxu0 %v432
  %568 = vmatpush.bf16.msra.mxu0 %v431
  %569 = vmatpush.bf16.msra.mxu0 %v430
  %570 = vmatpush.bf16.msra.mxu0 %v429
  %571 = vmatpush.bf16.msra.mxu0 %v428
  %572 = vmatpush.bf16.msra.mxu0 %v427
  %573 = vmatpush.bf16.msra.mxu0 %v426
  %574 = vmatpush.bf16.msra.mxu0 %v425
  %575 = vmatmul.bf16.gmra.mxu0 %v161
  %v576 = vpop.f32.mrf.mxu0
  %v577 = vadd.f32 %v563, %v576
  %v578 = vpop.f32.mrf.mxu0
  %v579 = vadd.f32 %v565, %v578
  %580 = vdwg.mxu0
  %581 = vmatpush.bf16.msra.mxu0 0
  %582 = vmatpush.bf16.msra.mxu0 0
  %583 = vmatpush.bf16.msra.mxu0 %v438
  %584 = vmatpush.bf16.msra.mxu0 %v437
  %585 = vmatpush.bf16.msra.mxu0 %v436
  %586 = vmatpush.bf16.msra.mxu0 %v435
  %587 = vmatpush.bf16.msra.mxu0 %v434
  %588 = vmatpush.bf16.msra.mxu0 %v433
  %589 = vmatmul.bf16.gmra.mxu0 %v495
  %v590 = vpop.f32.mrf.mxu0
  %v591 = vadd.f32 %v577, %v590
  %v592 = vpop.f32.mrf.mxu0
  %v593 = vadd.f32 %v579, %v592
  %594 = vdwg.mxu0
  %v595 = vld [vmem:[%s2] sm:$0x1]
  %v596 = vperm.slane %v595, 0
  %v597 = vmul.f32 %v591, %v596
  %v598 = vmul.f32 %v593, %v596
  %v599 = vld [vmem:[%s2 + $0x1] sm:$0x1]
  %v600 = vperm.slane %v599, 0
  %v601 = vadd.f32 %v597, %v600
  %v602 = vadd.f32 %v598, %v600
  %v603 = vld [vmem:[%s3] sm:$0xf]
  %v604 = vld [vmem:[%s3 + $0x4] sm:$0xf]
  %v605 = vunpack.c.l.bf16 %v603
  %v606 = vunpack.c.l.bf16 %v604
  %v607 = vadd.f32 %v601, %v605
  %v608 = vadd.f32 %v602, %v606
  %v609 = vmax.f32 %v607, 0.0
  %v610 = vmax.f32 %v608, 0.0
  %v611 = vpack.c.bf16 %v609, %v609
  %v612 = vpack.c.bf16 %v610, %v610
  %613 = vst [vmem:[%s4] sm:$0xf] %v611
  %614 = vst [vmem:[%s4 + $0x4] sm:$0xf] %v612
  // Predicated region
  $region18: #{restnet18_forward.32} parent=0 // pred_check
    _
  $region19: #{restnet18_forward.32} parent=0 // pred_check_branch
    %616 = sbr.rel (0) target = $region21
  $region20: #{restnet18_forward.32} parent=0 // pred_region
    _
  $region21: #{restnet18_forward.32} parent=0 // pred_fallthru
    _
  // Predicated region
  $region22: #{restnet18_forward.32} parent=0 // pred_check
    _
  $region23: #{restnet18_forward.32} parent=0 // pred_check_branch
    %618 = sbr.rel (0) target = $region25
  $region24: #{restnet18_forward.32} parent=0 // pred_region
    _
  $region25: #{restnet18_forward.32} parent=0 // pred_fallthru
    _

// kernel: restnet18_forward.30
$region0: #{restnet18_forward.30}
  #allocation0 [shape = 'u32[]', space=smem, size = 0x4, offset = 0x4, fixed_abs, tag = 'smem constant byte address 0x4 - core index']
  #allocation1 [shape = 'u32[72,128]{1,0:T(1,128)}', space=vmem, size = 0x9000, scoped, tag = 'internal scratch']
  %s0 = inlined_call_operand.vmem [shape: bf16[32,864], index: 0, kind: input, shape index: {}]
  %s1 = inlined_call_operand.vmem [shape: bf16[864,128], index: 1, kind: input, shape index: {}]
  %s2 = inlined_call_operand.vmem [shape: f32[2,128], index: 2, kind: input, shape index: {}]
  %s3 = inlined_call_operand.vmem [shape: bf16[32,128], index: 3, kind: input, shape index: {}]
  %s4 = inlined_call_operand.vmem [shape: bf16[32,128], index: 4, kind: output, shape index: {}]
  %s5 = sld [smem:[#allocation0]]
  $region49: #{restnet18_forward.30} parent=0
    _
  %s7 = ssub.s32 1, %s5
  %s8 = scalar_select 0, %s7, %s5
  loop: start=0, step=1, limit=4
  $region2: #{restnet18_forward.30} parent=0 // loop_pre_header
    _
  $region3: #{restnet18_forward.30} parent=0 // loop_header
    %s10 = sphi 0, %s14
    %p11 = scmp.ge.s32.totalorder %s10, 4
    %s20 = sphi 0, %s22
    %s23 = sphi 0, %s20
    %s24 = sphi 0, %s23
    %s40 = sphi 0, %s24
    %s44 = sphi 0, %s44
    %s46 = sphi 0, %s44
    %s47 = sphi 0, %s46
    %s61 = sphi 0, %s47
    %s65 = sphi 0, %s65
    %s67 = sphi 0, %s65
    %s68 = sphi 0, %s67
    %s82 = sphi 0, %s68
    %s88 = sphi 0, %s90
    %s91 = sphi 0, %s88
    %s92 = sphi 0, %s91
    %s108 = sphi 0, %s92
    %s114 = sphi 0, %s116
    %s117 = sphi 0, %s114
    %s118 = sphi 0, %s117
    %s134 = sphi 0, %s118
  $region4: #{restnet18_forward.30} parent=0 // loop_header_branch
    %13 = sbr.rel (%p11) target = $region8
  $region5: #{restnet18_forward.30} parent=0 // loop_body
    %s15 = ssub.s32 %s10, 1
    %s16 = ssub.s32 %s10, 2
    %s17 = sadd.s32 %s10, 1
    %s18 = ssub.s32 %s10, %s17
    %p19 = scmp.eq.s32.totalorder %s18, 0
    %s21 = sadd.s32 %s20, 1
    %s22 = scalar_select %p19, %s20, %s21
    %p25 = pneg %p19
    %p26 = scmp.eq.s32.totalorder %s10, 1
    %p27 = por %p25, %p26
    %p28 = scmp.ne.s32.totalorder %s20, %s23
    %p29 = scmp.eq.s32.totalorder %s10, 0
    %p30 = por %p28, %p29
    %p31 = scmp.ne.s32.totalorder %s20, %s23
    %p32 = scmp.eq.s32.totalorder %s15, 1
    %p33 = por %p31, %p32
    %p34 = scmp.ne.s32.totalorder %s23, %s24
    %p35 = scmp.eq.s32.totalorder %s15, 0
    %p36 = por %p34, %p35
    %p37 = scmp.ne.s32.totalorder %s23, %s24
    %p38 = scmp.eq.s32.totalorder %s16, 1
    %p39 = por %p37, %p38
    %p41 = scmp.ne.s32.totalorder %s24, %s40
    %p42 = scmp.eq.s32.totalorder %s16, 0
    %p43 = por %p41, %p42
    %s45 = sadd.s32 %s44, 1
    %p48 = scmp.eq.s32.totalorder %s10, 1
    %p49 = scmp.ne.s32.totalorder %s44, %s46
    %p50 = scmp.eq.s32.totalorder %s10, 0
    %p51 = por %p49, %p50
    %p52 = scmp.ne.s32.totalorder %s44, %s46
    %p53 = scmp.eq.s32.totalorder %s15, 1
    %p54 = por %p52, %p53
    %p55 = scmp.ne.s32.totalorder %s46, %s47
    %p56 = scmp.eq.s32.totalorder %s15, 0
    %p57 = por %p55, %p56
    %p58 = scmp.ne.s32.totalorder %s46, %s47
    %p59 = scmp.eq.s32.totalorder %s16, 1
    %p60 = por %p58, %p59
    %p62 = scmp.ne.s32.totalorder %s47, %s61
    %p63 = scmp.eq.s32.totalorder %s16, 0
    %p64 = por %p62, %p63
    %s66 = sadd.s32 %s65, 1
    %p69 = scmp.eq.s32.totalorder %s10, 1
    %p70 = scmp.ne.s32.totalorder %s65, %s67
    %p71 = scmp.eq.s32.totalorder %s10, 0
    %p72 = por %p70, %p71
    %p73 = scmp.ne.s32.totalorder %s65, %s67
    %p74 = scmp.eq.s32.totalorder %s15, 1
    %p75 = por %p73, %p74
    %p76 = scmp.ne.s32.totalorder %s67, %s68
    %p77 = scmp.eq.s32.totalorder %s15, 0
    %p78 = por %p76, %p77
    %p79 = scmp.ne.s32.totalorder %s67, %s68
    %p80 = scmp.eq.s32.totalorder %s16, 1
    %p81 = por %p79, %p80
    %p83 = scmp.ne.s32.totalorder %s68, %s82
    %p84 = scmp.eq.s32.totalorder %s16, 0
    %p85 = por %p83, %p84
    %s86 = ssub.s32 %s10, %s17
    %p87 = scmp.eq.s32.totalorder %s86, 0
    %s89 = sadd.s32 %s88, 1
    %s90 = scalar_select %p87, %s88, %s89
    %p93 = pneg %p87
    %p94 = scmp.eq.s32.totalorder %s10, 1
    %p95 = por %p93, %p94
    %p96 = scmp.ne.s32.totalorder %s88, %s91
    %p97 = scmp.eq.s32.totalorder %s10, 0
    %p98 = por %p96, %p97
    %p99 = scmp.ne.s32.totalorder %s88, %s91
    %p100 = scmp.eq.s32.totalorder %s15, 1
    %p101 = por %p99, %p100
    %p102 = scmp.ne.s32.totalorder %s91, %s92
    %p103 = scmp.eq.s32.totalorder %s15, 0
    %p104 = por %p102, %p103
    %p105 = scmp.ne.s32.totalorder %s91, %s92
    %p106 = scmp.eq.s32.totalorder %s16, 1
    %p107 = por %p105, %p106
    %p109 = scmp.ne.s32.totalorder %s92, %s108
    %p110 = scmp.eq.s32.totalorder %s16, 0
    %p111 = por %p109, %p110
    %s112 = ssub.s32 %s10, %s17
    %p113 = scmp.eq.s32.totalorder %s112, 0
    %s115 = sadd.s32 %s114, 1
    %s116 = scalar_select %p113, %s114, %s115
    %p119 = pneg %p113
    %p120 = scmp.eq.s32.totalorder %s10, 1
    %p121 = por %p119, %p120
    %p122 = scmp.ne.s32.totalorder %s114, %s117
    %p123 = scmp.eq.s32.totalorder %s10, 0
    %p124 = por %p122, %p123
    %p125 = scmp.ne.s32.totalorder %s114, %s117
    %p126 = scmp.eq.s32.totalorder %s15, 1
    %p127 = por %p125, %p126
    %p128 = scmp.ne.s32.totalorder %s117, %s118
    %p129 = scmp.eq.s32.totalorder %s15, 0
    %p130 = por %p128, %p129
    %p131 = scmp.ne.s32.totalorder %s117, %s118
    %p132 = scmp.eq.s32.totalorder %s16, 1
    %p133 = por %p131, %p132
    %p135 = scmp.ne.s32.totalorder %s118, %s134
    %p136 = scmp.eq.s32.totalorder %s16, 0
    %p137 = por %p135, %p136
    %p138 = scmp.le.s32.totalorder 1, %s10
    %p139 = scmp.lt.s32.totalorder %s10, 3
    %p140 = pnand %p138, %p139
    %p141 = pneg %p140
    // Predicated region
    $region9: #{restnet18_forward.30} parent=5 // pred_check
      _
    $region10: #{restnet18_forward.30} parent=5 // pred_check_branch
      %143 = sbr.rel (%p140) target = $region12
    $region11: #{restnet18_forward.30} parent=5 // pred_region
      %s144 = ssub.s32 %s10, 1
      // Predicated region
      $region13: #{restnet18_forward.30} parent=11 // pred_check
        %p145 = pneg %p57
      $region14: #{restnet18_forward.30} parent=11 // pred_check_branch
        %147 = sbr.rel (%p145) target = $region16
      $region15: #{restnet18_forward.30} parent=11 // pred_region
        _
      $region16: #{restnet18_forward.30} parent=11 // pred_fallthru
        _
      // Predicated region
      $region17: #{restnet18_forward.30} parent=11 // pred_check
        %p148 = pneg %p78
      $region18: #{restnet18_forward.30} parent=11 // pred_check_branch
        %150 = sbr.rel (%p148) target = $region20
      $region19: #{restnet18_forward.30} parent=11 // pred_region
        _
      $region20: #{restnet18_forward.30} parent=11 // pred_fallthru
        _
    $region12: #{restnet18_forward.30} parent=5 // pred_fallthru
      _
    %p151 = scmp.lt.s32.totalorder %s10, 2
    // Predicated region
    $region21: #{restnet18_forward.30} parent=5 // pred_check
      %p152 = pneg %p151
    $region22: #{restnet18_forward.30} parent=5 // pred_check_branch
      %154 = sbr.rel (%p152) target = $region24
    $region23: #{restnet18_forward.30} parent=5 // pred_region
      // Predicated region
      $region25: #{restnet18_forward.30} parent=23 // pred_check
        %p155 = pneg %p30
      $region26: #{restnet18_forward.30} parent=23 // pred_check_branch
        %157 = sbr.rel (%p155) target = $region28
      $region27: #{restnet18_forward.30} parent=23 // pred_region
        %s158 = smul.u32 2, %s10
        %p159 = scmp.lt.s32.totalorder %s158, 3
        %s160 = scalar_select %p159, %s158, 3
        %s161 = smul.addr %s160, 7
        %s162 = smul.addr %s161, 4
        %s163 = scalar_lea.vmem %s0, %s162
        %s164 = smul.u32 2, %s10
      $region28: #{restnet18_forward.30} parent=23 // pred_fallthru
        _
      // Predicated region
      $region29: #{restnet18_forward.30} parent=23 // pred_check
        %p165 = pneg %p98
      $region30: #{restnet18_forward.30} parent=23 // pred_check_branch
        %167 = sbr.rel (%p165) target = $region32
      $region31: #{restnet18_forward.30} parent=23 // pred_region
        %s168 = smul.u32 2, %s10
        %p169 = scmp.lt.s32.totalorder %s168, 3
        %s170 = scalar_select %p169, %s168, 3
        %s171 = smul.addr %s170, 4
        %s172 = scalar_lea.vmem %s3, %s171
        %s173 = smul.u32 2, %s10
      $region32: #{restnet18_forward.30} parent=23 // pred_fallthru
        _
    $region24: #{restnet18_forward.30} parent=5 // pred_fallthru
      _
    %p174 = scmp.le.s32.totalorder 1, %s10
    %p175 = scmp.lt.s32.totalorder %s10, 3
    %p176 = pnand %p174, %p175
    %p177 = pneg %p176
    // Predicated region
    $region33: #{restnet18_forward.30} parent=5 // pred_check
      _
    $region34: #{restnet18_forward.30} parent=5 // pred_check_branch
      %179 = sbr.rel (%p176) target = $region36
    $region35: #{restnet18_forward.30} parent=5 // pred_region
      %s180 = ssub.s32 %s10, 1
      %s181 = smul.u32 2, %s15
      %p182 = scmp.lt.s32.totalorder %s181, 3
      %s183 = scalar_select %p182, %s181, 3
      %s184 = smul.addr %s183, 7
      %s185 = smul.addr %s184, 4
      %s186 = scalar_lea.vmem %s0, %s185
      %p187 = pneg %p36
      %p188 = pneg %p33
      %p189 = pneg %p57
      %p190 = pneg %p54
      %p191 = pneg %p78
      %p192 = pneg %p75
      %s193 = smul.u32 2, %s15
      %p194 = scmp.lt.s32.totalorder %s193, 3
      %s195 = scalar_select %p194, %s193, 3
      %s196 = smul.addr %s195, 4
      %s197 = scalar_lea.vmem %s3, %s196
      %p198 = pneg %p104
      %p199 = pneg %p101
      %p200 = pneg %p130
      %p201 = pneg %p127
      %s202 = smul.u32 2, %s15
      %p203 = scmp.lt.s32.totalorder %s202, 3
      %s204 = scalar_select %p203, %s202, 3
      %s205 = smul.addr %s204, 4
      %s206 = scalar_lea.vmem %s4, %s205
      %s207 = smul.u32 2, %s15
      %p208 = scmp.lt.s32.totalorder %s207, 3
      %s209 = scalar_select %p208, %s207, 3
      %s210 = smul.addr %s209, 7
      %s211 = smul.addr %s210, 4
      %s212 = scalar_lea.vmem %s0, %s211
      %s213 = smul.u32 2, %s15
      %s214 = smul.u32 2, %s15
      %p215 = scmp.lt.s32.totalorder %s214, 3
      %s216 = scalar_select %p215, %s214, 3
      %s217 = smul.addr %s216, 4
      %s218 = scalar_lea.vmem %s3, %s217
      %s219 = smul.u32 2, %s15
      %s220 = smul.u32 2, %s15
      %p221 = scmp.lt.s32.totalorder %s220, 3
      %s222 = scalar_select %p221, %s220, 3
      %s223 = smul.addr %s222, 4
      %s224 = scalar_lea.vmem %s4, %s223
      %s225 = smul.u32 2, %s15
      %v227 = vld [vmem:[%s212] sm:$0xff]
      %v228 = vld [vmem:[%s212 + $0x8] sm:$0xff]
      %v229 = vld [vmem:[%s212 + $0x10] sm:$0xff]
      %v230 = vld [vmem:[%s212 + $0x18] sm:$0xf]
      %v231 = vld [vmem:[%s212 + $0x1c] sm:$0xff]
      %v232 = vld [vmem:[%s212 + $0x24] sm:$0xff]
      %v233 = vld [vmem:[%s212 + $0x2c] sm:$0xff]
      %v234 = vld [vmem:[%s212 + $0x34] sm:$0xf]
      %v235 = vld [vmem:[%s1] sm:$0xf]
      %v236 = vld [vmem:[%s1 + $0x4] sm:$0xf]
      %v237 = vld [vmem:[%s1 + $0x8] sm:$0xf]
      %v238 = vld [vmem:[%s1 + $0xc] sm:$0xf]
      %v239 = vld [vmem:[%s1 + $0x10] sm:$0xf]
      %v240 = vld [vmem:[%s1 + $0x14] sm:$0xf]
      %v241 = vld [vmem:[%s1 + $0x18] sm:$0xf]
      %v242 = vld [vmem:[%s1 + $0x1c] sm:$0xf]
      %v243 = vld [vmem:[%s1 + $0x20] sm:$0xf]
      %v244 = vld [vmem:[%s1 + $0x24] sm:$0xf]
      %v245 = vld [vmem:[%s1 + $0x28] sm:$0xf]
      %v246 = vld [vmem:[%s1 + $0x2c] sm:$0xf]
      %v247 = vld [vmem:[%s1 + $0x30] sm:$0xf]
      %v248 = vld [vmem:[%s1 + $0x34] sm:$0xf]
      %v249 = vld [vmem:[%s1 + $0x38] sm:$0xf]
      %v250 = vld [vmem:[%s1 + $0x3c] sm:$0xf]
      %v251 = vld [vmem:[%s1 + $0x40] sm:$0xf]
      %v252 = vld [vmem:[%s1 + $0x44] sm:$0xf]
      %v253 = vld [vmem:[%s1 + $0x48] sm:$0xf]
      %v254 = vld [vmem:[%s1 + $0x4c] sm:$0xf]
      %v255 = vld [vmem:[%s1 + $0x50] sm:$0xf]
      %v256 = vld [vmem:[%s1 + $0x54] sm:$0xf]
      %v257 = vld [vmem:[%s1 + $0x58] sm:$0xf]
      %v258 = vld [vmem:[%s1 + $0x5c] sm:$0xf]
      %v259 = vld [vmem:[%s1 + $0x60] sm:$0xf]
      %v260 = vld [vmem:[%s1 + $0x64] sm:$0xf]
      %v261 = vld [vmem:[%s1 + $0x68] sm:$0xf]
      %v262 = vld [vmem:[%s1 + $0x6c] sm:$0xf]
      %v263 = vld [vmem:[%s1 + $0x70] sm:$0xf]
      %v264 = vld [vmem:[%s1 + $0x74] sm:$0xf]
      %v265 = vld [vmem:[%s1 + $0x78] sm:$0xf]
      %v266 = vld [vmem:[%s1 + $0x7c] sm:$0xf]
      %v267 = vld [vmem:[%s1 + $0x80] sm:$0xf]
      %v268 = vld [vmem:[%s1 + $0x84] sm:$0xf]
      %v269 = vld [vmem:[%s1 + $0x88] sm:$0xf]
      %v270 = vld [vmem:[%s1 + $0x8c] sm:$0xf]
      %v271 = vld [vmem:[%s1 + $0x90] sm:$0xf]
      %v272 = vld [vmem:[%s1 + $0x94] sm:$0xf]
      %v273 = vld [vmem:[%s1 + $0x98] sm:$0xf]
      %v274 = vld [vmem:[%s1 + $0x9c] sm:$0xf]
      %v275 = vld [vmem:[%s1 + $0xa0] sm:$0xf]
      %v276 = vld [vmem:[%s1 + $0xa4] sm:$0xf]
      %v277 = vld [vmem:[%s1 + $0xa8] sm:$0xf]
      %v278 = vld [vmem:[%s1 + $0xac] sm:$0xf]
      %v279 = vld [vmem:[%s1 + $0xb0] sm:$0xf]
      %v280 = vld [vmem:[%s1 + $0xb4] sm:$0xf]
      %v281 = vld [vmem:[%s1 + $0xb8] sm:$0xf]
      %v282 = vld [vmem:[%s1 + $0xbc] sm:$0xf]
      %v283 = vld [vmem:[%s1 + $0xc0] sm:$0xf]
      %v284 = vld [vmem:[%s1 + $0xc4] sm:$0xf]
      %v285 = vld [vmem:[%s1 + $0xc8] sm:$0xf]
      %v286 = vld [vmem:[%s1 + $0xcc] sm:$0xf]
      %v287 = vld [vmem:[%s1 + $0xd0] sm:$0xf]
      %v288 = vld [vmem:[%s1 + $0xd4] sm:$0xf]
      %v289 = vld [vmem:[%s1 + $0xd8] sm:$0xf]
      %v290 = vld [vmem:[%s1 + $0xdc] sm:$0xf]
      %v291 = vld [vmem:[%s1 + $0xe0] sm:$0xf]
      %v292 = vld [vmem:[%s1 + $0xe4] sm:$0xf]
      %v293 = vld [vmem:[%s1 + $0xe8] sm:$0xf]
      %v294 = vld [vmem:[%s1 + $0xec] sm:$0xf]
      %v295 = vld [vmem:[%s1 + $0xf0] sm:$0xf]
      %v296 = vld [vmem:[%s1 + $0xf4] sm:$0xf]
      %v297 = vld [vmem:[%s1 + $0xf8] sm:$0xf]
      %v298 = vld [vmem:[%s1 + $0xfc] sm:$0xf]
      %v299 = vld [vmem:[%s1 + $0x100] sm:$0xf]
      %v300 = vld [vmem:[%s1 + $0x104] sm:$0xf]
      %v301 = vld [vmem:[%s1 + $0x108] sm:$0xf]
      %v302 = vld [vmem:[%s1 + $0x10c] sm:$0xf]
      %v303 = vld [vmem:[%s1 + $0x110] sm:$0xf]
      %v304 = vld [vmem:[%s1 + $0x114] sm:$0xf]
      %v305 = vld [vmem:[%s1 + $0x118] sm:$0xf]
      %v306 = vld [vmem:[%s1 + $0x11c] sm:$0xf]
      %v307 = vld [vmem:[%s1 + $0x120] sm:$0xf]
      %v308 = vld [vmem:[%s1 + $0x124] sm:$0xf]
      %v309 = vld [vmem:[%s1 + $0x128] sm:$0xf]
      %v310 = vld [vmem:[%s1 + $0x12c] sm:$0xf]
      %v311 = vld [vmem:[%s1 + $0x130] sm:$0xf]
      %v312 = vld [vmem:[%s1 + $0x134] sm:$0xf]
      %v313 = vld [vmem:[%s1 + $0x138] sm:$0xf]
      %v314 = vld [vmem:[%s1 + $0x13c] sm:$0xf]
      %v315 = vld [vmem:[%s1 + $0x140] sm:$0xf]
      %v316 = vld [vmem:[%s1 + $0x144] sm:$0xf]
      %v317 = vld [vmem:[%s1 + $0x148] sm:$0xf]
      %v318 = vld [vmem:[%s1 + $0x14c] sm:$0xf]
      %v319 = vld [vmem:[%s1 + $0x150] sm:$0xf]
      %v320 = vld [vmem:[%s1 + $0x154] sm:$0xf]
      %v321 = vld [vmem:[%s1 + $0x158] sm:$0xf]
      %v322 = vld [vmem:[%s1 + $0x15c] sm:$0xf]
      %v323 = vld [vmem:[%s1 + $0x160] sm:$0xf]
      %v324 = vld [vmem:[%s1 + $0x164] sm:$0xf]
      %v325 = vld [vmem:[%s1 + $0x168] sm:$0xf]
      %v326 = vld [vmem:[%s1 + $0x16c] sm:$0xf]
      %v327 = vld [vmem:[%s1 + $0x170] sm:$0xf]
      %v328 = vld [vmem:[%s1 + $0x174] sm:$0xf]
      %v329 = vld [vmem:[%s1 + $0x178] sm:$0xf]
      %v330 = vld [vmem:[%s1 + $0x17c] sm:$0xf]
      %v331 = vld [vmem:[%s1 + $0x180] sm:$0xf]
      %v332 = vld [vmem:[%s1 + $0x184] sm:$0xf]
      %v333 = vld [vmem:[%s1 + $0x188] sm:$0xf]
      %v334 = vld [vmem:[%s1 + $0x18c] sm:$0xf]
      %v335 = vld [vmem:[%s1 + $0x190] sm:$0xf]
      %v336 = vld [vmem:[%s1 + $0x194] sm:$0xf]
      %v337 = vld [vmem:[%s1 + $0x198] sm:$0xf]
      %v338 = vld [vmem:[%s1 + $0x19c] sm:$0xf]
      %v339 = vld [vmem:[%s1 + $0x1a0] sm:$0xf]
      %v340 = vld [vmem:[%s1 + $0x1a4] sm:$0xf]
      %v341 = vld [vmem:[%s1 + $0x1a8] sm:$0xf]
      %v342 = vld [vmem:[%s1 + $0x1ac] sm:$0xf]
      %v351 = vunpack.c.l.b16 %v227
      %v352 = vunpack.c.h.b16 %v227
      %v353 = vunpack.c.l.b16 %v228
      %v354 = vunpack.c.h.b16 %v228
      %v355 = vunpack.c.l.b16 %v229
      %v356 = vunpack.c.h.b16 %v229
      %v357 = vunpack.c.l.b16 %v230
      %v358 = vunpack.c.l.b16 %v231
      %v359 = vunpack.c.h.b16 %v231
      %v360 = vunpack.c.l.b16 %v232
      %v361 = vunpack.c.h.b16 %v232
      %v362 = vunpack.c.l.b16 %v233
      %v363 = vunpack.c.h.b16 %v233
      %v364 = vunpack.c.l.b16 %v234
      %v365 = vpack.c.b16 %v358, %v351
      %v366 = vpack.c.b16 %v359, %v352
      %v367 = vpack.c.b16 %v360, %v353
      %v368 = vpack.c.b16 %v361, %v354
      %v369 = vpack.c.b16 %v362, %v355
      %v370 = vpack.c.b16 %v363, %v356
      %v371 = vpack.c.b16 %v364, %v357
      %v486 = vunpack.c.l.b16 %v235
      %v487 = vunpack.c.l.b16 %v236
      %v488 = vunpack.c.l.b16 %v237
      %v489 = vunpack.c.l.b16 %v238
      %v490 = vunpack.c.l.b16 %v239
      %v491 = vunpack.c.l.b16 %v240
      %v492 = vunpack.c.l.b16 %v241
      %v493 = vunpack.c.l.b16 %v242
      %v494 = vunpack.c.l.b16 %v243
      %v495 = vunpack.c.l.b16 %v244
      %v496 = vunpack.c.l.b16 %v245
      %v497 = vunpack.c.l.b16 %v246
      %v498 = vunpack.c.l.b16 %v247
      %v499 = vunpack.c.l.b16 %v248
      %v500 = vunpack.c.l.b16 %v249
      %v501 = vunpack.c.l.b16 %v250
      %v502 = vunpack.c.l.b16 %v251
      %v503 = vunpack.c.l.b16 %v252
      %v504 = vunpack.c.l.b16 %v253
      %v505 = vunpack.c.l.b16 %v254
      %v506 = vunpack.c.l.b16 %v255
      %v507 = vunpack.c.l.b16 %v256
      %v508 = vunpack.c.l.b16 %v257
      %v509 = vunpack.c.l.b16 %v258
      %v510 = vunpack.c.l.b16 %v259
      %v511 = vunpack.c.l.b16 %v260
      %v512 = vunpack.c.l.b16 %v261
      %v513 = vunpack.c.l.b16 %v262
      %v514 = vunpack.c.l.b16 %v263
      %v515 = vunpack.c.l.b16 %v264
      %v516 = vunpack.c.l.b16 %v265
      %v517 = vunpack.c.l.b16 %v266
      %v518 = vunpack.c.l.b16 %v267
      %v519 = vunpack.c.l.b16 %v268
      %v520 = vunpack.c.l.b16 %v269
      %v521 = vunpack.c.l.b16 %v270
      %v522 = vunpack.c.l.b16 %v271
      %v523 = vunpack.c.l.b16 %v272
      %v524 = vunpack.c.l.b16 %v273
      %v525 = vunpack.c.l.b16 %v274
      %v526 = vunpack.c.l.b16 %v275
      %v527 = vunpack.c.l.b16 %v276
      %v528 = vunpack.c.l.b16 %v277
      %v529 = vunpack.c.l.b16 %v278
      %v530 = vunpack.c.l.b16 %v279
      %v531 = vunpack.c.l.b16 %v280
      %v532 = vunpack.c.l.b16 %v281
      %v533 = vunpack.c.l.b16 %v282
      %v534 = vunpack.c.l.b16 %v283
      %v535 = vunpack.c.l.b16 %v284
      %v536 = vunpack.c.l.b16 %v285
      %v537 = vunpack.c.l.b16 %v286
      %v538 = vunpack.c.l.b16 %v287
      %v539 = vunpack.c.l.b16 %v288
      %v540 = vunpack.c.l.b16 %v289
      %v541 = vunpack.c.l.b16 %v290
      %v542 = vunpack.c.l.b16 %v291
      %v543 = vunpack.c.l.b16 %v292
      %v544 = vunpack.c.l.b16 %v293
      %v545 = vunpack.c.l.b16 %v294
      %v546 = vunpack.c.l.b16 %v295
      %v547 = vunpack.c.l.b16 %v296
      %v548 = vunpack.c.l.b16 %v297
      %v549 = vunpack.c.l.b16 %v298
      %v550 = vunpack.c.l.b16 %v299
      %v551 = vunpack.c.l.b16 %v300
      %v552 = vunpack.c.l.b16 %v301
      %v553 = vunpack.c.l.b16 %v302
      %v554 = vunpack.c.l.b16 %v303
      %v555 = vunpack.c.l.b16 %v304
      %v556 = vunpack.c.l.b16 %v305
      %v557 = vunpack.c.l.b16 %v306
      %v558 = vunpack.c.l.b16 %v307
      %v559 = vunpack.c.l.b16 %v308
      %v560 = vunpack.c.l.b16 %v309
      %v561 = vunpack.c.l.b16 %v310
      %v562 = vunpack.c.l.b16 %v311
      %v563 = vunpack.c.l.b16 %v312
      %v564 = vunpack.c.l.b16 %v313
      %v565 = vunpack.c.l.b16 %v314
      %v566 = vunpack.c.l.b16 %v315
      %v567 = vunpack.c.l.b16 %v316
      %v568 = vunpack.c.l.b16 %v317
      %v569 = vunpack.c.l.b16 %v318
      %v570 = vunpack.c.l.b16 %v319
      %v571 = vunpack.c.l.b16 %v320
      %v572 = vunpack.c.l.b16 %v321
      %v573 = vunpack.c.l.b16 %v322
      %v574 = vunpack.c.l.b16 %v323
      %v575 = vunpack.c.l.b16 %v324
      %v576 = vunpack.c.l.b16 %v325
      %v577 = vunpack.c.l.b16 %v326
      %v578 = vunpack.c.l.b16 %v327
      %v579 = vunpack.c.l.b16 %v328
      %v580 = vunpack.c.l.b16 %v329
      %v581 = vunpack.c.l.b16 %v330
      %v582 = vunpack.c.l.b16 %v331
      %v583 = vunpack.c.l.b16 %v332
      %v584 = vunpack.c.l.b16 %v333
      %v585 = vunpack.c.l.b16 %v334
      %v586 = vunpack.c.l.b16 %v335
      %v587 = vunpack.c.l.b16 %v336
      %v588 = vunpack.c.l.b16 %v337
      %v589 = vunpack.c.l.b16 %v338
      %v590 = vunpack.c.l.b16 %v339
      %v591 = vunpack.c.l.b16 %v340
      %v592 = vunpack.c.l.b16 %v341
      %v593 = vunpack.c.l.b16 %v342
      %v594 = vpack.c.b16 %v487, %v486
      %v595 = vpack.c.b16 %v489, %v488
      %v596 = vpack.c.b16 %v491, %v490
      %v597 = vpack.c.b16 %v493, %v492
      %v598 = vpack.c.b16 %v495, %v494
      %v599 = vpack.c.b16 %v497, %v496
      %v600 = vpack.c.b16 %v499, %v498
      %v601 = vpack.c.b16 %v501, %v500
      %v602 = vpack.c.b16 %v503, %v502
      %v603 = vpack.c.b16 %v505, %v504
      %v604 = vpack.c.b16 %v507, %v506
      %v605 = vpack.c.b16 %v509, %v508
      %v606 = vpack.c.b16 %v511, %v510
      %v607 = vpack.c.b16 %v513, %v512
      %v608 = vpack.c.b16 %v515, %v514
      %v609 = vpack.c.b16 %v517, %v516
      %v610 = vpack.c.b16 %v519, %v518
      %v611 = vpack.c.b16 %v521, %v520
      %v612 = vpack.c.b16 %v523, %v522
      %v613 = vpack.c.b16 %v525, %v524
      %v614 = vpack.c.b16 %v527, %v526
      %v615 = vpack.c.b16 %v529, %v528
      %v616 = vpack.c.b16 %v531, %v530
      %v617 = vpack.c.b16 %v533, %v532
      %v618 = vpack.c.b16 %v535, %v534
      %v619 = vpack.c.b16 %v537, %v536
      %v620 = vpack.c.b16 %v539, %v538
      %v621 = vpack.c.b16 %v541, %v540
      %v622 = vpack.c.b16 %v543, %v542
      %v623 = vpack.c.b16 %v545, %v544
      %v624 = vpack.c.b16 %v547, %v546
      %v625 = vpack.c.b16 %v549, %v548
      %v626 = vpack.c.b16 %v551, %v550
      %v627 = vpack.c.b16 %v553, %v552
      %v628 = vpack.c.b16 %v555, %v554
      %v629 = vpack.c.b16 %v557, %v556
      %v630 = vpack.c.b16 %v559, %v558
      %v631 = vpack.c.b16 %v561, %v560
      %v632 = vpack.c.b16 %v563, %v562
      %v633 = vpack.c.b16 %v565, %v564
      %v634 = vpack.c.b16 %v567, %v566
      %v635 = vpack.c.b16 %v569, %v568
      %v636 = vpack.c.b16 %v571, %v570
      %v637 = vpack.c.b16 %v573, %v572
      %v638 = vpack.c.b16 %v575, %v574
      %v639 = vpack.c.b16 %v577, %v576
      %v640 = vpack.c.b16 %v579, %v578
      %v641 = vpack.c.b16 %v581, %v580
      %v642 = vpack.c.b16 %v583, %v582
      %v643 = vpack.c.b16 %v585, %v584
      %v644 = vpack.c.b16 %v587, %v586
      %v645 = vpack.c.b16 %v589, %v588
      %v646 = vpack.c.b16 %v591, %v590
      %v647 = vpack.c.b16 %v593, %v592
      %vm702 = vcmask 785408
      %v704 = vsel %vm702, %v371, 0
      %706 = vmatpush.bf16.msra.mxu0 %v601
      %707 = vmatpush.bf16.msra.mxu0 %v600
      %708 = vmatpush.bf16.msra.mxu0 %v599
      %709 = vmatpush.bf16.msra.mxu0 %v598
      %710 = vmatpush.bf16.msra.mxu0 %v597
      %711 = vmatpush.bf16.msra.mxu0 %v596
      %712 = vmatpush.bf16.msra.mxu0 %v595
      %713 = vmatpush.bf16.msra.mxu0 %v594
      %714 = vmatmul.bf16.gmra.mxu0 %v365
      %v715 = vpop.f32.mrf.mxu0
      %v716 = vadd.f32 0.0, %v715
      %v717 = vpop.f32.mrf.mxu0
      %v718 = vadd.f32 0.0, %v717
      %719 = vdwg.mxu0
      %720 = vmatpush.bf16.msra.mxu0 %v609
      %721 = vmatpush.bf16.msra.mxu0 %v608
      %722 = vmatpush.bf16.msra.mxu0 %v607
      %723 = vmatpush.bf16.msra.mxu0 %v606
      %724 = vmatpush.bf16.msra.mxu0 %v605
      %725 = vmatpush.bf16.msra.mxu0 %v604
      %726 = vmatpush.bf16.msra.mxu0 %v603
      %727 = vmatpush.bf16.msra.mxu0 %v602
      %728 = vmatmul.bf16.gmra.mxu0 %v366
      %v729 = vpop.f32.mrf.mxu0
      %v730 = vadd.f32 %v716, %v729
      %v731 = vpop.f32.mrf.mxu0
      %v732 = vadd.f32 %v718, %v731
      %733 = vdwg.mxu0
      %734 = vmatpush.bf16.msra.mxu0 %v617
      %735 = vmatpush.bf16.msra.mxu0 %v616
      %736 = vmatpush.bf16.msra.mxu0 %v615
      %737 = vmatpush.bf16.msra.mxu0 %v614
      %738 = vmatpush.bf16.msra.mxu0 %v613
      %739 = vmatpush.bf16.msra.mxu0 %v612
      %740 = vmatpush.bf16.msra.mxu0 %v611
      %741 = vmatpush.bf16.msra.mxu0 %v610
      %742 = vmatmul.bf16.gmra.mxu0 %v367
      %v743 = vpop.f32.mrf.mxu0
      %v744 = vadd.f32 %v730, %v743
      %v745 = vpop.f32.mrf.mxu0
      %v746 = vadd.f32 %v732, %v745
      %747 = vdwg.mxu0
      %748 = vmatpush.bf16.msra.mxu0 %v625
      %749 = vmatpush.bf16.msra.mxu0 %v624
      %750 = vmatpush.bf16.msra.mxu0 %v623
      %751 = vmatpush.bf16.msra.mxu0 %v622
      %752 = vmatpush.bf16.msra.mxu0 %v621
      %753 = vmatpush.bf16.msra.mxu0 %v620
      %754 = vmatpush.bf16.msra.mxu0 %v619
      %755 = vmatpush.bf16.msra.mxu0 %v618
      %756 = vmatmul.bf16.gmra.mxu0 %v368
      %v757 = vpop.f32.mrf.mxu0
      %v758 = vadd.f32 %v744, %v757
      %v759 = vpop.f32.mrf.mxu0
      %v760 = vadd.f32 %v746, %v759
      %761 = vdwg.mxu0
      %762 = vmatpush.bf16.msra.mxu0 %v633
      %763 = vmatpush.bf16.msra.mxu0 %v632
      %764 = vmatpush.bf16.msra.mxu0 %v631
      %765 = vmatpush.bf16.msra.mxu0 %v630
      %766 = vmatpush.bf16.msra.mxu0 %v629
      %767 = vmatpush.bf16.msra.mxu0 %v628
      %768 = vmatpush.bf16.msra.mxu0 %v627
      %769 = vmatpush.bf16.msra.mxu0 %v626
      %770 = vmatmul.bf16.gmra.mxu0 %v369
      %v771 = vpop.f32.mrf.mxu0
      %v772 = vadd.f32 %v758, %v771
      %v773 = vpop.f32.mrf.mxu0
      %v774 = vadd.f32 %v760, %v773
      %775 = vdwg.mxu0
      %776 = vmatpush.bf16.msra.mxu0 %v641
      %777 = vmatpush.bf16.msra.mxu0 %v640
      %778 = vmatpush.bf16.msra.mxu0 %v639
      %779 = vmatpush.bf16.msra.mxu0 %v638
      %780 = vmatpush.bf16.msra.mxu0 %v637
      %781 = vmatpush.bf16.msra.mxu0 %v636
      %782 = vmatpush.bf16.msra.mxu0 %v635
      %783 = vmatpush.bf16.msra.mxu0 %v634
      %784 = vmatmul.bf16.gmra.mxu0 %v370
      %v785 = vpop.f32.mrf.mxu0
      %v786 = vadd.f32 %v772, %v785
      %v787 = vpop.f32.mrf.mxu0
      %v788 = vadd.f32 %v774, %v787
      %789 = vdwg.mxu0
      %790 = vmatpush.bf16.msra.mxu0 0
      %791 = vmatpush.bf16.msra.mxu0 0
      %792 = vmatpush.bf16.msra.mxu0 %v647
      %793 = vmatpush.bf16.msra.mxu0 %v646
      %794 = vmatpush.bf16.msra.mxu0 %v645
      %795 = vmatpush.bf16.msra.mxu0 %v644
      %796 = vmatpush.bf16.msra.mxu0 %v643
      %797 = vmatpush.bf16.msra.mxu0 %v642
      %798 = vmatmul.bf16.gmra.mxu0 %v704
      %v799 = vpop.f32.mrf.mxu0
      %v800 = vadd.f32 %v786, %v799
      %v801 = vpop.f32.mrf.mxu0
      %v802 = vadd.f32 %v788, %v801
      %803 = vdwg.mxu0
      %v804 = vld [vmem:[%s2] sm:$0x1]
      %v805 = vperm.slane %v804, 0
      %v806 = vmul.f32 %v800, %v805
      %v807 = vmul.f32 %v802, %v805
      %v808 = vld [vmem:[%s2 + $0x1] sm:$0x1]
      %v809 = vperm.slane %v808, 0
      %v810 = vadd.f32 %v806, %v809
      %v811 = vadd.f32 %v807, %v809
      %v812 = vld [vmem:[%s218] sm:$0xf]
      %v813 = vld [vmem:[%s218 + $0x4] sm:$0xf]
      %v814 = vunpack.c.l.bf16 %v812
      %v815 = vunpack.c.l.bf16 %v813
      %v816 = vadd.f32 %v810, %v814
      %v817 = vadd.f32 %v811, %v815
      %v818 = vmax.f32 %v816, 0.0
      %v819 = vmax.f32 %v817, 0.0
      %v820 = vpack.c.bf16 %v818, %v818
      %v821 = vpack.c.bf16 %v819, %v819
      %822 = vst [vmem:[%s224] sm:$0xf] %v820
      %823 = vst [vmem:[%s224 + $0x4] sm:$0xf] %v821
      %s824 = smul.u32 2, %s15
      %p825 = scmp.lt.s32.totalorder %s824, 3
      %s826 = scalar_select %p825, %s824, 3
      %s827 = smul.addr %s826, 4
      %s828 = scalar_lea.vmem %s4, %s827
      // Predicated region
      $region37: #{restnet18_forward.30} parent=35 // pred_check
        %p829 = pneg %p127
      $region38: #{restnet18_forward.30} parent=35 // pred_check_branch
        %831 = sbr.rel (%p829) target = $region40
      $region39: #{restnet18_forward.30} parent=35 // pred_region
        %s832 = smul.u32 2, %s15
      $region40: #{restnet18_forward.30} parent=35 // pred_fallthru
        _
    $region36: #{restnet18_forward.30} parent=5 // pred_fallthru
      _
    %p833 = scmp.le.s32.totalorder 2, %s10
    // Predicated region
    $region41: #{restnet18_forward.30} parent=5 // pred_check
      %p834 = pneg %p833
    $region42: #{restnet18_forward.30} parent=5 // pred_check_branch
      %836 = sbr.rel (%p834) target = $region44
    $region43: #{restnet18_forward.30} parent=5 // pred_region
      %s837 = ssub.s32 %s10, 2
      // Predicated region
      $region45: #{restnet18_forward.30} parent=43 // pred_check
        %p838 = pneg %p133
      $region46: #{restnet18_forward.30} parent=43 // pred_check_branch
        %840 = sbr.rel (%p838) target = $region48
      $region47: #{restnet18_forward.30} parent=43 // pred_region
        %s841 = smul.u32 2, %s16
        %p842 = scmp.lt.s32.totalorder %s841, 3
        %s843 = scalar_select %p842, %s841, 3
        %s844 = smul.addr %s843, 4
        %s845 = scalar_lea.vmem %s4, %s844
      $region48: #{restnet18_forward.30} parent=43 // pred_fallthru
        _
    $region44: #{restnet18_forward.30} parent=5 // pred_fallthru
      _
  $region6: #{restnet18_forward.30} parent=0 // loop_footer
    %s14 = sadd.s32 1, %s10
  $region7: #{restnet18_forward.30} parent=0 // loop_footer_branch
    %9 = sbr.rel target = $region3
  $region8: #{restnet18_forward.30} parent=0 // loop_exit
    _

// kernel: restnet18_forward.33
$region0: #{restnet18_forward.33}
  #allocation0 [shape = 'u32[]', space=smem, size = 0x4, offset = 0x4, fixed_abs, tag = 'smem constant byte address 0x4 - core index']
  #allocation1 [shape = 'u32[72,128]{1,0:T(1,128)}', space=vmem, size = 0x9000, scoped, tag = 'internal scratch']
  %s0 = inlined_call_operand.vmem [shape: bf16[16,864], index: 0, kind: input, shape index: {}]
  %s1 = inlined_call_operand.vmem [shape: bf16[864,128], index: 1, kind: input, shape index: {}]
  %s2 = inlined_call_operand.vmem [shape: f32[2,128], index: 2, kind: input, shape index: {}]
  %s3 = inlined_call_operand.vmem [shape: bf16[16,128], index: 3, kind: output, shape index: {}]
  %s4 = sld [smem:[#allocation0]]
  $region22: #{restnet18_forward.33} parent=0
    _
  %s6 = ssub.s32 1, %s4
  %s7 = scalar_select 0, %s6, %s4
  // Predicated region
  $region2: #{restnet18_forward.33} parent=0 // pred_check
    _
  $region3: #{restnet18_forward.33} parent=0 // pred_check_branch
    %9 = sbr.rel (0) target = $region5
  $region4: #{restnet18_forward.33} parent=0 // pred_region
    _
  $region5: #{restnet18_forward.33} parent=0 // pred_fallthru
    _
  // Predicated region
  $region6: #{restnet18_forward.33} parent=0 // pred_check
    _
  $region7: #{restnet18_forward.33} parent=0 // pred_check_branch
    %11 = sbr.rel (0) target = $region9
  $region8: #{restnet18_forward.33} parent=0 // pred_region
    _
  $region9: #{restnet18_forward.33} parent=0 // pred_fallthru
    _
  // Predicated region
  $region10: #{restnet18_forward.33} parent=0 // pred_check
    _
  $region11: #{restnet18_forward.33} parent=0 // pred_check_branch
    %13 = sbr.rel (0) target = $region13
  $region12: #{restnet18_forward.33} parent=0 // pred_region
    _
  $region13: #{restnet18_forward.33} parent=0 // pred_fallthru
    _
  %v15 = vld [vmem:[%s0] sm:$0xff]
  %v16 = vld [vmem:[%s0 + $0x8] sm:$0xff]
  %v17 = vld [vmem:[%s0 + $0x10] sm:$0xff]
  %v18 = vld [vmem:[%s0 + $0x18] sm:$0xf]
  %v19 = vld [vmem:[%s0 + $0x1c] sm:$0xff]
  %v20 = vld [vmem:[%s0 + $0x24] sm:$0xff]
  %v21 = vld [vmem:[%s0 + $0x2c] sm:$0xff]
  %v22 = vld [vmem:[%s0 + $0x34] sm:$0xf]
  %v23 = vld [vmem:[%s1] sm:$0xf]
  %v24 = vld [vmem:[%s1 + $0x4] sm:$0xf]
  %v25 = vld [vmem:[%s1 + $0x8] sm:$0xf]
  %v26 = vld [vmem:[%s1 + $0xc] sm:$0xf]
  %v27 = vld [vmem:[%s1 + $0x10] sm:$0xf]
  %v28 = vld [vmem:[%s1 + $0x14] sm:$0xf]
  %v29 = vld [vmem:[%s1 + $0x18] sm:$0xf]
  %v30 = vld [vmem:[%s1 + $0x1c] sm:$0xf]
  %v31 = vld [vmem:[%s1 + $0x20] sm:$0xf]
  %v32 = vld [vmem:[%s1 + $0x24] sm:$0xf]
  %v33 = vld [vmem:[%s1 + $0x28] sm:$0xf]
  %v34 = vld [vmem:[%s1 + $0x2c] sm:$0xf]
  %v35 = vld [vmem:[%s1 + $0x30] sm:$0xf]
  %v36 = vld [vmem:[%s1 + $0x34] sm:$0xf]
  %v37 = vld [vmem:[%s1 + $0x38] sm:$0xf]
  %v38 = vld [vmem:[%s1 + $0x3c] sm:$0xf]
  %v39 = vld [vmem:[%s1 + $0x40] sm:$0xf]
  %v40 = vld [vmem:[%s1 + $0x44] sm:$0xf]
  %v41 = vld [vmem:[%s1 + $0x48] sm:$0xf]
  %v42 = vld [vmem:[%s1 + $0x4c] sm:$0xf]
  %v43 = vld [vmem:[%s1 + $0x50] sm:$0xf]
  %v44 = vld [vmem:[%s1 + $0x54] sm:$0xf]
  %v45 = vld [vmem:[%s1 + $0x58] sm:$0xf]
  %v46 = vld [vmem:[%s1 + $0x5c] sm:$0xf]
  %v47 = vld [vmem:[%s1 + $0x60] sm:$0xf]
  %v48 = vld [vmem:[%s1 + $0x64] sm:$0xf]
  %v49 = vld [vmem:[%s1 + $0x68] sm:$0xf]
  %v50 = vld [vmem:[%s1 + $0x6c] sm:$0xf]
  %v51 = vld [vmem:[%s1 + $0x70] sm:$0xf]
  %v52 = vld [vmem:[%s1 + $0x74] sm:$0xf]
  %v53 = vld [vmem:[%s1 + $0x78] sm:$0xf]
  %v54 = vld [vmem:[%s1 + $0x7c] sm:$0xf]
  %v55 = vld [vmem:[%s1 + $0x80] sm:$0xf]
  %v56 = vld [vmem:[%s1 + $0x84] sm:$0xf]
  %v57 = vld [vmem:[%s1 + $0x88] sm:$0xf]
  %v58 = vld [vmem:[%s1 + $0x8c] sm:$0xf]
  %v59 = vld [vmem:[%s1 + $0x90] sm:$0xf]
  %v60 = vld [vmem:[%s1 + $0x94] sm:$0xf]
  %v61 = vld [vmem:[%s1 + $0x98] sm:$0xf]
  %v62 = vld [vmem:[%s1 + $0x9c] sm:$0xf]
  %v63 = vld [vmem:[%s1 + $0xa0] sm:$0xf]
  %v64 = vld [vmem:[%s1 + $0xa4] sm:$0xf]
  %v65 = vld [vmem:[%s1 + $0xa8] sm:$0xf]
  %v66 = vld [vmem:[%s1 + $0xac] sm:$0xf]
  %v67 = vld [vmem:[%s1 + $0xb0] sm:$0xf]
  %v68 = vld [vmem:[%s1 + $0xb4] sm:$0xf]
  %v69 = vld [vmem:[%s1 + $0xb8] sm:$0xf]
  %v70 = vld [vmem:[%s1 + $0xbc] sm:$0xf]
  %v71 = vld [vmem:[%s1 + $0xc0] sm:$0xf]
  %v72 = vld [vmem:[%s1 + $0xc4] sm:$0xf]
  %v73 = vld [vmem:[%s1 + $0xc8] sm:$0xf]
  %v74 = vld [vmem:[%s1 + $0xcc] sm:$0xf]
  %v75 = vld [vmem:[%s1 + $0xd0] sm:$0xf]
  %v76 = vld [vmem:[%s1 + $0xd4] sm:$0xf]
  %v77 = vld [vmem:[%s1 + $0xd8] sm:$0xf]
  %v78 = vld [vmem:[%s1 + $0xdc] sm:$0xf]
  %v79 = vld [vmem:[%s1 + $0xe0] sm:$0xf]
  %v80 = vld [vmem:[%s1 + $0xe4] sm:$0xf]
  %v81 = vld [vmem:[%s1 + $0xe8] sm:$0xf]
  %v82 = vld [vmem:[%s1 + $0xec] sm:$0xf]
  %v83 = vld [vmem:[%s1 + $0xf0] sm:$0xf]
  %v84 = vld [vmem:[%s1 + $0xf4] sm:$0xf]
  %v85 = vld [vmem:[%s1 + $0xf8] sm:$0xf]
  %v86 = vld [vmem:[%s1 + $0xfc] sm:$0xf]
  %v87 = vld [vmem:[%s1 + $0x100] sm:$0xf]
  %v88 = vld [vmem:[%s1 + $0x104] sm:$0xf]
  %v89 = vld [vmem:[%s1 + $0x108] sm:$0xf]
  %v90 = vld [vmem:[%s1 + $0x10c] sm:$0xf]
  %v91 = vld [vmem:[%s1 + $0x110] sm:$0xf]
  %v92 = vld [vmem:[%s1 + $0x114] sm:$0xf]
  %v93 = vld [vmem:[%s1 + $0x118] sm:$0xf]
  %v94 = vld [vmem:[%s1 + $0x11c] sm:$0xf]
  %v95 = vld [vmem:[%s1 + $0x120] sm:$0xf]
  %v96 = vld [vmem:[%s1 + $0x124] sm:$0xf]
  %v97 = vld [vmem:[%s1 + $0x128] sm:$0xf]
  %v98 = vld [vmem:[%s1 + $0x12c] sm:$0xf]
  %v99 = vld [vmem:[%s1 + $0x130] sm:$0xf]
  %v100 = vld [vmem:[%s1 + $0x134] sm:$0xf]
  %v101 = vld [vmem:[%s1 + $0x138] sm:$0xf]
  %v102 = vld [vmem:[%s1 + $0x13c] sm:$0xf]
  %v103 = vld [vmem:[%s1 + $0x140] sm:$0xf]
  %v104 = vld [vmem:[%s1 + $0x144] sm:$0xf]
  %v105 = vld [vmem:[%s1 + $0x148] sm:$0xf]
  %v106 = vld [vmem:[%s1 + $0x14c] sm:$0xf]
  %v107 = vld [vmem:[%s1 + $0x150] sm:$0xf]
  %v108 = vld [vmem:[%s1 + $0x154] sm:$0xf]
  %v109 = vld [vmem:[%s1 + $0x158] sm:$0xf]
  %v110 = vld [vmem:[%s1 + $0x15c] sm:$0xf]
  %v111 = vld [vmem:[%s1 + $0x160] sm:$0xf]
  %v112 = vld [vmem:[%s1 + $0x164] sm:$0xf]
  %v113 = vld [vmem:[%s1 + $0x168] sm:$0xf]
  %v114 = vld [vmem:[%s1 + $0x16c] sm:$0xf]
  %v115 = vld [vmem:[%s1 + $0x170] sm:$0xf]
  %v116 = vld [vmem:[%s1 + $0x174] sm:$0xf]
  %v117 = vld [vmem:[%s1 + $0x178] sm:$0xf]
  %v118 = vld [vmem:[%s1 + $0x17c] sm:$0xf]
  %v119 = vld [vmem:[%s1 + $0x180] sm:$0xf]
  %v120 = vld [vmem:[%s1 + $0x184] sm:$0xf]
  %v121 = vld [vmem:[%s1 + $0x188] sm:$0xf]
  %v122 = vld [vmem:[%s1 + $0x18c] sm:$0xf]
  %v123 = vld [vmem:[%s1 + $0x190] sm:$0xf]
  %v124 = vld [vmem:[%s1 + $0x194] sm:$0xf]
  %v125 = vld [vmem:[%s1 + $0x198] sm:$0xf]
  %v126 = vld [vmem:[%s1 + $0x19c] sm:$0xf]
  %v127 = vld [vmem:[%s1 + $0x1a0] sm:$0xf]
  %v128 = vld [vmem:[%s1 + $0x1a4] sm:$0xf]
  %v129 = vld [vmem:[%s1 + $0x1a8] sm:$0xf]
  %v130 = vld [vmem:[%s1 + $0x1ac] sm:$0xf]
  %v139 = vunpack.c.l.b16 %v15
  %v140 = vunpack.c.h.b16 %v15
  %v141 = vunpack.c.l.b16 %v16
  %v142 = vunpack.c.h.b16 %v16
  %v143 = vunpack.c.l.b16 %v17
  %v144 = vunpack.c.h.b16 %v17
  %v145 = vunpack.c.l.b16 %v18
  %v146 = vunpack.c.l.b16 %v19
  %v147 = vunpack.c.h.b16 %v19
  %v148 = vunpack.c.l.b16 %v20
  %v149 = vunpack.c.h.b16 %v20
  %v150 = vunpack.c.l.b16 %v21
  %v151 = vunpack.c.h.b16 %v21
  %v152 = vunpack.c.l.b16 %v22
  %v153 = vpack.c.b16 %v146, %v139
  %v154 = vpack.c.b16 %v147, %v140
  %v155 = vpack.c.b16 %v148, %v141
  %v156 = vpack.c.b16 %v149, %v142
  %v157 = vpack.c.b16 %v150, %v143
  %v158 = vpack.c.b16 %v151, %v144
  %v159 = vpack.c.b16 %v152, %v145
  %v274 = vunpack.c.l.b16 %v23
  %v275 = vunpack.c.l.b16 %v24
  %v276 = vunpack.c.l.b16 %v25
  %v277 = vunpack.c.l.b16 %v26
  %v278 = vunpack.c.l.b16 %v27
  %v279 = vunpack.c.l.b16 %v28
  %v280 = vunpack.c.l.b16 %v29
  %v281 = vunpack.c.l.b16 %v30
  %v282 = vunpack.c.l.b16 %v31
  %v283 = vunpack.c.l.b16 %v32
  %v284 = vunpack.c.l.b16 %v33
  %v285 = vunpack.c.l.b16 %v34
  %v286 = vunpack.c.l.b16 %v35
  %v287 = vunpack.c.l.b16 %v36
  %v288 = vunpack.c.l.b16 %v37
  %v289 = vunpack.c.l.b16 %v38
  %v290 = vunpack.c.l.b16 %v39
  %v291 = vunpack.c.l.b16 %v40
  %v292 = vunpack.c.l.b16 %v41
  %v293 = vunpack.c.l.b16 %v42
  %v294 = vunpack.c.l.b16 %v43
  %v295 = vunpack.c.l.b16 %v44
  %v296 = vunpack.c.l.b16 %v45
  %v297 = vunpack.c.l.b16 %v46
  %v298 = vunpack.c.l.b16 %v47
  %v299 = vunpack.c.l.b16 %v48
  %v300 = vunpack.c.l.b16 %v49
  %v301 = vunpack.c.l.b16 %v50
  %v302 = vunpack.c.l.b16 %v51
  %v303 = vunpack.c.l.b16 %v52
  %v304 = vunpack.c.l.b16 %v53
  %v305 = vunpack.c.l.b16 %v54
  %v306 = vunpack.c.l.b16 %v55
  %v307 = vunpack.c.l.b16 %v56
  %v308 = vunpack.c.l.b16 %v57
  %v309 = vunpack.c.l.b16 %v58
  %v310 = vunpack.c.l.b16 %v59
  %v311 = vunpack.c.l.b16 %v60
  %v312 = vunpack.c.l.b16 %v61
  %v313 = vunpack.c.l.b16 %v62
  %v314 = vunpack.c.l.b16 %v63
  %v315 = vunpack.c.l.b16 %v64
  %v316 = vunpack.c.l.b16 %v65
  %v317 = vunpack.c.l.b16 %v66
  %v318 = vunpack.c.l.b16 %v67
  %v319 = vunpack.c.l.b16 %v68
  %v320 = vunpack.c.l.b16 %v69
  %v321 = vunpack.c.l.b16 %v70
  %v322 = vunpack.c.l.b16 %v71
  %v323 = vunpack.c.l.b16 %v72
  %v324 = vunpack.c.l.b16 %v73
  %v325 = vunpack.c.l.b16 %v74
  %v326 = vunpack.c.l.b16 %v75
  %v327 = vunpack.c.l.b16 %v76
  %v328 = vunpack.c.l.b16 %v77
  %v329 = vunpack.c.l.b16 %v78
  %v330 = vunpack.c.l.b16 %v79
  %v331 = vunpack.c.l.b16 %v80
  %v332 = vunpack.c.l.b16 %v81
  %v333 = vunpack.c.l.b16 %v82
  %v334 = vunpack.c.l.b16 %v83
  %v335 = vunpack.c.l.b16 %v84
  %v336 = vunpack.c.l.b16 %v85
  %v337 = vunpack.c.l.b16 %v86
  %v338 = vunpack.c.l.b16 %v87
  %v339 = vunpack.c.l.b16 %v88
  %v340 = vunpack.c.l.b16 %v89
  %v341 = vunpack.c.l.b16 %v90
  %v342 = vunpack.c.l.b16 %v91
  %v343 = vunpack.c.l.b16 %v92
  %v344 = vunpack.c.l.b16 %v93
  %v345 = vunpack.c.l.b16 %v94
  %v346 = vunpack.c.l.b16 %v95
  %v347 = vunpack.c.l.b16 %v96
  %v348 = vunpack.c.l.b16 %v97
  %v349 = vunpack.c.l.b16 %v98
  %v350 = vunpack.c.l.b16 %v99
  %v351 = vunpack.c.l.b16 %v100
  %v352 = vunpack.c.l.b16 %v101
  %v353 = vunpack.c.l.b16 %v102
  %v354 = vunpack.c.l.b16 %v103
  %v355 = vunpack.c.l.b16 %v104
  %v356 = vunpack.c.l.b16 %v105
  %v357 = vunpack.c.l.b16 %v106
  %v358 = vunpack.c.l.b16 %v107
  %v359 = vunpack.c.l.b16 %v108
  %v360 = vunpack.c.l.b16 %v109
  %v361 = vunpack.c.l.b16 %v110
  %v362 = vunpack.c.l.b16 %v111
  %v363 = vunpack.c.l.b16 %v112
  %v364 = vunpack.c.l.b16 %v113
  %v365 = vunpack.c.l.b16 %v114
  %v366 = vunpack.c.l.b16 %v115
  %v367 = vunpack.c.l.b16 %v116
  %v368 = vunpack.c.l.b16 %v117
  %v369 = vunpack.c.l.b16 %v118
  %v370 = vunpack.c.l.b16 %v119
  %v371 = vunpack.c.l.b16 %v120
  %v372 = vunpack.c.l.b16 %v121
  %v373 = vunpack.c.l.b16 %v122
  %v374 = vunpack.c.l.b16 %v123
  %v375 = vunpack.c.l.b16 %v124
  %v376 = vunpack.c.l.b16 %v125
  %v377 = vunpack.c.l.b16 %v126
  %v378 = vunpack.c.l.b16 %v127
  %v379 = vunpack.c.l.b16 %v128
  %v380 = vunpack.c.l.b16 %v129
  %v381 = vunpack.c.l.b16 %v130
  %v382 = vpack.c.b16 %v275, %v274
  %v383 = vpack.c.b16 %v277, %v276
  %v384 = vpack.c.b16 %v279, %v278
  %v385 = vpack.c.b16 %v281, %v280
  %v386 = vpack.c.b16 %v283, %v282
  %v387 = vpack.c.b16 %v285, %v284
  %v388 = vpack.c.b16 %v287, %v286
  %v389 = vpack.c.b16 %v289, %v288
  %v390 = vpack.c.b16 %v291, %v290
  %v391 = vpack.c.b16 %v293, %v292
  %v392 = vpack.c.b16 %v295, %v294
  %v393 = vpack.c.b16 %v297, %v296
  %v394 = vpack.c.b16 %v299, %v298
  %v395 = vpack.c.b16 %v301, %v300
  %v396 = vpack.c.b16 %v303, %v302
  %v397 = vpack.c.b16 %v305, %v304
  %v398 = vpack.c.b16 %v307, %v306
  %v399 = vpack.c.b16 %v309, %v308
  %v400 = vpack.c.b16 %v311, %v310
  %v401 = vpack.c.b16 %v313, %v312
  %v402 = vpack.c.b16 %v315, %v314
  %v403 = vpack.c.b16 %v317, %v316
  %v404 = vpack.c.b16 %v319, %v318
  %v405 = vpack.c.b16 %v321, %v320
  %v406 = vpack.c.b16 %v323, %v322
  %v407 = vpack.c.b16 %v325, %v324
  %v408 = vpack.c.b16 %v327, %v326
  %v409 = vpack.c.b16 %v329, %v328
  %v410 = vpack.c.b16 %v331, %v330
  %v411 = vpack.c.b16 %v333, %v332
  %v412 = vpack.c.b16 %v335, %v334
  %v413 = vpack.c.b16 %v337, %v336
  %v414 = vpack.c.b16 %v339, %v338
  %v415 = vpack.c.b16 %v341, %v340
  %v416 = vpack.c.b16 %v343, %v342
  %v417 = vpack.c.b16 %v345, %v344
  %v418 = vpack.c.b16 %v347, %v346
  %v419 = vpack.c.b16 %v349, %v348
  %v420 = vpack.c.b16 %v351, %v350
  %v421 = vpack.c.b16 %v353, %v352
  %v422 = vpack.c.b16 %v355, %v354
  %v423 = vpack.c.b16 %v357, %v356
  %v424 = vpack.c.b16 %v359, %v358
  %v425 = vpack.c.b16 %v361, %v360
  %v426 = vpack.c.b16 %v363, %v362
  %v427 = vpack.c.b16 %v365, %v364
  %v428 = vpack.c.b16 %v367, %v366
  %v429 = vpack.c.b16 %v369, %v368
  %v430 = vpack.c.b16 %v371, %v370
  %v431 = vpack.c.b16 %v373, %v372
  %v432 = vpack.c.b16 %v375, %v374
  %v433 = vpack.c.b16 %v377, %v376
  %v434 = vpack.c.b16 %v379, %v378
  %v435 = vpack.c.b16 %v381, %v380
  %vm490 = vcmask 785408
  %v492 = vsel %vm490, %v159, 0
  %494 = vmatpush.bf16.msra.mxu0 %v389
  %495 = vmatpush.bf16.msra.mxu0 %v388
  %496 = vmatpush.bf16.msra.mxu0 %v387
  %497 = vmatpush.bf16.msra.mxu0 %v386
  %498 = vmatpush.bf16.msra.mxu0 %v385
  %499 = vmatpush.bf16.msra.mxu0 %v384
  %500 = vmatpush.bf16.msra.mxu0 %v383
  %501 = vmatpush.bf16.msra.mxu0 %v382
  %502 = vmatmul.bf16.gmra.mxu0 %v153
  %v503 = vpop.f32.mrf.mxu0
  %v504 = vadd.f32 0.0, %v503
  %v505 = vpop.f32.mrf.mxu0
  %v506 = vadd.f32 0.0, %v505
  %507 = vdwg.mxu0
  %508 = vmatpush.bf16.msra.mxu0 %v397
  %509 = vmatpush.bf16.msra.mxu0 %v396
  %510 = vmatpush.bf16.msra.mxu0 %v395
  %511 = vmatpush.bf16.msra.mxu0 %v394
  %512 = vmatpush.bf16.msra.mxu0 %v393
  %513 = vmatpush.bf16.msra.mxu0 %v392
  %514 = vmatpush.bf16.msra.mxu0 %v391
  %515 = vmatpush.bf16.msra.mxu0 %v390
  %516 = vmatmul.bf16.gmra.mxu0 %v154
  %v517 = vpop.f32.mrf.mxu0
  %v518 = vadd.f32 %v504, %v517
  %v519 = vpop.f32.mrf.mxu0
  %v520 = vadd.f32 %v506, %v519
  %521 = vdwg.mxu0
  %522 = vmatpush.bf16.msra.mxu0 %v405
  %523 = vmatpush.bf16.msra.mxu0 %v404
  %524 = vmatpush.bf16.msra.mxu0 %v403
  %525 = vmatpush.bf16.msra.mxu0 %v402
  %526 = vmatpush.bf16.msra.mxu0 %v401
  %527 = vmatpush.bf16.msra.mxu0 %v400
  %528 = vmatpush.bf16.msra.mxu0 %v399
  %529 = vmatpush.bf16.msra.mxu0 %v398
  %530 = vmatmul.bf16.gmra.mxu0 %v155
  %v531 = vpop.f32.mrf.mxu0
  %v532 = vadd.f32 %v518, %v531
  %v533 = vpop.f32.mrf.mxu0
  %v534 = vadd.f32 %v520, %v533
  %535 = vdwg.mxu0
  %536 = vmatpush.bf16.msra.mxu0 %v413
  %537 = vmatpush.bf16.msra.mxu0 %v412
  %538 = vmatpush.bf16.msra.mxu0 %v411
  %539 = vmatpush.bf16.msra.mxu0 %v410
  %540 = vmatpush.bf16.msra.mxu0 %v409
  %541 = vmatpush.bf16.msra.mxu0 %v408
  %542 = vmatpush.bf16.msra.mxu0 %v407
  %543 = vmatpush.bf16.msra.mxu0 %v406
  %544 = vmatmul.bf16.gmra.mxu0 %v156
  %v545 = vpop.f32.mrf.mxu0
  %v546 = vadd.f32 %v532, %v545
  %v547 = vpop.f32.mrf.mxu0
  %v548 = vadd.f32 %v534, %v547
  %549 = vdwg.mxu0
  %550 = vmatpush.bf16.msra.mxu0 %v421
  %551 = vmatpush.bf16.msra.mxu0 %v420
  %552 = vmatpush.bf16.msra.mxu0 %v419
  %553 = vmatpush.bf16.msra.mxu0 %v418
  %554 = vmatpush.bf16.msra.mxu0 %v417
  %555 = vmatpush.bf16.msra.mxu0 %v416
  %556 = vmatpush.bf16.msra.mxu0 %v415
  %557 = vmatpush.bf16.msra.mxu0 %v414
  %558 = vmatmul.bf16.gmra.mxu0 %v157
  %v559 = vpop.f32.mrf.mxu0
  %v560 = vadd.f32 %v546, %v559
  %v561 = vpop.f32.mrf.mxu0
  %v562 = vadd.f32 %v548, %v561
  %563 = vdwg.mxu0
  %564 = vmatpush.bf16.msra.mxu0 %v429
  %565 = vmatpush.bf16.msra.mxu0 %v428
  %566 = vmatpush.bf16.msra.mxu0 %v427
  %567 = vmatpush.bf16.msra.mxu0 %v426
  %568 = vmatpush.bf16.msra.mxu0 %v425
  %569 = vmatpush.bf16.msra.mxu0 %v424
  %570 = vmatpush.bf16.msra.mxu0 %v423
  %571 = vmatpush.bf16.msra.mxu0 %v422
  %572 = vmatmul.bf16.gmra.mxu0 %v158
  %v573 = vpop.f32.mrf.mxu0
  %v574 = vadd.f32 %v560, %v573
  %v575 = vpop.f32.mrf.mxu0
  %v576 = vadd.f32 %v562, %v575
  %577 = vdwg.mxu0
  %578 = vmatpush.bf16.msra.mxu0 0
  %579 = vmatpush.bf16.msra.mxu0 0
  %580 = vmatpush.bf16.msra.mxu0 %v435
  %581 = vmatpush.bf16.msra.mxu0 %v434
  %582 = vmatpush.bf16.msra.mxu0 %v433
  %583 = vmatpush.bf16.msra.mxu0 %v432
  %584 = vmatpush.bf16.msra.mxu0 %v431
  %585 = vmatpush.bf16.msra.mxu0 %v430
  %586 = vmatmul.bf16.gmra.mxu0 %v492
  %v587 = vpop.f32.mrf.mxu0
  %v588 = vadd.f32 %v574, %v587
  %v589 = vpop.f32.mrf.mxu0
  %v590 = vadd.f32 %v576, %v589
  %591 = vdwg.mxu0
  %v592 = vld [vmem:[%s2] sm:$0x1]
  %v593 = vperm.slane %v592, 0
  %v594 = vmul.f32 %v588, %v593
  %v595 = vmul.f32 %v590, %v593
  %v596 = vld [vmem:[%s2 + $0x1] sm:$0x1]
  %v597 = vperm.slane %v596, 0
  %v598 = vadd.f32 %v594, %v597
  %v599 = vadd.f32 %v595, %v597
  %v600 = vmax.f32 %v598, 0.0
  %v601 = vmax.f32 %v599, 0.0
  %v602 = vpack.c.bf16 %v600, %v600
  %v603 = vpack.c.bf16 %v601, %v601
  %604 = vst [vmem:[%s3] sm:$0xf] %v602
  %605 = vst [vmem:[%s3 + $0x4] sm:$0xf] %v603
  // Predicated region
  $region14: #{restnet18_forward.33} parent=0 // pred_check
    _
  $region15: #{restnet18_forward.33} parent=0 // pred_check_branch
    %607 = sbr.rel (0) target = $region17
  $region16: #{restnet18_forward.33} parent=0 // pred_region
    _
  $region17: #{restnet18_forward.33} parent=0 // pred_fallthru
    _
  // Predicated region
  $region18: #{restnet18_forward.33} parent=0 // pred_check
    _
  $region19: #{restnet18_forward.33} parent=0 // pred_check_branch
    %609 = sbr.rel (0) target = $region21
  $region20: #{restnet18_forward.33} parent=0 // pred_region
    _
  $region21: #{restnet18_forward.33} parent=0 // pred_fallthru
    _

// kernel: restnet18_forward.31
$region0: #{restnet18_forward.31}
  #allocation0 [shape = 'u32[]', space=smem, size = 0x4, offset = 0x4, fixed_abs, tag = 'smem constant byte address 0x4 - core index']
  #allocation1 [shape = 'u32[72,128]{1,0:T(1,128)}', space=vmem, size = 0x9000, scoped, tag = 'internal scratch']
  %s0 = inlined_call_operand.vmem [shape: bf16[16,864], index: 0, kind: input, shape index: {}]
  %s1 = inlined_call_operand.vmem [shape: bf16[864,256], index: 1, kind: input, shape index: {}]
  %s2 = inlined_call_operand.vmem [shape: f32[2,256], index: 2, kind: input, shape index: {}]
  %s3 = inlined_call_operand.vmem [shape: bf16[16,128], index: 3, kind: output, shape index: {0}]
  %s4 = inlined_call_operand.vmem [shape: bf16[16,128], index: 4, kind: output, shape index: {1}]
  %5 = xla_tuple %s3, %s4
  %s6 = sld [smem:[#allocation0]]
  $region30: #{restnet18_forward.31} parent=0
    _
  %s8 = ssub.s32 1, %s6
  %s9 = scalar_select 0, %s8, %s6
  // Predicated region
  $region2: #{restnet18_forward.31} parent=0 // pred_check
    _
  $region3: #{restnet18_forward.31} parent=0 // pred_check_branch
    %11 = sbr.rel (0) target = $region5
  $region4: #{restnet18_forward.31} parent=0 // pred_region
    _
  $region5: #{restnet18_forward.31} parent=0 // pred_fallthru
    _
  // Predicated region
  $region6: #{restnet18_forward.31} parent=0 // pred_check
    _
  $region7: #{restnet18_forward.31} parent=0 // pred_check_branch
    %13 = sbr.rel (0) target = $region9
  $region8: #{restnet18_forward.31} parent=0 // pred_region
    _
  $region9: #{restnet18_forward.31} parent=0 // pred_fallthru
    _
  // Predicated region
  $region10: #{restnet18_forward.31} parent=0 // pred_check
    _
  $region11: #{restnet18_forward.31} parent=0 // pred_check_branch
    %15 = sbr.rel (0) target = $region13
  $region12: #{restnet18_forward.31} parent=0 // pred_region
    _
  $region13: #{restnet18_forward.31} parent=0 // pred_fallthru
    _
  %v17 = vld [vmem:[%s0] sm:$0xff]
  %v18 = vld [vmem:[%s0 + $0x8] sm:$0xff]
  %v19 = vld [vmem:[%s0 + $0x10] sm:$0xff]
  %v20 = vld [vmem:[%s0 + $0x18] sm:$0xf]
  %v21 = vld [vmem:[%s0 + $0x1c] sm:$0xff]
  %v22 = vld [vmem:[%s0 + $0x24] sm:$0xff]
  %v23 = vld [vmem:[%s0 + $0x2c] sm:$0xff]
  %v24 = vld [vmem:[%s0 + $0x34] sm:$0xf]
  %v25 = vld [vmem:[%s1] sm:$0xff]
  %v26 = vld [vmem:[%s1 + $0x8] sm:$0xff]
  %v27 = vld [vmem:[%s1 + $0x10] sm:$0xff]
  %v28 = vld [vmem:[%s1 + $0x18] sm:$0xff]
  %v29 = vld [vmem:[%s1 + $0x20] sm:$0xff]
  %v30 = vld [vmem:[%s1 + $0x28] sm:$0xff]
  %v31 = vld [vmem:[%s1 + $0x30] sm:$0xff]
  %v32 = vld [vmem:[%s1 + $0x38] sm:$0xff]
  %v33 = vld [vmem:[%s1 + $0x40] sm:$0xff]
  %v34 = vld [vmem:[%s1 + $0x48] sm:$0xff]
  %v35 = vld [vmem:[%s1 + $0x50] sm:$0xff]
  %v36 = vld [vmem:[%s1 + $0x58] sm:$0xff]
  %v37 = vld [vmem:[%s1 + $0x60] sm:$0xff]
  %v38 = vld [vmem:[%s1 + $0x68] sm:$0xff]
  %v39 = vld [vmem:[%s1 + $0x70] sm:$0xff]
  %v40 = vld [vmem:[%s1 + $0x78] sm:$0xff]
  %v41 = vld [vmem:[%s1 + $0x80] sm:$0xff]
  %v42 = vld [vmem:[%s1 + $0x88] sm:$0xff]
  %v43 = vld [vmem:[%s1 + $0x90] sm:$0xff]
  %v44 = vld [vmem:[%s1 + $0x98] sm:$0xff]
  %v45 = vld [vmem:[%s1 + $0xa0] sm:$0xff]
  %v46 = vld [vmem:[%s1 + $0xa8] sm:$0xff]
  %v47 = vld [vmem:[%s1 + $0xb0] sm:$0xff]
  %v48 = vld [vmem:[%s1 + $0xb8] sm:$0xff]
  %v49 = vld [vmem:[%s1 + $0xc0] sm:$0xff]
  %v50 = vld [vmem:[%s1 + $0xc8] sm:$0xff]
  %v51 = vld [vmem:[%s1 + $0xd0] sm:$0xff]
  %v52 = vld [vmem:[%s1 + $0xd8] sm:$0xff]
  %v53 = vld [vmem:[%s1 + $0xe0] sm:$0xff]
  %v54 = vld [vmem:[%s1 + $0xe8] sm:$0xff]
  %v55 = vld [vmem:[%s1 + $0xf0] sm:$0xff]
  %v56 = vld [vmem:[%s1 + $0xf8] sm:$0xff]
  %v57 = vld [vmem:[%s1 + $0x100] sm:$0xff]
  %v58 = vld [vmem:[%s1 + $0x108] sm:$0xff]
  %v59 = vld [vmem:[%s1 + $0x110] sm:$0xff]
  %v60 = vld [vmem:[%s1 + $0x118] sm:$0xff]
  %v61 = vld [vmem:[%s1 + $0x120] sm:$0xff]
  %v62 = vld [vmem:[%s1 + $0x128] sm:$0xff]
  %v63 = vld [vmem:[%s1 + $0x130] sm:$0xff]
  %v64 = vld [vmem:[%s1 + $0x138] sm:$0xff]
  %v65 = vld [vmem:[%s1 + $0x140] sm:$0xff]
  %v66 = vld [vmem:[%s1 + $0x148] sm:$0xff]
  %v67 = vld [vmem:[%s1 + $0x150] sm:$0xff]
  %v68 = vld [vmem:[%s1 + $0x158] sm:$0xff]
  %v69 = vld [vmem:[%s1 + $0x160] sm:$0xff]
  %v70 = vld [vmem:[%s1 + $0x168] sm:$0xff]
  %v71 = vld [vmem:[%s1 + $0x170] sm:$0xff]
  %v72 = vld [vmem:[%s1 + $0x178] sm:$0xff]
  %v73 = vld [vmem:[%s1 + $0x180] sm:$0xff]
  %v74 = vld [vmem:[%s1 + $0x188] sm:$0xff]
  %v75 = vld [vmem:[%s1 + $0x190] sm:$0xff]
  %v76 = vld [vmem:[%s1 + $0x198] sm:$0xff]
  %v77 = vld [vmem:[%s1 + $0x1a0] sm:$0xff]
  %v78 = vld [vmem:[%s1 + $0x1a8] sm:$0xff]
  %v79 = vld [vmem:[%s1 + $0x1b0] sm:$0xff]
  %v80 = vld [vmem:[%s1 + $0x1b8] sm:$0xff]
  %v81 = vld [vmem:[%s1 + $0x1c0] sm:$0xff]
  %v82 = vld [vmem:[%s1 + $0x1c8] sm:$0xff]
  %v83 = vld [vmem:[%s1 + $0x1d0] sm:$0xff]
  %v84 = vld [vmem:[%s1 + $0x1d8] sm:$0xff]
  %v85 = vld [vmem:[%s1 + $0x1e0] sm:$0xff]
  %v86 = vld [vmem:[%s1 + $0x1e8] sm:$0xff]
  %v87 = vld [vmem:[%s1 + $0x1f0] sm:$0xff]
  %v88 = vld [vmem:[%s1 + $0x1f8] sm:$0xff]
  %v89 = vld [vmem:[%s1 + $0x200] sm:$0xff]
  %v90 = vld [vmem:[%s1 + $0x208] sm:$0xff]
  %v91 = vld [vmem:[%s1 + $0x210] sm:$0xff]
  %v92 = vld [vmem:[%s1 + $0x218] sm:$0xff]
  %v93 = vld [vmem:[%s1 + $0x220] sm:$0xff]
  %v94 = vld [vmem:[%s1 + $0x228] sm:$0xff]
  %v95 = vld [vmem:[%s1 + $0x230] sm:$0xff]
  %v96 = vld [vmem:[%s1 + $0x238] sm:$0xff]
  %v97 = vld [vmem:[%s1 + $0x240] sm:$0xff]
  %v98 = vld [vmem:[%s1 + $0x248] sm:$0xff]
  %v99 = vld [vmem:[%s1 + $0x250] sm:$0xff]
  %v100 = vld [vmem:[%s1 + $0x258] sm:$0xff]
  %v101 = vld [vmem:[%s1 + $0x260] sm:$0xff]
  %v102 = vld [vmem:[%s1 + $0x268] sm:$0xff]
  %v103 = vld [vmem:[%s1 + $0x270] sm:$0xff]
  %v104 = vld [vmem:[%s1 + $0x278] sm:$0xff]
  %v105 = vld [vmem:[%s1 + $0x280] sm:$0xff]
  %v106 = vld [vmem:[%s1 + $0x288] sm:$0xff]
  %v107 = vld [vmem:[%s1 + $0x290] sm:$0xff]
  %v108 = vld [vmem:[%s1 + $0x298] sm:$0xff]
  %v109 = vld [vmem:[%s1 + $0x2a0] sm:$0xff]
  %v110 = vld [vmem:[%s1 + $0x2a8] sm:$0xff]
  %v111 = vld [vmem:[%s1 + $0x2b0] sm:$0xff]
  %v112 = vld [vmem:[%s1 + $0x2b8] sm:$0xff]
  %v113 = vld [vmem:[%s1 + $0x2c0] sm:$0xff]
  %v114 = vld [vmem:[%s1 + $0x2c8] sm:$0xff]
  %v115 = vld [vmem:[%s1 + $0x2d0] sm:$0xff]
  %v116 = vld [vmem:[%s1 + $0x2d8] sm:$0xff]
  %v117 = vld [vmem:[%s1 + $0x2e0] sm:$0xff]
  %v118 = vld [vmem:[%s1 + $0x2e8] sm:$0xff]
  %v119 = vld [vmem:[%s1 + $0x2f0] sm:$0xff]
  %v120 = vld [vmem:[%s1 + $0x2f8] sm:$0xff]
  %v121 = vld [vmem:[%s1 + $0x300] sm:$0xff]
  %v122 = vld [vmem:[%s1 + $0x308] sm:$0xff]
  %v123 = vld [vmem:[%s1 + $0x310] sm:$0xff]
  %v124 = vld [vmem:[%s1 + $0x318] sm:$0xff]
  %v125 = vld [vmem:[%s1 + $0x320] sm:$0xff]
  %v126 = vld [vmem:[%s1 + $0x328] sm:$0xff]
  %v127 = vld [vmem:[%s1 + $0x330] sm:$0xff]
  %v128 = vld [vmem:[%s1 + $0x338] sm:$0xff]
  %v129 = vld [vmem:[%s1 + $0x340] sm:$0xff]
  %v130 = vld [vmem:[%s1 + $0x348] sm:$0xff]
  %v131 = vld [vmem:[%s1 + $0x350] sm:$0xff]
  %v132 = vld [vmem:[%s1 + $0x358] sm:$0xff]
  %v141 = vunpack.c.l.b16 %v17
  %v142 = vunpack.c.h.b16 %v17
  %v143 = vunpack.c.l.b16 %v18
  %v144 = vunpack.c.h.b16 %v18
  %v145 = vunpack.c.l.b16 %v19
  %v146 = vunpack.c.h.b16 %v19
  %v147 = vunpack.c.l.b16 %v20
  %v148 = vunpack.c.l.b16 %v21
  %v149 = vunpack.c.h.b16 %v21
  %v150 = vunpack.c.l.b16 %v22
  %v151 = vunpack.c.h.b16 %v22
  %v152 = vunpack.c.l.b16 %v23
  %v153 = vunpack.c.h.b16 %v23
  %v154 = vunpack.c.l.b16 %v24
  %v155 = vpack.c.b16 %v148, %v141
  %v156 = vpack.c.b16 %v149, %v142
  %v157 = vpack.c.b16 %v150, %v143
  %v158 = vpack.c.b16 %v151, %v144
  %v159 = vpack.c.b16 %v152, %v145
  %v160 = vpack.c.b16 %v153, %v146
  %v161 = vpack.c.b16 %v154, %v147
  %v276 = vunpack.c.l.b16 %v25
  %v277 = vunpack.c.h.b16 %v25
  %v278 = vunpack.c.l.b16 %v26
  %v279 = vunpack.c.h.b16 %v26
  %v280 = vunpack.c.l.b16 %v27
  %v281 = vunpack.c.h.b16 %v27
  %v282 = vunpack.c.l.b16 %v28
  %v283 = vunpack.c.h.b16 %v28
  %v284 = vunpack.c.l.b16 %v29
  %v285 = vunpack.c.h.b16 %v29
  %v286 = vunpack.c.l.b16 %v30
  %v287 = vunpack.c.h.b16 %v30
  %v288 = vunpack.c.l.b16 %v31
  %v289 = vunpack.c.h.b16 %v31
  %v290 = vunpack.c.l.b16 %v32
  %v291 = vunpack.c.h.b16 %v32
  %v292 = vunpack.c.l.b16 %v33
  %v293 = vunpack.c.h.b16 %v33
  %v294 = vunpack.c.l.b16 %v34
  %v295 = vunpack.c.h.b16 %v34
  %v296 = vunpack.c.l.b16 %v35
  %v297 = vunpack.c.h.b16 %v35
  %v298 = vunpack.c.l.b16 %v36
  %v299 = vunpack.c.h.b16 %v36
  %v300 = vunpack.c.l.b16 %v37
  %v301 = vunpack.c.h.b16 %v37
  %v302 = vunpack.c.l.b16 %v38
  %v303 = vunpack.c.h.b16 %v38
  %v304 = vunpack.c.l.b16 %v39
  %v305 = vunpack.c.h.b16 %v39
  %v306 = vunpack.c.l.b16 %v40
  %v307 = vunpack.c.h.b16 %v40
  %v308 = vunpack.c.l.b16 %v41
  %v309 = vunpack.c.h.b16 %v41
  %v310 = vunpack.c.l.b16 %v42
  %v311 = vunpack.c.h.b16 %v42
  %v312 = vunpack.c.l.b16 %v43
  %v313 = vunpack.c.h.b16 %v43
  %v314 = vunpack.c.l.b16 %v44
  %v315 = vunpack.c.h.b16 %v44
  %v316 = vunpack.c.l.b16 %v45
  %v317 = vunpack.c.h.b16 %v45
  %v318 = vunpack.c.l.b16 %v46
  %v319 = vunpack.c.h.b16 %v46
  %v320 = vunpack.c.l.b16 %v47
  %v321 = vunpack.c.h.b16 %v47
  %v322 = vunpack.c.l.b16 %v48
  %v323 = vunpack.c.h.b16 %v48
  %v324 = vunpack.c.l.b16 %v49
  %v325 = vunpack.c.h.b16 %v49
  %v326 = vunpack.c.l.b16 %v50
  %v327 = vunpack.c.h.b16 %v50
  %v328 = vunpack.c.l.b16 %v51
  %v329 = vunpack.c.h.b16 %v51
  %v330 = vunpack.c.l.b16 %v52
  %v331 = vunpack.c.h.b16 %v52
  %v332 = vunpack.c.l.b16 %v53
  %v333 = vunpack.c.h.b16 %v53
  %v334 = vunpack.c.l.b16 %v54
  %v335 = vunpack.c.h.b16 %v54
  %v336 = vunpack.c.l.b16 %v55
  %v337 = vunpack.c.h.b16 %v55
  %v338 = vunpack.c.l.b16 %v56
  %v339 = vunpack.c.h.b16 %v56
  %v340 = vunpack.c.l.b16 %v57
  %v341 = vunpack.c.h.b16 %v57
  %v342 = vunpack.c.l.b16 %v58
  %v343 = vunpack.c.h.b16 %v58
  %v344 = vunpack.c.l.b16 %v59
  %v345 = vunpack.c.h.b16 %v59
  %v346 = vunpack.c.l.b16 %v60
  %v347 = vunpack.c.h.b16 %v60
  %v348 = vunpack.c.l.b16 %v61
  %v349 = vunpack.c.h.b16 %v61
  %v350 = vunpack.c.l.b16 %v62
  %v351 = vunpack.c.h.b16 %v62
  %v352 = vunpack.c.l.b16 %v63
  %v353 = vunpack.c.h.b16 %v63
  %v354 = vunpack.c.l.b16 %v64
  %v355 = vunpack.c.h.b16 %v64
  %v356 = vunpack.c.l.b16 %v65
  %v357 = vunpack.c.h.b16 %v65
  %v358 = vunpack.c.l.b16 %v66
  %v359 = vunpack.c.h.b16 %v66
  %v360 = vunpack.c.l.b16 %v67
  %v361 = vunpack.c.h.b16 %v67
  %v362 = vunpack.c.l.b16 %v68
  %v363 = vunpack.c.h.b16 %v68
  %v364 = vunpack.c.l.b16 %v69
  %v365 = vunpack.c.h.b16 %v69
  %v366 = vunpack.c.l.b16 %v70
  %v367 = vunpack.c.h.b16 %v70
  %v368 = vunpack.c.l.b16 %v71
  %v369 = vunpack.c.h.b16 %v71
  %v370 = vunpack.c.l.b16 %v72
  %v371 = vunpack.c.h.b16 %v72
  %v372 = vunpack.c.l.b16 %v73
  %v373 = vunpack.c.h.b16 %v73
  %v374 = vunpack.c.l.b16 %v74
  %v375 = vunpack.c.h.b16 %v74
  %v376 = vunpack.c.l.b16 %v75
  %v377 = vunpack.c.h.b16 %v75
  %v378 = vunpack.c.l.b16 %v76
  %v379 = vunpack.c.h.b16 %v76
  %v380 = vunpack.c.l.b16 %v77
  %v381 = vunpack.c.h.b16 %v77
  %v382 = vunpack.c.l.b16 %v78
  %v383 = vunpack.c.h.b16 %v78
  %v384 = vunpack.c.l.b16 %v79
  %v385 = vunpack.c.h.b16 %v79
  %v386 = vunpack.c.l.b16 %v80
  %v387 = vunpack.c.h.b16 %v80
  %v388 = vunpack.c.l.b16 %v81
  %v389 = vunpack.c.h.b16 %v81
  %v390 = vunpack.c.l.b16 %v82
  %v391 = vunpack.c.h.b16 %v82
  %v392 = vunpack.c.l.b16 %v83
  %v393 = vunpack.c.h.b16 %v83
  %v394 = vunpack.c.l.b16 %v84
  %v395 = vunpack.c.h.b16 %v84
  %v396 = vunpack.c.l.b16 %v85
  %v397 = vunpack.c.h.b16 %v85
  %v398 = vunpack.c.l.b16 %v86
  %v399 = vunpack.c.h.b16 %v86
  %v400 = vunpack.c.l.b16 %v87
  %v401 = vunpack.c.h.b16 %v87
  %v402 = vunpack.c.l.b16 %v88
  %v403 = vunpack.c.h.b16 %v88
  %v404 = vunpack.c.l.b16 %v89
  %v405 = vunpack.c.h.b16 %v89
  %v406 = vunpack.c.l.b16 %v90
  %v407 = vunpack.c.h.b16 %v90
  %v408 = vunpack.c.l.b16 %v91
  %v409 = vunpack.c.h.b16 %v91
  %v410 = vunpack.c.l.b16 %v92
  %v411 = vunpack.c.h.b16 %v92
  %v412 = vunpack.c.l.b16 %v93
  %v413 = vunpack.c.h.b16 %v93
  %v414 = vunpack.c.l.b16 %v94
  %v415 = vunpack.c.h.b16 %v94
  %v416 = vunpack.c.l.b16 %v95
  %v417 = vunpack.c.h.b16 %v95
  %v418 = vunpack.c.l.b16 %v96
  %v419 = vunpack.c.h.b16 %v96
  %v420 = vunpack.c.l.b16 %v97
  %v421 = vunpack.c.h.b16 %v97
  %v422 = vunpack.c.l.b16 %v98
  %v423 = vunpack.c.h.b16 %v98
  %v424 = vunpack.c.l.b16 %v99
  %v425 = vunpack.c.h.b16 %v99
  %v426 = vunpack.c.l.b16 %v100
  %v427 = vunpack.c.h.b16 %v100
  %v428 = vunpack.c.l.b16 %v101
  %v429 = vunpack.c.h.b16 %v101
  %v430 = vunpack.c.l.b16 %v102
  %v431 = vunpack.c.h.b16 %v102
  %v432 = vunpack.c.l.b16 %v103
  %v433 = vunpack.c.h.b16 %v103
  %v434 = vunpack.c.l.b16 %v104
  %v435 = vunpack.c.h.b16 %v104
  %v436 = vunpack.c.l.b16 %v105
  %v437 = vunpack.c.h.b16 %v105
  %v438 = vunpack.c.l.b16 %v106
  %v439 = vunpack.c.h.b16 %v106
  %v440 = vunpack.c.l.b16 %v107
  %v441 = vunpack.c.h.b16 %v107
  %v442 = vunpack.c.l.b16 %v108
  %v443 = vunpack.c.h.b16 %v108
  %v444 = vunpack.c.l.b16 %v109
  %v445 = vunpack.c.h.b16 %v109
  %v446 = vunpack.c.l.b16 %v110
  %v447 = vunpack.c.h.b16 %v110
  %v448 = vunpack.c.l.b16 %v111
  %v449 = vunpack.c.h.b16 %v111
  %v450 = vunpack.c.l.b16 %v112
  %v451 = vunpack.c.h.b16 %v112
  %v452 = vunpack.c.l.b16 %v113
  %v453 = vunpack.c.h.b16 %v113
  %v454 = vunpack.c.l.b16 %v114
  %v455 = vunpack.c.h.b16 %v114
  %v456 = vunpack.c.l.b16 %v115
  %v457 = vunpack.c.h.b16 %v115
  %v458 = vunpack.c.l.b16 %v116
  %v459 = vunpack.c.h.b16 %v116
  %v460 = vunpack.c.l.b16 %v117
  %v461 = vunpack.c.h.b16 %v117
  %v462 = vunpack.c.l.b16 %v118
  %v463 = vunpack.c.h.b16 %v118
  %v464 = vunpack.c.l.b16 %v119
  %v465 = vunpack.c.h.b16 %v119
  %v466 = vunpack.c.l.b16 %v120
  %v467 = vunpack.c.h.b16 %v120
  %v468 = vunpack.c.l.b16 %v121
  %v469 = vunpack.c.h.b16 %v121
  %v470 = vunpack.c.l.b16 %v122
  %v471 = vunpack.c.h.b16 %v122
  %v472 = vunpack.c.l.b16 %v123
  %v473 = vunpack.c.h.b16 %v123
  %v474 = vunpack.c.l.b16 %v124
  %v475 = vunpack.c.h.b16 %v124
  %v476 = vunpack.c.l.b16 %v125
  %v477 = vunpack.c.h.b16 %v125
  %v478 = vunpack.c.l.b16 %v126
  %v479 = vunpack.c.h.b16 %v126
  %v480 = vunpack.c.l.b16 %v127
  %v481 = vunpack.c.h.b16 %v127
  %v482 = vunpack.c.l.b16 %v128
  %v483 = vunpack.c.h.b16 %v128
  %v484 = vunpack.c.l.b16 %v129
  %v485 = vunpack.c.h.b16 %v129
  %v486 = vunpack.c.l.b16 %v130
  %v487 = vunpack.c.h.b16 %v130
  %v488 = vunpack.c.l.b16 %v131
  %v489 = vunpack.c.h.b16 %v131
  %v490 = vunpack.c.l.b16 %v132
  %v491 = vunpack.c.h.b16 %v132
  %v492 = vpack.c.b16 %v278, %v276
  %v493 = vpack.c.b16 %v279, %v277
  %v494 = vpack.c.b16 %v282, %v280
  %v495 = vpack.c.b16 %v283, %v281
  %v496 = vpack.c.b16 %v286, %v284
  %v497 = vpack.c.b16 %v287, %v285
  %v498 = vpack.c.b16 %v290, %v288
  %v499 = vpack.c.b16 %v291, %v289
  %v500 = vpack.c.b16 %v294, %v292
  %v501 = vpack.c.b16 %v295, %v293
  %v502 = vpack.c.b16 %v298, %v296
  %v503 = vpack.c.b16 %v299, %v297
  %v504 = vpack.c.b16 %v302, %v300
  %v505 = vpack.c.b16 %v303, %v301
  %v506 = vpack.c.b16 %v306, %v304
  %v507 = vpack.c.b16 %v307, %v305
  %v508 = vpack.c.b16 %v310, %v308
  %v509 = vpack.c.b16 %v311, %v309
  %v510 = vpack.c.b16 %v314, %v312
  %v511 = vpack.c.b16 %v315, %v313
  %v512 = vpack.c.b16 %v318, %v316
  %v513 = vpack.c.b16 %v319, %v317
  %v514 = vpack.c.b16 %v322, %v320
  %v515 = vpack.c.b16 %v323, %v321
  %v516 = vpack.c.b16 %v326, %v324
  %v517 = vpack.c.b16 %v327, %v325
  %v518 = vpack.c.b16 %v330, %v328
  %v519 = vpack.c.b16 %v331, %v329
  %v520 = vpack.c.b16 %v334, %v332
  %v521 = vpack.c.b16 %v335, %v333
  %v522 = vpack.c.b16 %v338, %v336
  %v523 = vpack.c.b16 %v339, %v337
  %v524 = vpack.c.b16 %v342, %v340
  %v525 = vpack.c.b16 %v343, %v341
  %v526 = vpack.c.b16 %v346, %v344
  %v527 = vpack.c.b16 %v347, %v345
  %v528 = vpack.c.b16 %v350, %v348
  %v529 = vpack.c.b16 %v351, %v349
  %v530 = vpack.c.b16 %v354, %v352
  %v531 = vpack.c.b16 %v355, %v353
  %v532 = vpack.c.b16 %v358, %v356
  %v533 = vpack.c.b16 %v359, %v357
  %v534 = vpack.c.b16 %v362, %v360
  %v535 = vpack.c.b16 %v363, %v361
  %v536 = vpack.c.b16 %v366, %v364
  %v537 = vpack.c.b16 %v367, %v365
  %v538 = vpack.c.b16 %v370, %v368
  %v539 = vpack.c.b16 %v371, %v369
  %v540 = vpack.c.b16 %v374, %v372
  %v541 = vpack.c.b16 %v375, %v373
  %v542 = vpack.c.b16 %v378, %v376
  %v543 = vpack.c.b16 %v379, %v377
  %v544 = vpack.c.b16 %v382, %v380
  %v545 = vpack.c.b16 %v383, %v381
  %v546 = vpack.c.b16 %v386, %v384
  %v547 = vpack.c.b16 %v387, %v385
  %v548 = vpack.c.b16 %v390, %v388
  %v549 = vpack.c.b16 %v391, %v389
  %v550 = vpack.c.b16 %v394, %v392
  %v551 = vpack.c.b16 %v395, %v393
  %v552 = vpack.c.b16 %v398, %v396
  %v553 = vpack.c.b16 %v399, %v397
  %v554 = vpack.c.b16 %v402, %v400
  %v555 = vpack.c.b16 %v403, %v401
  %v556 = vpack.c.b16 %v406, %v404
  %v557 = vpack.c.b16 %v407, %v405
  %v558 = vpack.c.b16 %v410, %v408
  %v559 = vpack.c.b16 %v411, %v409
  %v560 = vpack.c.b16 %v414, %v412
  %v561 = vpack.c.b16 %v415, %v413
  %v562 = vpack.c.b16 %v418, %v416
  %v563 = vpack.c.b16 %v419, %v417
  %v564 = vpack.c.b16 %v422, %v420
  %v565 = vpack.c.b16 %v423, %v421
  %v566 = vpack.c.b16 %v426, %v424
  %v567 = vpack.c.b16 %v427, %v425
  %v568 = vpack.c.b16 %v430, %v428
  %v569 = vpack.c.b16 %v431, %v429
  %v570 = vpack.c.b16 %v434, %v432
  %v571 = vpack.c.b16 %v435, %v433
  %v572 = vpack.c.b16 %v438, %v436
  %v573 = vpack.c.b16 %v439, %v437
  %v574 = vpack.c.b16 %v442, %v440
  %v575 = vpack.c.b16 %v443, %v441
  %v576 = vpack.c.b16 %v446, %v444
  %v577 = vpack.c.b16 %v447, %v445
  %v578 = vpack.c.b16 %v450, %v448
  %v579 = vpack.c.b16 %v451, %v449
  %v580 = vpack.c.b16 %v454, %v452
  %v581 = vpack.c.b16 %v455, %v453
  %v582 = vpack.c.b16 %v458, %v456
  %v583 = vpack.c.b16 %v459, %v457
  %v584 = vpack.c.b16 %v462, %v460
  %v585 = vpack.c.b16 %v463, %v461
  %v586 = vpack.c.b16 %v466, %v464
  %v587 = vpack.c.b16 %v467, %v465
  %v588 = vpack.c.b16 %v470, %v468
  %v589 = vpack.c.b16 %v471, %v469
  %v590 = vpack.c.b16 %v474, %v472
  %v591 = vpack.c.b16 %v475, %v473
  %v592 = vpack.c.b16 %v478, %v476
  %v593 = vpack.c.b16 %v479, %v477
  %v594 = vpack.c.b16 %v482, %v480
  %v595 = vpack.c.b16 %v483, %v481
  %v596 = vpack.c.b16 %v486, %v484
  %v597 = vpack.c.b16 %v487, %v485
  %v598 = vpack.c.b16 %v490, %v488
  %v599 = vpack.c.b16 %v491, %v489
  %vm708 = vcmask 785408
  %v710 = vsel %vm708, %v161, 0
  %712 = vmatpush.bf16.msra.mxu0 %v506
  %713 = vmatpush.bf16.msra.mxu0 %v504
  %714 = vmatpush.bf16.msra.mxu0 %v502
  %715 = vmatpush.bf16.msra.mxu0 %v500
  %716 = vmatpush.bf16.msra.mxu0 %v498
  %717 = vmatpush.bf16.msra.mxu0 %v496
  %718 = vmatpush.bf16.msra.mxu0 %v494
  %719 = vmatpush.bf16.msra.mxu0 %v492
  %720 = vmatmul.bf16.gmra.mxu0 %v155
  %v721 = vpop.f32.mrf.mxu0
  %v722 = vadd.f32 0.0, %v721
  %v723 = vpop.f32.mrf.mxu0
  %v724 = vadd.f32 0.0, %v723
  %725 = vdwg.mxu0
  %726 = vmatpush.bf16.msra.mxu0 %v522
  %727 = vmatpush.bf16.msra.mxu0 %v520
  %728 = vmatpush.bf16.msra.mxu0 %v518
  %729 = vmatpush.bf16.msra.mxu0 %v516
  %730 = vmatpush.bf16.msra.mxu0 %v514
  %731 = vmatpush.bf16.msra.mxu0 %v512
  %732 = vmatpush.bf16.msra.mxu0 %v510
  %733 = vmatpush.bf16.msra.mxu0 %v508
  %734 = vmatmul.bf16.gmra.mxu0 %v156
  %v735 = vpop.f32.mrf.mxu0
  %v736 = vadd.f32 %v722, %v735
  %v737 = vpop.f32.mrf.mxu0
  %v738 = vadd.f32 %v724, %v737
  %739 = vdwg.mxu0
  %740 = vmatpush.bf16.msra.mxu0 %v538
  %741 = vmatpush.bf16.msra.mxu0 %v536
  %742 = vmatpush.bf16.msra.mxu0 %v534
  %743 = vmatpush.bf16.msra.mxu0 %v532
  %744 = vmatpush.bf16.msra.mxu0 %v530
  %745 = vmatpush.bf16.msra.mxu0 %v528
  %746 = vmatpush.bf16.msra.mxu0 %v526
  %747 = vmatpush.bf16.msra.mxu0 %v524
  %748 = vmatmul.bf16.gmra.mxu0 %v157
  %v749 = vpop.f32.mrf.mxu0
  %v750 = vadd.f32 %v736, %v749
  %v751 = vpop.f32.mrf.mxu0
  %v752 = vadd.f32 %v738, %v751
  %753 = vdwg.mxu0
  %754 = vmatpush.bf16.msra.mxu0 %v554
  %755 = vmatpush.bf16.msra.mxu0 %v552
  %756 = vmatpush.bf16.msra.mxu0 %v550
  %757 = vmatpush.bf16.msra.mxu0 %v548
  %758 = vmatpush.bf16.msra.mxu0 %v546
  %759 = vmatpush.bf16.msra.mxu0 %v544
  %760 = vmatpush.bf16.msra.mxu0 %v542
  %761 = vmatpush.bf16.msra.mxu0 %v540
  %762 = vmatmul.bf16.gmra.mxu0 %v158
  %v763 = vpop.f32.mrf.mxu0
  %v764 = vadd.f32 %v750, %v763
  %v765 = vpop.f32.mrf.mxu0
  %v766 = vadd.f32 %v752, %v765
  %767 = vdwg.mxu0
  %768 = vmatpush.bf16.msra.mxu0 %v570
  %769 = vmatpush.bf16.msra.mxu0 %v568
  %770 = vmatpush.bf16.msra.mxu0 %v566
  %771 = vmatpush.bf16.msra.mxu0 %v564
  %772 = vmatpush.bf16.msra.mxu0 %v562
  %773 = vmatpush.bf16.msra.mxu0 %v560
  %774 = vmatpush.bf16.msra.mxu0 %v558
  %775 = vmatpush.bf16.msra.mxu0 %v556
  %776 = vmatmul.bf16.gmra.mxu0 %v159
  %v777 = vpop.f32.mrf.mxu0
  %v778 = vadd.f32 %v764, %v777
  %v779 = vpop.f32.mrf.mxu0
  %v780 = vadd.f32 %v766, %v779
  %781 = vdwg.mxu0
  %782 = vmatpush.bf16.msra.mxu0 %v586
  %783 = vmatpush.bf16.msra.mxu0 %v584
  %784 = vmatpush.bf16.msra.mxu0 %v582
  %785 = vmatpush.bf16.msra.mxu0 %v580
  %786 = vmatpush.bf16.msra.mxu0 %v578
  %787 = vmatpush.bf16.msra.mxu0 %v576
  %788 = vmatpush.bf16.msra.mxu0 %v574
  %789 = vmatpush.bf16.msra.mxu0 %v572
  %790 = vmatmul.bf16.gmra.mxu0 %v160
  %v791 = vpop.f32.mrf.mxu0
  %v792 = vadd.f32 %v778, %v791
  %v793 = vpop.f32.mrf.mxu0
  %v794 = vadd.f32 %v780, %v793
  %795 = vdwg.mxu0
  %796 = vmatpush.bf16.msra.mxu0 0
  %797 = vmatpush.bf16.msra.mxu0 0
  %798 = vmatpush.bf16.msra.mxu0 %v598
  %799 = vmatpush.bf16.msra.mxu0 %v596
  %800 = vmatpush.bf16.msra.mxu0 %v594
  %801 = vmatpush.bf16.msra.mxu0 %v592
  %802 = vmatpush.bf16.msra.mxu0 %v590
  %803 = vmatpush.bf16.msra.mxu0 %v588
  %804 = vmatmul.bf16.gmra.mxu0 %v710
  %v805 = vpop.f32.mrf.mxu0
  %v806 = vadd.f32 %v792, %v805
  %v807 = vpop.f32.mrf.mxu0
  %v808 = vadd.f32 %v794, %v807
  %809 = vdwg.mxu0
  %810 = vmatpush.bf16.msra.mxu0 %v507
  %811 = vmatpush.bf16.msra.mxu0 %v505
  %812 = vmatpush.bf16.msra.mxu0 %v503
  %813 = vmatpush.bf16.msra.mxu0 %v501
  %814 = vmatpush.bf16.msra.mxu0 %v499
  %815 = vmatpush.bf16.msra.mxu0 %v497
  %816 = vmatpush.bf16.msra.mxu0 %v495
  %817 = vmatpush.bf16.msra.mxu0 %v493
  %818 = vmatmul.bf16.gmra.mxu0 %v155
  %v819 = vpop.f32.mrf.mxu0
  %v820 = vadd.f32 0.0, %v819
  %v821 = vpop.f32.mrf.mxu0
  %v822 = vadd.f32 0.0, %v821
  %823 = vdwg.mxu0
  %824 = vmatpush.bf16.msra.mxu0 %v523
  %825 = vmatpush.bf16.msra.mxu0 %v521
  %826 = vmatpush.bf16.msra.mxu0 %v519
  %827 = vmatpush.bf16.msra.mxu0 %v517
  %828 = vmatpush.bf16.msra.mxu0 %v515
  %829 = vmatpush.bf16.msra.mxu0 %v513
  %830 = vmatpush.bf16.msra.mxu0 %v511
  %831 = vmatpush.bf16.msra.mxu0 %v509
  %832 = vmatmul.bf16.gmra.mxu0 %v156
  %v833 = vpop.f32.mrf.mxu0
  %v834 = vadd.f32 %v820, %v833
  %v835 = vpop.f32.mrf.mxu0
  %v836 = vadd.f32 %v822, %v835
  %837 = vdwg.mxu0
  %838 = vmatpush.bf16.msra.mxu0 %v539
  %839 = vmatpush.bf16.msra.mxu0 %v537
  %840 = vmatpush.bf16.msra.mxu0 %v535
  %841 = vmatpush.bf16.msra.mxu0 %v533
  %842 = vmatpush.bf16.msra.mxu0 %v531
  %843 = vmatpush.bf16.msra.mxu0 %v529
  %844 = vmatpush.bf16.msra.mxu0 %v527
  %845 = vmatpush.bf16.msra.mxu0 %v525
  %846 = vmatmul.bf16.gmra.mxu0 %v157
  %v847 = vpop.f32.mrf.mxu0
  %v848 = vadd.f32 %v834, %v847
  %v849 = vpop.f32.mrf.mxu0
  %v850 = vadd.f32 %v836, %v849
  %851 = vdwg.mxu0
  %852 = vmatpush.bf16.msra.mxu0 %v555
  %853 = vmatpush.bf16.msra.mxu0 %v553
  %854 = vmatpush.bf16.msra.mxu0 %v551
  %855 = vmatpush.bf16.msra.mxu0 %v549
  %856 = vmatpush.bf16.msra.mxu0 %v547
  %857 = vmatpush.bf16.msra.mxu0 %v545
  %858 = vmatpush.bf16.msra.mxu0 %v543
  %859 = vmatpush.bf16.msra.mxu0 %v541
  %860 = vmatmul.bf16.gmra.mxu0 %v158
  %v861 = vpop.f32.mrf.mxu0
  %v862 = vadd.f32 %v848, %v861
  %v863 = vpop.f32.mrf.mxu0
  %v864 = vadd.f32 %v850, %v863
  %865 = vdwg.mxu0
  %866 = vmatpush.bf16.msra.mxu0 %v571
  %867 = vmatpush.bf16.msra.mxu0 %v569
  %868 = vmatpush.bf16.msra.mxu0 %v567
  %869 = vmatpush.bf16.msra.mxu0 %v565
  %870 = vmatpush.bf16.msra.mxu0 %v563
  %871 = vmatpush.bf16.msra.mxu0 %v561
  %872 = vmatpush.bf16.msra.mxu0 %v559
  %873 = vmatpush.bf16.msra.mxu0 %v557
  %874 = vmatmul.bf16.gmra.mxu0 %v159
  %v875 = vpop.f32.mrf.mxu0
  %v876 = vadd.f32 %v862, %v875
  %v877 = vpop.f32.mrf.mxu0
  %v878 = vadd.f32 %v864, %v877
  %879 = vdwg.mxu0
  %880 = vmatpush.bf16.msra.mxu0 %v587
  %881 = vmatpush.bf16.msra.mxu0 %v585
  %882 = vmatpush.bf16.msra.mxu0 %v583
  %883 = vmatpush.bf16.msra.mxu0 %v581
  %884 = vmatpush.bf16.msra.mxu0 %v579
  %885 = vmatpush.bf16.msra.mxu0 %v577
  %886 = vmatpush.bf16.msra.mxu0 %v575
  %887 = vmatpush.bf16.msra.mxu0 %v573
  %888 = vmatmul.bf16.gmra.mxu0 %v160
  %v889 = vpop.f32.mrf.mxu0
  %v890 = vadd.f32 %v876, %v889
  %v891 = vpop.f32.mrf.mxu0
  %v892 = vadd.f32 %v878, %v891
  %893 = vdwg.mxu0
  %894 = vmatpush.bf16.msra.mxu0 0
  %895 = vmatpush.bf16.msra.mxu0 0
  %896 = vmatpush.bf16.msra.mxu0 %v599
  %897 = vmatpush.bf16.msra.mxu0 %v597
  %898 = vmatpush.bf16.msra.mxu0 %v595
  %899 = vmatpush.bf16.msra.mxu0 %v593
  %900 = vmatpush.bf16.msra.mxu0 %v591
  %901 = vmatpush.bf16.msra.mxu0 %v589
  %902 = vmatmul.bf16.gmra.mxu0 %v710
  %v903 = vpop.f32.mrf.mxu0
  %v904 = vadd.f32 %v890, %v903
  %v905 = vpop.f32.mrf.mxu0
  %v906 = vadd.f32 %v892, %v905
  %907 = vdwg.mxu0
  %v908 = vld [vmem:[%s2] ss:$2 sm:$0x3]
  %v910 = vperm.slane %v908, 0
  %v911 = vperm.slane %v908, 1
  %v914 = vmul.f32 %v806, %v910
  %v915 = vmul.f32 %v904, %v911
  %v916 = vmul.f32 %v808, %v910
  %v917 = vmul.f32 %v906, %v911
  %s918 = scalar_lea.vmem %s2, 1
  %v919 = vld [vmem:[%s918] ss:$2 sm:$0x3]
  %v921 = vperm.slane %v919, 0
  %v922 = vperm.slane %v919, 1
  %v925 = vadd.f32 %v914, %v921
  %v926 = vadd.f32 %v915, %v922
  %v927 = vadd.f32 %v916, %v921
  %v928 = vadd.f32 %v917, %v922
  %v929 = vmax.f32 %v925, 0.0
  %v930 = vmax.f32 %v927, 0.0
  %v931 = vpack.c.bf16 %v929, %v929
  %v932 = vpack.c.bf16 %v930, %v930
  %933 = vst [vmem:[%s3] sm:$0xf] %v931
  %934 = vst [vmem:[%s3 + $0x4] sm:$0xf] %v932
  %v935 = vpack.c.bf16 %v926, %v926
  %v936 = vpack.c.bf16 %v928, %v928
  %937 = vst [vmem:[%s4] sm:$0xf] %v935
  %938 = vst [vmem:[%s4 + $0x4] sm:$0xf] %v936
  // Predicated region
  $region14: #{restnet18_forward.31} parent=0 // pred_check
    _
  $region15: #{restnet18_forward.31} parent=0 // pred_check_branch
    %940 = sbr.rel (0) target = $region17
  $region16: #{restnet18_forward.31} parent=0 // pred_region
    _
  $region17: #{restnet18_forward.31} parent=0 // pred_fallthru
    _
  // Predicated region
  $region18: #{restnet18_forward.31} parent=0 // pred_check
    _
  $region19: #{restnet18_forward.31} parent=0 // pred_check_branch
    %942 = sbr.rel (0) target = $region21
  $region20: #{restnet18_forward.31} parent=0 // pred_region
    _
  $region21: #{restnet18_forward.31} parent=0 // pred_fallthru
    _
  // Predicated region
  $region22: #{restnet18_forward.31} parent=0 // pred_check
    _
  $region23: #{restnet18_forward.31} parent=0 // pred_check_branch
    %944 = sbr.rel (0) target = $region25
  $region24: #{restnet18_forward.31} parent=0 // pred_region
    _
  $region25: #{restnet18_forward.31} parent=0 // pred_fallthru
    _
  // Predicated region
  $region26: #{restnet18_forward.31} parent=0 // pred_check
    _
  $region27: #{restnet18_forward.31} parent=0 // pred_check_branch
    %946 = sbr.rel (0) target = $region29
  $region28: #{restnet18_forward.31} parent=0 // pred_region
    _
  $region29: #{restnet18_forward.31} parent=0 // pred_fallthru
    _

// kernel: restnet18_forward.36
$region0: #{restnet18_forward.36}
  #allocation0 [shape = 'u32[]', space=smem, size = 0x4, offset = 0x4, fixed_abs, tag = 'smem constant byte address 0x4 - core index']
  #allocation1 [shape = 'u32[72,128]{1,0:T(1,128)}', space=vmem, size = 0x9000, scoped, tag = 'internal scratch']
  %s0 = inlined_call_operand.vmem [shape: bf16[16,576], index: 0, kind: input, shape index: {}]
  %s1 = inlined_call_operand.vmem [shape: bf16[576,256], index: 1, kind: input, shape index: {}]
  %s2 = inlined_call_operand.vmem [shape: f32[2,256], index: 2, kind: input, shape index: {}]
  %s3 = inlined_call_operand.vmem [shape: bf16[16,128], index: 3, kind: output, shape index: {0}]
  %s4 = inlined_call_operand.vmem [shape: bf16[16,128], index: 4, kind: output, shape index: {1}]
  %5 = xla_tuple %s3, %s4
  %s6 = sld [smem:[#allocation0]]
  $region30: #{restnet18_forward.36} parent=0
    _
  %s8 = ssub.s32 1, %s6
  %s9 = scalar_select 0, %s8, %s6
  // Predicated region
  $region2: #{restnet18_forward.36} parent=0 // pred_check
    _
  $region3: #{restnet18_forward.36} parent=0 // pred_check_branch
    %11 = sbr.rel (0) target = $region5
  $region4: #{restnet18_forward.36} parent=0 // pred_region
    _
  $region5: #{restnet18_forward.36} parent=0 // pred_fallthru
    _
  // Predicated region
  $region6: #{restnet18_forward.36} parent=0 // pred_check
    _
  $region7: #{restnet18_forward.36} parent=0 // pred_check_branch
    %13 = sbr.rel (0) target = $region9
  $region8: #{restnet18_forward.36} parent=0 // pred_region
    _
  $region9: #{restnet18_forward.36} parent=0 // pred_fallthru
    _
  // Predicated region
  $region10: #{restnet18_forward.36} parent=0 // pred_check
    _
  $region11: #{restnet18_forward.36} parent=0 // pred_check_branch
    %15 = sbr.rel (0) target = $region13
  $region12: #{restnet18_forward.36} parent=0 // pred_region
    _
  $region13: #{restnet18_forward.36} parent=0 // pred_fallthru
    _
  %v17 = vld [vmem:[%s0] sm:$0xff]
  %v18 = vld [vmem:[%s0 + $0x8] sm:$0xff]
  %v19 = vld [vmem:[%s0 + $0x10] sm:$0xf]
  %v20 = vld [vmem:[%s0 + $0x14] sm:$0xff]
  %v21 = vld [vmem:[%s0 + $0x1c] sm:$0xff]
  %v22 = vld [vmem:[%s0 + $0x24] sm:$0xf]
  %v23 = vld [vmem:[%s1] sm:$0xff]
  %v24 = vld [vmem:[%s1 + $0x8] sm:$0xff]
  %v25 = vld [vmem:[%s1 + $0x10] sm:$0xff]
  %v26 = vld [vmem:[%s1 + $0x18] sm:$0xff]
  %v27 = vld [vmem:[%s1 + $0x20] sm:$0xff]
  %v28 = vld [vmem:[%s1 + $0x28] sm:$0xff]
  %v29 = vld [vmem:[%s1 + $0x30] sm:$0xff]
  %v30 = vld [vmem:[%s1 + $0x38] sm:$0xff]
  %v31 = vld [vmem:[%s1 + $0x40] sm:$0xff]
  %v32 = vld [vmem:[%s1 + $0x48] sm:$0xff]
  %v33 = vld [vmem:[%s1 + $0x50] sm:$0xff]
  %v34 = vld [vmem:[%s1 + $0x58] sm:$0xff]
  %v35 = vld [vmem:[%s1 + $0x60] sm:$0xff]
  %v36 = vld [vmem:[%s1 + $0x68] sm:$0xff]
  %v37 = vld [vmem:[%s1 + $0x70] sm:$0xff]
  %v38 = vld [vmem:[%s1 + $0x78] sm:$0xff]
  %v39 = vld [vmem:[%s1 + $0x80] sm:$0xff]
  %v40 = vld [vmem:[%s1 + $0x88] sm:$0xff]
  %v41 = vld [vmem:[%s1 + $0x90] sm:$0xff]
  %v42 = vld [vmem:[%s1 + $0x98] sm:$0xff]
  %v43 = vld [vmem:[%s1 + $0xa0] sm:$0xff]
  %v44 = vld [vmem:[%s1 + $0xa8] sm:$0xff]
  %v45 = vld [vmem:[%s1 + $0xb0] sm:$0xff]
  %v46 = vld [vmem:[%s1 + $0xb8] sm:$0xff]
  %v47 = vld [vmem:[%s1 + $0xc0] sm:$0xff]
  %v48 = vld [vmem:[%s1 + $0xc8] sm:$0xff]
  %v49 = vld [vmem:[%s1 + $0xd0] sm:$0xff]
  %v50 = vld [vmem:[%s1 + $0xd8] sm:$0xff]
  %v51 = vld [vmem:[%s1 + $0xe0] sm:$0xff]
  %v52 = vld [vmem:[%s1 + $0xe8] sm:$0xff]
  %v53 = vld [vmem:[%s1 + $0xf0] sm:$0xff]
  %v54 = vld [vmem:[%s1 + $0xf8] sm:$0xff]
  %v55 = vld [vmem:[%s1 + $0x100] sm:$0xff]
  %v56 = vld [vmem:[%s1 + $0x108] sm:$0xff]
  %v57 = vld [vmem:[%s1 + $0x110] sm:$0xff]
  %v58 = vld [vmem:[%s1 + $0x118] sm:$0xff]
  %v59 = vld [vmem:[%s1 + $0x120] sm:$0xff]
  %v60 = vld [vmem:[%s1 + $0x128] sm:$0xff]
  %v61 = vld [vmem:[%s1 + $0x130] sm:$0xff]
  %v62 = vld [vmem:[%s1 + $0x138] sm:$0xff]
  %v63 = vld [vmem:[%s1 + $0x140] sm:$0xff]
  %v64 = vld [vmem:[%s1 + $0x148] sm:$0xff]
  %v65 = vld [vmem:[%s1 + $0x150] sm:$0xff]
  %v66 = vld [vmem:[%s1 + $0x158] sm:$0xff]
  %v67 = vld [vmem:[%s1 + $0x160] sm:$0xff]
  %v68 = vld [vmem:[%s1 + $0x168] sm:$0xff]
  %v69 = vld [vmem:[%s1 + $0x170] sm:$0xff]
  %v70 = vld [vmem:[%s1 + $0x178] sm:$0xff]
  %v71 = vld [vmem:[%s1 + $0x180] sm:$0xff]
  %v72 = vld [vmem:[%s1 + $0x188] sm:$0xff]
  %v73 = vld [vmem:[%s1 + $0x190] sm:$0xff]
  %v74 = vld [vmem:[%s1 + $0x198] sm:$0xff]
  %v75 = vld [vmem:[%s1 + $0x1a0] sm:$0xff]
  %v76 = vld [vmem:[%s1 + $0x1a8] sm:$0xff]
  %v77 = vld [vmem:[%s1 + $0x1b0] sm:$0xff]
  %v78 = vld [vmem:[%s1 + $0x1b8] sm:$0xff]
  %v79 = vld [vmem:[%s1 + $0x1c0] sm:$0xff]
  %v80 = vld [vmem:[%s1 + $0x1c8] sm:$0xff]
  %v81 = vld [vmem:[%s1 + $0x1d0] sm:$0xff]
  %v82 = vld [vmem:[%s1 + $0x1d8] sm:$0xff]
  %v83 = vld [vmem:[%s1 + $0x1e0] sm:$0xff]
  %v84 = vld [vmem:[%s1 + $0x1e8] sm:$0xff]
  %v85 = vld [vmem:[%s1 + $0x1f0] sm:$0xff]
  %v86 = vld [vmem:[%s1 + $0x1f8] sm:$0xff]
  %v87 = vld [vmem:[%s1 + $0x200] sm:$0xff]
  %v88 = vld [vmem:[%s1 + $0x208] sm:$0xff]
  %v89 = vld [vmem:[%s1 + $0x210] sm:$0xff]
  %v90 = vld [vmem:[%s1 + $0x218] sm:$0xff]
  %v91 = vld [vmem:[%s1 + $0x220] sm:$0xff]
  %v92 = vld [vmem:[%s1 + $0x228] sm:$0xff]
  %v93 = vld [vmem:[%s1 + $0x230] sm:$0xff]
  %v94 = vld [vmem:[%s1 + $0x238] sm:$0xff]
  %v101 = vunpack.c.l.b16 %v17
  %v102 = vunpack.c.h.b16 %v17
  %v103 = vunpack.c.l.b16 %v18
  %v104 = vunpack.c.h.b16 %v18
  %v105 = vunpack.c.l.b16 %v19
  %v106 = vunpack.c.l.b16 %v20
  %v107 = vunpack.c.h.b16 %v20
  %v108 = vunpack.c.l.b16 %v21
  %v109 = vunpack.c.h.b16 %v21
  %v110 = vunpack.c.l.b16 %v22
  %v111 = vpack.c.b16 %v106, %v101
  %v112 = vpack.c.b16 %v107, %v102
  %v113 = vpack.c.b16 %v108, %v103
  %v114 = vpack.c.b16 %v109, %v104
  %v115 = vpack.c.b16 %v110, %v105
  %v192 = vunpack.c.l.b16 %v23
  %v193 = vunpack.c.h.b16 %v23
  %v194 = vunpack.c.l.b16 %v24
  %v195 = vunpack.c.h.b16 %v24
  %v196 = vunpack.c.l.b16 %v25
  %v197 = vunpack.c.h.b16 %v25
  %v198 = vunpack.c.l.b16 %v26
  %v199 = vunpack.c.h.b16 %v26
  %v200 = vunpack.c.l.b16 %v27
  %v201 = vunpack.c.h.b16 %v27
  %v202 = vunpack.c.l.b16 %v28
  %v203 = vunpack.c.h.b16 %v28
  %v204 = vunpack.c.l.b16 %v29
  %v205 = vunpack.c.h.b16 %v29
  %v206 = vunpack.c.l.b16 %v30
  %v207 = vunpack.c.h.b16 %v30
  %v208 = vunpack.c.l.b16 %v31
  %v209 = vunpack.c.h.b16 %v31
  %v210 = vunpack.c.l.b16 %v32
  %v211 = vunpack.c.h.b16 %v32
  %v212 = vunpack.c.l.b16 %v33
  %v213 = vunpack.c.h.b16 %v33
  %v214 = vunpack.c.l.b16 %v34
  %v215 = vunpack.c.h.b16 %v34
  %v216 = vunpack.c.l.b16 %v35
  %v217 = vunpack.c.h.b16 %v35
  %v218 = vunpack.c.l.b16 %v36
  %v219 = vunpack.c.h.b16 %v36
  %v220 = vunpack.c.l.b16 %v37
  %v221 = vunpack.c.h.b16 %v37
  %v222 = vunpack.c.l.b16 %v38
  %v223 = vunpack.c.h.b16 %v38
  %v224 = vunpack.c.l.b16 %v39
  %v225 = vunpack.c.h.b16 %v39
  %v226 = vunpack.c.l.b16 %v40
  %v227 = vunpack.c.h.b16 %v40
  %v228 = vunpack.c.l.b16 %v41
  %v229 = vunpack.c.h.b16 %v41
  %v230 = vunpack.c.l.b16 %v42
  %v231 = vunpack.c.h.b16 %v42
  %v232 = vunpack.c.l.b16 %v43
  %v233 = vunpack.c.h.b16 %v43
  %v234 = vunpack.c.l.b16 %v44
  %v235 = vunpack.c.h.b16 %v44
  %v236 = vunpack.c.l.b16 %v45
  %v237 = vunpack.c.h.b16 %v45
  %v238 = vunpack.c.l.b16 %v46
  %v239 = vunpack.c.h.b16 %v46
  %v240 = vunpack.c.l.b16 %v47
  %v241 = vunpack.c.h.b16 %v47
  %v242 = vunpack.c.l.b16 %v48
  %v243 = vunpack.c.h.b16 %v48
  %v244 = vunpack.c.l.b16 %v49
  %v245 = vunpack.c.h.b16 %v49
  %v246 = vunpack.c.l.b16 %v50
  %v247 = vunpack.c.h.b16 %v50
  %v248 = vunpack.c.l.b16 %v51
  %v249 = vunpack.c.h.b16 %v51
  %v250 = vunpack.c.l.b16 %v52
  %v251 = vunpack.c.h.b16 %v52
  %v252 = vunpack.c.l.b16 %v53
  %v253 = vunpack.c.h.b16 %v53
  %v254 = vunpack.c.l.b16 %v54
  %v255 = vunpack.c.h.b16 %v54
  %v256 = vunpack.c.l.b16 %v55
  %v257 = vunpack.c.h.b16 %v55
  %v258 = vunpack.c.l.b16 %v56
  %v259 = vunpack.c.h.b16 %v56
  %v260 = vunpack.c.l.b16 %v57
  %v261 = vunpack.c.h.b16 %v57
  %v262 = vunpack.c.l.b16 %v58
  %v263 = vunpack.c.h.b16 %v58
  %v264 = vunpack.c.l.b16 %v59
  %v265 = vunpack.c.h.b16 %v59
  %v266 = vunpack.c.l.b16 %v60
  %v267 = vunpack.c.h.b16 %v60
  %v268 = vunpack.c.l.b16 %v61
  %v269 = vunpack.c.h.b16 %v61
  %v270 = vunpack.c.l.b16 %v62
  %v271 = vunpack.c.h.b16 %v62
  %v272 = vunpack.c.l.b16 %v63
  %v273 = vunpack.c.h.b16 %v63
  %v274 = vunpack.c.l.b16 %v64
  %v275 = vunpack.c.h.b16 %v64
  %v276 = vunpack.c.l.b16 %v65
  %v277 = vunpack.c.h.b16 %v65
  %v278 = vunpack.c.l.b16 %v66
  %v279 = vunpack.c.h.b16 %v66
  %v280 = vunpack.c.l.b16 %v67
  %v281 = vunpack.c.h.b16 %v67
  %v282 = vunpack.c.l.b16 %v68
  %v283 = vunpack.c.h.b16 %v68
  %v284 = vunpack.c.l.b16 %v69
  %v285 = vunpack.c.h.b16 %v69
  %v286 = vunpack.c.l.b16 %v70
  %v287 = vunpack.c.h.b16 %v70
  %v288 = vunpack.c.l.b16 %v71
  %v289 = vunpack.c.h.b16 %v71
  %v290 = vunpack.c.l.b16 %v72
  %v291 = vunpack.c.h.b16 %v72
  %v292 = vunpack.c.l.b16 %v73
  %v293 = vunpack.c.h.b16 %v73
  %v294 = vunpack.c.l.b16 %v74
  %v295 = vunpack.c.h.b16 %v74
  %v296 = vunpack.c.l.b16 %v75
  %v297 = vunpack.c.h.b16 %v75
  %v298 = vunpack.c.l.b16 %v76
  %v299 = vunpack.c.h.b16 %v76
  %v300 = vunpack.c.l.b16 %v77
  %v301 = vunpack.c.h.b16 %v77
  %v302 = vunpack.c.l.b16 %v78
  %v303 = vunpack.c.h.b16 %v78
  %v304 = vunpack.c.l.b16 %v79
  %v305 = vunpack.c.h.b16 %v79
  %v306 = vunpack.c.l.b16 %v80
  %v307 = vunpack.c.h.b16 %v80
  %v308 = vunpack.c.l.b16 %v81
  %v309 = vunpack.c.h.b16 %v81
  %v310 = vunpack.c.l.b16 %v82
  %v311 = vunpack.c.h.b16 %v82
  %v312 = vunpack.c.l.b16 %v83
  %v313 = vunpack.c.h.b16 %v83
  %v314 = vunpack.c.l.b16 %v84
  %v315 = vunpack.c.h.b16 %v84
  %v316 = vunpack.c.l.b16 %v85
  %v317 = vunpack.c.h.b16 %v85
  %v318 = vunpack.c.l.b16 %v86
  %v319 = vunpack.c.h.b16 %v86
  %v320 = vunpack.c.l.b16 %v87
  %v321 = vunpack.c.h.b16 %v87
  %v322 = vunpack.c.l.b16 %v88
  %v323 = vunpack.c.h.b16 %v88
  %v324 = vunpack.c.l.b16 %v89
  %v325 = vunpack.c.h.b16 %v89
  %v326 = vunpack.c.l.b16 %v90
  %v327 = vunpack.c.h.b16 %v90
  %v328 = vunpack.c.l.b16 %v91
  %v329 = vunpack.c.h.b16 %v91
  %v330 = vunpack.c.l.b16 %v92
  %v331 = vunpack.c.h.b16 %v92
  %v332 = vunpack.c.l.b16 %v93
  %v333 = vunpack.c.h.b16 %v93
  %v334 = vunpack.c.l.b16 %v94
  %v335 = vunpack.c.h.b16 %v94
  %v336 = vpack.c.b16 %v194, %v192
  %v337 = vpack.c.b16 %v195, %v193
  %v338 = vpack.c.b16 %v198, %v196
  %v339 = vpack.c.b16 %v199, %v197
  %v340 = vpack.c.b16 %v202, %v200
  %v341 = vpack.c.b16 %v203, %v201
  %v342 = vpack.c.b16 %v206, %v204
  %v343 = vpack.c.b16 %v207, %v205
  %v344 = vpack.c.b16 %v210, %v208
  %v345 = vpack.c.b16 %v211, %v209
  %v346 = vpack.c.b16 %v214, %v212
  %v347 = vpack.c.b16 %v215, %v213
  %v348 = vpack.c.b16 %v218, %v216
  %v349 = vpack.c.b16 %v219, %v217
  %v350 = vpack.c.b16 %v222, %v220
  %v351 = vpack.c.b16 %v223, %v221
  %v352 = vpack.c.b16 %v226, %v224
  %v353 = vpack.c.b16 %v227, %v225
  %v354 = vpack.c.b16 %v230, %v228
  %v355 = vpack.c.b16 %v231, %v229
  %v356 = vpack.c.b16 %v234, %v232
  %v357 = vpack.c.b16 %v235, %v233
  %v358 = vpack.c.b16 %v238, %v236
  %v359 = vpack.c.b16 %v239, %v237
  %v360 = vpack.c.b16 %v242, %v240
  %v361 = vpack.c.b16 %v243, %v241
  %v362 = vpack.c.b16 %v246, %v244
  %v363 = vpack.c.b16 %v247, %v245
  %v364 = vpack.c.b16 %v250, %v248
  %v365 = vpack.c.b16 %v251, %v249
  %v366 = vpack.c.b16 %v254, %v252
  %v367 = vpack.c.b16 %v255, %v253
  %v368 = vpack.c.b16 %v258, %v256
  %v369 = vpack.c.b16 %v259, %v257
  %v370 = vpack.c.b16 %v262, %v260
  %v371 = vpack.c.b16 %v263, %v261
  %v372 = vpack.c.b16 %v266, %v264
  %v373 = vpack.c.b16 %v267, %v265
  %v374 = vpack.c.b16 %v270, %v268
  %v375 = vpack.c.b16 %v271, %v269
  %v376 = vpack.c.b16 %v274, %v272
  %v377 = vpack.c.b16 %v275, %v273
  %v378 = vpack.c.b16 %v278, %v276
  %v379 = vpack.c.b16 %v279, %v277
  %v380 = vpack.c.b16 %v282, %v280
  %v381 = vpack.c.b16 %v283, %v281
  %v382 = vpack.c.b16 %v286, %v284
  %v383 = vpack.c.b16 %v287, %v285
  %v384 = vpack.c.b16 %v290, %v288
  %v385 = vpack.c.b16 %v291, %v289
  %v386 = vpack.c.b16 %v294, %v292
  %v387 = vpack.c.b16 %v295, %v293
  %v388 = vpack.c.b16 %v298, %v296
  %v389 = vpack.c.b16 %v299, %v297
  %v390 = vpack.c.b16 %v302, %v300
  %v391 = vpack.c.b16 %v303, %v301
  %v392 = vpack.c.b16 %v306, %v304
  %v393 = vpack.c.b16 %v307, %v305
  %v394 = vpack.c.b16 %v310, %v308
  %v395 = vpack.c.b16 %v311, %v309
  %v396 = vpack.c.b16 %v314, %v312
  %v397 = vpack.c.b16 %v315, %v313
  %v398 = vpack.c.b16 %v318, %v316
  %v399 = vpack.c.b16 %v319, %v317
  %v400 = vpack.c.b16 %v322, %v320
  %v401 = vpack.c.b16 %v323, %v321
  %v402 = vpack.c.b16 %v326, %v324
  %v403 = vpack.c.b16 %v327, %v325
  %v404 = vpack.c.b16 %v330, %v328
  %v405 = vpack.c.b16 %v331, %v329
  %v406 = vpack.c.b16 %v334, %v332
  %v407 = vpack.c.b16 %v335, %v333
  %vm480 = vcmask 523264
  %v482 = vsel %vm480, %v115, 0
  %484 = vmatpush.bf16.msra.mxu0 %v350
  %485 = vmatpush.bf16.msra.mxu0 %v348
  %486 = vmatpush.bf16.msra.mxu0 %v346
  %487 = vmatpush.bf16.msra.mxu0 %v344
  %488 = vmatpush.bf16.msra.mxu0 %v342
  %489 = vmatpush.bf16.msra.mxu0 %v340
  %490 = vmatpush.bf16.msra.mxu0 %v338
  %491 = vmatpush.bf16.msra.mxu0 %v336
  %492 = vmatmul.bf16.gmra.mxu0 %v111
  %v493 = vpop.f32.mrf.mxu0
  %v494 = vadd.f32 0.0, %v493
  %v495 = vpop.f32.mrf.mxu0
  %v496 = vadd.f32 0.0, %v495
  %497 = vdwg.mxu0
  %498 = vmatpush.bf16.msra.mxu0 %v366
  %499 = vmatpush.bf16.msra.mxu0 %v364
  %500 = vmatpush.bf16.msra.mxu0 %v362
  %501 = vmatpush.bf16.msra.mxu0 %v360
  %502 = vmatpush.bf16.msra.mxu0 %v358
  %503 = vmatpush.bf16.msra.mxu0 %v356
  %504 = vmatpush.bf16.msra.mxu0 %v354
  %505 = vmatpush.bf16.msra.mxu0 %v352
  %506 = vmatmul.bf16.gmra.mxu0 %v112
  %v507 = vpop.f32.mrf.mxu0
  %v508 = vadd.f32 %v494, %v507
  %v509 = vpop.f32.mrf.mxu0
  %v510 = vadd.f32 %v496, %v509
  %511 = vdwg.mxu0
  %512 = vmatpush.bf16.msra.mxu0 %v382
  %513 = vmatpush.bf16.msra.mxu0 %v380
  %514 = vmatpush.bf16.msra.mxu0 %v378
  %515 = vmatpush.bf16.msra.mxu0 %v376
  %516 = vmatpush.bf16.msra.mxu0 %v374
  %517 = vmatpush.bf16.msra.mxu0 %v372
  %518 = vmatpush.bf16.msra.mxu0 %v370
  %519 = vmatpush.bf16.msra.mxu0 %v368
  %520 = vmatmul.bf16.gmra.mxu0 %v113
  %v521 = vpop.f32.mrf.mxu0
  %v522 = vadd.f32 %v508, %v521
  %v523 = vpop.f32.mrf.mxu0
  %v524 = vadd.f32 %v510, %v523
  %525 = vdwg.mxu0
  %526 = vmatpush.bf16.msra.mxu0 %v398
  %527 = vmatpush.bf16.msra.mxu0 %v396
  %528 = vmatpush.bf16.msra.mxu0 %v394
  %529 = vmatpush.bf16.msra.mxu0 %v392
  %530 = vmatpush.bf16.msra.mxu0 %v390
  %531 = vmatpush.bf16.msra.mxu0 %v388
  %532 = vmatpush.bf16.msra.mxu0 %v386
  %533 = vmatpush.bf16.msra.mxu0 %v384
  %534 = vmatmul.bf16.gmra.mxu0 %v114
  %v535 = vpop.f32.mrf.mxu0
  %v536 = vadd.f32 %v522, %v535
  %v537 = vpop.f32.mrf.mxu0
  %v538 = vadd.f32 %v524, %v537
  %539 = vdwg.mxu0
  %540 = vmatpush.bf16.msra.mxu0 0
  %541 = vmatpush.bf16.msra.mxu0 0
  %542 = vmatpush.bf16.msra.mxu0 0
  %543 = vmatpush.bf16.msra.mxu0 0
  %544 = vmatpush.bf16.msra.mxu0 %v406
  %545 = vmatpush.bf16.msra.mxu0 %v404
  %546 = vmatpush.bf16.msra.mxu0 %v402
  %547 = vmatpush.bf16.msra.mxu0 %v400
  %548 = vmatmul.bf16.gmra.mxu0 %v482
  %v549 = vpop.f32.mrf.mxu0
  %v550 = vadd.f32 %v536, %v549
  %v551 = vpop.f32.mrf.mxu0
  %v552 = vadd.f32 %v538, %v551
  %553 = vdwg.mxu0
  %554 = vmatpush.bf16.msra.mxu0 %v351
  %555 = vmatpush.bf16.msra.mxu0 %v349
  %556 = vmatpush.bf16.msra.mxu0 %v347
  %557 = vmatpush.bf16.msra.mxu0 %v345
  %558 = vmatpush.bf16.msra.mxu0 %v343
  %559 = vmatpush.bf16.msra.mxu0 %v341
  %560 = vmatpush.bf16.msra.mxu0 %v339
  %561 = vmatpush.bf16.msra.mxu0 %v337
  %562 = vmatmul.bf16.gmra.mxu0 %v111
  %v563 = vpop.f32.mrf.mxu0
  %v564 = vadd.f32 0.0, %v563
  %v565 = vpop.f32.mrf.mxu0
  %v566 = vadd.f32 0.0, %v565
  %567 = vdwg.mxu0
  %568 = vmatpush.bf16.msra.mxu0 %v367
  %569 = vmatpush.bf16.msra.mxu0 %v365
  %570 = vmatpush.bf16.msra.mxu0 %v363
  %571 = vmatpush.bf16.msra.mxu0 %v361
  %572 = vmatpush.bf16.msra.mxu0 %v359
  %573 = vmatpush.bf16.msra.mxu0 %v357
  %574 = vmatpush.bf16.msra.mxu0 %v355
  %575 = vmatpush.bf16.msra.mxu0 %v353
  %576 = vmatmul.bf16.gmra.mxu0 %v112
  %v577 = vpop.f32.mrf.mxu0
  %v578 = vadd.f32 %v564, %v577
  %v579 = vpop.f32.mrf.mxu0
  %v580 = vadd.f32 %v566, %v579
  %581 = vdwg.mxu0
  %582 = vmatpush.bf16.msra.mxu0 %v383
  %583 = vmatpush.bf16.msra.mxu0 %v381
  %584 = vmatpush.bf16.msra.mxu0 %v379
  %585 = vmatpush.bf16.msra.mxu0 %v377
  %586 = vmatpush.bf16.msra.mxu0 %v375
  %587 = vmatpush.bf16.msra.mxu0 %v373
  %588 = vmatpush.bf16.msra.mxu0 %v371
  %589 = vmatpush.bf16.msra.mxu0 %v369
  %590 = vmatmul.bf16.gmra.mxu0 %v113
  %v591 = vpop.f32.mrf.mxu0
  %v592 = vadd.f32 %v578, %v591
  %v593 = vpop.f32.mrf.mxu0
  %v594 = vadd.f32 %v580, %v593
  %595 = vdwg.mxu0
  %596 = vmatpush.bf16.msra.mxu0 %v399
  %597 = vmatpush.bf16.msra.mxu0 %v397
  %598 = vmatpush.bf16.msra.mxu0 %v395
  %599 = vmatpush.bf16.msra.mxu0 %v393
  %600 = vmatpush.bf16.msra.mxu0 %v391
  %601 = vmatpush.bf16.msra.mxu0 %v389
  %602 = vmatpush.bf16.msra.mxu0 %v387
  %603 = vmatpush.bf16.msra.mxu0 %v385
  %604 = vmatmul.bf16.gmra.mxu0 %v114
  %v605 = vpop.f32.mrf.mxu0
  %v606 = vadd.f32 %v592, %v605
  %v607 = vpop.f32.mrf.mxu0
  %v608 = vadd.f32 %v594, %v607
  %609 = vdwg.mxu0
  %610 = vmatpush.bf16.msra.mxu0 0
  %611 = vmatpush.bf16.msra.mxu0 0
  %612 = vmatpush.bf16.msra.mxu0 0
  %613 = vmatpush.bf16.msra.mxu0 0
  %614 = vmatpush.bf16.msra.mxu0 %v407
  %615 = vmatpush.bf16.msra.mxu0 %v405
  %616 = vmatpush.bf16.msra.mxu0 %v403
  %617 = vmatpush.bf16.msra.mxu0 %v401
  %618 = vmatmul.bf16.gmra.mxu0 %v482
  %v619 = vpop.f32.mrf.mxu0
  %v620 = vadd.f32 %v606, %v619
  %v621 = vpop.f32.mrf.mxu0
  %v622 = vadd.f32 %v608, %v621
  %623 = vdwg.mxu0
  %v624 = vld [vmem:[%s2] ss:$2 sm:$0x3]
  %v626 = vperm.slane %v624, 0
  %v627 = vperm.slane %v624, 1
  %v630 = vmul.f32 %v550, %v626
  %v631 = vmul.f32 %v620, %v627
  %v632 = vmul.f32 %v552, %v626
  %v633 = vmul.f32 %v622, %v627
  %s634 = scalar_lea.vmem %s2, 1
  %v635 = vld [vmem:[%s634] ss:$2 sm:$0x3]
  %v637 = vperm.slane %v635, 0
  %v638 = vperm.slane %v635, 1
  %v641 = vadd.f32 %v630, %v637
  %v642 = vadd.f32 %v631, %v638
  %v643 = vadd.f32 %v632, %v637
  %v644 = vadd.f32 %v633, %v638
  %v645 = vmax.f32 %v641, 0.0
  %v646 = vmax.f32 %v643, 0.0
  %v647 = vpack.c.bf16 %v645, %v645
  %v648 = vpack.c.bf16 %v646, %v646
  %649 = vst [vmem:[%s3] sm:$0xf] %v647
  %650 = vst [vmem:[%s3 + $0x4] sm:$0xf] %v648
  %v651 = vpack.c.bf16 %v642, %v642
  %v652 = vpack.c.bf16 %v644, %v644
  %653 = vst [vmem:[%s4] sm:$0xf] %v651
  %654 = vst [vmem:[%s4 + $0x4] sm:$0xf] %v652
  // Predicated region
  $region14: #{restnet18_forward.36} parent=0 // pred_check
    _
  $region15: #{restnet18_forward.36} parent=0 // pred_check_branch
    %656 = sbr.rel (0) target = $region17
  $region16: #{restnet18_forward.36} parent=0 // pred_region
    _
  $region17: #{restnet18_forward.36} parent=0 // pred_fallthru
    _
  // Predicated region
  $region18: #{restnet18_forward.36} parent=0 // pred_check
    _
  $region19: #{restnet18_forward.36} parent=0 // pred_check_branch
    %658 = sbr.rel (0) target = $region21
  $region20: #{restnet18_forward.36} parent=0 // pred_region
    _
  $region21: #{restnet18_forward.36} parent=0 // pred_fallthru
    _
  // Predicated region
  $region22: #{restnet18_forward.36} parent=0 // pred_check
    _
  $region23: #{restnet18_forward.36} parent=0 // pred_check_branch
    %660 = sbr.rel (0) target = $region25
  $region24: #{restnet18_forward.36} parent=0 // pred_region
    _
  $region25: #{restnet18_forward.36} parent=0 // pred_fallthru
    _
  // Predicated region
  $region26: #{restnet18_forward.36} parent=0 // pred_check
    _
  $region27: #{restnet18_forward.36} parent=0 // pred_check_branch
    %662 = sbr.rel (0) target = $region29
  $region28: #{restnet18_forward.36} parent=0 // pred_region
    _
  $region29: #{restnet18_forward.36} parent=0 // pred_fallthru
    _

// kernel: restnet18_forward.37
$region0: #{restnet18_forward.37}
  #allocation0 [shape = 'u32[]', space=smem, size = 0x4, offset = 0x4, fixed_abs, tag = 'smem constant byte address 0x4 - core index']
  #allocation1 [shape = 'u32[72,128]{1,0:T(1,128)}', space=vmem, size = 0x9000, scoped, tag = 'internal scratch']
  %s0 = inlined_call_operand.vmem [shape: bf16[16,1152], index: 0, kind: input, shape index: {}]
  %s1 = inlined_call_operand.vmem [shape: bf16[1152,128], index: 1, kind: input, shape index: {}]
  %s2 = inlined_call_operand.vmem [shape: f32[2,128], index: 2, kind: input, shape index: {}]
  %s3 = inlined_call_operand.vmem [shape: bf16[16,128], index: 3, kind: input, shape index: {}]
  %s4 = inlined_call_operand.vmem [shape: bf16[16,128], index: 4, kind: output, shape index: {}]
  %s5 = sld [smem:[#allocation0]]
  $region26: #{restnet18_forward.37} parent=0
    _
  %s7 = ssub.s32 1, %s5
  %s8 = scalar_select 0, %s7, %s5
  // Predicated region
  $region2: #{restnet18_forward.37} parent=0 // pred_check
    _
  $region3: #{restnet18_forward.37} parent=0 // pred_check_branch
    %10 = sbr.rel (0) target = $region5
  $region4: #{restnet18_forward.37} parent=0 // pred_region
    _
  $region5: #{restnet18_forward.37} parent=0 // pred_fallthru
    _
  // Predicated region
  $region6: #{restnet18_forward.37} parent=0 // pred_check
    _
  $region7: #{restnet18_forward.37} parent=0 // pred_check_branch
    %12 = sbr.rel (0) target = $region9
  $region8: #{restnet18_forward.37} parent=0 // pred_region
    _
  $region9: #{restnet18_forward.37} parent=0 // pred_fallthru
    _
  // Predicated region
  $region10: #{restnet18_forward.37} parent=0 // pred_check
    _
  $region11: #{restnet18_forward.37} parent=0 // pred_check_branch
    %14 = sbr.rel (0) target = $region13
  $region12: #{restnet18_forward.37} parent=0 // pred_region
    _
  $region13: #{restnet18_forward.37} parent=0 // pred_fallthru
    _
  // Predicated region
  $region14: #{restnet18_forward.37} parent=0 // pred_check
    _
  $region15: #{restnet18_forward.37} parent=0 // pred_check_branch
    %16 = sbr.rel (0) target = $region17
  $region16: #{restnet18_forward.37} parent=0 // pred_region
    _
  $region17: #{restnet18_forward.37} parent=0 // pred_fallthru
    _
  %v17 = vld [vmem:[%s0] sm:$0xff]
  %v18 = vld [vmem:[%s0 + $0x8] sm:$0xff]
  %v19 = vld [vmem:[%s0 + $0x10] sm:$0xff]
  %v20 = vld [vmem:[%s0 + $0x18] sm:$0xff]
  %v21 = vld [vmem:[%s0 + $0x20] sm:$0xf]
  %v22 = vld [vmem:[%s0 + $0x24] sm:$0xff]
  %v23 = vld [vmem:[%s0 + $0x2c] sm:$0xff]
  %v24 = vld [vmem:[%s0 + $0x34] sm:$0xff]
  %v25 = vld [vmem:[%s0 + $0x3c] sm:$0xff]
  %v26 = vld [vmem:[%s0 + $0x44] sm:$0xf]
  %v27 = vld [vmem:[%s1] sm:$0xf]
  %v28 = vld [vmem:[%s1 + $0x4] sm:$0xf]
  %v29 = vld [vmem:[%s1 + $0x8] sm:$0xf]
  %v30 = vld [vmem:[%s1 + $0xc] sm:$0xf]
  %v31 = vld [vmem:[%s1 + $0x10] sm:$0xf]
  %v32 = vld [vmem:[%s1 + $0x14] sm:$0xf]
  %v33 = vld [vmem:[%s1 + $0x18] sm:$0xf]
  %v34 = vld [vmem:[%s1 + $0x1c] sm:$0xf]
  %v35 = vld [vmem:[%s1 + $0x20] sm:$0xf]
  %v36 = vld [vmem:[%s1 + $0x24] sm:$0xf]
  %v37 = vld [vmem:[%s1 + $0x28] sm:$0xf]
  %v38 = vld [vmem:[%s1 + $0x2c] sm:$0xf]
  %v39 = vld [vmem:[%s1 + $0x30] sm:$0xf]
  %v40 = vld [vmem:[%s1 + $0x34] sm:$0xf]
  %v41 = vld [vmem:[%s1 + $0x38] sm:$0xf]
  %v42 = vld [vmem:[%s1 + $0x3c] sm:$0xf]
  %v43 = vld [vmem:[%s1 + $0x40] sm:$0xf]
  %v44 = vld [vmem:[%s1 + $0x44] sm:$0xf]
  %v45 = vld [vmem:[%s1 + $0x48] sm:$0xf]
  %v46 = vld [vmem:[%s1 + $0x4c] sm:$0xf]
  %v47 = vld [vmem:[%s1 + $0x50] sm:$0xf]
  %v48 = vld [vmem:[%s1 + $0x54] sm:$0xf]
  %v49 = vld [vmem:[%s1 + $0x58] sm:$0xf]
  %v50 = vld [vmem:[%s1 + $0x5c] sm:$0xf]
  %v51 = vld [vmem:[%s1 + $0x60] sm:$0xf]
  %v52 = vld [vmem:[%s1 + $0x64] sm:$0xf]
  %v53 = vld [vmem:[%s1 + $0x68] sm:$0xf]
  %v54 = vld [vmem:[%s1 + $0x6c] sm:$0xf]
  %v55 = vld [vmem:[%s1 + $0x70] sm:$0xf]
  %v56 = vld [vmem:[%s1 + $0x74] sm:$0xf]
  %v57 = vld [vmem:[%s1 + $0x78] sm:$0xf]
  %v58 = vld [vmem:[%s1 + $0x7c] sm:$0xf]
  %v59 = vld [vmem:[%s1 + $0x80] sm:$0xf]
  %v60 = vld [vmem:[%s1 + $0x84] sm:$0xf]
  %v61 = vld [vmem:[%s1 + $0x88] sm:$0xf]
  %v62 = vld [vmem:[%s1 + $0x8c] sm:$0xf]
  %v63 = vld [vmem:[%s1 + $0x90] sm:$0xf]
  %v64 = vld [vmem:[%s1 + $0x94] sm:$0xf]
  %v65 = vld [vmem:[%s1 + $0x98] sm:$0xf]
  %v66 = vld [vmem:[%s1 + $0x9c] sm:$0xf]
  %v67 = vld [vmem:[%s1 + $0xa0] sm:$0xf]
  %v68 = vld [vmem:[%s1 + $0xa4] sm:$0xf]
  %v69 = vld [vmem:[%s1 + $0xa8] sm:$0xf]
  %v70 = vld [vmem:[%s1 + $0xac] sm:$0xf]
  %v71 = vld [vmem:[%s1 + $0xb0] sm:$0xf]
  %v72 = vld [vmem:[%s1 + $0xb4] sm:$0xf]
  %v73 = vld [vmem:[%s1 + $0xb8] sm:$0xf]
  %v74 = vld [vmem:[%s1 + $0xbc] sm:$0xf]
  %v75 = vld [vmem:[%s1 + $0xc0] sm:$0xf]
  %v76 = vld [vmem:[%s1 + $0xc4] sm:$0xf]
  %v77 = vld [vmem:[%s1 + $0xc8] sm:$0xf]
  %v78 = vld [vmem:[%s1 + $0xcc] sm:$0xf]
  %v79 = vld [vmem:[%s1 + $0xd0] sm:$0xf]
  %v80 = vld [vmem:[%s1 + $0xd4] sm:$0xf]
  %v81 = vld [vmem:[%s1 + $0xd8] sm:$0xf]
  %v82 = vld [vmem:[%s1 + $0xdc] sm:$0xf]
  %v83 = vld [vmem:[%s1 + $0xe0] sm:$0xf]
  %v84 = vld [vmem:[%s1 + $0xe4] sm:$0xf]
  %v85 = vld [vmem:[%s1 + $0xe8] sm:$0xf]
  %v86 = vld [vmem:[%s1 + $0xec] sm:$0xf]
  %v87 = vld [vmem:[%s1 + $0xf0] sm:$0xf]
  %v88 = vld [vmem:[%s1 + $0xf4] sm:$0xf]
  %v89 = vld [vmem:[%s1 + $0xf8] sm:$0xf]
  %v90 = vld [vmem:[%s1 + $0xfc] sm:$0xf]
  %v91 = vld [vmem:[%s1 + $0x100] sm:$0xf]
  %v92 = vld [vmem:[%s1 + $0x104] sm:$0xf]
  %v93 = vld [vmem:[%s1 + $0x108] sm:$0xf]
  %v94 = vld [vmem:[%s1 + $0x10c] sm:$0xf]
  %v95 = vld [vmem:[%s1 + $0x110] sm:$0xf]
  %v96 = vld [vmem:[%s1 + $0x114] sm:$0xf]
  %v97 = vld [vmem:[%s1 + $0x118] sm:$0xf]
  %v98 = vld [vmem:[%s1 + $0x11c] sm:$0xf]
  %v99 = vld [vmem:[%s1 + $0x120] sm:$0xf]
  %v100 = vld [vmem:[%s1 + $0x124] sm:$0xf]
  %v101 = vld [vmem:[%s1 + $0x128] sm:$0xf]
  %v102 = vld [vmem:[%s1 + $0x12c] sm:$0xf]
  %v103 = vld [vmem:[%s1 + $0x130] sm:$0xf]
  %v104 = vld [vmem:[%s1 + $0x134] sm:$0xf]
  %v105 = vld [vmem:[%s1 + $0x138] sm:$0xf]
  %v106 = vld [vmem:[%s1 + $0x13c] sm:$0xf]
  %v107 = vld [vmem:[%s1 + $0x140] sm:$0xf]
  %v108 = vld [vmem:[%s1 + $0x144] sm:$0xf]
  %v109 = vld [vmem:[%s1 + $0x148] sm:$0xf]
  %v110 = vld [vmem:[%s1 + $0x14c] sm:$0xf]
  %v111 = vld [vmem:[%s1 + $0x150] sm:$0xf]
  %v112 = vld [vmem:[%s1 + $0x154] sm:$0xf]
  %v113 = vld [vmem:[%s1 + $0x158] sm:$0xf]
  %v114 = vld [vmem:[%s1 + $0x15c] sm:$0xf]
  %v115 = vld [vmem:[%s1 + $0x160] sm:$0xf]
  %v116 = vld [vmem:[%s1 + $0x164] sm:$0xf]
  %v117 = vld [vmem:[%s1 + $0x168] sm:$0xf]
  %v118 = vld [vmem:[%s1 + $0x16c] sm:$0xf]
  %v119 = vld [vmem:[%s1 + $0x170] sm:$0xf]
  %v120 = vld [vmem:[%s1 + $0x174] sm:$0xf]
  %v121 = vld [vmem:[%s1 + $0x178] sm:$0xf]
  %v122 = vld [vmem:[%s1 + $0x17c] sm:$0xf]
  %v123 = vld [vmem:[%s1 + $0x180] sm:$0xf]
  %v124 = vld [vmem:[%s1 + $0x184] sm:$0xf]
  %v125 = vld [vmem:[%s1 + $0x188] sm:$0xf]
  %v126 = vld [vmem:[%s1 + $0x18c] sm:$0xf]
  %v127 = vld [vmem:[%s1 + $0x190] sm:$0xf]
  %v128 = vld [vmem:[%s1 + $0x194] sm:$0xf]
  %v129 = vld [vmem:[%s1 + $0x198] sm:$0xf]
  %v130 = vld [vmem:[%s1 + $0x19c] sm:$0xf]
  %v131 = vld [vmem:[%s1 + $0x1a0] sm:$0xf]
  %v132 = vld [vmem:[%s1 + $0x1a4] sm:$0xf]
  %v133 = vld [vmem:[%s1 + $0x1a8] sm:$0xf]
  %v134 = vld [vmem:[%s1 + $0x1ac] sm:$0xf]
  %v135 = vld [vmem:[%s1 + $0x1b0] sm:$0xf]
  %v136 = vld [vmem:[%s1 + $0x1b4] sm:$0xf]
  %v137 = vld [vmem:[%s1 + $0x1b8] sm:$0xf]
  %v138 = vld [vmem:[%s1 + $0x1bc] sm:$0xf]
  %v139 = vld [vmem:[%s1 + $0x1c0] sm:$0xf]
  %v140 = vld [vmem:[%s1 + $0x1c4] sm:$0xf]
  %v141 = vld [vmem:[%s1 + $0x1c8] sm:$0xf]
  %v142 = vld [vmem:[%s1 + $0x1cc] sm:$0xf]
  %v143 = vld [vmem:[%s1 + $0x1d0] sm:$0xf]
  %v144 = vld [vmem:[%s1 + $0x1d4] sm:$0xf]
  %v145 = vld [vmem:[%s1 + $0x1d8] sm:$0xf]
  %v146 = vld [vmem:[%s1 + $0x1dc] sm:$0xf]
  %v147 = vld [vmem:[%s1 + $0x1e0] sm:$0xf]
  %v148 = vld [vmem:[%s1 + $0x1e4] sm:$0xf]
  %v149 = vld [vmem:[%s1 + $0x1e8] sm:$0xf]
  %v150 = vld [vmem:[%s1 + $0x1ec] sm:$0xf]
  %v151 = vld [vmem:[%s1 + $0x1f0] sm:$0xf]
  %v152 = vld [vmem:[%s1 + $0x1f4] sm:$0xf]
  %v153 = vld [vmem:[%s1 + $0x1f8] sm:$0xf]
  %v154 = vld [vmem:[%s1 + $0x1fc] sm:$0xf]
  %v155 = vld [vmem:[%s1 + $0x200] sm:$0xf]
  %v156 = vld [vmem:[%s1 + $0x204] sm:$0xf]
  %v157 = vld [vmem:[%s1 + $0x208] sm:$0xf]
  %v158 = vld [vmem:[%s1 + $0x20c] sm:$0xf]
  %v159 = vld [vmem:[%s1 + $0x210] sm:$0xf]
  %v160 = vld [vmem:[%s1 + $0x214] sm:$0xf]
  %v161 = vld [vmem:[%s1 + $0x218] sm:$0xf]
  %v162 = vld [vmem:[%s1 + $0x21c] sm:$0xf]
  %v163 = vld [vmem:[%s1 + $0x220] sm:$0xf]
  %v164 = vld [vmem:[%s1 + $0x224] sm:$0xf]
  %v165 = vld [vmem:[%s1 + $0x228] sm:$0xf]
  %v166 = vld [vmem:[%s1 + $0x22c] sm:$0xf]
  %v167 = vld [vmem:[%s1 + $0x230] sm:$0xf]
  %v168 = vld [vmem:[%s1 + $0x234] sm:$0xf]
  %v169 = vld [vmem:[%s1 + $0x238] sm:$0xf]
  %v170 = vld [vmem:[%s1 + $0x23c] sm:$0xf]
  %v181 = vunpack.c.l.b16 %v17
  %v182 = vunpack.c.h.b16 %v17
  %v183 = vunpack.c.l.b16 %v18
  %v184 = vunpack.c.h.b16 %v18
  %v185 = vunpack.c.l.b16 %v19
  %v186 = vunpack.c.h.b16 %v19
  %v187 = vunpack.c.l.b16 %v20
  %v188 = vunpack.c.h.b16 %v20
  %v189 = vunpack.c.l.b16 %v21
  %v190 = vunpack.c.l.b16 %v22
  %v191 = vunpack.c.h.b16 %v22
  %v192 = vunpack.c.l.b16 %v23
  %v193 = vunpack.c.h.b16 %v23
  %v194 = vunpack.c.l.b16 %v24
  %v195 = vunpack.c.h.b16 %v24
  %v196 = vunpack.c.l.b16 %v25
  %v197 = vunpack.c.h.b16 %v25
  %v198 = vunpack.c.l.b16 %v26
  %v199 = vpack.c.b16 %v190, %v181
  %v200 = vpack.c.b16 %v191, %v182
  %v201 = vpack.c.b16 %v192, %v183
  %v202 = vpack.c.b16 %v193, %v184
  %v203 = vpack.c.b16 %v194, %v185
  %v204 = vpack.c.b16 %v195, %v186
  %v205 = vpack.c.b16 %v196, %v187
  %v206 = vpack.c.b16 %v197, %v188
  %v207 = vpack.c.b16 %v198, %v189
  %v361 = vunpack.c.l.b16 %v27
  %v362 = vunpack.c.l.b16 %v28
  %v363 = vunpack.c.l.b16 %v29
  %v364 = vunpack.c.l.b16 %v30
  %v365 = vunpack.c.l.b16 %v31
  %v366 = vunpack.c.l.b16 %v32
  %v367 = vunpack.c.l.b16 %v33
  %v368 = vunpack.c.l.b16 %v34
  %v369 = vunpack.c.l.b16 %v35
  %v370 = vunpack.c.l.b16 %v36
  %v371 = vunpack.c.l.b16 %v37
  %v372 = vunpack.c.l.b16 %v38
  %v373 = vunpack.c.l.b16 %v39
  %v374 = vunpack.c.l.b16 %v40
  %v375 = vunpack.c.l.b16 %v41
  %v376 = vunpack.c.l.b16 %v42
  %v377 = vunpack.c.l.b16 %v43
  %v378 = vunpack.c.l.b16 %v44
  %v379 = vunpack.c.l.b16 %v45
  %v380 = vunpack.c.l.b16 %v46
  %v381 = vunpack.c.l.b16 %v47
  %v382 = vunpack.c.l.b16 %v48
  %v383 = vunpack.c.l.b16 %v49
  %v384 = vunpack.c.l.b16 %v50
  %v385 = vunpack.c.l.b16 %v51
  %v386 = vunpack.c.l.b16 %v52
  %v387 = vunpack.c.l.b16 %v53
  %v388 = vunpack.c.l.b16 %v54
  %v389 = vunpack.c.l.b16 %v55
  %v390 = vunpack.c.l.b16 %v56
  %v391 = vunpack.c.l.b16 %v57
  %v392 = vunpack.c.l.b16 %v58
  %v393 = vunpack.c.l.b16 %v59
  %v394 = vunpack.c.l.b16 %v60
  %v395 = vunpack.c.l.b16 %v61
  %v396 = vunpack.c.l.b16 %v62
  %v397 = vunpack.c.l.b16 %v63
  %v398 = vunpack.c.l.b16 %v64
  %v399 = vunpack.c.l.b16 %v65
  %v400 = vunpack.c.l.b16 %v66
  %v401 = vunpack.c.l.b16 %v67
  %v402 = vunpack.c.l.b16 %v68
  %v403 = vunpack.c.l.b16 %v69
  %v404 = vunpack.c.l.b16 %v70
  %v405 = vunpack.c.l.b16 %v71
  %v406 = vunpack.c.l.b16 %v72
  %v407 = vunpack.c.l.b16 %v73
  %v408 = vunpack.c.l.b16 %v74
  %v409 = vunpack.c.l.b16 %v75
  %v410 = vunpack.c.l.b16 %v76
  %v411 = vunpack.c.l.b16 %v77
  %v412 = vunpack.c.l.b16 %v78
  %v413 = vunpack.c.l.b16 %v79
  %v414 = vunpack.c.l.b16 %v80
  %v415 = vunpack.c.l.b16 %v81
  %v416 = vunpack.c.l.b16 %v82
  %v417 = vunpack.c.l.b16 %v83
  %v418 = vunpack.c.l.b16 %v84
  %v419 = vunpack.c.l.b16 %v85
  %v420 = vunpack.c.l.b16 %v86
  %v421 = vunpack.c.l.b16 %v87
  %v422 = vunpack.c.l.b16 %v88
  %v423 = vunpack.c.l.b16 %v89
  %v424 = vunpack.c.l.b16 %v90
  %v425 = vunpack.c.l.b16 %v91
  %v426 = vunpack.c.l.b16 %v92
  %v427 = vunpack.c.l.b16 %v93
  %v428 = vunpack.c.l.b16 %v94
  %v429 = vunpack.c.l.b16 %v95
  %v430 = vunpack.c.l.b16 %v96
  %v431 = vunpack.c.l.b16 %v97
  %v432 = vunpack.c.l.b16 %v98
  %v433 = vunpack.c.l.b16 %v99
  %v434 = vunpack.c.l.b16 %v100
  %v435 = vunpack.c.l.b16 %v101
  %v436 = vunpack.c.l.b16 %v102
  %v437 = vunpack.c.l.b16 %v103
  %v438 = vunpack.c.l.b16 %v104
  %v439 = vunpack.c.l.b16 %v105
  %v440 = vunpack.c.l.b16 %v106
  %v441 = vunpack.c.l.b16 %v107
  %v442 = vunpack.c.l.b16 %v108
  %v443 = vunpack.c.l.b16 %v109
  %v444 = vunpack.c.l.b16 %v110
  %v445 = vunpack.c.l.b16 %v111
  %v446 = vunpack.c.l.b16 %v112
  %v447 = vunpack.c.l.b16 %v113
  %v448 = vunpack.c.l.b16 %v114
  %v449 = vunpack.c.l.b16 %v115
  %v450 = vunpack.c.l.b16 %v116
  %v451 = vunpack.c.l.b16 %v117
  %v452 = vunpack.c.l.b16 %v118
  %v453 = vunpack.c.l.b16 %v119
  %v454 = vunpack.c.l.b16 %v120
  %v455 = vunpack.c.l.b16 %v121
  %v456 = vunpack.c.l.b16 %v122
  %v457 = vunpack.c.l.b16 %v123
  %v458 = vunpack.c.l.b16 %v124
  %v459 = vunpack.c.l.b16 %v125
  %v460 = vunpack.c.l.b16 %v126
  %v461 = vunpack.c.l.b16 %v127
  %v462 = vunpack.c.l.b16 %v128
  %v463 = vunpack.c.l.b16 %v129
  %v464 = vunpack.c.l.b16 %v130
  %v465 = vunpack.c.l.b16 %v131
  %v466 = vunpack.c.l.b16 %v132
  %v467 = vunpack.c.l.b16 %v133
  %v468 = vunpack.c.l.b16 %v134
  %v469 = vunpack.c.l.b16 %v135
  %v470 = vunpack.c.l.b16 %v136
  %v471 = vunpack.c.l.b16 %v137
  %v472 = vunpack.c.l.b16 %v138
  %v473 = vunpack.c.l.b16 %v139
  %v474 = vunpack.c.l.b16 %v140
  %v475 = vunpack.c.l.b16 %v141
  %v476 = vunpack.c.l.b16 %v142
  %v477 = vunpack.c.l.b16 %v143
  %v478 = vunpack.c.l.b16 %v144
  %v479 = vunpack.c.l.b16 %v145
  %v480 = vunpack.c.l.b16 %v146
  %v481 = vunpack.c.l.b16 %v147
  %v482 = vunpack.c.l.b16 %v148
  %v483 = vunpack.c.l.b16 %v149
  %v484 = vunpack.c.l.b16 %v150
  %v485 = vunpack.c.l.b16 %v151
  %v486 = vunpack.c.l.b16 %v152
  %v487 = vunpack.c.l.b16 %v153
  %v488 = vunpack.c.l.b16 %v154
  %v489 = vunpack.c.l.b16 %v155
  %v490 = vunpack.c.l.b16 %v156
  %v491 = vunpack.c.l.b16 %v157
  %v492 = vunpack.c.l.b16 %v158
  %v493 = vunpack.c.l.b16 %v159
  %v494 = vunpack.c.l.b16 %v160
  %v495 = vunpack.c.l.b16 %v161
  %v496 = vunpack.c.l.b16 %v162
  %v497 = vunpack.c.l.b16 %v163
  %v498 = vunpack.c.l.b16 %v164
  %v499 = vunpack.c.l.b16 %v165
  %v500 = vunpack.c.l.b16 %v166
  %v501 = vunpack.c.l.b16 %v167
  %v502 = vunpack.c.l.b16 %v168
  %v503 = vunpack.c.l.b16 %v169
  %v504 = vunpack.c.l.b16 %v170
  %v505 = vpack.c.b16 %v362, %v361
  %v506 = vpack.c.b16 %v364, %v363
  %v507 = vpack.c.b16 %v366, %v365
  %v508 = vpack.c.b16 %v368, %v367
  %v509 = vpack.c.b16 %v370, %v369
  %v510 = vpack.c.b16 %v372, %v371
  %v511 = vpack.c.b16 %v374, %v373
  %v512 = vpack.c.b16 %v376, %v375
  %v513 = vpack.c.b16 %v378, %v377
  %v514 = vpack.c.b16 %v380, %v379
  %v515 = vpack.c.b16 %v382, %v381
  %v516 = vpack.c.b16 %v384, %v383
  %v517 = vpack.c.b16 %v386, %v385
  %v518 = vpack.c.b16 %v388, %v387
  %v519 = vpack.c.b16 %v390, %v389
  %v520 = vpack.c.b16 %v392, %v391
  %v521 = vpack.c.b16 %v394, %v393
  %v522 = vpack.c.b16 %v396, %v395
  %v523 = vpack.c.b16 %v398, %v397
  %v524 = vpack.c.b16 %v400, %v399
  %v525 = vpack.c.b16 %v402, %v401
  %v526 = vpack.c.b16 %v404, %v403
  %v527 = vpack.c.b16 %v406, %v405
  %v528 = vpack.c.b16 %v408, %v407
  %v529 = vpack.c.b16 %v410, %v409
  %v530 = vpack.c.b16 %v412, %v411
  %v531 = vpack.c.b16 %v414, %v413
  %v532 = vpack.c.b16 %v416, %v415
  %v533 = vpack.c.b16 %v418, %v417
  %v534 = vpack.c.b16 %v420, %v419
  %v535 = vpack.c.b16 %v422, %v421
  %v536 = vpack.c.b16 %v424, %v423
  %v537 = vpack.c.b16 %v426, %v425
  %v538 = vpack.c.b16 %v428, %v427
  %v539 = vpack.c.b16 %v430, %v429
  %v540 = vpack.c.b16 %v432, %v431
  %v541 = vpack.c.b16 %v434, %v433
  %v542 = vpack.c.b16 %v436, %v435
  %v543 = vpack.c.b16 %v438, %v437
  %v544 = vpack.c.b16 %v440, %v439
  %v545 = vpack.c.b16 %v442, %v441
  %v546 = vpack.c.b16 %v444, %v443
  %v547 = vpack.c.b16 %v446, %v445
  %v548 = vpack.c.b16 %v448, %v447
  %v549 = vpack.c.b16 %v450, %v449
  %v550 = vpack.c.b16 %v452, %v451
  %v551 = vpack.c.b16 %v454, %v453
  %v552 = vpack.c.b16 %v456, %v455
  %v553 = vpack.c.b16 %v458, %v457
  %v554 = vpack.c.b16 %v460, %v459
  %v555 = vpack.c.b16 %v462, %v461
  %v556 = vpack.c.b16 %v464, %v463
  %v557 = vpack.c.b16 %v466, %v465
  %v558 = vpack.c.b16 %v468, %v467
  %v559 = vpack.c.b16 %v470, %v469
  %v560 = vpack.c.b16 %v472, %v471
  %v561 = vpack.c.b16 %v474, %v473
  %v562 = vpack.c.b16 %v476, %v475
  %v563 = vpack.c.b16 %v478, %v477
  %v564 = vpack.c.b16 %v480, %v479
  %v565 = vpack.c.b16 %v482, %v481
  %v566 = vpack.c.b16 %v484, %v483
  %v567 = vpack.c.b16 %v486, %v485
  %v568 = vpack.c.b16 %v488, %v487
  %v569 = vpack.c.b16 %v490, %v489
  %v570 = vpack.c.b16 %v492, %v491
  %v571 = vpack.c.b16 %v494, %v493
  %v572 = vpack.c.b16 %v496, %v495
  %v573 = vpack.c.b16 %v498, %v497
  %v574 = vpack.c.b16 %v500, %v499
  %v575 = vpack.c.b16 %v502, %v501
  %v576 = vpack.c.b16 %v504, %v503
  %649 = vmatpush.bf16.msra.mxu0 %v512
  %650 = vmatpush.bf16.msra.mxu0 %v511
  %651 = vmatpush.bf16.msra.mxu0 %v510
  %652 = vmatpush.bf16.msra.mxu0 %v509
  %653 = vmatpush.bf16.msra.mxu0 %v508
  %654 = vmatpush.bf16.msra.mxu0 %v507
  %655 = vmatpush.bf16.msra.mxu0 %v506
  %656 = vmatpush.bf16.msra.mxu0 %v505
  %657 = vmatmul.bf16.gmra.mxu0 %v199
  %v658 = vpop.f32.mrf.mxu0
  %v659 = vadd.f32 0.0, %v658
  %v660 = vpop.f32.mrf.mxu0
  %v661 = vadd.f32 0.0, %v660
  %662 = vdwg.mxu0
  %663 = vmatpush.bf16.msra.mxu0 %v520
  %664 = vmatpush.bf16.msra.mxu0 %v519
  %665 = vmatpush.bf16.msra.mxu0 %v518
  %666 = vmatpush.bf16.msra.mxu0 %v517
  %667 = vmatpush.bf16.msra.mxu0 %v516
  %668 = vmatpush.bf16.msra.mxu0 %v515
  %669 = vmatpush.bf16.msra.mxu0 %v514
  %670 = vmatpush.bf16.msra.mxu0 %v513
  %671 = vmatmul.bf16.gmra.mxu0 %v200
  %v672 = vpop.f32.mrf.mxu0
  %v673 = vadd.f32 %v659, %v672
  %v674 = vpop.f32.mrf.mxu0
  %v675 = vadd.f32 %v661, %v674
  %676 = vdwg.mxu0
  %677 = vmatpush.bf16.msra.mxu0 %v528
  %678 = vmatpush.bf16.msra.mxu0 %v527
  %679 = vmatpush.bf16.msra.mxu0 %v526
  %680 = vmatpush.bf16.msra.mxu0 %v525
  %681 = vmatpush.bf16.msra.mxu0 %v524
  %682 = vmatpush.bf16.msra.mxu0 %v523
  %683 = vmatpush.bf16.msra.mxu0 %v522
  %684 = vmatpush.bf16.msra.mxu0 %v521
  %685 = vmatmul.bf16.gmra.mxu0 %v201
  %v686 = vpop.f32.mrf.mxu0
  %v687 = vadd.f32 %v673, %v686
  %v688 = vpop.f32.mrf.mxu0
  %v689 = vadd.f32 %v675, %v688
  %690 = vdwg.mxu0
  %691 = vmatpush.bf16.msra.mxu0 %v536
  %692 = vmatpush.bf16.msra.mxu0 %v535
  %693 = vmatpush.bf16.msra.mxu0 %v534
  %694 = vmatpush.bf16.msra.mxu0 %v533
  %695 = vmatpush.bf16.msra.mxu0 %v532
  %696 = vmatpush.bf16.msra.mxu0 %v531
  %697 = vmatpush.bf16.msra.mxu0 %v530
  %698 = vmatpush.bf16.msra.mxu0 %v529
  %699 = vmatmul.bf16.gmra.mxu0 %v202
  %v700 = vpop.f32.mrf.mxu0
  %v701 = vadd.f32 %v687, %v700
  %v702 = vpop.f32.mrf.mxu0
  %v703 = vadd.f32 %v689, %v702
  %704 = vdwg.mxu0
  %705 = vmatpush.bf16.msra.mxu0 %v544
  %706 = vmatpush.bf16.msra.mxu0 %v543
  %707 = vmatpush.bf16.msra.mxu0 %v542
  %708 = vmatpush.bf16.msra.mxu0 %v541
  %709 = vmatpush.bf16.msra.mxu0 %v540
  %710 = vmatpush.bf16.msra.mxu0 %v539
  %711 = vmatpush.bf16.msra.mxu0 %v538
  %712 = vmatpush.bf16.msra.mxu0 %v537
  %713 = vmatmul.bf16.gmra.mxu0 %v203
  %v714 = vpop.f32.mrf.mxu0
  %v715 = vadd.f32 %v701, %v714
  %v716 = vpop.f32.mrf.mxu0
  %v717 = vadd.f32 %v703, %v716
  %718 = vdwg.mxu0
  %719 = vmatpush.bf16.msra.mxu0 %v552
  %720 = vmatpush.bf16.msra.mxu0 %v551
  %721 = vmatpush.bf16.msra.mxu0 %v550
  %722 = vmatpush.bf16.msra.mxu0 %v549
  %723 = vmatpush.bf16.msra.mxu0 %v548
  %724 = vmatpush.bf16.msra.mxu0 %v547
  %725 = vmatpush.bf16.msra.mxu0 %v546
  %726 = vmatpush.bf16.msra.mxu0 %v545
  %727 = vmatmul.bf16.gmra.mxu0 %v204
  %v728 = vpop.f32.mrf.mxu0
  %v729 = vadd.f32 %v715, %v728
  %v730 = vpop.f32.mrf.mxu0
  %v731 = vadd.f32 %v717, %v730
  %732 = vdwg.mxu0
  %733 = vmatpush.bf16.msra.mxu0 %v560
  %734 = vmatpush.bf16.msra.mxu0 %v559
  %735 = vmatpush.bf16.msra.mxu0 %v558
  %736 = vmatpush.bf16.msra.mxu0 %v557
  %737 = vmatpush.bf16.msra.mxu0 %v556
  %738 = vmatpush.bf16.msra.mxu0 %v555
  %739 = vmatpush.bf16.msra.mxu0 %v554
  %740 = vmatpush.bf16.msra.mxu0 %v553
  %741 = vmatmul.bf16.gmra.mxu0 %v205
  %v742 = vpop.f32.mrf.mxu0
  %v743 = vadd.f32 %v729, %v742
  %v744 = vpop.f32.mrf.mxu0
  %v745 = vadd.f32 %v731, %v744
  %746 = vdwg.mxu0
  %747 = vmatpush.bf16.msra.mxu0 %v568
  %748 = vmatpush.bf16.msra.mxu0 %v567
  %749 = vmatpush.bf16.msra.mxu0 %v566
  %750 = vmatpush.bf16.msra.mxu0 %v565
  %751 = vmatpush.bf16.msra.mxu0 %v564
  %752 = vmatpush.bf16.msra.mxu0 %v563
  %753 = vmatpush.bf16.msra.mxu0 %v562
  %754 = vmatpush.bf16.msra.mxu0 %v561
  %755 = vmatmul.bf16.gmra.mxu0 %v206
  %v756 = vpop.f32.mrf.mxu0
  %v757 = vadd.f32 %v743, %v756
  %v758 = vpop.f32.mrf.mxu0
  %v759 = vadd.f32 %v745, %v758
  %760 = vdwg.mxu0
  %761 = vmatpush.bf16.msra.mxu0 %v576
  %762 = vmatpush.bf16.msra.mxu0 %v575
  %763 = vmatpush.bf16.msra.mxu0 %v574
  %764 = vmatpush.bf16.msra.mxu0 %v573
  %765 = vmatpush.bf16.msra.mxu0 %v572
  %766 = vmatpush.bf16.msra.mxu0 %v571
  %767 = vmatpush.bf16.msra.mxu0 %v570
  %768 = vmatpush.bf16.msra.mxu0 %v569
  %769 = vmatmul.bf16.gmra.mxu0 %v207
  %v770 = vpop.f32.mrf.mxu0
  %v771 = vadd.f32 %v757, %v770
  %v772 = vpop.f32.mrf.mxu0
  %v773 = vadd.f32 %v759, %v772
  %774 = vdwg.mxu0
  %v775 = vld [vmem:[%s2] sm:$0x1]
  %v776 = vperm.slane %v775, 0
  %v777 = vmul.f32 %v771, %v776
  %v778 = vmul.f32 %v773, %v776
  %v779 = vld [vmem:[%s2 + $0x1] sm:$0x1]
  %v780 = vperm.slane %v779, 0
  %v781 = vadd.f32 %v777, %v780
  %v782 = vadd.f32 %v778, %v780
  %v783 = vld [vmem:[%s3] sm:$0xf]
  %v784 = vld [vmem:[%s3 + $0x4] sm:$0xf]
  %v785 = vunpack.c.l.bf16 %v783
  %v786 = vunpack.c.l.bf16 %v784
  %v787 = vadd.f32 %v781, %v785
  %v788 = vadd.f32 %v782, %v786
  %v789 = vmax.f32 %v787, 0.0
  %v790 = vmax.f32 %v788, 0.0
  %v791 = vpack.c.bf16 %v789, %v789
  %v792 = vpack.c.bf16 %v790, %v790
  %793 = vst [vmem:[%s4] sm:$0xf] %v791
  %794 = vst [vmem:[%s4 + $0x4] sm:$0xf] %v792
  // Predicated region
  $region18: #{restnet18_forward.37} parent=0 // pred_check
    _
  $region19: #{restnet18_forward.37} parent=0 // pred_check_branch
    %796 = sbr.rel (0) target = $region21
  $region20: #{restnet18_forward.37} parent=0 // pred_region
    _
  $region21: #{restnet18_forward.37} parent=0 // pred_fallthru
    _
  // Predicated region
  $region22: #{restnet18_forward.37} parent=0 // pred_check
    _
  $region23: #{restnet18_forward.37} parent=0 // pred_check_branch
    %798 = sbr.rel (0) target = $region25
  $region24: #{restnet18_forward.37} parent=0 // pred_region
    _
  $region25: #{restnet18_forward.37} parent=0 // pred_fallthru
    _

// kernel: restnet18_forward.40
$region0: #{restnet18_forward.40}
  #allocation0 [shape = 'u32[]', space=smem, size = 0x4, offset = 0x4, fixed_abs, tag = 'smem constant byte address 0x4 - core index']
  #allocation1 [shape = 'u32[72,128]{1,0:T(1,128)}', space=vmem, size = 0x9000, scoped, tag = 'internal scratch']
  %s0 = inlined_call_operand.vmem [shape: bf16[16,1152], index: 0, kind: input, shape index: {}]
  %s1 = inlined_call_operand.vmem [shape: bf16[1152,128], index: 1, kind: input, shape index: {}]
  %s2 = inlined_call_operand.vmem [shape: f32[2,128], index: 2, kind: input, shape index: {}]
  %s3 = inlined_call_operand.vmem [shape: bf16[16,128], index: 3, kind: output, shape index: {}]
  %s4 = sld [smem:[#allocation0]]
  $region22: #{restnet18_forward.40} parent=0
    _
  %s6 = ssub.s32 1, %s4
  %s7 = scalar_select 0, %s6, %s4
  // Predicated region
  $region2: #{restnet18_forward.40} parent=0 // pred_check
    _
  $region3: #{restnet18_forward.40} parent=0 // pred_check_branch
    %9 = sbr.rel (0) target = $region5
  $region4: #{restnet18_forward.40} parent=0 // pred_region
    _
  $region5: #{restnet18_forward.40} parent=0 // pred_fallthru
    _
  // Predicated region
  $region6: #{restnet18_forward.40} parent=0 // pred_check
    _
  $region7: #{restnet18_forward.40} parent=0 // pred_check_branch
    %11 = sbr.rel (0) target = $region9
  $region8: #{restnet18_forward.40} parent=0 // pred_region
    _
  $region9: #{restnet18_forward.40} parent=0 // pred_fallthru
    _
  // Predicated region
  $region10: #{restnet18_forward.40} parent=0 // pred_check
    _
  $region11: #{restnet18_forward.40} parent=0 // pred_check_branch
    %13 = sbr.rel (0) target = $region13
  $region12: #{restnet18_forward.40} parent=0 // pred_region
    _
  $region13: #{restnet18_forward.40} parent=0 // pred_fallthru
    _
  %v14 = vld [vmem:[%s0] sm:$0xff]
  %v15 = vld [vmem:[%s0 + $0x8] sm:$0xff]
  %v16 = vld [vmem:[%s0 + $0x10] sm:$0xff]
  %v17 = vld [vmem:[%s0 + $0x18] sm:$0xff]
  %v18 = vld [vmem:[%s0 + $0x20] sm:$0xf]
  %v19 = vld [vmem:[%s0 + $0x24] sm:$0xff]
  %v20 = vld [vmem:[%s0 + $0x2c] sm:$0xff]
  %v21 = vld [vmem:[%s0 + $0x34] sm:$0xff]
  %v22 = vld [vmem:[%s0 + $0x3c] sm:$0xff]
  %v23 = vld [vmem:[%s0 + $0x44] sm:$0xf]
  %v24 = vld [vmem:[%s1] sm:$0xf]
  %v25 = vld [vmem:[%s1 + $0x4] sm:$0xf]
  %v26 = vld [vmem:[%s1 + $0x8] sm:$0xf]
  %v27 = vld [vmem:[%s1 + $0xc] sm:$0xf]
  %v28 = vld [vmem:[%s1 + $0x10] sm:$0xf]
  %v29 = vld [vmem:[%s1 + $0x14] sm:$0xf]
  %v30 = vld [vmem:[%s1 + $0x18] sm:$0xf]
  %v31 = vld [vmem:[%s1 + $0x1c] sm:$0xf]
  %v32 = vld [vmem:[%s1 + $0x20] sm:$0xf]
  %v33 = vld [vmem:[%s1 + $0x24] sm:$0xf]
  %v34 = vld [vmem:[%s1 + $0x28] sm:$0xf]
  %v35 = vld [vmem:[%s1 + $0x2c] sm:$0xf]
  %v36 = vld [vmem:[%s1 + $0x30] sm:$0xf]
  %v37 = vld [vmem:[%s1 + $0x34] sm:$0xf]
  %v38 = vld [vmem:[%s1 + $0x38] sm:$0xf]
  %v39 = vld [vmem:[%s1 + $0x3c] sm:$0xf]
  %v40 = vld [vmem:[%s1 + $0x40] sm:$0xf]
  %v41 = vld [vmem:[%s1 + $0x44] sm:$0xf]
  %v42 = vld [vmem:[%s1 + $0x48] sm:$0xf]
  %v43 = vld [vmem:[%s1 + $0x4c] sm:$0xf]
  %v44 = vld [vmem:[%s1 + $0x50] sm:$0xf]
  %v45 = vld [vmem:[%s1 + $0x54] sm:$0xf]
  %v46 = vld [vmem:[%s1 + $0x58] sm:$0xf]
  %v47 = vld [vmem:[%s1 + $0x5c] sm:$0xf]
  %v48 = vld [vmem:[%s1 + $0x60] sm:$0xf]
  %v49 = vld [vmem:[%s1 + $0x64] sm:$0xf]
  %v50 = vld [vmem:[%s1 + $0x68] sm:$0xf]
  %v51 = vld [vmem:[%s1 + $0x6c] sm:$0xf]
  %v52 = vld [vmem:[%s1 + $0x70] sm:$0xf]
  %v53 = vld [vmem:[%s1 + $0x74] sm:$0xf]
  %v54 = vld [vmem:[%s1 + $0x78] sm:$0xf]
  %v55 = vld [vmem:[%s1 + $0x7c] sm:$0xf]
  %v56 = vld [vmem:[%s1 + $0x80] sm:$0xf]
  %v57 = vld [vmem:[%s1 + $0x84] sm:$0xf]
  %v58 = vld [vmem:[%s1 + $0x88] sm:$0xf]
  %v59 = vld [vmem:[%s1 + $0x8c] sm:$0xf]
  %v60 = vld [vmem:[%s1 + $0x90] sm:$0xf]
  %v61 = vld [vmem:[%s1 + $0x94] sm:$0xf]
  %v62 = vld [vmem:[%s1 + $0x98] sm:$0xf]
  %v63 = vld [vmem:[%s1 + $0x9c] sm:$0xf]
  %v64 = vld [vmem:[%s1 + $0xa0] sm:$0xf]
  %v65 = vld [vmem:[%s1 + $0xa4] sm:$0xf]
  %v66 = vld [vmem:[%s1 + $0xa8] sm:$0xf]
  %v67 = vld [vmem:[%s1 + $0xac] sm:$0xf]
  %v68 = vld [vmem:[%s1 + $0xb0] sm:$0xf]
  %v69 = vld [vmem:[%s1 + $0xb4] sm:$0xf]
  %v70 = vld [vmem:[%s1 + $0xb8] sm:$0xf]
  %v71 = vld [vmem:[%s1 + $0xbc] sm:$0xf]
  %v72 = vld [vmem:[%s1 + $0xc0] sm:$0xf]
  %v73 = vld [vmem:[%s1 + $0xc4] sm:$0xf]
  %v74 = vld [vmem:[%s1 + $0xc8] sm:$0xf]
  %v75 = vld [vmem:[%s1 + $0xcc] sm:$0xf]
  %v76 = vld [vmem:[%s1 + $0xd0] sm:$0xf]
  %v77 = vld [vmem:[%s1 + $0xd4] sm:$0xf]
  %v78 = vld [vmem:[%s1 + $0xd8] sm:$0xf]
  %v79 = vld [vmem:[%s1 + $0xdc] sm:$0xf]
  %v80 = vld [vmem:[%s1 + $0xe0] sm:$0xf]
  %v81 = vld [vmem:[%s1 + $0xe4] sm:$0xf]
  %v82 = vld [vmem:[%s1 + $0xe8] sm:$0xf]
  %v83 = vld [vmem:[%s1 + $0xec] sm:$0xf]
  %v84 = vld [vmem:[%s1 + $0xf0] sm:$0xf]
  %v85 = vld [vmem:[%s1 + $0xf4] sm:$0xf]
  %v86 = vld [vmem:[%s1 + $0xf8] sm:$0xf]
  %v87 = vld [vmem:[%s1 + $0xfc] sm:$0xf]
  %v88 = vld [vmem:[%s1 + $0x100] sm:$0xf]
  %v89 = vld [vmem:[%s1 + $0x104] sm:$0xf]
  %v90 = vld [vmem:[%s1 + $0x108] sm:$0xf]
  %v91 = vld [vmem:[%s1 + $0x10c] sm:$0xf]
  %v92 = vld [vmem:[%s1 + $0x110] sm:$0xf]
  %v93 = vld [vmem:[%s1 + $0x114] sm:$0xf]
  %v94 = vld [vmem:[%s1 + $0x118] sm:$0xf]
  %v95 = vld [vmem:[%s1 + $0x11c] sm:$0xf]
  %v96 = vld [vmem:[%s1 + $0x120] sm:$0xf]
  %v97 = vld [vmem:[%s1 + $0x124] sm:$0xf]
  %v98 = vld [vmem:[%s1 + $0x128] sm:$0xf]
  %v99 = vld [vmem:[%s1 + $0x12c] sm:$0xf]
  %v100 = vld [vmem:[%s1 + $0x130] sm:$0xf]
  %v101 = vld [vmem:[%s1 + $0x134] sm:$0xf]
  %v102 = vld [vmem:[%s1 + $0x138] sm:$0xf]
  %v103 = vld [vmem:[%s1 + $0x13c] sm:$0xf]
  %v104 = vld [vmem:[%s1 + $0x140] sm:$0xf]
  %v105 = vld [vmem:[%s1 + $0x144] sm:$0xf]
  %v106 = vld [vmem:[%s1 + $0x148] sm:$0xf]
  %v107 = vld [vmem:[%s1 + $0x14c] sm:$0xf]
  %v108 = vld [vmem:[%s1 + $0x150] sm:$0xf]
  %v109 = vld [vmem:[%s1 + $0x154] sm:$0xf]
  %v110 = vld [vmem:[%s1 + $0x158] sm:$0xf]
  %v111 = vld [vmem:[%s1 + $0x15c] sm:$0xf]
  %v112 = vld [vmem:[%s1 + $0x160] sm:$0xf]
  %v113 = vld [vmem:[%s1 + $0x164] sm:$0xf]
  %v114 = vld [vmem:[%s1 + $0x168] sm:$0xf]
  %v115 = vld [vmem:[%s1 + $0x16c] sm:$0xf]
  %v116 = vld [vmem:[%s1 + $0x170] sm:$0xf]
  %v117 = vld [vmem:[%s1 + $0x174] sm:$0xf]
  %v118 = vld [vmem:[%s1 + $0x178] sm:$0xf]
  %v119 = vld [vmem:[%s1 + $0x17c] sm:$0xf]
  %v120 = vld [vmem:[%s1 + $0x180] sm:$0xf]
  %v121 = vld [vmem:[%s1 + $0x184] sm:$0xf]
  %v122 = vld [vmem:[%s1 + $0x188] sm:$0xf]
  %v123 = vld [vmem:[%s1 + $0x18c] sm:$0xf]
  %v124 = vld [vmem:[%s1 + $0x190] sm:$0xf]
  %v125 = vld [vmem:[%s1 + $0x194] sm:$0xf]
  %v126 = vld [vmem:[%s1 + $0x198] sm:$0xf]
  %v127 = vld [vmem:[%s1 + $0x19c] sm:$0xf]
  %v128 = vld [vmem:[%s1 + $0x1a0] sm:$0xf]
  %v129 = vld [vmem:[%s1 + $0x1a4] sm:$0xf]
  %v130 = vld [vmem:[%s1 + $0x1a8] sm:$0xf]
  %v131 = vld [vmem:[%s1 + $0x1ac] sm:$0xf]
  %v132 = vld [vmem:[%s1 + $0x1b0] sm:$0xf]
  %v133 = vld [vmem:[%s1 + $0x1b4] sm:$0xf]
  %v134 = vld [vmem:[%s1 + $0x1b8] sm:$0xf]
  %v135 = vld [vmem:[%s1 + $0x1bc] sm:$0xf]
  %v136 = vld [vmem:[%s1 + $0x1c0] sm:$0xf]
  %v137 = vld [vmem:[%s1 + $0x1c4] sm:$0xf]
  %v138 = vld [vmem:[%s1 + $0x1c8] sm:$0xf]
  %v139 = vld [vmem:[%s1 + $0x1cc] sm:$0xf]
  %v140 = vld [vmem:[%s1 + $0x1d0] sm:$0xf]
  %v141 = vld [vmem:[%s1 + $0x1d4] sm:$0xf]
  %v142 = vld [vmem:[%s1 + $0x1d8] sm:$0xf]
  %v143 = vld [vmem:[%s1 + $0x1dc] sm:$0xf]
  %v144 = vld [vmem:[%s1 + $0x1e0] sm:$0xf]
  %v145 = vld [vmem:[%s1 + $0x1e4] sm:$0xf]
  %v146 = vld [vmem:[%s1 + $0x1e8] sm:$0xf]
  %v147 = vld [vmem:[%s1 + $0x1ec] sm:$0xf]
  %v148 = vld [vmem:[%s1 + $0x1f0] sm:$0xf]
  %v149 = vld [vmem:[%s1 + $0x1f4] sm:$0xf]
  %v150 = vld [vmem:[%s1 + $0x1f8] sm:$0xf]
  %v151 = vld [vmem:[%s1 + $0x1fc] sm:$0xf]
  %v152 = vld [vmem:[%s1 + $0x200] sm:$0xf]
  %v153 = vld [vmem:[%s1 + $0x204] sm:$0xf]
  %v154 = vld [vmem:[%s1 + $0x208] sm:$0xf]
  %v155 = vld [vmem:[%s1 + $0x20c] sm:$0xf]
  %v156 = vld [vmem:[%s1 + $0x210] sm:$0xf]
  %v157 = vld [vmem:[%s1 + $0x214] sm:$0xf]
  %v158 = vld [vmem:[%s1 + $0x218] sm:$0xf]
  %v159 = vld [vmem:[%s1 + $0x21c] sm:$0xf]
  %v160 = vld [vmem:[%s1 + $0x220] sm:$0xf]
  %v161 = vld [vmem:[%s1 + $0x224] sm:$0xf]
  %v162 = vld [vmem:[%s1 + $0x228] sm:$0xf]
  %v163 = vld [vmem:[%s1 + $0x22c] sm:$0xf]
  %v164 = vld [vmem:[%s1 + $0x230] sm:$0xf]
  %v165 = vld [vmem:[%s1 + $0x234] sm:$0xf]
  %v166 = vld [vmem:[%s1 + $0x238] sm:$0xf]
  %v167 = vld [vmem:[%s1 + $0x23c] sm:$0xf]
  %v178 = vunpack.c.l.b16 %v14
  %v179 = vunpack.c.h.b16 %v14
  %v180 = vunpack.c.l.b16 %v15
  %v181 = vunpack.c.h.b16 %v15
  %v182 = vunpack.c.l.b16 %v16
  %v183 = vunpack.c.h.b16 %v16
  %v184 = vunpack.c.l.b16 %v17
  %v185 = vunpack.c.h.b16 %v17
  %v186 = vunpack.c.l.b16 %v18
  %v187 = vunpack.c.l.b16 %v19
  %v188 = vunpack.c.h.b16 %v19
  %v189 = vunpack.c.l.b16 %v20
  %v190 = vunpack.c.h.b16 %v20
  %v191 = vunpack.c.l.b16 %v21
  %v192 = vunpack.c.h.b16 %v21
  %v193 = vunpack.c.l.b16 %v22
  %v194 = vunpack.c.h.b16 %v22
  %v195 = vunpack.c.l.b16 %v23
  %v196 = vpack.c.b16 %v187, %v178
  %v197 = vpack.c.b16 %v188, %v179
  %v198 = vpack.c.b16 %v189, %v180
  %v199 = vpack.c.b16 %v190, %v181
  %v200 = vpack.c.b16 %v191, %v182
  %v201 = vpack.c.b16 %v192, %v183
  %v202 = vpack.c.b16 %v193, %v184
  %v203 = vpack.c.b16 %v194, %v185
  %v204 = vpack.c.b16 %v195, %v186
  %v358 = vunpack.c.l.b16 %v24
  %v359 = vunpack.c.l.b16 %v25
  %v360 = vunpack.c.l.b16 %v26
  %v361 = vunpack.c.l.b16 %v27
  %v362 = vunpack.c.l.b16 %v28
  %v363 = vunpack.c.l.b16 %v29
  %v364 = vunpack.c.l.b16 %v30
  %v365 = vunpack.c.l.b16 %v31
  %v366 = vunpack.c.l.b16 %v32
  %v367 = vunpack.c.l.b16 %v33
  %v368 = vunpack.c.l.b16 %v34
  %v369 = vunpack.c.l.b16 %v35
  %v370 = vunpack.c.l.b16 %v36
  %v371 = vunpack.c.l.b16 %v37
  %v372 = vunpack.c.l.b16 %v38
  %v373 = vunpack.c.l.b16 %v39
  %v374 = vunpack.c.l.b16 %v40
  %v375 = vunpack.c.l.b16 %v41
  %v376 = vunpack.c.l.b16 %v42
  %v377 = vunpack.c.l.b16 %v43
  %v378 = vunpack.c.l.b16 %v44
  %v379 = vunpack.c.l.b16 %v45
  %v380 = vunpack.c.l.b16 %v46
  %v381 = vunpack.c.l.b16 %v47
  %v382 = vunpack.c.l.b16 %v48
  %v383 = vunpack.c.l.b16 %v49
  %v384 = vunpack.c.l.b16 %v50
  %v385 = vunpack.c.l.b16 %v51
  %v386 = vunpack.c.l.b16 %v52
  %v387 = vunpack.c.l.b16 %v53
  %v388 = vunpack.c.l.b16 %v54
  %v389 = vunpack.c.l.b16 %v55
  %v390 = vunpack.c.l.b16 %v56
  %v391 = vunpack.c.l.b16 %v57
  %v392 = vunpack.c.l.b16 %v58
  %v393 = vunpack.c.l.b16 %v59
  %v394 = vunpack.c.l.b16 %v60
  %v395 = vunpack.c.l.b16 %v61
  %v396 = vunpack.c.l.b16 %v62
  %v397 = vunpack.c.l.b16 %v63
  %v398 = vunpack.c.l.b16 %v64
  %v399 = vunpack.c.l.b16 %v65
  %v400 = vunpack.c.l.b16 %v66
  %v401 = vunpack.c.l.b16 %v67
  %v402 = vunpack.c.l.b16 %v68
  %v403 = vunpack.c.l.b16 %v69
  %v404 = vunpack.c.l.b16 %v70
  %v405 = vunpack.c.l.b16 %v71
  %v406 = vunpack.c.l.b16 %v72
  %v407 = vunpack.c.l.b16 %v73
  %v408 = vunpack.c.l.b16 %v74
  %v409 = vunpack.c.l.b16 %v75
  %v410 = vunpack.c.l.b16 %v76
  %v411 = vunpack.c.l.b16 %v77
  %v412 = vunpack.c.l.b16 %v78
  %v413 = vunpack.c.l.b16 %v79
  %v414 = vunpack.c.l.b16 %v80
  %v415 = vunpack.c.l.b16 %v81
  %v416 = vunpack.c.l.b16 %v82
  %v417 = vunpack.c.l.b16 %v83
  %v418 = vunpack.c.l.b16 %v84
  %v419 = vunpack.c.l.b16 %v85
  %v420 = vunpack.c.l.b16 %v86
  %v421 = vunpack.c.l.b16 %v87
  %v422 = vunpack.c.l.b16 %v88
  %v423 = vunpack.c.l.b16 %v89
  %v424 = vunpack.c.l.b16 %v90
  %v425 = vunpack.c.l.b16 %v91
  %v426 = vunpack.c.l.b16 %v92
  %v427 = vunpack.c.l.b16 %v93
  %v428 = vunpack.c.l.b16 %v94
  %v429 = vunpack.c.l.b16 %v95
  %v430 = vunpack.c.l.b16 %v96
  %v431 = vunpack.c.l.b16 %v97
  %v432 = vunpack.c.l.b16 %v98
  %v433 = vunpack.c.l.b16 %v99
  %v434 = vunpack.c.l.b16 %v100
  %v435 = vunpack.c.l.b16 %v101
  %v436 = vunpack.c.l.b16 %v102
  %v437 = vunpack.c.l.b16 %v103
  %v438 = vunpack.c.l.b16 %v104
  %v439 = vunpack.c.l.b16 %v105
  %v440 = vunpack.c.l.b16 %v106
  %v441 = vunpack.c.l.b16 %v107
  %v442 = vunpack.c.l.b16 %v108
  %v443 = vunpack.c.l.b16 %v109
  %v444 = vunpack.c.l.b16 %v110
  %v445 = vunpack.c.l.b16 %v111
  %v446 = vunpack.c.l.b16 %v112
  %v447 = vunpack.c.l.b16 %v113
  %v448 = vunpack.c.l.b16 %v114
  %v449 = vunpack.c.l.b16 %v115
  %v450 = vunpack.c.l.b16 %v116
  %v451 = vunpack.c.l.b16 %v117
  %v452 = vunpack.c.l.b16 %v118
  %v453 = vunpack.c.l.b16 %v119
  %v454 = vunpack.c.l.b16 %v120
  %v455 = vunpack.c.l.b16 %v121
  %v456 = vunpack.c.l.b16 %v122
  %v457 = vunpack.c.l.b16 %v123
  %v458 = vunpack.c.l.b16 %v124
  %v459 = vunpack.c.l.b16 %v125
  %v460 = vunpack.c.l.b16 %v126
  %v461 = vunpack.c.l.b16 %v127
  %v462 = vunpack.c.l.b16 %v128
  %v463 = vunpack.c.l.b16 %v129
  %v464 = vunpack.c.l.b16 %v130
  %v465 = vunpack.c.l.b16 %v131
  %v466 = vunpack.c.l.b16 %v132
  %v467 = vunpack.c.l.b16 %v133
  %v468 = vunpack.c.l.b16 %v134
  %v469 = vunpack.c.l.b16 %v135
  %v470 = vunpack.c.l.b16 %v136
  %v471 = vunpack.c.l.b16 %v137
  %v472 = vunpack.c.l.b16 %v138
  %v473 = vunpack.c.l.b16 %v139
  %v474 = vunpack.c.l.b16 %v140
  %v475 = vunpack.c.l.b16 %v141
  %v476 = vunpack.c.l.b16 %v142
  %v477 = vunpack.c.l.b16 %v143
  %v478 = vunpack.c.l.b16 %v144
  %v479 = vunpack.c.l.b16 %v145
  %v480 = vunpack.c.l.b16 %v146
  %v481 = vunpack.c.l.b16 %v147
  %v482 = vunpack.c.l.b16 %v148
  %v483 = vunpack.c.l.b16 %v149
  %v484 = vunpack.c.l.b16 %v150
  %v485 = vunpack.c.l.b16 %v151
  %v486 = vunpack.c.l.b16 %v152
  %v487 = vunpack.c.l.b16 %v153
  %v488 = vunpack.c.l.b16 %v154
  %v489 = vunpack.c.l.b16 %v155
  %v490 = vunpack.c.l.b16 %v156
  %v491 = vunpack.c.l.b16 %v157
  %v492 = vunpack.c.l.b16 %v158
  %v493 = vunpack.c.l.b16 %v159
  %v494 = vunpack.c.l.b16 %v160
  %v495 = vunpack.c.l.b16 %v161
  %v496 = vunpack.c.l.b16 %v162
  %v497 = vunpack.c.l.b16 %v163
  %v498 = vunpack.c.l.b16 %v164
  %v499 = vunpack.c.l.b16 %v165
  %v500 = vunpack.c.l.b16 %v166
  %v501 = vunpack.c.l.b16 %v167
  %v502 = vpack.c.b16 %v359, %v358
  %v503 = vpack.c.b16 %v361, %v360
  %v504 = vpack.c.b16 %v363, %v362
  %v505 = vpack.c.b16 %v365, %v364
  %v506 = vpack.c.b16 %v367, %v366
  %v507 = vpack.c.b16 %v369, %v368
  %v508 = vpack.c.b16 %v371, %v370
  %v509 = vpack.c.b16 %v373, %v372
  %v510 = vpack.c.b16 %v375, %v374
  %v511 = vpack.c.b16 %v377, %v376
  %v512 = vpack.c.b16 %v379, %v378
  %v513 = vpack.c.b16 %v381, %v380
  %v514 = vpack.c.b16 %v383, %v382
  %v515 = vpack.c.b16 %v385, %v384
  %v516 = vpack.c.b16 %v387, %v386
  %v517 = vpack.c.b16 %v389, %v388
  %v518 = vpack.c.b16 %v391, %v390
  %v519 = vpack.c.b16 %v393, %v392
  %v520 = vpack.c.b16 %v395, %v394
  %v521 = vpack.c.b16 %v397, %v396
  %v522 = vpack.c.b16 %v399, %v398
  %v523 = vpack.c.b16 %v401, %v400
  %v524 = vpack.c.b16 %v403, %v402
  %v525 = vpack.c.b16 %v405, %v404
  %v526 = vpack.c.b16 %v407, %v406
  %v527 = vpack.c.b16 %v409, %v408
  %v528 = vpack.c.b16 %v411, %v410
  %v529 = vpack.c.b16 %v413, %v412
  %v530 = vpack.c.b16 %v415, %v414
  %v531 = vpack.c.b16 %v417, %v416
  %v532 = vpack.c.b16 %v419, %v418
  %v533 = vpack.c.b16 %v421, %v420
  %v534 = vpack.c.b16 %v423, %v422
  %v535 = vpack.c.b16 %v425, %v424
  %v536 = vpack.c.b16 %v427, %v426
  %v537 = vpack.c.b16 %v429, %v428
  %v538 = vpack.c.b16 %v431, %v430
  %v539 = vpack.c.b16 %v433, %v432
  %v540 = vpack.c.b16 %v435, %v434
  %v541 = vpack.c.b16 %v437, %v436
  %v542 = vpack.c.b16 %v439, %v438
  %v543 = vpack.c.b16 %v441, %v440
  %v544 = vpack.c.b16 %v443, %v442
  %v545 = vpack.c.b16 %v445, %v444
  %v546 = vpack.c.b16 %v447, %v446
  %v547 = vpack.c.b16 %v449, %v448
  %v548 = vpack.c.b16 %v451, %v450
  %v549 = vpack.c.b16 %v453, %v452
  %v550 = vpack.c.b16 %v455, %v454
  %v551 = vpack.c.b16 %v457, %v456
  %v552 = vpack.c.b16 %v459, %v458
  %v553 = vpack.c.b16 %v461, %v460
  %v554 = vpack.c.b16 %v463, %v462
  %v555 = vpack.c.b16 %v465, %v464
  %v556 = vpack.c.b16 %v467, %v466
  %v557 = vpack.c.b16 %v469, %v468
  %v558 = vpack.c.b16 %v471, %v470
  %v559 = vpack.c.b16 %v473, %v472
  %v560 = vpack.c.b16 %v475, %v474
  %v561 = vpack.c.b16 %v477, %v476
  %v562 = vpack.c.b16 %v479, %v478
  %v563 = vpack.c.b16 %v481, %v480
  %v564 = vpack.c.b16 %v483, %v482
  %v565 = vpack.c.b16 %v485, %v484
  %v566 = vpack.c.b16 %v487, %v486
  %v567 = vpack.c.b16 %v489, %v488
  %v568 = vpack.c.b16 %v491, %v490
  %v569 = vpack.c.b16 %v493, %v492
  %v570 = vpack.c.b16 %v495, %v494
  %v571 = vpack.c.b16 %v497, %v496
  %v572 = vpack.c.b16 %v499, %v498
  %v573 = vpack.c.b16 %v501, %v500
  %646 = vmatpush.bf16.msra.mxu0 %v509
  %647 = vmatpush.bf16.msra.mxu0 %v508
  %648 = vmatpush.bf16.msra.mxu0 %v507
  %649 = vmatpush.bf16.msra.mxu0 %v506
  %650 = vmatpush.bf16.msra.mxu0 %v505
  %651 = vmatpush.bf16.msra.mxu0 %v504
  %652 = vmatpush.bf16.msra.mxu0 %v503
  %653 = vmatpush.bf16.msra.mxu0 %v502
  %654 = vmatmul.bf16.gmra.mxu0 %v196
  %v655 = vpop.f32.mrf.mxu0
  %v656 = vadd.f32 0.0, %v655
  %v657 = vpop.f32.mrf.mxu0
  %v658 = vadd.f32 0.0, %v657
  %659 = vdwg.mxu0
  %660 = vmatpush.bf16.msra.mxu0 %v517
  %661 = vmatpush.bf16.msra.mxu0 %v516
  %662 = vmatpush.bf16.msra.mxu0 %v515
  %663 = vmatpush.bf16.msra.mxu0 %v514
  %664 = vmatpush.bf16.msra.mxu0 %v513
  %665 = vmatpush.bf16.msra.mxu0 %v512
  %666 = vmatpush.bf16.msra.mxu0 %v511
  %667 = vmatpush.bf16.msra.mxu0 %v510
  %668 = vmatmul.bf16.gmra.mxu0 %v197
  %v669 = vpop.f32.mrf.mxu0
  %v670 = vadd.f32 %v656, %v669
  %v671 = vpop.f32.mrf.mxu0
  %v672 = vadd.f32 %v658, %v671
  %673 = vdwg.mxu0
  %674 = vmatpush.bf16.msra.mxu0 %v525
  %675 = vmatpush.bf16.msra.mxu0 %v524
  %676 = vmatpush.bf16.msra.mxu0 %v523
  %677 = vmatpush.bf16.msra.mxu0 %v522
  %678 = vmatpush.bf16.msra.mxu0 %v521
  %679 = vmatpush.bf16.msra.mxu0 %v520
  %680 = vmatpush.bf16.msra.mxu0 %v519
  %681 = vmatpush.bf16.msra.mxu0 %v518
  %682 = vmatmul.bf16.gmra.mxu0 %v198
  %v683 = vpop.f32.mrf.mxu0
  %v684 = vadd.f32 %v670, %v683
  %v685 = vpop.f32.mrf.mxu0
  %v686 = vadd.f32 %v672, %v685
  %687 = vdwg.mxu0
  %688 = vmatpush.bf16.msra.mxu0 %v533
  %689 = vmatpush.bf16.msra.mxu0 %v532
  %690 = vmatpush.bf16.msra.mxu0 %v531
  %691 = vmatpush.bf16.msra.mxu0 %v530
  %692 = vmatpush.bf16.msra.mxu0 %v529
  %693 = vmatpush.bf16.msra.mxu0 %v528
  %694 = vmatpush.bf16.msra.mxu0 %v527
  %695 = vmatpush.bf16.msra.mxu0 %v526
  %696 = vmatmul.bf16.gmra.mxu0 %v199
  %v697 = vpop.f32.mrf.mxu0
  %v698 = vadd.f32 %v684, %v697
  %v699 = vpop.f32.mrf.mxu0
  %v700 = vadd.f32 %v686, %v699
  %701 = vdwg.mxu0
  %702 = vmatpush.bf16.msra.mxu0 %v541
  %703 = vmatpush.bf16.msra.mxu0 %v540
  %704 = vmatpush.bf16.msra.mxu0 %v539
  %705 = vmatpush.bf16.msra.mxu0 %v538
  %706 = vmatpush.bf16.msra.mxu0 %v537
  %707 = vmatpush.bf16.msra.mxu0 %v536
  %708 = vmatpush.bf16.msra.mxu0 %v535
  %709 = vmatpush.bf16.msra.mxu0 %v534
  %710 = vmatmul.bf16.gmra.mxu0 %v200
  %v711 = vpop.f32.mrf.mxu0
  %v712 = vadd.f32 %v698, %v711
  %v713 = vpop.f32.mrf.mxu0
  %v714 = vadd.f32 %v700, %v713
  %715 = vdwg.mxu0
  %716 = vmatpush.bf16.msra.mxu0 %v549
  %717 = vmatpush.bf16.msra.mxu0 %v548
  %718 = vmatpush.bf16.msra.mxu0 %v547
  %719 = vmatpush.bf16.msra.mxu0 %v546
  %720 = vmatpush.bf16.msra.mxu0 %v545
  %721 = vmatpush.bf16.msra.mxu0 %v544
  %722 = vmatpush.bf16.msra.mxu0 %v543
  %723 = vmatpush.bf16.msra.mxu0 %v542
  %724 = vmatmul.bf16.gmra.mxu0 %v201
  %v725 = vpop.f32.mrf.mxu0
  %v726 = vadd.f32 %v712, %v725
  %v727 = vpop.f32.mrf.mxu0
  %v728 = vadd.f32 %v714, %v727
  %729 = vdwg.mxu0
  %730 = vmatpush.bf16.msra.mxu0 %v557
  %731 = vmatpush.bf16.msra.mxu0 %v556
  %732 = vmatpush.bf16.msra.mxu0 %v555
  %733 = vmatpush.bf16.msra.mxu0 %v554
  %734 = vmatpush.bf16.msra.mxu0 %v553
  %735 = vmatpush.bf16.msra.mxu0 %v552
  %736 = vmatpush.bf16.msra.mxu0 %v551
  %737 = vmatpush.bf16.msra.mxu0 %v550
  %738 = vmatmul.bf16.gmra.mxu0 %v202
  %v739 = vpop.f32.mrf.mxu0
  %v740 = vadd.f32 %v726, %v739
  %v741 = vpop.f32.mrf.mxu0
  %v742 = vadd.f32 %v728, %v741
  %743 = vdwg.mxu0
  %744 = vmatpush.bf16.msra.mxu0 %v565
  %745 = vmatpush.bf16.msra.mxu0 %v564
  %746 = vmatpush.bf16.msra.mxu0 %v563
  %747 = vmatpush.bf16.msra.mxu0 %v562
  %748 = vmatpush.bf16.msra.mxu0 %v561
  %749 = vmatpush.bf16.msra.mxu0 %v560
  %750 = vmatpush.bf16.msra.mxu0 %v559
  %751 = vmatpush.bf16.msra.mxu0 %v558
  %752 = vmatmul.bf16.gmra.mxu0 %v203
  %v753 = vpop.f32.mrf.mxu0
  %v754 = vadd.f32 %v740, %v753
  %v755 = vpop.f32.mrf.mxu0
  %v756 = vadd.f32 %v742, %v755
  %757 = vdwg.mxu0
  %758 = vmatpush.bf16.msra.mxu0 %v573
  %759 = vmatpush.bf16.msra.mxu0 %v572
  %760 = vmatpush.bf16.msra.mxu0 %v571
  %761 = vmatpush.bf16.msra.mxu0 %v570
  %762 = vmatpush.bf16.msra.mxu0 %v569
  %763 = vmatpush.bf16.msra.mxu0 %v568
  %764 = vmatpush.bf16.msra.mxu0 %v567
  %765 = vmatpush.bf16.msra.mxu0 %v566
  %766 = vmatmul.bf16.gmra.mxu0 %v204
  %v767 = vpop.f32.mrf.mxu0
  %v768 = vadd.f32 %v754, %v767
  %v769 = vpop.f32.mrf.mxu0
  %v770 = vadd.f32 %v756, %v769
  %771 = vdwg.mxu0
  %v772 = vld [vmem:[%s2] sm:$0x1]
  %v773 = vperm.slane %v772, 0
  %v774 = vmul.f32 %v768, %v773
  %v775 = vmul.f32 %v770, %v773
  %v776 = vld [vmem:[%s2 + $0x1] sm:$0x1]
  %v777 = vperm.slane %v776, 0
  %v778 = vadd.f32 %v774, %v777
  %v779 = vadd.f32 %v775, %v777
  %v780 = vmax.f32 %v778, 0.0
  %v781 = vmax.f32 %v779, 0.0
  %v782 = vpack.c.bf16 %v780, %v780
  %v783 = vpack.c.bf16 %v781, %v781
  %784 = vst [vmem:[%s3] sm:$0xf] %v782
  %785 = vst [vmem:[%s3 + $0x4] sm:$0xf] %v783
  // Predicated region
  $region14: #{restnet18_forward.40} parent=0 // pred_check
    _
  $region15: #{restnet18_forward.40} parent=0 // pred_check_branch
    %787 = sbr.rel (0) target = $region17
  $region16: #{restnet18_forward.40} parent=0 // pred_region
    _
  $region17: #{restnet18_forward.40} parent=0 // pred_fallthru
    _
  // Predicated region
  $region18: #{restnet18_forward.40} parent=0 // pred_check
    _
  $region19: #{restnet18_forward.40} parent=0 // pred_check_branch
    %789 = sbr.rel (0) target = $region21
  $region20: #{restnet18_forward.40} parent=0 // pred_region
    _
  $region21: #{restnet18_forward.40} parent=0 // pred_fallthru
    _

// kernel: restnet18_forward.38
$region0: #{restnet18_forward.38}
  #allocation0 [shape = 'u32[]', space=smem, size = 0x4, offset = 0x4, fixed_abs, tag = 'smem constant byte address 0x4 - core index']
  #allocation1 [shape = 'u32[72,128]{1,0:T(1,128)}', space=vmem, size = 0x9000, scoped, tag = 'internal scratch']
  %s0 = inlined_call_operand.vmem [shape: bf16[16,1152], index: 0, kind: input, shape index: {}]
  %s1 = inlined_call_operand.vmem [shape: bf16[1152,256], index: 1, kind: input, shape index: {}]
  %s2 = inlined_call_operand.vmem [shape: f32[2,256], index: 2, kind: input, shape index: {}]
  %s3 = inlined_call_operand.vmem [shape: bf16[16,128], index: 3, kind: output, shape index: {0}]
  %s4 = inlined_call_operand.vmem [shape: bf16[16,128], index: 4, kind: output, shape index: {1}]
  %5 = xla_tuple %s3, %s4
  %s6 = sld [smem:[#allocation0]]
  $region30: #{restnet18_forward.38} parent=0
    _
  %s8 = ssub.s32 1, %s6
  %s9 = scalar_select 0, %s8, %s6
  // Predicated region
  $region2: #{restnet18_forward.38} parent=0 // pred_check
    _
  $region3: #{restnet18_forward.38} parent=0 // pred_check_branch
    %11 = sbr.rel (0) target = $region5
  $region4: #{restnet18_forward.38} parent=0 // pred_region
    _
  $region5: #{restnet18_forward.38} parent=0 // pred_fallthru
    _
  // Predicated region
  $region6: #{restnet18_forward.38} parent=0 // pred_check
    _
  $region7: #{restnet18_forward.38} parent=0 // pred_check_branch
    %13 = sbr.rel (0) target = $region9
  $region8: #{restnet18_forward.38} parent=0 // pred_region
    _
  $region9: #{restnet18_forward.38} parent=0 // pred_fallthru
    _
  // Predicated region
  $region10: #{restnet18_forward.38} parent=0 // pred_check
    _
  $region11: #{restnet18_forward.38} parent=0 // pred_check_branch
    %15 = sbr.rel (0) target = $region13
  $region12: #{restnet18_forward.38} parent=0 // pred_region
    _
  $region13: #{restnet18_forward.38} parent=0 // pred_fallthru
    _
  %v16 = vld [vmem:[%s0] sm:$0xff]
  %v17 = vld [vmem:[%s0 + $0x8] sm:$0xff]
  %v18 = vld [vmem:[%s0 + $0x10] sm:$0xff]
  %v19 = vld [vmem:[%s0 + $0x18] sm:$0xff]
  %v20 = vld [vmem:[%s0 + $0x20] sm:$0xf]
  %v21 = vld [vmem:[%s0 + $0x24] sm:$0xff]
  %v22 = vld [vmem:[%s0 + $0x2c] sm:$0xff]
  %v23 = vld [vmem:[%s0 + $0x34] sm:$0xff]
  %v24 = vld [vmem:[%s0 + $0x3c] sm:$0xff]
  %v25 = vld [vmem:[%s0 + $0x44] sm:$0xf]
  %v26 = vld [vmem:[%s1] sm:$0xff]
  %v27 = vld [vmem:[%s1 + $0x8] sm:$0xff]
  %v28 = vld [vmem:[%s1 + $0x10] sm:$0xff]
  %v29 = vld [vmem:[%s1 + $0x18] sm:$0xff]
  %v30 = vld [vmem:[%s1 + $0x20] sm:$0xff]
  %v31 = vld [vmem:[%s1 + $0x28] sm:$0xff]
  %v32 = vld [vmem:[%s1 + $0x30] sm:$0xff]
  %v33 = vld [vmem:[%s1 + $0x38] sm:$0xff]
  %v34 = vld [vmem:[%s1 + $0x40] sm:$0xff]
  %v35 = vld [vmem:[%s1 + $0x48] sm:$0xff]
  %v36 = vld [vmem:[%s1 + $0x50] sm:$0xff]
  %v37 = vld [vmem:[%s1 + $0x58] sm:$0xff]
  %v38 = vld [vmem:[%s1 + $0x60] sm:$0xff]
  %v39 = vld [vmem:[%s1 + $0x68] sm:$0xff]
  %v40 = vld [vmem:[%s1 + $0x70] sm:$0xff]
  %v41 = vld [vmem:[%s1 + $0x78] sm:$0xff]
  %v42 = vld [vmem:[%s1 + $0x80] sm:$0xff]
  %v43 = vld [vmem:[%s1 + $0x88] sm:$0xff]
  %v44 = vld [vmem:[%s1 + $0x90] sm:$0xff]
  %v45 = vld [vmem:[%s1 + $0x98] sm:$0xff]
  %v46 = vld [vmem:[%s1 + $0xa0] sm:$0xff]
  %v47 = vld [vmem:[%s1 + $0xa8] sm:$0xff]
  %v48 = vld [vmem:[%s1 + $0xb0] sm:$0xff]
  %v49 = vld [vmem:[%s1 + $0xb8] sm:$0xff]
  %v50 = vld [vmem:[%s1 + $0xc0] sm:$0xff]
  %v51 = vld [vmem:[%s1 + $0xc8] sm:$0xff]
  %v52 = vld [vmem:[%s1 + $0xd0] sm:$0xff]
  %v53 = vld [vmem:[%s1 + $0xd8] sm:$0xff]
  %v54 = vld [vmem:[%s1 + $0xe0] sm:$0xff]
  %v55 = vld [vmem:[%s1 + $0xe8] sm:$0xff]
  %v56 = vld [vmem:[%s1 + $0xf0] sm:$0xff]
  %v57 = vld [vmem:[%s1 + $0xf8] sm:$0xff]
  %v58 = vld [vmem:[%s1 + $0x100] sm:$0xff]
  %v59 = vld [vmem:[%s1 + $0x108] sm:$0xff]
  %v60 = vld [vmem:[%s1 + $0x110] sm:$0xff]
  %v61 = vld [vmem:[%s1 + $0x118] sm:$0xff]
  %v62 = vld [vmem:[%s1 + $0x120] sm:$0xff]
  %v63 = vld [vmem:[%s1 + $0x128] sm:$0xff]
  %v64 = vld [vmem:[%s1 + $0x130] sm:$0xff]
  %v65 = vld [vmem:[%s1 + $0x138] sm:$0xff]
  %v66 = vld [vmem:[%s1 + $0x140] sm:$0xff]
  %v67 = vld [vmem:[%s1 + $0x148] sm:$0xff]
  %v68 = vld [vmem:[%s1 + $0x150] sm:$0xff]
  %v69 = vld [vmem:[%s1 + $0x158] sm:$0xff]
  %v70 = vld [vmem:[%s1 + $0x160] sm:$0xff]
  %v71 = vld [vmem:[%s1 + $0x168] sm:$0xff]
  %v72 = vld [vmem:[%s1 + $0x170] sm:$0xff]
  %v73 = vld [vmem:[%s1 + $0x178] sm:$0xff]
  %v74 = vld [vmem:[%s1 + $0x180] sm:$0xff]
  %v75 = vld [vmem:[%s1 + $0x188] sm:$0xff]
  %v76 = vld [vmem:[%s1 + $0x190] sm:$0xff]
  %v77 = vld [vmem:[%s1 + $0x198] sm:$0xff]
  %v78 = vld [vmem:[%s1 + $0x1a0] sm:$0xff]
  %v79 = vld [vmem:[%s1 + $0x1a8] sm:$0xff]
  %v80 = vld [vmem:[%s1 + $0x1b0] sm:$0xff]
  %v81 = vld [vmem:[%s1 + $0x1b8] sm:$0xff]
  %v82 = vld [vmem:[%s1 + $0x1c0] sm:$0xff]
  %v83 = vld [vmem:[%s1 + $0x1c8] sm:$0xff]
  %v84 = vld [vmem:[%s1 + $0x1d0] sm:$0xff]
  %v85 = vld [vmem:[%s1 + $0x1d8] sm:$0xff]
  %v86 = vld [vmem:[%s1 + $0x1e0] sm:$0xff]
  %v87 = vld [vmem:[%s1 + $0x1e8] sm:$0xff]
  %v88 = vld [vmem:[%s1 + $0x1f0] sm:$0xff]
  %v89 = vld [vmem:[%s1 + $0x1f8] sm:$0xff]
  %v90 = vld [vmem:[%s1 + $0x200] sm:$0xff]
  %v91 = vld [vmem:[%s1 + $0x208] sm:$0xff]
  %v92 = vld [vmem:[%s1 + $0x210] sm:$0xff]
  %v93 = vld [vmem:[%s1 + $0x218] sm:$0xff]
  %v94 = vld [vmem:[%s1 + $0x220] sm:$0xff]
  %v95 = vld [vmem:[%s1 + $0x228] sm:$0xff]
  %v96 = vld [vmem:[%s1 + $0x230] sm:$0xff]
  %v97 = vld [vmem:[%s1 + $0x238] sm:$0xff]
  %v98 = vld [vmem:[%s1 + $0x240] sm:$0xff]
  %v99 = vld [vmem:[%s1 + $0x248] sm:$0xff]
  %v100 = vld [vmem:[%s1 + $0x250] sm:$0xff]
  %v101 = vld [vmem:[%s1 + $0x258] sm:$0xff]
  %v102 = vld [vmem:[%s1 + $0x260] sm:$0xff]
  %v103 = vld [vmem:[%s1 + $0x268] sm:$0xff]
  %v104 = vld [vmem:[%s1 + $0x270] sm:$0xff]
  %v105 = vld [vmem:[%s1 + $0x278] sm:$0xff]
  %v106 = vld [vmem:[%s1 + $0x280] sm:$0xff]
  %v107 = vld [vmem:[%s1 + $0x288] sm:$0xff]
  %v108 = vld [vmem:[%s1 + $0x290] sm:$0xff]
  %v109 = vld [vmem:[%s1 + $0x298] sm:$0xff]
  %v110 = vld [vmem:[%s1 + $0x2a0] sm:$0xff]
  %v111 = vld [vmem:[%s1 + $0x2a8] sm:$0xff]
  %v112 = vld [vmem:[%s1 + $0x2b0] sm:$0xff]
  %v113 = vld [vmem:[%s1 + $0x2b8] sm:$0xff]
  %v114 = vld [vmem:[%s1 + $0x2c0] sm:$0xff]
  %v115 = vld [vmem:[%s1 + $0x2c8] sm:$0xff]
  %v116 = vld [vmem:[%s1 + $0x2d0] sm:$0xff]
  %v117 = vld [vmem:[%s1 + $0x2d8] sm:$0xff]
  %v118 = vld [vmem:[%s1 + $0x2e0] sm:$0xff]
  %v119 = vld [vmem:[%s1 + $0x2e8] sm:$0xff]
  %v120 = vld [vmem:[%s1 + $0x2f0] sm:$0xff]
  %v121 = vld [vmem:[%s1 + $0x2f8] sm:$0xff]
  %v122 = vld [vmem:[%s1 + $0x300] sm:$0xff]
  %v123 = vld [vmem:[%s1 + $0x308] sm:$0xff]
  %v124 = vld [vmem:[%s1 + $0x310] sm:$0xff]
  %v125 = vld [vmem:[%s1 + $0x318] sm:$0xff]
  %v126 = vld [vmem:[%s1 + $0x320] sm:$0xff]
  %v127 = vld [vmem:[%s1 + $0x328] sm:$0xff]
  %v128 = vld [vmem:[%s1 + $0x330] sm:$0xff]
  %v129 = vld [vmem:[%s1 + $0x338] sm:$0xff]
  %v130 = vld [vmem:[%s1 + $0x340] sm:$0xff]
  %v131 = vld [vmem:[%s1 + $0x348] sm:$0xff]
  %v132 = vld [vmem:[%s1 + $0x350] sm:$0xff]
  %v133 = vld [vmem:[%s1 + $0x358] sm:$0xff]
  %v134 = vld [vmem:[%s1 + $0x360] sm:$0xff]
  %v135 = vld [vmem:[%s1 + $0x368] sm:$0xff]
  %v136 = vld [vmem:[%s1 + $0x370] sm:$0xff]
  %v137 = vld [vmem:[%s1 + $0x378] sm:$0xff]
  %v138 = vld [vmem:[%s1 + $0x380] sm:$0xff]
  %v139 = vld [vmem:[%s1 + $0x388] sm:$0xff]
  %v140 = vld [vmem:[%s1 + $0x390] sm:$0xff]
  %v141 = vld [vmem:[%s1 + $0x398] sm:$0xff]
  %v142 = vld [vmem:[%s1 + $0x3a0] sm:$0xff]
  %v143 = vld [vmem:[%s1 + $0x3a8] sm:$0xff]
  %v144 = vld [vmem:[%s1 + $0x3b0] sm:$0xff]
  %v145 = vld [vmem:[%s1 + $0x3b8] sm:$0xff]
  %v146 = vld [vmem:[%s1 + $0x3c0] sm:$0xff]
  %v147 = vld [vmem:[%s1 + $0x3c8] sm:$0xff]
  %v148 = vld [vmem:[%s1 + $0x3d0] sm:$0xff]
  %v149 = vld [vmem:[%s1 + $0x3d8] sm:$0xff]
  %v150 = vld [vmem:[%s1 + $0x3e0] sm:$0xff]
  %v151 = vld [vmem:[%s1 + $0x3e8] sm:$0xff]
  %v152 = vld [vmem:[%s1 + $0x3f0] sm:$0xff]
  %v153 = vld [vmem:[%s1 + $0x3f8] sm:$0xff]
  %v154 = vld [vmem:[%s1 + $0x400] sm:$0xff]
  %v155 = vld [vmem:[%s1 + $0x408] sm:$0xff]
  %v156 = vld [vmem:[%s1 + $0x410] sm:$0xff]
  %v157 = vld [vmem:[%s1 + $0x418] sm:$0xff]
  %v158 = vld [vmem:[%s1 + $0x420] sm:$0xff]
  %v159 = vld [vmem:[%s1 + $0x428] sm:$0xff]
  %v160 = vld [vmem:[%s1 + $0x430] sm:$0xff]
  %v161 = vld [vmem:[%s1 + $0x438] sm:$0xff]
  %v162 = vld [vmem:[%s1 + $0x440] sm:$0xff]
  %v163 = vld [vmem:[%s1 + $0x448] sm:$0xff]
  %v164 = vld [vmem:[%s1 + $0x450] sm:$0xff]
  %v165 = vld [vmem:[%s1 + $0x458] sm:$0xff]
  %v166 = vld [vmem:[%s1 + $0x460] sm:$0xff]
  %v167 = vld [vmem:[%s1 + $0x468] sm:$0xff]
  %v168 = vld [vmem:[%s1 + $0x470] sm:$0xff]
  %v169 = vld [vmem:[%s1 + $0x478] sm:$0xff]
  %v180 = vunpack.c.l.b16 %v16
  %v181 = vunpack.c.h.b16 %v16
  %v182 = vunpack.c.l.b16 %v17
  %v183 = vunpack.c.h.b16 %v17
  %v184 = vunpack.c.l.b16 %v18
  %v185 = vunpack.c.h.b16 %v18
  %v186 = vunpack.c.l.b16 %v19
  %v187 = vunpack.c.h.b16 %v19
  %v188 = vunpack.c.l.b16 %v20
  %v189 = vunpack.c.l.b16 %v21
  %v190 = vunpack.c.h.b16 %v21
  %v191 = vunpack.c.l.b16 %v22
  %v192 = vunpack.c.h.b16 %v22
  %v193 = vunpack.c.l.b16 %v23
  %v194 = vunpack.c.h.b16 %v23
  %v195 = vunpack.c.l.b16 %v24
  %v196 = vunpack.c.h.b16 %v24
  %v197 = vunpack.c.l.b16 %v25
  %v198 = vpack.c.b16 %v189, %v180
  %v199 = vpack.c.b16 %v190, %v181
  %v200 = vpack.c.b16 %v191, %v182
  %v201 = vpack.c.b16 %v192, %v183
  %v202 = vpack.c.b16 %v193, %v184
  %v203 = vpack.c.b16 %v194, %v185
  %v204 = vpack.c.b16 %v195, %v186
  %v205 = vpack.c.b16 %v196, %v187
  %v206 = vpack.c.b16 %v197, %v188
  %v360 = vunpack.c.l.b16 %v26
  %v361 = vunpack.c.h.b16 %v26
  %v362 = vunpack.c.l.b16 %v27
  %v363 = vunpack.c.h.b16 %v27
  %v364 = vunpack.c.l.b16 %v28
  %v365 = vunpack.c.h.b16 %v28
  %v366 = vunpack.c.l.b16 %v29
  %v367 = vunpack.c.h.b16 %v29
  %v368 = vunpack.c.l.b16 %v30
  %v369 = vunpack.c.h.b16 %v30
  %v370 = vunpack.c.l.b16 %v31
  %v371 = vunpack.c.h.b16 %v31
  %v372 = vunpack.c.l.b16 %v32
  %v373 = vunpack.c.h.b16 %v32
  %v374 = vunpack.c.l.b16 %v33
  %v375 = vunpack.c.h.b16 %v33
  %v376 = vunpack.c.l.b16 %v34
  %v377 = vunpack.c.h.b16 %v34
  %v378 = vunpack.c.l.b16 %v35
  %v379 = vunpack.c.h.b16 %v35
  %v380 = vunpack.c.l.b16 %v36
  %v381 = vunpack.c.h.b16 %v36
  %v382 = vunpack.c.l.b16 %v37
  %v383 = vunpack.c.h.b16 %v37
  %v384 = vunpack.c.l.b16 %v38
  %v385 = vunpack.c.h.b16 %v38
  %v386 = vunpack.c.l.b16 %v39
  %v387 = vunpack.c.h.b16 %v39
  %v388 = vunpack.c.l.b16 %v40
  %v389 = vunpack.c.h.b16 %v40
  %v390 = vunpack.c.l.b16 %v41
  %v391 = vunpack.c.h.b16 %v41
  %v392 = vunpack.c.l.b16 %v42
  %v393 = vunpack.c.h.b16 %v42
  %v394 = vunpack.c.l.b16 %v43
  %v395 = vunpack.c.h.b16 %v43
  %v396 = vunpack.c.l.b16 %v44
  %v397 = vunpack.c.h.b16 %v44
  %v398 = vunpack.c.l.b16 %v45
  %v399 = vunpack.c.h.b16 %v45
  %v400 = vunpack.c.l.b16 %v46
  %v401 = vunpack.c.h.b16 %v46
  %v402 = vunpack.c.l.b16 %v47
  %v403 = vunpack.c.h.b16 %v47
  %v404 = vunpack.c.l.b16 %v48
  %v405 = vunpack.c.h.b16 %v48
  %v406 = vunpack.c.l.b16 %v49
  %v407 = vunpack.c.h.b16 %v49
  %v408 = vunpack.c.l.b16 %v50
  %v409 = vunpack.c.h.b16 %v50
  %v410 = vunpack.c.l.b16 %v51
  %v411 = vunpack.c.h.b16 %v51
  %v412 = vunpack.c.l.b16 %v52
  %v413 = vunpack.c.h.b16 %v52
  %v414 = vunpack.c.l.b16 %v53
  %v415 = vunpack.c.h.b16 %v53
  %v416 = vunpack.c.l.b16 %v54
  %v417 = vunpack.c.h.b16 %v54
  %v418 = vunpack.c.l.b16 %v55
  %v419 = vunpack.c.h.b16 %v55
  %v420 = vunpack.c.l.b16 %v56
  %v421 = vunpack.c.h.b16 %v56
  %v422 = vunpack.c.l.b16 %v57
  %v423 = vunpack.c.h.b16 %v57
  %v424 = vunpack.c.l.b16 %v58
  %v425 = vunpack.c.h.b16 %v58
  %v426 = vunpack.c.l.b16 %v59
  %v427 = vunpack.c.h.b16 %v59
  %v428 = vunpack.c.l.b16 %v60
  %v429 = vunpack.c.h.b16 %v60
  %v430 = vunpack.c.l.b16 %v61
  %v431 = vunpack.c.h.b16 %v61
  %v432 = vunpack.c.l.b16 %v62
  %v433 = vunpack.c.h.b16 %v62
  %v434 = vunpack.c.l.b16 %v63
  %v435 = vunpack.c.h.b16 %v63
  %v436 = vunpack.c.l.b16 %v64
  %v437 = vunpack.c.h.b16 %v64
  %v438 = vunpack.c.l.b16 %v65
  %v439 = vunpack.c.h.b16 %v65
  %v440 = vunpack.c.l.b16 %v66
  %v441 = vunpack.c.h.b16 %v66
  %v442 = vunpack.c.l.b16 %v67
  %v443 = vunpack.c.h.b16 %v67
  %v444 = vunpack.c.l.b16 %v68
  %v445 = vunpack.c.h.b16 %v68
  %v446 = vunpack.c.l.b16 %v69
  %v447 = vunpack.c.h.b16 %v69
  %v448 = vunpack.c.l.b16 %v70
  %v449 = vunpack.c.h.b16 %v70
  %v450 = vunpack.c.l.b16 %v71
  %v451 = vunpack.c.h.b16 %v71
  %v452 = vunpack.c.l.b16 %v72
  %v453 = vunpack.c.h.b16 %v72
  %v454 = vunpack.c.l.b16 %v73
  %v455 = vunpack.c.h.b16 %v73
  %v456 = vunpack.c.l.b16 %v74
  %v457 = vunpack.c.h.b16 %v74
  %v458 = vunpack.c.l.b16 %v75
  %v459 = vunpack.c.h.b16 %v75
  %v460 = vunpack.c.l.b16 %v76
  %v461 = vunpack.c.h.b16 %v76
  %v462 = vunpack.c.l.b16 %v77
  %v463 = vunpack.c.h.b16 %v77
  %v464 = vunpack.c.l.b16 %v78
  %v465 = vunpack.c.h.b16 %v78
  %v466 = vunpack.c.l.b16 %v79
  %v467 = vunpack.c.h.b16 %v79
  %v468 = vunpack.c.l.b16 %v80
  %v469 = vunpack.c.h.b16 %v80
  %v470 = vunpack.c.l.b16 %v81
  %v471 = vunpack.c.h.b16 %v81
  %v472 = vunpack.c.l.b16 %v82
  %v473 = vunpack.c.h.b16 %v82
  %v474 = vunpack.c.l.b16 %v83
  %v475 = vunpack.c.h.b16 %v83
  %v476 = vunpack.c.l.b16 %v84
  %v477 = vunpack.c.h.b16 %v84
  %v478 = vunpack.c.l.b16 %v85
  %v479 = vunpack.c.h.b16 %v85
  %v480 = vunpack.c.l.b16 %v86
  %v481 = vunpack.c.h.b16 %v86
  %v482 = vunpack.c.l.b16 %v87
  %v483 = vunpack.c.h.b16 %v87
  %v484 = vunpack.c.l.b16 %v88
  %v485 = vunpack.c.h.b16 %v88
  %v486 = vunpack.c.l.b16 %v89
  %v487 = vunpack.c.h.b16 %v89
  %v488 = vunpack.c.l.b16 %v90
  %v489 = vunpack.c.h.b16 %v90
  %v490 = vunpack.c.l.b16 %v91
  %v491 = vunpack.c.h.b16 %v91
  %v492 = vunpack.c.l.b16 %v92
  %v493 = vunpack.c.h.b16 %v92
  %v494 = vunpack.c.l.b16 %v93
  %v495 = vunpack.c.h.b16 %v93
  %v496 = vunpack.c.l.b16 %v94
  %v497 = vunpack.c.h.b16 %v94
  %v498 = vunpack.c.l.b16 %v95
  %v499 = vunpack.c.h.b16 %v95
  %v500 = vunpack.c.l.b16 %v96
  %v501 = vunpack.c.h.b16 %v96
  %v502 = vunpack.c.l.b16 %v97
  %v503 = vunpack.c.h.b16 %v97
  %v504 = vunpack.c.l.b16 %v98
  %v505 = vunpack.c.h.b16 %v98
  %v506 = vunpack.c.l.b16 %v99
  %v507 = vunpack.c.h.b16 %v99
  %v508 = vunpack.c.l.b16 %v100
  %v509 = vunpack.c.h.b16 %v100
  %v510 = vunpack.c.l.b16 %v101
  %v511 = vunpack.c.h.b16 %v101
  %v512 = vunpack.c.l.b16 %v102
  %v513 = vunpack.c.h.b16 %v102
  %v514 = vunpack.c.l.b16 %v103
  %v515 = vunpack.c.h.b16 %v103
  %v516 = vunpack.c.l.b16 %v104
  %v517 = vunpack.c.h.b16 %v104
  %v518 = vunpack.c.l.b16 %v105
  %v519 = vunpack.c.h.b16 %v105
  %v520 = vunpack.c.l.b16 %v106
  %v521 = vunpack.c.h.b16 %v106
  %v522 = vunpack.c.l.b16 %v107
  %v523 = vunpack.c.h.b16 %v107
  %v524 = vunpack.c.l.b16 %v108
  %v525 = vunpack.c.h.b16 %v108
  %v526 = vunpack.c.l.b16 %v109
  %v527 = vunpack.c.h.b16 %v109
  %v528 = vunpack.c.l.b16 %v110
  %v529 = vunpack.c.h.b16 %v110
  %v530 = vunpack.c.l.b16 %v111
  %v531 = vunpack.c.h.b16 %v111
  %v532 = vunpack.c.l.b16 %v112
  %v533 = vunpack.c.h.b16 %v112
  %v534 = vunpack.c.l.b16 %v113
  %v535 = vunpack.c.h.b16 %v113
  %v536 = vunpack.c.l.b16 %v114
  %v537 = vunpack.c.h.b16 %v114
  %v538 = vunpack.c.l.b16 %v115
  %v539 = vunpack.c.h.b16 %v115
  %v540 = vunpack.c.l.b16 %v116
  %v541 = vunpack.c.h.b16 %v116
  %v542 = vunpack.c.l.b16 %v117
  %v543 = vunpack.c.h.b16 %v117
  %v544 = vunpack.c.l.b16 %v118
  %v545 = vunpack.c.h.b16 %v118
  %v546 = vunpack.c.l.b16 %v119
  %v547 = vunpack.c.h.b16 %v119
  %v548 = vunpack.c.l.b16 %v120
  %v549 = vunpack.c.h.b16 %v120
  %v550 = vunpack.c.l.b16 %v121
  %v551 = vunpack.c.h.b16 %v121
  %v552 = vunpack.c.l.b16 %v122
  %v553 = vunpack.c.h.b16 %v122
  %v554 = vunpack.c.l.b16 %v123
  %v555 = vunpack.c.h.b16 %v123
  %v556 = vunpack.c.l.b16 %v124
  %v557 = vunpack.c.h.b16 %v124
  %v558 = vunpack.c.l.b16 %v125
  %v559 = vunpack.c.h.b16 %v125
  %v560 = vunpack.c.l.b16 %v126
  %v561 = vunpack.c.h.b16 %v126
  %v562 = vunpack.c.l.b16 %v127
  %v563 = vunpack.c.h.b16 %v127
  %v564 = vunpack.c.l.b16 %v128
  %v565 = vunpack.c.h.b16 %v128
  %v566 = vunpack.c.l.b16 %v129
  %v567 = vunpack.c.h.b16 %v129
  %v568 = vunpack.c.l.b16 %v130
  %v569 = vunpack.c.h.b16 %v130
  %v570 = vunpack.c.l.b16 %v131
  %v571 = vunpack.c.h.b16 %v131
  %v572 = vunpack.c.l.b16 %v132
  %v573 = vunpack.c.h.b16 %v132
  %v574 = vunpack.c.l.b16 %v133
  %v575 = vunpack.c.h.b16 %v133
  %v576 = vunpack.c.l.b16 %v134
  %v577 = vunpack.c.h.b16 %v134
  %v578 = vunpack.c.l.b16 %v135
  %v579 = vunpack.c.h.b16 %v135
  %v580 = vunpack.c.l.b16 %v136
  %v581 = vunpack.c.h.b16 %v136
  %v582 = vunpack.c.l.b16 %v137
  %v583 = vunpack.c.h.b16 %v137
  %v584 = vunpack.c.l.b16 %v138
  %v585 = vunpack.c.h.b16 %v138
  %v586 = vunpack.c.l.b16 %v139
  %v587 = vunpack.c.h.b16 %v139
  %v588 = vunpack.c.l.b16 %v140
  %v589 = vunpack.c.h.b16 %v140
  %v590 = vunpack.c.l.b16 %v141
  %v591 = vunpack.c.h.b16 %v141
  %v592 = vunpack.c.l.b16 %v142
  %v593 = vunpack.c.h.b16 %v142
  %v594 = vunpack.c.l.b16 %v143
  %v595 = vunpack.c.h.b16 %v143
  %v596 = vunpack.c.l.b16 %v144
  %v597 = vunpack.c.h.b16 %v144
  %v598 = vunpack.c.l.b16 %v145
  %v599 = vunpack.c.h.b16 %v145
  %v600 = vunpack.c.l.b16 %v146
  %v601 = vunpack.c.h.b16 %v146
  %v602 = vunpack.c.l.b16 %v147
  %v603 = vunpack.c.h.b16 %v147
  %v604 = vunpack.c.l.b16 %v148
  %v605 = vunpack.c.h.b16 %v148
  %v606 = vunpack.c.l.b16 %v149
  %v607 = vunpack.c.h.b16 %v149
  %v608 = vunpack.c.l.b16 %v150
  %v609 = vunpack.c.h.b16 %v150
  %v610 = vunpack.c.l.b16 %v151
  %v611 = vunpack.c.h.b16 %v151
  %v612 = vunpack.c.l.b16 %v152
  %v613 = vunpack.c.h.b16 %v152
  %v614 = vunpack.c.l.b16 %v153
  %v615 = vunpack.c.h.b16 %v153
  %v616 = vunpack.c.l.b16 %v154
  %v617 = vunpack.c.h.b16 %v154
  %v618 = vunpack.c.l.b16 %v155
  %v619 = vunpack.c.h.b16 %v155
  %v620 = vunpack.c.l.b16 %v156
  %v621 = vunpack.c.h.b16 %v156
  %v622 = vunpack.c.l.b16 %v157
  %v623 = vunpack.c.h.b16 %v157
  %v624 = vunpack.c.l.b16 %v158
  %v625 = vunpack.c.h.b16 %v158
  %v626 = vunpack.c.l.b16 %v159
  %v627 = vunpack.c.h.b16 %v159
  %v628 = vunpack.c.l.b16 %v160
  %v629 = vunpack.c.h.b16 %v160
  %v630 = vunpack.c.l.b16 %v161
  %v631 = vunpack.c.h.b16 %v161
  %v632 = vunpack.c.l.b16 %v162
  %v633 = vunpack.c.h.b16 %v162
  %v634 = vunpack.c.l.b16 %v163
  %v635 = vunpack.c.h.b16 %v163
  %v636 = vunpack.c.l.b16 %v164
  %v637 = vunpack.c.h.b16 %v164
  %v638 = vunpack.c.l.b16 %v165
  %v639 = vunpack.c.h.b16 %v165
  %v640 = vunpack.c.l.b16 %v166
  %v641 = vunpack.c.h.b16 %v166
  %v642 = vunpack.c.l.b16 %v167
  %v643 = vunpack.c.h.b16 %v167
  %v644 = vunpack.c.l.b16 %v168
  %v645 = vunpack.c.h.b16 %v168
  %v646 = vunpack.c.l.b16 %v169
  %v647 = vunpack.c.h.b16 %v169
  %v648 = vpack.c.b16 %v362, %v360
  %v649 = vpack.c.b16 %v363, %v361
  %v650 = vpack.c.b16 %v366, %v364
  %v651 = vpack.c.b16 %v367, %v365
  %v652 = vpack.c.b16 %v370, %v368
  %v653 = vpack.c.b16 %v371, %v369
  %v654 = vpack.c.b16 %v374, %v372
  %v655 = vpack.c.b16 %v375, %v373
  %v656 = vpack.c.b16 %v378, %v376
  %v657 = vpack.c.b16 %v379, %v377
  %v658 = vpack.c.b16 %v382, %v380
  %v659 = vpack.c.b16 %v383, %v381
  %v660 = vpack.c.b16 %v386, %v384
  %v661 = vpack.c.b16 %v387, %v385
  %v662 = vpack.c.b16 %v390, %v388
  %v663 = vpack.c.b16 %v391, %v389
  %v664 = vpack.c.b16 %v394, %v392
  %v665 = vpack.c.b16 %v395, %v393
  %v666 = vpack.c.b16 %v398, %v396
  %v667 = vpack.c.b16 %v399, %v397
  %v668 = vpack.c.b16 %v402, %v400
  %v669 = vpack.c.b16 %v403, %v401
  %v670 = vpack.c.b16 %v406, %v404
  %v671 = vpack.c.b16 %v407, %v405
  %v672 = vpack.c.b16 %v410, %v408
  %v673 = vpack.c.b16 %v411, %v409
  %v674 = vpack.c.b16 %v414, %v412
  %v675 = vpack.c.b16 %v415, %v413
  %v676 = vpack.c.b16 %v418, %v416
  %v677 = vpack.c.b16 %v419, %v417
  %v678 = vpack.c.b16 %v422, %v420
  %v679 = vpack.c.b16 %v423, %v421
  %v680 = vpack.c.b16 %v426, %v424
  %v681 = vpack.c.b16 %v427, %v425
  %v682 = vpack.c.b16 %v430, %v428
  %v683 = vpack.c.b16 %v431, %v429
  %v684 = vpack.c.b16 %v434, %v432
  %v685 = vpack.c.b16 %v435, %v433
  %v686 = vpack.c.b16 %v438, %v436
  %v687 = vpack.c.b16 %v439, %v437
  %v688 = vpack.c.b16 %v442, %v440
  %v689 = vpack.c.b16 %v443, %v441
  %v690 = vpack.c.b16 %v446, %v444
  %v691 = vpack.c.b16 %v447, %v445
  %v692 = vpack.c.b16 %v450, %v448
  %v693 = vpack.c.b16 %v451, %v449
  %v694 = vpack.c.b16 %v454, %v452
  %v695 = vpack.c.b16 %v455, %v453
  %v696 = vpack.c.b16 %v458, %v456
  %v697 = vpack.c.b16 %v459, %v457
  %v698 = vpack.c.b16 %v462, %v460
  %v699 = vpack.c.b16 %v463, %v461
  %v700 = vpack.c.b16 %v466, %v464
  %v701 = vpack.c.b16 %v467, %v465
  %v702 = vpack.c.b16 %v470, %v468
  %v703 = vpack.c.b16 %v471, %v469
  %v704 = vpack.c.b16 %v474, %v472
  %v705 = vpack.c.b16 %v475, %v473
  %v706 = vpack.c.b16 %v478, %v476
  %v707 = vpack.c.b16 %v479, %v477
  %v708 = vpack.c.b16 %v482, %v480
  %v709 = vpack.c.b16 %v483, %v481
  %v710 = vpack.c.b16 %v486, %v484
  %v711 = vpack.c.b16 %v487, %v485
  %v712 = vpack.c.b16 %v490, %v488
  %v713 = vpack.c.b16 %v491, %v489
  %v714 = vpack.c.b16 %v494, %v492
  %v715 = vpack.c.b16 %v495, %v493
  %v716 = vpack.c.b16 %v498, %v496
  %v717 = vpack.c.b16 %v499, %v497
  %v718 = vpack.c.b16 %v502, %v500
  %v719 = vpack.c.b16 %v503, %v501
  %v720 = vpack.c.b16 %v506, %v504
  %v721 = vpack.c.b16 %v507, %v505
  %v722 = vpack.c.b16 %v510, %v508
  %v723 = vpack.c.b16 %v511, %v509
  %v724 = vpack.c.b16 %v514, %v512
  %v725 = vpack.c.b16 %v515, %v513
  %v726 = vpack.c.b16 %v518, %v516
  %v727 = vpack.c.b16 %v519, %v517
  %v728 = vpack.c.b16 %v522, %v520
  %v729 = vpack.c.b16 %v523, %v521
  %v730 = vpack.c.b16 %v526, %v524
  %v731 = vpack.c.b16 %v527, %v525
  %v732 = vpack.c.b16 %v530, %v528
  %v733 = vpack.c.b16 %v531, %v529
  %v734 = vpack.c.b16 %v534, %v532
  %v735 = vpack.c.b16 %v535, %v533
  %v736 = vpack.c.b16 %v538, %v536
  %v737 = vpack.c.b16 %v539, %v537
  %v738 = vpack.c.b16 %v542, %v540
  %v739 = vpack.c.b16 %v543, %v541
  %v740 = vpack.c.b16 %v546, %v544
  %v741 = vpack.c.b16 %v547, %v545
  %v742 = vpack.c.b16 %v550, %v548
  %v743 = vpack.c.b16 %v551, %v549
  %v744 = vpack.c.b16 %v554, %v552
  %v745 = vpack.c.b16 %v555, %v553
  %v746 = vpack.c.b16 %v558, %v556
  %v747 = vpack.c.b16 %v559, %v557
  %v748 = vpack.c.b16 %v562, %v560
  %v749 = vpack.c.b16 %v563, %v561
  %v750 = vpack.c.b16 %v566, %v564
  %v751 = vpack.c.b16 %v567, %v565
  %v752 = vpack.c.b16 %v570, %v568
  %v753 = vpack.c.b16 %v571, %v569
  %v754 = vpack.c.b16 %v574, %v572
  %v755 = vpack.c.b16 %v575, %v573
  %v756 = vpack.c.b16 %v578, %v576
  %v757 = vpack.c.b16 %v579, %v577
  %v758 = vpack.c.b16 %v582, %v580
  %v759 = vpack.c.b16 %v583, %v581
  %v760 = vpack.c.b16 %v586, %v584
  %v761 = vpack.c.b16 %v587, %v585
  %v762 = vpack.c.b16 %v590, %v588
  %v763 = vpack.c.b16 %v591, %v589
  %v764 = vpack.c.b16 %v594, %v592
  %v765 = vpack.c.b16 %v595, %v593
  %v766 = vpack.c.b16 %v598, %v596
  %v767 = vpack.c.b16 %v599, %v597
  %v768 = vpack.c.b16 %v602, %v600
  %v769 = vpack.c.b16 %v603, %v601
  %v770 = vpack.c.b16 %v606, %v604
  %v771 = vpack.c.b16 %v607, %v605
  %v772 = vpack.c.b16 %v610, %v608
  %v773 = vpack.c.b16 %v611, %v609
  %v774 = vpack.c.b16 %v614, %v612
  %v775 = vpack.c.b16 %v615, %v613
  %v776 = vpack.c.b16 %v618, %v616
  %v777 = vpack.c.b16 %v619, %v617
  %v778 = vpack.c.b16 %v622, %v620
  %v779 = vpack.c.b16 %v623, %v621
  %v780 = vpack.c.b16 %v626, %v624
  %v781 = vpack.c.b16 %v627, %v625
  %v782 = vpack.c.b16 %v630, %v628
  %v783 = vpack.c.b16 %v631, %v629
  %v784 = vpack.c.b16 %v634, %v632
  %v785 = vpack.c.b16 %v635, %v633
  %v786 = vpack.c.b16 %v638, %v636
  %v787 = vpack.c.b16 %v639, %v637
  %v788 = vpack.c.b16 %v642, %v640
  %v789 = vpack.c.b16 %v643, %v641
  %v790 = vpack.c.b16 %v646, %v644
  %v791 = vpack.c.b16 %v647, %v645
  %936 = vmatpush.bf16.msra.mxu0 %v662
  %937 = vmatpush.bf16.msra.mxu0 %v660
  %938 = vmatpush.bf16.msra.mxu0 %v658
  %939 = vmatpush.bf16.msra.mxu0 %v656
  %940 = vmatpush.bf16.msra.mxu0 %v654
  %941 = vmatpush.bf16.msra.mxu0 %v652
  %942 = vmatpush.bf16.msra.mxu0 %v650
  %943 = vmatpush.bf16.msra.mxu0 %v648
  %944 = vmatmul.bf16.gmra.mxu0 %v198
  %v945 = vpop.f32.mrf.mxu0
  %v946 = vadd.f32 0.0, %v945
  %v947 = vpop.f32.mrf.mxu0
  %v948 = vadd.f32 0.0, %v947
  %949 = vdwg.mxu0
  %950 = vmatpush.bf16.msra.mxu0 %v678
  %951 = vmatpush.bf16.msra.mxu0 %v676
  %952 = vmatpush.bf16.msra.mxu0 %v674
  %953 = vmatpush.bf16.msra.mxu0 %v672
  %954 = vmatpush.bf16.msra.mxu0 %v670
  %955 = vmatpush.bf16.msra.mxu0 %v668
  %956 = vmatpush.bf16.msra.mxu0 %v666
  %957 = vmatpush.bf16.msra.mxu0 %v664
  %958 = vmatmul.bf16.gmra.mxu0 %v199
  %v959 = vpop.f32.mrf.mxu0
  %v960 = vadd.f32 %v946, %v959
  %v961 = vpop.f32.mrf.mxu0
  %v962 = vadd.f32 %v948, %v961
  %963 = vdwg.mxu0
  %964 = vmatpush.bf16.msra.mxu0 %v694
  %965 = vmatpush.bf16.msra.mxu0 %v692
  %966 = vmatpush.bf16.msra.mxu0 %v690
  %967 = vmatpush.bf16.msra.mxu0 %v688
  %968 = vmatpush.bf16.msra.mxu0 %v686
  %969 = vmatpush.bf16.msra.mxu0 %v684
  %970 = vmatpush.bf16.msra.mxu0 %v682
  %971 = vmatpush.bf16.msra.mxu0 %v680
  %972 = vmatmul.bf16.gmra.mxu0 %v200
  %v973 = vpop.f32.mrf.mxu0
  %v974 = vadd.f32 %v960, %v973
  %v975 = vpop.f32.mrf.mxu0
  %v976 = vadd.f32 %v962, %v975
  %977 = vdwg.mxu0
  %978 = vmatpush.bf16.msra.mxu0 %v710
  %979 = vmatpush.bf16.msra.mxu0 %v708
  %980 = vmatpush.bf16.msra.mxu0 %v706
  %981 = vmatpush.bf16.msra.mxu0 %v704
  %982 = vmatpush.bf16.msra.mxu0 %v702
  %983 = vmatpush.bf16.msra.mxu0 %v700
  %984 = vmatpush.bf16.msra.mxu0 %v698
  %985 = vmatpush.bf16.msra.mxu0 %v696
  %986 = vmatmul.bf16.gmra.mxu0 %v201
  %v987 = vpop.f32.mrf.mxu0
  %v988 = vadd.f32 %v974, %v987
  %v989 = vpop.f32.mrf.mxu0
  %v990 = vadd.f32 %v976, %v989
  %991 = vdwg.mxu0
  %992 = vmatpush.bf16.msra.mxu0 %v726
  %993 = vmatpush.bf16.msra.mxu0 %v724
  %994 = vmatpush.bf16.msra.mxu0 %v722
  %995 = vmatpush.bf16.msra.mxu0 %v720
  %996 = vmatpush.bf16.msra.mxu0 %v718
  %997 = vmatpush.bf16.msra.mxu0 %v716
  %998 = vmatpush.bf16.msra.mxu0 %v714
  %999 = vmatpush.bf16.msra.mxu0 %v712
  %1000 = vmatmul.bf16.gmra.mxu0 %v202
  %v1001 = vpop.f32.mrf.mxu0
  %v1002 = vadd.f32 %v988, %v1001
  %v1003 = vpop.f32.mrf.mxu0
  %v1004 = vadd.f32 %v990, %v1003
  %1005 = vdwg.mxu0
  %1006 = vmatpush.bf16.msra.mxu0 %v742
  %1007 = vmatpush.bf16.msra.mxu0 %v740
  %1008 = vmatpush.bf16.msra.mxu0 %v738
  %1009 = vmatpush.bf16.msra.mxu0 %v736
  %1010 = vmatpush.bf16.msra.mxu0 %v734
  %1011 = vmatpush.bf16.msra.mxu0 %v732
  %1012 = vmatpush.bf16.msra.mxu0 %v730
  %1013 = vmatpush.bf16.msra.mxu0 %v728
  %1014 = vmatmul.bf16.gmra.mxu0 %v203
  %v1015 = vpop.f32.mrf.mxu0
  %v1016 = vadd.f32 %v1002, %v1015
  %v1017 = vpop.f32.mrf.mxu0
  %v1018 = vadd.f32 %v1004, %v1017
  %1019 = vdwg.mxu0
  %1020 = vmatpush.bf16.msra.mxu0 %v758
  %1021 = vmatpush.bf16.msra.mxu0 %v756
  %1022 = vmatpush.bf16.msra.mxu0 %v754
  %1023 = vmatpush.bf16.msra.mxu0 %v752
  %1024 = vmatpush.bf16.msra.mxu0 %v750
  %1025 = vmatpush.bf16.msra.mxu0 %v748
  %1026 = vmatpush.bf16.msra.mxu0 %v746
  %1027 = vmatpush.bf16.msra.mxu0 %v744
  %1028 = vmatmul.bf16.gmra.mxu0 %v204
  %v1029 = vpop.f32.mrf.mxu0
  %v1030 = vadd.f32 %v1016, %v1029
  %v1031 = vpop.f32.mrf.mxu0
  %v1032 = vadd.f32 %v1018, %v1031
  %1033 = vdwg.mxu0
  %1034 = vmatpush.bf16.msra.mxu0 %v774
  %1035 = vmatpush.bf16.msra.mxu0 %v772
  %1036 = vmatpush.bf16.msra.mxu0 %v770
  %1037 = vmatpush.bf16.msra.mxu0 %v768
  %1038 = vmatpush.bf16.msra.mxu0 %v766
  %1039 = vmatpush.bf16.msra.mxu0 %v764
  %1040 = vmatpush.bf16.msra.mxu0 %v762
  %1041 = vmatpush.bf16.msra.mxu0 %v760
  %1042 = vmatmul.bf16.gmra.mxu0 %v205
  %v1043 = vpop.f32.mrf.mxu0
  %v1044 = vadd.f32 %v1030, %v1043
  %v1045 = vpop.f32.mrf.mxu0
  %v1046 = vadd.f32 %v1032, %v1045
  %1047 = vdwg.mxu0
  %1048 = vmatpush.bf16.msra.mxu0 %v790
  %1049 = vmatpush.bf16.msra.mxu0 %v788
  %1050 = vmatpush.bf16.msra.mxu0 %v786
  %1051 = vmatpush.bf16.msra.mxu0 %v784
  %1052 = vmatpush.bf16.msra.mxu0 %v782
  %1053 = vmatpush.bf16.msra.mxu0 %v780
  %1054 = vmatpush.bf16.msra.mxu0 %v778
  %1055 = vmatpush.bf16.msra.mxu0 %v776
  %1056 = vmatmul.bf16.gmra.mxu0 %v206
  %v1057 = vpop.f32.mrf.mxu0
  %v1058 = vadd.f32 %v1044, %v1057
  %v1059 = vpop.f32.mrf.mxu0
  %v1060 = vadd.f32 %v1046, %v1059
  %1061 = vdwg.mxu0
  %1062 = vmatpush.bf16.msra.mxu0 %v663
  %1063 = vmatpush.bf16.msra.mxu0 %v661
  %1064 = vmatpush.bf16.msra.mxu0 %v659
  %1065 = vmatpush.bf16.msra.mxu0 %v657
  %1066 = vmatpush.bf16.msra.mxu0 %v655
  %1067 = vmatpush.bf16.msra.mxu0 %v653
  %1068 = vmatpush.bf16.msra.mxu0 %v651
  %1069 = vmatpush.bf16.msra.mxu0 %v649
  %1070 = vmatmul.bf16.gmra.mxu0 %v198
  %v1071 = vpop.f32.mrf.mxu0
  %v1072 = vadd.f32 0.0, %v1071
  %v1073 = vpop.f32.mrf.mxu0
  %v1074 = vadd.f32 0.0, %v1073
  %1075 = vdwg.mxu0
  %1076 = vmatpush.bf16.msra.mxu0 %v679
  %1077 = vmatpush.bf16.msra.mxu0 %v677
  %1078 = vmatpush.bf16.msra.mxu0 %v675
  %1079 = vmatpush.bf16.msra.mxu0 %v673
  %1080 = vmatpush.bf16.msra.mxu0 %v671
  %1081 = vmatpush.bf16.msra.mxu0 %v669
  %1082 = vmatpush.bf16.msra.mxu0 %v667
  %1083 = vmatpush.bf16.msra.mxu0 %v665
  %1084 = vmatmul.bf16.gmra.mxu0 %v199
  %v1085 = vpop.f32.mrf.mxu0
  %v1086 = vadd.f32 %v1072, %v1085
  %v1087 = vpop.f32.mrf.mxu0
  %v1088 = vadd.f32 %v1074, %v1087
  %1089 = vdwg.mxu0
  %1090 = vmatpush.bf16.msra.mxu0 %v695
  %1091 = vmatpush.bf16.msra.mxu0 %v693
  %1092 = vmatpush.bf16.msra.mxu0 %v691
  %1093 = vmatpush.bf16.msra.mxu0 %v689
  %1094 = vmatpush.bf16.msra.mxu0 %v687
  %1095 = vmatpush.bf16.msra.mxu0 %v685
  %1096 = vmatpush.bf16.msra.mxu0 %v683
  %1097 = vmatpush.bf16.msra.mxu0 %v681
  %1098 = vmatmul.bf16.gmra.mxu0 %v200
  %v1099 = vpop.f32.mrf.mxu0
  %v1100 = vadd.f32 %v1086, %v1099
  %v1101 = vpop.f32.mrf.mxu0
  %v1102 = vadd.f32 %v1088, %v1101
  %1103 = vdwg.mxu0
  %1104 = vmatpush.bf16.msra.mxu0 %v711
  %1105 = vmatpush.bf16.msra.mxu0 %v709
  %1106 = vmatpush.bf16.msra.mxu0 %v707
  %1107 = vmatpush.bf16.msra.mxu0 %v705
  %1108 = vmatpush.bf16.msra.mxu0 %v703
  %1109 = vmatpush.bf16.msra.mxu0 %v701
  %1110 = vmatpush.bf16.msra.mxu0 %v699
  %1111 = vmatpush.bf16.msra.mxu0 %v697
  %1112 = vmatmul.bf16.gmra.mxu0 %v201
  %v1113 = vpop.f32.mrf.mxu0
  %v1114 = vadd.f32 %v1100, %v1113
  %v1115 = vpop.f32.mrf.mxu0
  %v1116 = vadd.f32 %v1102, %v1115
  %1117 = vdwg.mxu0
  %1118 = vmatpush.bf16.msra.mxu0 %v727
  %1119 = vmatpush.bf16.msra.mxu0 %v725
  %1120 = vmatpush.bf16.msra.mxu0 %v723
  %1121 = vmatpush.bf16.msra.mxu0 %v721
  %1122 = vmatpush.bf16.msra.mxu0 %v719
  %1123 = vmatpush.bf16.msra.mxu0 %v717
  %1124 = vmatpush.bf16.msra.mxu0 %v715
  %1125 = vmatpush.bf16.msra.mxu0 %v713
  %1126 = vmatmul.bf16.gmra.mxu0 %v202
  %v1127 = vpop.f32.mrf.mxu0
  %v1128 = vadd.f32 %v1114, %v1127
  %v1129 = vpop.f32.mrf.mxu0
  %v1130 = vadd.f32 %v1116, %v1129
  %1131 = vdwg.mxu0
  %1132 = vmatpush.bf16.msra.mxu0 %v743
  %1133 = vmatpush.bf16.msra.mxu0 %v741
  %1134 = vmatpush.bf16.msra.mxu0 %v739
  %1135 = vmatpush.bf16.msra.mxu0 %v737
  %1136 = vmatpush.bf16.msra.mxu0 %v735
  %1137 = vmatpush.bf16.msra.mxu0 %v733
  %1138 = vmatpush.bf16.msra.mxu0 %v731
  %1139 = vmatpush.bf16.msra.mxu0 %v729
  %1140 = vmatmul.bf16.gmra.mxu0 %v203
  %v1141 = vpop.f32.mrf.mxu0
  %v1142 = vadd.f32 %v1128, %v1141
  %v1143 = vpop.f32.mrf.mxu0
  %v1144 = vadd.f32 %v1130, %v1143
  %1145 = vdwg.mxu0
  %1146 = vmatpush.bf16.msra.mxu0 %v759
  %1147 = vmatpush.bf16.msra.mxu0 %v757
  %1148 = vmatpush.bf16.msra.mxu0 %v755
  %1149 = vmatpush.bf16.msra.mxu0 %v753
  %1150 = vmatpush.bf16.msra.mxu0 %v751
  %1151 = vmatpush.bf16.msra.mxu0 %v749
  %1152 = vmatpush.bf16.msra.mxu0 %v747
  %1153 = vmatpush.bf16.msra.mxu0 %v745
  %1154 = vmatmul.bf16.gmra.mxu0 %v204
  %v1155 = vpop.f32.mrf.mxu0
  %v1156 = vadd.f32 %v1142, %v1155
  %v1157 = vpop.f32.mrf.mxu0
  %v1158 = vadd.f32 %v1144, %v1157
  %1159 = vdwg.mxu0
  %1160 = vmatpush.bf16.msra.mxu0 %v775
  %1161 = vmatpush.bf16.msra.mxu0 %v773
  %1162 = vmatpush.bf16.msra.mxu0 %v771
  %1163 = vmatpush.bf16.msra.mxu0 %v769
  %1164 = vmatpush.bf16.msra.mxu0 %v767
  %1165 = vmatpush.bf16.msra.mxu0 %v765
  %1166 = vmatpush.bf16.msra.mxu0 %v763
  %1167 = vmatpush.bf16.msra.mxu0 %v761
  %1168 = vmatmul.bf16.gmra.mxu0 %v205
  %v1169 = vpop.f32.mrf.mxu0
  %v1170 = vadd.f32 %v1156, %v1169
  %v1171 = vpop.f32.mrf.mxu0
  %v1172 = vadd.f32 %v1158, %v1171
  %1173 = vdwg.mxu0
  %1174 = vmatpush.bf16.msra.mxu0 %v791
  %1175 = vmatpush.bf16.msra.mxu0 %v789
  %1176 = vmatpush.bf16.msra.mxu0 %v787
  %1177 = vmatpush.bf16.msra.mxu0 %v785
  %1178 = vmatpush.bf16.msra.mxu0 %v783
  %1179 = vmatpush.bf16.msra.mxu0 %v781
  %1180 = vmatpush.bf16.msra.mxu0 %v779
  %1181 = vmatpush.bf16.msra.mxu0 %v777
  %1182 = vmatmul.bf16.gmra.mxu0 %v206
  %v1183 = vpop.f32.mrf.mxu0
  %v1184 = vadd.f32 %v1170, %v1183
  %v1185 = vpop.f32.mrf.mxu0
  %v1186 = vadd.f32 %v1172, %v1185
  %1187 = vdwg.mxu0
  %v1188 = vld [vmem:[%s2] ss:$2 sm:$0x3]
  %v1190 = vperm.slane %v1188, 0
  %v1191 = vperm.slane %v1188, 1
  %v1194 = vmul.f32 %v1058, %v1190
  %v1195 = vmul.f32 %v1184, %v1191
  %v1196 = vmul.f32 %v1060, %v1190
  %v1197 = vmul.f32 %v1186, %v1191
  %s1198 = scalar_lea.vmem %s2, 1
  %v1199 = vld [vmem:[%s1198] ss:$2 sm:$0x3]
  %v1201 = vperm.slane %v1199, 0
  %v1202 = vperm.slane %v1199, 1
  %v1205 = vadd.f32 %v1194, %v1201
  %v1206 = vadd.f32 %v1195, %v1202
  %v1207 = vadd.f32 %v1196, %v1201
  %v1208 = vadd.f32 %v1197, %v1202
  %v1209 = vmax.f32 %v1205, 0.0
  %v1210 = vmax.f32 %v1207, 0.0
  %v1211 = vpack.c.bf16 %v1209, %v1209
  %v1212 = vpack.c.bf16 %v1210, %v1210
  %1213 = vst [vmem:[%s3] sm:$0xf] %v1211
  %1214 = vst [vmem:[%s3 + $0x4] sm:$0xf] %v1212
  %v1215 = vpack.c.bf16 %v1206, %v1206
  %v1216 = vpack.c.bf16 %v1208, %v1208
  %1217 = vst [vmem:[%s4] sm:$0xf] %v1215
  %1218 = vst [vmem:[%s4 + $0x4] sm:$0xf] %v1216
  // Predicated region
  $region14: #{restnet18_forward.38} parent=0 // pred_check
    _
  $region15: #{restnet18_forward.38} parent=0 // pred_check_branch
    %1220 = sbr.rel (0) target = $region17
  $region16: #{restnet18_forward.38} parent=0 // pred_region
    _
  $region17: #{restnet18_forward.38} parent=0 // pred_fallthru
    _
  // Predicated region
  $region18: #{restnet18_forward.38} parent=0 // pred_check
    _
  $region19: #{restnet18_forward.38} parent=0 // pred_check_branch
    %1222 = sbr.rel (0) target = $region21
  $region20: #{restnet18_forward.38} parent=0 // pred_region
    _
  $region21: #{restnet18_forward.38} parent=0 // pred_fallthru
    _
  // Predicated region
  $region22: #{restnet18_forward.38} parent=0 // pred_check
    _
  $region23: #{restnet18_forward.38} parent=0 // pred_check_branch
    %1224 = sbr.rel (0) target = $region25
  $region24: #{restnet18_forward.38} parent=0 // pred_region
    _
  $region25: #{restnet18_forward.38} parent=0 // pred_fallthru
    _
  // Predicated region
  $region26: #{restnet18_forward.38} parent=0 // pred_check
    _
  $region27: #{restnet18_forward.38} parent=0 // pred_check_branch
    %1226 = sbr.rel (0) target = $region29
  $region28: #{restnet18_forward.38} parent=0 // pred_region
    _
  $region29: #{restnet18_forward.38} parent=0 // pred_fallthru
    _

</llo_original>
